<compile_context>
chip_gen: v5e
topology: v5e:2x2
jax: 0.10.0
libtpu: 0.0.40
codegen_flags: <defaults>
</compile_context>

<pallas_src>
import jax
import jax.numpy as jnp
from jax.experimental import pallas as pl
from jax.experimental.pallas import tpu as pltpu

_HIDDEN = 32        # GeoGraph(hidden=32, geo=False, training=False)
_N_PER_GRAPH = 16   # nodes per graph in the demo batch
_C_IN = 64

# Row offsets inside the 128-lane bf16 weight slab (all 16-aligned for bf16 sublane tiles).
_R_W1, _R_W2, _R_W3, _R_WL, _R_WP = 0, 64, 96, 128, 144
_W_ROWS, _W_COLS = 160, 128


def _geograph_kernel(src_ref, dst_ref, x_ref, w_ref, b_ref, out_ref):
    f32, bf16 = jnp.float32, jnp.bfloat16
    m = x_ref.shape[0]            # GB*N node rows in this graph block
    ecols = src_ref.shape[-1]     # GB*E edge columns in this graph block

    # ---- edge-membership masks straight from the block-local integer indices ----
    node_iota = jax.lax.broadcasted_iota(jnp.int32, (m, ecols), 0)
    m_src = node_iota == src_ref[0]                       # (m, ecols) bool
    m_dst = node_iota == dst_ref[0]
    m_src_bf = m_src.astype(bf16)                         # 0/1 exact in bf16 -> MXU operand
    m_dst_bf = m_dst.astype(bf16)

    # ---- integer-valued adjacency (exact in bf16); mean weights applied later in f32 ----
    counts = jnp.sum(m_dst.astype(f32), axis=1, keepdims=True)            # (m,1) in-degree
    deg_inv = jnp.where(counts > 0.0, 1.0 / jnp.maximum(counts, 1.0), 0.0)
    adj_bf = jax.lax.dot_general(                                          # adj[i,j] = #edges j->i
        m_dst_bf, m_src_bf, (((1,), (1,)), ((), ())),
        preferred_element_type=f32).astype(bf16)                           # (m,m), block-diagonal

    def gconv(h_bf, w_rows, bias, c_out):
        # GraphConv(aggr='mean'): h@W_root + (1/deg)*(adj@(h@W_rel)) + b, fused [root|rel] W.
        t = jnp.dot(h_bf, w_rows, preferred_element_type=f32)             # (m, 128)
        agg = jnp.dot(adj_bf, t[:, c_out:2 * c_out].astype(bf16),
                      preferred_element_type=f32)                          # (m, c_out)
        out = jnp.maximum(t[:, :c_out] + deg_inv * agg + bias, 0.0)        # f32 relu
        return out.astype(bf16)

    h = gconv(x_ref[...], w_ref[_R_W1:_R_W1 + 64, :], b_ref[0:1, 0:_HIDDEN], _HIDDEN)  # 64->32
    h = gconv(h, w_ref[_R_W2:_R_W2 + 32, :], b_ref[1:2, 0:32], 32)                     # 32->32
    h = gconv(h, w_ref[_R_W3:_R_W3 + 32, :], b_ref[2:3, 0:16], 16)                     # 32->16

    # lin1 + relu; F.dropout(p=0.2, training=False) is the identity in eval mode.
    t = jnp.dot(h, w_ref[_R_WL:_R_WL + 16, :], preferred_element_type=f32)
    h = jnp.maximum(t[:, :16] + b_ref[3:4, 0:16], 0.0)                                 # (m,16) f32

    # ---- EdgePooling raw scores: node projections on the MXU, exact one-hot gather in f32 ----
    p = jnp.dot(h.astype(bf16), w_ref[_R_WP:_R_WP + 16, :],
                preferred_element_type=f32)                 # (m,128): lane0=p_src, lane1=p_dst
    contrib = (jnp.where(m_src, p[:, 0:1], 0.0)             # p_src[src[e]]
               + jnp.where(m_dst, p[:, 1:2], 0.0))          # + p_dst[dst[e]]
    raw = jnp.sum(contrib, axis=0, keepdims=True) + b_ref[4:5, 0:1]       # (1, ecols)

    # ---- segment softmax over edges grouped by dst node: O(N*E), mask BEFORE exp ----
    neg = jnp.float32(-1e30)
    masked = jnp.where(m_dst, raw, neg)                                   # (m, ecols)
    seg_max = jnp.max(masked, axis=1, keepdims=True)                      # (m,1) per-dst max
    # Rows with no incoming edge evaluate exp(0)=1 below; the where() zeroes them (benign).
    exp_in = jnp.where(m_dst, jnp.exp(masked - seg_max), 0.0)
    denom_node = jnp.sum(exp_in, axis=1, keepdims=True)                   # (m,1) per-dst sum
    num_edge = jnp.sum(exp_in, axis=0, keepdims=True)                     # (1,ecols)
    den_edge = jnp.sum(jnp.where(m_dst, denom_node, 0.0), axis=0, keepdims=True)
    out_ref[0] = num_edge / den_edge + 0.5                                # lane-dense (1, GB*E)


def geograph_forward(x, edge_index, params, *, graphs_per_block=16):
    """x: (B, N, 64) node features; edge_index: (B, 2, E) per-graph local node indices.
    Returns (B, E) EdgePooling edge scores (the only output GeoGraph.forward returns)."""
    b, n, c = x.shape
    e = edge_index.shape[-1]
    gb = graphs_per_block
    pad = (-b) % gb
    if pad:
        x = jnp.concatenate([x, jnp.zeros((pad, n, c), x.dtype)], axis=0)
        edge_index = jnp.concatenate(
            [edge_index, jnp.zeros((pad, 2, e), edge_index.dtype)], axis=0)
    bp_ = b + pad
    nblk = bp_ // gb

    # Globalize node indices within each block of gb graphs, flatten edges per block.
    offs = (jnp.arange(bp_, dtype=jnp.int32) % gb) * n
    src = (edge_index[:, 0, :].astype(jnp.int32) + offs[:, None]).reshape(nblk, 1, gb * e)
    dst = (edge_index[:, 1, :].astype(jnp.int32) + offs[:, None]).reshape(nblk, 1, gb * e)
    x_flat = x.reshape(bp_ * n, c).astype(jnp.bfloat16)      # bf16 once in the wrapper

    out = pl.pallas_call(
        _geograph_kernel,
        out_shape=jax.ShapeDtypeStruct((nblk, 1, gb * e), jnp.float32),
        grid=(nblk,),
        in_specs=[
            pl.BlockSpec((1, 1, gb * e), lambda i: (i, 0, 0)),          # src (globalized)
            pl.BlockSpec((1, 1, gb * e), lambda i: (i, 0, 0)),          # dst (globalized)
            pl.BlockSpec((gb * n, c), lambda i: (i, 0)),                # node features (bf16)
            pl.BlockSpec((_W_ROWS, _W_COLS), lambda i: (0, 0)),         # packed bf16 weights
            pl.BlockSpec((8, 128), lambda i: (0, 0)),                   # packed f32 biases
        ],
        out_specs=pl.BlockSpec((1, 1, gb * e), lambda i: (i, 0, 0)),
        compiler_params=pltpu.CompilerParams(
            dimension_semantics=("parallel",)),   # second TensorCore on v7x; no-op v5e/v6e
    )(src, dst, x_flat, params["w_slab"], params["b_slab"])
    return out.reshape(bp_, e)[:b]


def _linear_init(key, fan_in, fan_out, with_bias=True):
    # Deterministic kaiming-uniform-ish init (torch Linear bound 1/sqrt(fan_in)).
    kw, kb = jax.random.split(key)
    bound = 1.0 / (fan_in ** 0.5)
    w = jax.random.uniform(kw, (fan_in, fan_out), jnp.float32, -bound, bound)
    if not with_bias:
        return w
    bvec = jax.random.uniform(kb, (1, fan_out), jnp.float32, -bound, bound)
    return w, bvec


def make_params(key, in_ch=_C_IN, hidden=_HIDDEN):
    assert in_ch == 64 and hidden == 32, "slab layout is specialized to the reference sizes"
    ks = jax.random.split(key, 8)
    w1_rel, b1 = _linear_init(ks[0], in_ch, hidden)
    w1_root = _linear_init(ks[1], in_ch, hidden, with_bias=False)
    w2_rel, b2 = _linear_init(ks[2], hidden, 32)
    w2_root = _linear_init(ks[3], hidden, 32, with_bias=False)
    w3_rel, b3 = _linear_init(ks[4], 32, 16)
    w3_root = _linear_init(ks[5], 32, 16, with_bias=False)
    w_lin, b_lin = _linear_init(ks[6], 16, 16)
    wp, bp = _linear_init(ks[7], 2 * 16, 1)               # EdgePooling: Linear(2*16, 1)

    # 128-lane bf16 slab: every block starts at lane 0 with a 16-aligned row offset.
    slab = jnp.zeros((_W_ROWS, _W_COLS), jnp.float32)
    slab = slab.at[_R_W1:_R_W1 + 64, 0:32].set(w1_root)
    slab = slab.at[_R_W1:_R_W1 + 64, 32:64].set(w1_rel)
    slab = slab.at[_R_W2:_R_W2 + 32, 0:32].set(w2_root)
    slab = slab.at[_R_W2:_R_W2 + 32, 32:64].set(w2_rel)
    slab = slab.at[_R_W3:_R_W3 + 32, 0:16].set(w3_root)
    slab = slab.at[_R_W3:_R_W3 + 32, 16:32].set(w3_rel)
    slab = slab.at[_R_WL:_R_WL + 16, 0:16].set(w_lin)
    slab = slab.at[_R_WP:_R_WP + 16, 0].set(wp[:16, 0])    # EdgePooling src half
    slab = slab.at[_R_WP:_R_WP + 16, 1].set(wp[16:, 0])    # EdgePooling dst half

    # (8,128) f32 bias block: one bias per sublane row, starting at lane 0.
    bias = jnp.zeros((8, 128), jnp.float32)
    bias = bias.at[0, 0:hidden].set(b1[0])
    bias = bias.at[1, 0:32].set(b2[0])
    bias = bias.at[2, 0:16].set(b3[0])
    bias = bias.at[3, 0:16].set(b_lin[0])
    bias = bias.at[4, 0].set(bp[0, 0])

    ref = dict(w1_root=w1_root, w1_rel=w1_rel, b1=b1,
               w2_root=w2_root, w2_rel=w2_rel, b2=b2,
               w3_root=w3_root, w3_rel=w3_rel, b3=b3,
               w_lin=w_lin, b_lin=b_lin, wp=wp, bp=bp)
    return {"w_slab": slab.astype(jnp.bfloat16), "b_slab": bias, "ref": ref}


def _reference_forward(x, edge_index, ref):
    """Pure-JAX f32 reference of the eval-mode GeoGraph forward (per-graph, vmapped)."""
    n = x.shape[1]

    def one(xb, ei):
        src, dst = ei[0], ei[1]
        node = jnp.arange(n)
        ms = (node[:, None] == src[None, :]).astype(jnp.float32)
        md = (node[:, None] == dst[None, :]).astype(jnp.float32)
        deg = md.sum(axis=1, keepdims=True)
        deg_inv = jnp.where(deg > 0, 1.0 / jnp.maximum(deg, 1.0), 0.0)
        adj = md @ ms.T

        def gconv(h, w_root, w_rel, b):
            return jax.nn.relu(h @ w_root + deg_inv * (adj @ (h @ w_rel)) + b)

        h = gconv(xb, ref["w1_root"], ref["w1_rel"], ref["b1"])
        h = gconv(h, ref["w2_root"], ref["w2_rel"], ref["b2"])
        h = gconv(h, ref["w3_root"], ref["w3_rel"], ref["b3"])
        h = jax.nn.relu(h @ ref["w_lin"] + ref["b_lin"])
        raw = h[src] @ ref["wp"][:16, 0] + h[dst] @ ref["wp"][16:, 0] + ref["bp"][0, 0]
        seg_max = jax.ops.segment_max(raw, dst, num_segments=n)
        num = jnp.exp(raw - seg_max[dst])
        den = jax.ops.segment_sum(num, dst, num_segments=n)
        return num / den[dst] + 0.5

    return jax.vmap(one)(x, edge_index)


if __name__ == "__main__":
    key = jax.random.PRNGKey(0)
    k_x, k_e, k_p = jax.random.split(key, 3)

    B, N, E = 32, _N_PER_GRAPH, 32
    x = jax.random.normal(k_x, (B, N, _C_IN), jnp.float32)
    edge_index = jax.random.randint(k_e, (B, 2, E), 0, N, dtype=jnp.int32)
    params = make_params(k_p)

    scores = geograph_forward(x, edge_index, params, graphs_per_block=16)
    jax.block_until_ready(scores)
    assert scores.shape == (B, E)
    assert bool(jnp.all(jnp.isfinite(scores)))

    ref_scores = _reference_forward(x, edge_index, params["ref"])
    max_err = float(jnp.max(jnp.abs(scores - ref_scores)))
    assert max_err < 0.08, f"max |err| vs f32 reference = {max_err}"
    print("KERNEL_OK")
</pallas_src>

<mosaic_0001>
module attributes {stable_mosaic.version = 11 : i64} {
  func.func @_geograph_kernel(%arg0: i32, %arg1: memref<1x1x512xi32, #tpu.memory_space<vmem>>, %arg2: memref<1x1x512xi32, #tpu.memory_space<vmem>>, %arg3: memref<256x64xbf16, #tpu.memory_space<vmem>>, %arg4: memref<160x128xbf16, #tpu.memory_space<vmem>>, %arg5: memref<8x128xf32, #tpu.memory_space<vmem>>, %arg6: memref<1x1x512xf32, #tpu.memory_space<vmem>>) attributes {dimension_semantics = [#tpu.dimension_semantics<parallel>], iteration_bounds = array<i64: 2>, scalar_prefetch = 0 : i64, scratch_operands = 0 : i64, tpu.core_type = #tpu.core_type<tc>, window_params = [{transform_indices = @transform_0, window_bounds = array<i64: 1, 1, 512>}, {transform_indices = @transform_1, window_bounds = array<i64: 1, 1, 512>}, {transform_indices = @transform_2, window_bounds = array<i64: 256, 64>}, {pipeline_mode = #tpu.pipeline_mode<synchronous>, transform_indices = @transform_3, window_bounds = array<i64: 160, 128>}, {pipeline_mode = #tpu.pipeline_mode<synchronous>, transform_indices = @transform_4, window_bounds = array<i64: 8, 128>}, {transform_indices = @transform_5, window_bounds = array<i64: 1, 1, 512>}]} {
    %0 = tpu.iota {dimensions = array<i32: 0>} : vector<256x512xi32>
    %c0 = arith.constant 0 : index
    %c0_0 = arith.constant 0 : index
    %c0_1 = arith.constant 0 : index
    %1 = vector.load %arg1[%c0, %c0_0, %c0_1] : memref<1x1x512xi32, #tpu.memory_space<vmem>>, vector<1x1x512xi32>
    %2 = vector.shape_cast %1 : vector<1x1x512xi32> to vector<1x512xi32>
    %3 = vector.broadcast %2 : vector<1x512xi32> to vector<256x512xi32>
    %4 = arith.cmpi eq, %0, %3 : vector<256x512xi32>
    %c0_2 = arith.constant 0 : index
    %c0_3 = arith.constant 0 : index
    %c0_4 = arith.constant 0 : index
    %5 = vector.load %arg2[%c0_2, %c0_3, %c0_4] : memref<1x1x512xi32, #tpu.memory_space<vmem>>, vector<1x1x512xi32>
    %6 = vector.shape_cast %5 : vector<1x1x512xi32> to vector<1x512xi32>
    %7 = vector.broadcast %6 : vector<1x512xi32> to vector<256x512xi32>
    %8 = arith.cmpi eq, %0, %7 : vector<256x512xi32>
    %9 = arith.extui %4 : vector<256x512xi1> to vector<256x512xi32>
    %10 = arith.sitofp %9 : vector<256x512xi32> to vector<256x512xf32>
    %11 = arith.truncf %10 : vector<256x512xf32> to vector<256x512xbf16>
    %12 = arith.extui %8 : vector<256x512xi1> to vector<256x512xi32>
    %13 = arith.sitofp %12 : vector<256x512xi32> to vector<256x512xf32>
    %14 = arith.truncf %13 : vector<256x512xf32> to vector<256x512xbf16>
    %15 = arith.extui %8 : vector<256x512xi1> to vector<256x512xi32>
    %16 = arith.sitofp %15 : vector<256x512xi32> to vector<256x512xf32>
    %cst = arith.constant dense<0.000000e+00> : vector<256xf32>
    %17 = vector.multi_reduction <add>, %16, %cst [1] : vector<256x512xf32> to vector<256xf32>
    %18 = vector.shape_cast %17 : vector<256xf32> to vector<256x1xf32>
    %cst_5 = arith.constant 0.000000e+00 : f32
    %19 = vector.broadcast %cst_5 : f32 to vector<256x1xf32>
    %20 = arith.cmpf ogt, %18, %19 : vector<256x1xf32>
    %cst_6 = arith.constant 1.000000e+00 : f32
    %21 = vector.broadcast %cst_6 : f32 to vector<256x1xf32>
    %22 = arith.maximumf %18, %21 : vector<256x1xf32>
    %cst_7 = arith.constant 1.000000e+00 : f32
    %23 = vector.broadcast %cst_7 : f32 to vector<256x1xf32>
    %24 = arith.divf %23, %22 : vector<256x1xf32>
    %cst_8 = arith.constant 0.000000e+00 : f32
    %25 = vector.broadcast %cst_8 : f32 to vector<256x1xf32>
    %26 = arith.select %20, %24, %25 : vector<256x1xi1>, vector<256x1xf32>
    %cst_9 = arith.constant dense<0.000000e+00> : vector<256x256xf32>
    %27 = tpu.matmul %14, %11, %cst_9 {dimension_numbers = #tpu.dot_dimension_numbers<[1], [1], [0], [0], [0, 0, 1, 0], [], []>} : vector<256x512xbf16>, vector<256x512xbf16>, vector<256x256xf32> -> vector<256x256xf32>
    %28 = arith.truncf %27 : vector<256x256xf32> to vector<256x256xbf16>
    %c0_10 = arith.constant 0 : index
    %c0_11 = arith.constant 0 : index
    %29 = vector.load %arg3[%c0_10, %c0_11] : memref<256x64xbf16, #tpu.memory_space<vmem>>, vector<256x64xbf16>
    %c0_12 = arith.constant 0 : index
    %c0_13 = arith.constant 0 : index
    %30 = vector.load %arg4[%c0_12, %c0_13] : memref<160x128xbf16, #tpu.memory_space<vmem>>, vector<64x128xbf16>
    %c0_14 = arith.constant 0 : index
    %c0_15 = arith.constant 0 : index
    %31 = vector.load %arg5[%c0_14, %c0_15] : memref<8x128xf32, #tpu.memory_space<vmem>>, vector<1x32xf32>
    %cst_16 = arith.constant dense<0.000000e+00> : vector<256x128xf32>
    %32 = tpu.matmul %29, %30, %cst_16 {dimension_numbers = #tpu.dot_dimension_numbers<[1], [0], [0], [1], [0, 0, 1, 1], [], []>} : vector<256x64xbf16>, vector<64x128xbf16>, vector<256x128xf32> -> vector<256x128xf32>
    %33 = vector.extract_strided_slice %32 {offsets = [0, 32], sizes = [256, 32], strides = [1, 1]} : vector<256x128xf32> to vector<256x32xf32>
    %34 = arith.truncf %33 : vector<256x32xf32> to vector<256x32xbf16>
    %cst_17 = arith.constant dense<0.000000e+00> : vector<256x32xf32>
    %35 = tpu.matmul %28, %34, %cst_17 {dimension_numbers = #tpu.dot_dimension_numbers<[1], [0], [0], [1], [0, 0, 1, 1], [], []>} : vector<256x256xbf16>, vector<256x32xbf16>, vector<256x32xf32> -> vector<256x32xf32>
    %36 = vector.extract_strided_slice %32 {offsets = [0, 0], sizes = [256, 32], strides = [1, 1]} : vector<256x128xf32> to vector<256x32xf32>
    %37 = vector.broadcast %26 : vector<256x1xf32> to vector<256x32xf32>
    %38 = arith.mulf %37, %35 : vector<256x32xf32>
    %39 = arith.addf %36, %38 : vector<256x32xf32>
    %40 = vector.broadcast %31 : vector<1x32xf32> to vector<256x32xf32>
    %41 = arith.addf %39, %40 : vector<256x32xf32>
    %cst_18 = arith.constant 0.000000e+00 : f32
    %42 = vector.broadcast %cst_18 : f32 to vector<256x32xf32>
    %43 = arith.maximumf %41, %42 : vector<256x32xf32>
    %44 = arith.truncf %43 : vector<256x32xf32> to vector<256x32xbf16>
    %c64 = arith.constant 64 : index
    %c0_19 = arith.constant 0 : index
    %45 = vector.load %arg4[%c64, %c0_19] : memref<160x128xbf16, #tpu.memory_space<vmem>>, vector<32x128xbf16>
    %c1 = arith.constant 1 : index
    %c0_20 = arith.constant 0 : index
    %46 = vector.load %arg5[%c1, %c0_20] : memref<8x128xf32, #tpu.memory_space<vmem>>, vector<1x32xf32>
    %cst_21 = arith.constant dense<0.000000e+00> : vector<256x128xf32>
    %47 = tpu.matmul %44, %45, %cst_21 {dimension_numbers = #tpu.dot_dimension_numbers<[1], [0], [0], [1], [0, 0, 1, 1], [], []>} : vector<256x32xbf16>, vector<32x128xbf16>, vector<256x128xf32> -> vector<256x128xf32>
    %48 = vector.extract_strided_slice %47 {offsets = [0, 32], sizes = [256, 32], strides = [1, 1]} : vector<256x128xf32> to vector<256x32xf32>
    %49 = arith.truncf %48 : vector<256x32xf32> to vector<256x32xbf16>
    %cst_22 = arith.constant dense<0.000000e+00> : vector<256x32xf32>
    %50 = tpu.matmul %28, %49, %cst_22 {dimension_numbers = #tpu.dot_dimension_numbers<[1], [0], [0], [1], [0, 0, 1, 1], [], []>} : vector<256x256xbf16>, vector<256x32xbf16>, vector<256x32xf32> -> vector<256x32xf32>
    %51 = vector.extract_strided_slice %47 {offsets = [0, 0], sizes = [256, 32], strides = [1, 1]} : vector<256x128xf32> to vector<256x32xf32>
    %52 = vector.broadcast %26 : vector<256x1xf32> to vector<256x32xf32>
    %53 = arith.mulf %52, %50 : vector<256x32xf32>
    %54 = arith.addf %51, %53 : vector<256x32xf32>
    %55 = vector.broadcast %46 : vector<1x32xf32> to vector<256x32xf32>
    %56 = arith.addf %54, %55 : vector<256x32xf32>
    %cst_23 = arith.constant 0.000000e+00 : f32
    %57 = vector.broadcast %cst_23 : f32 to vector<256x32xf32>
    %58 = arith.maximumf %56, %57 : vector<256x32xf32>
    %59 = arith.truncf %58 : vector<256x32xf32> to vector<256x32xbf16>
    %c96 = arith.constant 96 : index
    %c0_24 = arith.constant 0 : index
    %60 = vector.load %arg4[%c96, %c0_24] : memref<160x128xbf16, #tpu.memory_space<vmem>>, vector<32x128xbf16>
    %c2 = arith.constant 2 : index
    %c0_25 = arith.constant 0 : index
    %61 = vector.load %arg5[%c2, %c0_25] : memref<8x128xf32, #tpu.memory_space<vmem>>, vector<1x16xf32>
    %cst_26 = arith.constant dense<0.000000e+00> : vector<256x128xf32>
    %62 = tpu.matmul %59, %60, %cst_26 {dimension_numbers = #tpu.dot_dimension_numbers<[1], [0], [0], [1], [0, 0, 1, 1], [], []>} : vector<256x32xbf16>, vector<32x128xbf16>, vector<256x128xf32> -> vector<256x128xf32>
    %63 = vector.extract_strided_slice %62 {offsets = [0, 16], sizes = [256, 16], strides = [1, 1]} : vector<256x128xf32> to vector<256x16xf32>
    %64 = arith.truncf %63 : vector<256x16xf32> to vector<256x16xbf16>
    %cst_27 = arith.constant dense<0.000000e+00> : vector<256x16xf32>
    %65 = tpu.matmul %28, %64, %cst_27 {dimension_numbers = #tpu.dot_dimension_numbers<[1], [0], [0], [1], [0, 0, 1, 1], [], []>} : vector<256x256xbf16>, vector<256x16xbf16>, vector<256x16xf32> -> vector<256x16xf32>
    %66 = vector.extract_strided_slice %62 {offsets = [0, 0], sizes = [256, 16], strides = [1, 1]} : vector<256x128xf32> to vector<256x16xf32>
    %67 = vector.broadcast %26 : vector<256x1xf32> to vector<256x16xf32>
    %68 = arith.mulf %67, %65 : vector<256x16xf32>
    %69 = arith.addf %66, %68 : vector<256x16xf32>
    %70 = vector.broadcast %61 : vector<1x16xf32> to vector<256x16xf32>
    %71 = arith.addf %69, %70 : vector<256x16xf32>
    %cst_28 = arith.constant 0.000000e+00 : f32
    %72 = vector.broadcast %cst_28 : f32 to vector<256x16xf32>
    %73 = arith.maximumf %71, %72 : vector<256x16xf32>
    %74 = arith.truncf %73 : vector<256x16xf32> to vector<256x16xbf16>
    %c128 = arith.constant 128 : index
    %c0_29 = arith.constant 0 : index
    %75 = vector.load %arg4[%c128, %c0_29] : memref<160x128xbf16, #tpu.memory_space<vmem>>, vector<16x128xbf16>
    %cst_30 = arith.constant dense<0.000000e+00> : vector<256x128xf32>
    %76 = tpu.matmul %74, %75, %cst_30 {dimension_numbers = #tpu.dot_dimension_numbers<[1], [0], [0], [1], [0, 0, 1, 1], [], []>} : vector<256x16xbf16>, vector<16x128xbf16>, vector<256x128xf32> -> vector<256x128xf32>
    %77 = vector.extract_strided_slice %76 {offsets = [0, 0], sizes = [256, 16], strides = [1, 1]} : vector<256x128xf32> to vector<256x16xf32>
    %c3 = arith.constant 3 : index
    %c0_31 = arith.constant 0 : index
    %78 = vector.load %arg5[%c3, %c0_31] : memref<8x128xf32, #tpu.memory_space<vmem>>, vector<1x16xf32>
    %79 = vector.broadcast %78 : vector<1x16xf32> to vector<256x16xf32>
    %80 = arith.addf %77, %79 : vector<256x16xf32>
    %cst_32 = arith.constant 0.000000e+00 : f32
    %81 = vector.broadcast %cst_32 : f32 to vector<256x16xf32>
    %82 = arith.maximumf %80, %81 : vector<256x16xf32>
    %83 = arith.truncf %82 : vector<256x16xf32> to vector<256x16xbf16>
    %c144 = arith.constant 144 : index
    %c0_33 = arith.constant 0 : index
    %84 = vector.load %arg4[%c144, %c0_33] : memref<160x128xbf16, #tpu.memory_space<vmem>>, vector<16x128xbf16>
    %cst_34 = arith.constant dense<0.000000e+00> : vector<256x128xf32>
    %85 = tpu.matmul %83, %84, %cst_34 {dimension_numbers = #tpu.dot_dimension_numbers<[1], [0], [0], [1], [0, 0, 1, 1], [], []>} : vector<256x16xbf16>, vector<16x128xbf16>, vector<256x128xf32> -> vector<256x128xf32>
    %86 = vector.extract_strided_slice %85 {offsets = [0, 0], sizes = [256, 1], strides = [1, 1]} : vector<256x128xf32> to vector<256x1xf32>
    %cst_35 = arith.constant 0.000000e+00 : f32
    %87 = vector.shape_cast %86 : vector<256x1xf32> to vector<256x1xf32>
    %88 = vector.broadcast %87 : vector<256x1xf32> to vector<256x512xf32>
    %89 = vector.broadcast %cst_35 : f32 to vector<256x512xf32>
    %90 = arith.select %4, %88, %89 : vector<256x512xi1>, vector<256x512xf32>
    %91 = vector.extract_strided_slice %85 {offsets = [0, 1], sizes = [256, 1], strides = [1, 1]} : vector<256x128xf32> to vector<256x1xf32>
    %cst_36 = arith.constant 0.000000e+00 : f32
    %92 = vector.shape_cast %91 : vector<256x1xf32> to vector<256x1xf32>
    %93 = vector.broadcast %92 : vector<256x1xf32> to vector<256x512xf32>
    %94 = vector.broadcast %cst_36 : f32 to vector<256x512xf32>
    %95 = arith.select %8, %93, %94 : vector<256x512xi1>, vector<256x512xf32>
    %96 = arith.addf %90, %95 : vector<256x512xf32>
    %cst_37 = arith.constant dense<0.000000e+00> : vector<512xf32>
    %97 = vector.multi_reduction <add>, %96, %cst_37 [0] : vector<256x512xf32> to vector<512xf32>
    %98 = vector.shape_cast %97 : vector<512xf32> to vector<1x512xf32>
    %c4 = arith.constant 4 : index
    %c0_38 = arith.constant 0 : index
    %99 = vector.load %arg5[%c4, %c0_38] : memref<8x128xf32, #tpu.memory_space<vmem>>, vector<1x1xf32>
    %100 = vector.broadcast %99 : vector<1x1xf32> to vector<1x512xf32>
    %101 = arith.addf %98, %100 : vector<1x512xf32>
    %cst_39 = arith.constant -1.000000e+30 : f32
    %102 = vector.shape_cast %101 : vector<1x512xf32> to vector<1x512xf32>
    %103 = vector.broadcast %102 : vector<1x512xf32> to vector<256x512xf32>
    %104 = vector.broadcast %cst_39 : f32 to vector<256x512xf32>
    %105 = arith.select %8, %103, %104 : vector<256x512xi1>, vector<256x512xf32>
    %cst_40 = arith.constant dense<0xFF800000> : vector<256xf32>
    %106 = vector.multi_reduction <maximumf>, %105, %cst_40 [1] : vector<256x512xf32> to vector<256xf32>
    %107 = vector.shape_cast %106 : vector<256xf32> to vector<256x1xf32>
    %108 = vector.broadcast %107 : vector<256x1xf32> to vector<256x512xf32>
    %109 = arith.subf %105, %108 : vector<256x512xf32>
    %110 = math.exp %109 : vector<256x512xf32>
    %cst_41 = arith.constant 0.000000e+00 : f32
    %111 = vector.broadcast %cst_41 : f32 to vector<256x512xf32>
    %112 = arith.select %8, %110, %111 : vector<256x512xi1>, vector<256x512xf32>
    %cst_42 = arith.constant dense<0.000000e+00> : vector<256xf32>
    %113 = vector.multi_reduction <add>, %112, %cst_42 [1] : vector<256x512xf32> to vector<256xf32>
    %114 = vector.shape_cast %113 : vector<256xf32> to vector<256x1xf32>
    %cst_43 = arith.constant dense<0.000000e+00> : vector<512xf32>
    %115 = vector.multi_reduction <add>, %112, %cst_43 [0] : vector<256x512xf32> to vector<512xf32>
    %116 = vector.shape_cast %115 : vector<512xf32> to vector<1x512xf32>
    %cst_44 = arith.constant 0.000000e+00 : f32
    %117 = vector.shape_cast %114 : vector<256x1xf32> to vector<256x1xf32>
    %118 = vector.broadcast %117 : vector<256x1xf32> to vector<256x512xf32>
    %119 = vector.broadcast %cst_44 : f32 to vector<256x512xf32>
    %120 = arith.select %8, %118, %119 : vector<256x512xi1>, vector<256x512xf32>
    %cst_45 = arith.constant dense<0.000000e+00> : vector<512xf32>
    %121 = vector.multi_reduction <add>, %120, %cst_45 [0] : vector<256x512xf32> to vector<512xf32>
    %122 = vector.shape_cast %121 : vector<512xf32> to vector<1x512xf32>
    %123 = arith.divf %116, %122 : vector<1x512xf32>
    %cst_46 = arith.constant 5.000000e-01 : f32
    %124 = vector.broadcast %cst_46 : f32 to vector<1x512xf32>
    %125 = arith.addf %123, %124 : vector<1x512xf32>
    %c0_47 = arith.constant 0 : index
    %c0_48 = arith.constant 0 : index
    %c0_49 = arith.constant 0 : index
    %126 = vector.load %arg6[%c0_47, %c0_48, %c0_49] : memref<1x1x512xf32, #tpu.memory_space<vmem>>, vector<1x1x512xf32>
    %127 = vector.shape_cast %126 : vector<1x1x512xf32> to vector<1x512xf32>
    %128 = vector.shape_cast %125 : vector<1x512xf32> to vector<1x1x512xf32>
    tpu.vector_store %arg6[%c0_47, %c0_48, %c0_49], %128 {strides = array<i32>} : memref<1x1x512xf32, #tpu.memory_space<vmem>>, vector<1x1x512xf32>,
    return
  }
  func.func @transform_0(%arg0: i32) -> (i32, i32, i32) {
    %c0_i32 = arith.constant 0 : i32
    %c0_i32_0 = arith.constant 0 : i32
    %c0_i32_1 = arith.constant 0 : i32
    return %arg0, %c0_i32, %c0_i32_0 : i32, i32, i32
  }
  func.func @transform_1(%arg0: i32) -> (i32, i32, i32) {
    %c0_i32 = arith.constant 0 : i32
    %c0_i32_0 = arith.constant 0 : i32
    %c0_i32_1 = arith.constant 0 : i32
    return %arg0, %c0_i32, %c0_i32_0 : i32, i32, i32
  }
  func.func @transform_2(%arg0: i32) -> (i32, i32) {
    %c0_i32 = arith.constant 0 : i32
    %c0_i32_0 = arith.constant 0 : i32
    return %arg0, %c0_i32 : i32, i32
  }
  func.func @transform_3(%arg0: i32) -> (i32, i32) {
    %c0_i32 = arith.constant 0 : i32
    %c0_i32_0 = arith.constant 0 : i32
    %c0_i32_1 = arith.constant 0 : i32
    return %c0_i32, %c0_i32_0 : i32, i32
  }
  func.func @transform_4(%arg0: i32) -> (i32, i32) {
    %c0_i32 = arith.constant 0 : i32
    %c0_i32_0 = arith.constant 0 : i32
    %c0_i32_1 = arith.constant 0 : i32
    return %c0_i32, %c0_i32_0 : i32, i32
  }
  func.func @transform_5(%arg0: i32) -> (i32, i32, i32) {
    %c0_i32 = arith.constant 0 : i32
    %c0_i32_0 = arith.constant 0 : i32
    %c0_i32_1 = arith.constant 0 : i32
    return %arg0, %c0_i32, %c0_i32_0 : i32, i32, i32
  }
}

</mosaic_0001>

<llo_original>
// kernel: tpu_custom_call.1
$region0: #{tpu_custom_call.1}
  #allocation0 [shape = 'u32[]', space=smem, size = 0x4, offset = 0x4, fixed_abs, tag = 'smem constant byte address 0x4 - core index']
  #allocation1 [shape = 'u32[72,128]{1,0:T(1,128)}', space=vmem, size = 0x9000, scoped, tag = 'internal scratch']
  %s0 = inlined_call_operand.vmem [shape: s32[2,1,512], index: 0, kind: input, shape index: {}]
  %s1 = inlined_call_operand.vmem [shape: s32[2,1,512], index: 1, kind: input, shape index: {}]
  %s2 = inlined_call_operand.vmem [shape: bf16[512,64], index: 2, kind: input, shape index: {}]
  %s3 = inlined_call_operand.vmem [shape: bf16[160,128], index: 3, kind: input, shape index: {}]
  %s4 = inlined_call_operand.vmem [shape: f32[8,128], index: 4, kind: input, shape index: {}]
  %s5 = inlined_call_operand.hbm [shape: f32[2,1,512], index: 5, kind: output, shape index: {}]
  %s6 = sld [smem:[#allocation0]]
  $region53: #{tpu_custom_call.1} parent=0
    _
  %s8 = ssub.s32 1, %s6
  %s9 = scalar_select 0, %s8, %s6
  $region1: #{tpu_custom_call.1} parent=0
    #allocation2 [shape = 'u8[4096]{0}', space=vmem, size = 0x1000, scoped, tag = 'output window, operand 0']
    #allocation3 [shape = 's32[2]{0}', space=sflag, size = 0x8, scoped, tag = 'scoped memory for tpu_custom_call.1']
    %10 = vsyncpa [#allocation3], 0
    %s11 = scalar_lea.sflag [#allocation3], 1
    %12 = vsyncpa %s11, 0
    loop: start=0, step=1, limit=4
    $region2: #{tpu_custom_call.1} parent=1 // loop_pre_header
      _
    $region3: #{tpu_custom_call.1} parent=1 // loop_header
      %s14 = sphi 0, %s18
      %p15 = scmp.ge.s32.totalorder %s14, 4
      %s24 = sphi 0, %s26
      %s27 = sphi 0, %s24
      %s28 = sphi 0, %s27
      %s44 = sphi 0, %s28
      %s50 = sphi 0, %s52
      %s53 = sphi 0, %s50
      %s54 = sphi 0, %s53
      %s70 = sphi 0, %s54
      %s76 = sphi 0, %s78
      %s79 = sphi 0, %s76
      %s80 = sphi 0, %s79
      %s96 = sphi 0, %s80
      %s100 = sphi 0, %s100
      %s102 = sphi 0, %s100
      %s103 = sphi 0, %s102
      %s117 = sphi 0, %s103
      %s121 = sphi 0, %s121
      %s123 = sphi 0, %s121
      %s124 = sphi 0, %s123
      %s138 = sphi 0, %s124
      %s144 = sphi 0, %s146
      %s147 = sphi 0, %s144
      %s148 = sphi 0, %s147
      %s164 = sphi 0, %s148
    $region4: #{tpu_custom_call.1} parent=1 // loop_header_branch
      %17 = sbr.rel (%p15) target = $region8
    $region5: #{tpu_custom_call.1} parent=1 // loop_body
      %s19 = ssub.s32 %s14, 1
      %s20 = ssub.s32 %s14, 2
      %s21 = sadd.s32 %s14, 1
      %s22 = ssub.s32 %s14, %s21
      %p23 = scmp.eq.s32.totalorder %s22, 0
      %s25 = sadd.s32 %s24, 1
      %s26 = scalar_select %p23, %s24, %s25
      %p29 = pneg %p23
      %p30 = scmp.eq.s32.totalorder %s14, 1
      %p31 = por %p29, %p30
      %p32 = scmp.ne.s32.totalorder %s24, %s27
      %p33 = scmp.eq.s32.totalorder %s14, 0
      %p34 = por %p32, %p33
      %p35 = scmp.ne.s32.totalorder %s24, %s27
      %p36 = scmp.eq.s32.totalorder %s19, 1
      %p37 = por %p35, %p36
      %p38 = scmp.ne.s32.totalorder %s27, %s28
      %p39 = scmp.eq.s32.totalorder %s19, 0
      %p40 = por %p38, %p39
      %p41 = scmp.ne.s32.totalorder %s27, %s28
      %p42 = scmp.eq.s32.totalorder %s20, 1
      %p43 = por %p41, %p42
      %p45 = scmp.ne.s32.totalorder %s28, %s44
      %p46 = scmp.eq.s32.totalorder %s20, 0
      %p47 = por %p45, %p46
      %s48 = ssub.s32 %s14, %s21
      %p49 = scmp.eq.s32.totalorder %s48, 0
      %s51 = sadd.s32 %s50, 1
      %s52 = scalar_select %p49, %s50, %s51
      %p55 = pneg %p49
      %p56 = scmp.eq.s32.totalorder %s14, 1
      %p57 = por %p55, %p56
      %p58 = scmp.ne.s32.totalorder %s50, %s53
      %p59 = scmp.eq.s32.totalorder %s14, 0
      %p60 = por %p58, %p59
      %p61 = scmp.ne.s32.totalorder %s50, %s53
      %p62 = scmp.eq.s32.totalorder %s19, 1
      %p63 = por %p61, %p62
      %p64 = scmp.ne.s32.totalorder %s53, %s54
      %p65 = scmp.eq.s32.totalorder %s19, 0
      %p66 = por %p64, %p65
      %p67 = scmp.ne.s32.totalorder %s53, %s54
      %p68 = scmp.eq.s32.totalorder %s20, 1
      %p69 = por %p67, %p68
      %p71 = scmp.ne.s32.totalorder %s54, %s70
      %p72 = scmp.eq.s32.totalorder %s20, 0
      %p73 = por %p71, %p72
      %s74 = ssub.s32 %s14, %s21
      %p75 = scmp.eq.s32.totalorder %s74, 0
      %s77 = sadd.s32 %s76, 1
      %s78 = scalar_select %p75, %s76, %s77
      %p81 = pneg %p75
      %p82 = scmp.eq.s32.totalorder %s14, 1
      %p83 = por %p81, %p82
      %p84 = scmp.ne.s32.totalorder %s76, %s79
      %p85 = scmp.eq.s32.totalorder %s14, 0
      %p86 = por %p84, %p85
      %p87 = scmp.ne.s32.totalorder %s76, %s79
      %p88 = scmp.eq.s32.totalorder %s19, 1
      %p89 = por %p87, %p88
      %p90 = scmp.ne.s32.totalorder %s79, %s80
      %p91 = scmp.eq.s32.totalorder %s19, 0
      %p92 = por %p90, %p91
      %p93 = scmp.ne.s32.totalorder %s79, %s80
      %p94 = scmp.eq.s32.totalorder %s20, 1
      %p95 = por %p93, %p94
      %p97 = scmp.ne.s32.totalorder %s80, %s96
      %p98 = scmp.eq.s32.totalorder %s20, 0
      %p99 = por %p97, %p98
      %s101 = sadd.s32 %s100, 1
      %p104 = scmp.eq.s32.totalorder %s14, 1
      %p105 = scmp.ne.s32.totalorder %s100, %s102
      %p106 = scmp.eq.s32.totalorder %s14, 0
      %p107 = por %p105, %p106
      %p108 = scmp.ne.s32.totalorder %s100, %s102
      %p109 = scmp.eq.s32.totalorder %s19, 1
      %p110 = por %p108, %p109
      %p111 = scmp.ne.s32.totalorder %s102, %s103
      %p112 = scmp.eq.s32.totalorder %s19, 0
      %p113 = por %p111, %p112
      %p114 = scmp.ne.s32.totalorder %s102, %s103
      %p115 = scmp.eq.s32.totalorder %s20, 1
      %p116 = por %p114, %p115
      %p118 = scmp.ne.s32.totalorder %s103, %s117
      %p119 = scmp.eq.s32.totalorder %s20, 0
      %p120 = por %p118, %p119
      %s122 = sadd.s32 %s121, 1
      %p125 = scmp.eq.s32.totalorder %s14, 1
      %p126 = scmp.ne.s32.totalorder %s121, %s123
      %p127 = scmp.eq.s32.totalorder %s14, 0
      %p128 = por %p126, %p127
      %p129 = scmp.ne.s32.totalorder %s121, %s123
      %p130 = scmp.eq.s32.totalorder %s19, 1
      %p131 = por %p129, %p130
      %p132 = scmp.ne.s32.totalorder %s123, %s124
      %p133 = scmp.eq.s32.totalorder %s19, 0
      %p134 = por %p132, %p133
      %p135 = scmp.ne.s32.totalorder %s123, %s124
      %p136 = scmp.eq.s32.totalorder %s20, 1
      %p137 = por %p135, %p136
      %p139 = scmp.ne.s32.totalorder %s124, %s138
      %p140 = scmp.eq.s32.totalorder %s20, 0
      %p141 = por %p139, %p140
      %s142 = ssub.s32 %s14, %s21
      %p143 = scmp.eq.s32.totalorder %s142, 0
      %s145 = sadd.s32 %s144, 1
      %s146 = scalar_select %p143, %s144, %s145
      %p149 = pneg %p143
      %p150 = scmp.eq.s32.totalorder %s14, 1
      %p151 = por %p149, %p150
      %p152 = scmp.ne.s32.totalorder %s144, %s147
      %p153 = scmp.eq.s32.totalorder %s14, 0
      %p154 = por %p152, %p153
      %p155 = scmp.ne.s32.totalorder %s144, %s147
      %p156 = scmp.eq.s32.totalorder %s19, 1
      %p157 = por %p155, %p156
      %p158 = scmp.ne.s32.totalorder %s147, %s148
      %p159 = scmp.eq.s32.totalorder %s19, 0
      %p160 = por %p158, %p159
      %p161 = scmp.ne.s32.totalorder %s147, %s148
      %p162 = scmp.eq.s32.totalorder %s20, 1
      %p163 = por %p161, %p162
      %p165 = scmp.ne.s32.totalorder %s148, %s164
      %p166 = scmp.eq.s32.totalorder %s20, 0
      %p167 = por %p165, %p166
      %p168 = scmp.le.s32.totalorder 1, %s14
      %p169 = scmp.lt.s32.totalorder %s14, 3
      %p170 = pnand %p168, %p169
      %p171 = pneg %p170
      // Predicated region
      $region9: #{tpu_custom_call.1} parent=5 // pred_check
        _
      $region10: #{tpu_custom_call.1} parent=5 // pred_check_branch
        %173 = sbr.rel (%p170) target = $region12
      $region11: #{tpu_custom_call.1} parent=5 // pred_region
        %s174 = ssub.s32 %s14, 1
        // Predicated region
        $region13: #{tpu_custom_call.1} parent=11 // pred_check
          %p175 = pneg %p113
        $region14: #{tpu_custom_call.1} parent=11 // pred_check_branch
          %177 = sbr.rel (%p175) target = $region16
        $region15: #{tpu_custom_call.1} parent=11 // pred_region
          _
        $region16: #{tpu_custom_call.1} parent=11 // pred_fallthru
          _
        // Predicated region
        $region17: #{tpu_custom_call.1} parent=11 // pred_check
          %p178 = pneg %p134
        $region18: #{tpu_custom_call.1} parent=11 // pred_check_branch
          %180 = sbr.rel (%p178) target = $region20
        $region19: #{tpu_custom_call.1} parent=11 // pred_region
          _
        $region20: #{tpu_custom_call.1} parent=11 // pred_fallthru
          _
      $region12: #{tpu_custom_call.1} parent=5 // pred_fallthru
        _
      %p181 = scmp.lt.s32.totalorder %s14, 2
      // Predicated region
      $region21: #{tpu_custom_call.1} parent=5 // pred_check
        %p182 = pneg %p181
      $region22: #{tpu_custom_call.1} parent=5 // pred_check_branch
        %184 = sbr.rel (%p182) target = $region24
      $region23: #{tpu_custom_call.1} parent=5 // pred_region
        // Predicated region
        $region25: #{tpu_custom_call.1} parent=23 // pred_check
          %p185 = pneg %p34
        $region26: #{tpu_custom_call.1} parent=23 // pred_check_branch
          %187 = sbr.rel (%p185) target = $region28
        $region27: #{tpu_custom_call.1} parent=23 // pred_region
          %p188 = scmp.lt.s32.totalorder %s14, 1
          %s189 = scalar_select %p188, %s14, 1
          %s190 = smul.addr %s189, 4
          %s191 = scalar_lea.vmem %s0, %s190
        $region28: #{tpu_custom_call.1} parent=23 // pred_fallthru
          _
        // Predicated region
        $region29: #{tpu_custom_call.1} parent=23 // pred_check
          %p192 = pneg %p60
        $region30: #{tpu_custom_call.1} parent=23 // pred_check_branch
          %194 = sbr.rel (%p192) target = $region32
        $region31: #{tpu_custom_call.1} parent=23 // pred_region
          %p195 = scmp.lt.s32.totalorder %s14, 1
          %s196 = scalar_select %p195, %s14, 1
          %s197 = smul.addr %s196, 4
          %s198 = scalar_lea.vmem %s1, %s197
        $region32: #{tpu_custom_call.1} parent=23 // pred_fallthru
          _
        // Predicated region
        $region33: #{tpu_custom_call.1} parent=23 // pred_check
          %p199 = pneg %p86
        $region34: #{tpu_custom_call.1} parent=23 // pred_check_branch
          %201 = sbr.rel (%p199) target = $region36
        $region35: #{tpu_custom_call.1} parent=23 // pred_region
          %s202 = smul.u32 32, %s14
          %p203 = scmp.lt.s32.totalorder %s202, 63
          %s204 = scalar_select %p203, %s202, 63
          %s205 = smul.addr %s204, 4
          %s206 = scalar_lea.vmem %s2, %s205
          %s207 = smul.u32 32, %s14
        $region36: #{tpu_custom_call.1} parent=23 // pred_fallthru
          _
      $region24: #{tpu_custom_call.1} parent=5 // pred_fallthru
        _
      %p208 = scmp.le.s32.totalorder 1, %s14
      %p209 = scmp.lt.s32.totalorder %s14, 3
      %p210 = pnand %p208, %p209
      %p211 = pneg %p210
      // Predicated region
      $region37: #{tpu_custom_call.1} parent=5 // pred_check
        _
      $region38: #{tpu_custom_call.1} parent=5 // pred_check_branch
        %213 = sbr.rel (%p210) target = $region40
      $region39: #{tpu_custom_call.1} parent=5 // pred_region
        %s214 = ssub.s32 %s14, 1
        %p215 = scmp.lt.s32.totalorder %s19, 1
        %s216 = scalar_select %p215, %s19, 1
        %s217 = smul.addr %s216, 4
        %s218 = scalar_lea.vmem %s0, %s217
        %p219 = pneg %p40
        %p220 = pneg %p37
        %p221 = scmp.lt.s32.totalorder %s19, 1
        %s222 = scalar_select %p221, %s19, 1
        %s223 = smul.addr %s222, 4
        %s224 = scalar_lea.vmem %s1, %s223
        %p225 = pneg %p66
        %p226 = pneg %p63
        %s227 = smul.u32 32, %s19
        %p228 = scmp.lt.s32.totalorder %s227, 63
        %s229 = scalar_select %p228, %s227, 63
        %s230 = smul.addr %s229, 4
        %s231 = scalar_lea.vmem %s2, %s230
        %p232 = pneg %p92
        %p233 = pneg %p89
        %p234 = pneg %p113
        %p235 = pneg %p110
        %p236 = pneg %p134
        %p237 = pneg %p131
        %p238 = pneg %p160
        %p239 = pneg %p157
        %s240 = sand.u32 %s147, 1
        %s241 = scalar_lea.sflag [#allocation3], %s240
        %s242 = sand.u32 %s147, 1
        %s243 = smul.addr %s242, 4
        %s244 = scalar_lea.vmem [#allocation2], %s243
        %p245 = scmp.lt.s32.totalorder %s19, 1
        %s246 = scalar_select %p245, %s19, 1
        %s247 = smul.addr %s246, 4
        %s248 = scalar_lea.vmem %s0, %s247
        %p249 = scmp.lt.s32.totalorder %s19, 1
        %s250 = scalar_select %p249, %s19, 1
        %s251 = smul.addr %s250, 4
        %s252 = scalar_lea.vmem %s1, %s251
        %s253 = smul.u32 32, %s19
        %p254 = scmp.lt.s32.totalorder %s253, 63
        %s255 = scalar_select %p254, %s253, 63
        %s256 = smul.addr %s255, 4
        %s257 = scalar_lea.vmem %s2, %s256
        %s258 = smul.u32 32, %s19
        %v260 = vlaneseq
        %v261 = vshrl.u32 %v260, 7
        %v262 = vadd.s32 %v261, 8
        %v263 = vadd.s32 %v261, 16
        %v264 = vadd.s32 %v261, 24
        %v265 = vadd.s32 %v261, 32
        %v266 = vadd.s32 %v261, 40
        %v267 = vadd.s32 %v261, 48
        %v268 = vadd.s32 %v261, 56
        %v269 = vadd.s32 %v261, 64
        %v270 = vadd.s32 %v261, 72
        %v271 = vadd.s32 %v261, 80
        %v272 = vadd.s32 %v261, 88
        %v273 = vadd.s32 %v261, 96
        %v274 = vadd.s32 %v261, 104
        %v275 = vadd.s32 %v261, 112
        %v276 = vadd.s32 %v261, 120
        %v277 = vadd.s32 %v261, 128
        %v278 = vadd.s32 %v261, 136
        %v279 = vadd.s32 %v261, 144
        %v280 = vadd.s32 %v261, 152
        %v281 = vadd.s32 %v261, 160
        %v282 = vadd.s32 %v261, 168
        %v283 = vadd.s32 %v261, 176
        %v284 = vadd.s32 %v261, 184
        %v285 = vadd.s32 %v261, 192
        %v286 = vadd.s32 %v261, 200
        %v287 = vadd.s32 %v261, 208
        %v288 = vadd.s32 %v261, 216
        %v289 = vadd.s32 %v261, 224
        %v290 = vadd.s32 %v261, 232
        %v291 = vadd.s32 %v261, 240
        %v292 = vadd.s32 %v261, 248
        %v293 = vld [vmem:[%s248] sm:$0xf]
        %v294 = vperm.slane %v293, 0
        %v295 = vperm.slane %v293, 1
        %v296 = vperm.slane %v293, 2
        %v297 = vperm.slane %v293, 3
        %vm298 = vcmp.eq.s32.totalorder %v261, %v294
        %vm299 = vcmp.eq.s32.totalorder %v261, %v295
        %vm300 = vcmp.eq.s32.totalorder %v261, %v296
        %vm301 = vcmp.eq.s32.totalorder %v261, %v297
        %vm302 = vcmp.eq.s32.totalorder %v262, %v294
        %vm303 = vcmp.eq.s32.totalorder %v262, %v295
        %vm304 = vcmp.eq.s32.totalorder %v262, %v296
        %vm305 = vcmp.eq.s32.totalorder %v262, %v297
        %vm306 = vcmp.eq.s32.totalorder %v263, %v294
        %vm307 = vcmp.eq.s32.totalorder %v263, %v295
        %vm308 = vcmp.eq.s32.totalorder %v263, %v296
        %vm309 = vcmp.eq.s32.totalorder %v263, %v297
        %vm310 = vcmp.eq.s32.totalorder %v264, %v294
        %vm311 = vcmp.eq.s32.totalorder %v264, %v295
        %vm312 = vcmp.eq.s32.totalorder %v264, %v296
        %vm313 = vcmp.eq.s32.totalorder %v264, %v297
        %vm314 = vcmp.eq.s32.totalorder %v265, %v294
        %vm315 = vcmp.eq.s32.totalorder %v265, %v295
        %vm316 = vcmp.eq.s32.totalorder %v265, %v296
        %vm317 = vcmp.eq.s32.totalorder %v265, %v297
        %vm318 = vcmp.eq.s32.totalorder %v266, %v294
        %vm319 = vcmp.eq.s32.totalorder %v266, %v295
        %vm320 = vcmp.eq.s32.totalorder %v266, %v296
        %vm321 = vcmp.eq.s32.totalorder %v266, %v297
        %vm322 = vcmp.eq.s32.totalorder %v267, %v294
        %vm323 = vcmp.eq.s32.totalorder %v267, %v295
        %vm324 = vcmp.eq.s32.totalorder %v267, %v296
        %vm325 = vcmp.eq.s32.totalorder %v267, %v297
        %vm326 = vcmp.eq.s32.totalorder %v268, %v294
        %vm327 = vcmp.eq.s32.totalorder %v268, %v295
        %vm328 = vcmp.eq.s32.totalorder %v268, %v296
        %vm329 = vcmp.eq.s32.totalorder %v268, %v297
        %vm330 = vcmp.eq.s32.totalorder %v269, %v294
        %vm331 = vcmp.eq.s32.totalorder %v269, %v295
        %vm332 = vcmp.eq.s32.totalorder %v269, %v296
        %vm333 = vcmp.eq.s32.totalorder %v269, %v297
        %vm334 = vcmp.eq.s32.totalorder %v270, %v294
        %vm335 = vcmp.eq.s32.totalorder %v270, %v295
        %vm336 = vcmp.eq.s32.totalorder %v270, %v296
        %vm337 = vcmp.eq.s32.totalorder %v270, %v297
        %vm338 = vcmp.eq.s32.totalorder %v271, %v294
        %vm339 = vcmp.eq.s32.totalorder %v271, %v295
        %vm340 = vcmp.eq.s32.totalorder %v271, %v296
        %vm341 = vcmp.eq.s32.totalorder %v271, %v297
        %vm342 = vcmp.eq.s32.totalorder %v272, %v294
        %vm343 = vcmp.eq.s32.totalorder %v272, %v295
        %vm344 = vcmp.eq.s32.totalorder %v272, %v296
        %vm345 = vcmp.eq.s32.totalorder %v272, %v297
        %vm346 = vcmp.eq.s32.totalorder %v273, %v294
        %vm347 = vcmp.eq.s32.totalorder %v273, %v295
        %vm348 = vcmp.eq.s32.totalorder %v273, %v296
        %vm349 = vcmp.eq.s32.totalorder %v273, %v297
        %vm350 = vcmp.eq.s32.totalorder %v274, %v294
        %vm351 = vcmp.eq.s32.totalorder %v274, %v295
        %vm352 = vcmp.eq.s32.totalorder %v274, %v296
        %vm353 = vcmp.eq.s32.totalorder %v274, %v297
        %vm354 = vcmp.eq.s32.totalorder %v275, %v294
        %vm355 = vcmp.eq.s32.totalorder %v275, %v295
        %vm356 = vcmp.eq.s32.totalorder %v275, %v296
        %vm357 = vcmp.eq.s32.totalorder %v275, %v297
        %vm358 = vcmp.eq.s32.totalorder %v276, %v294
        %vm359 = vcmp.eq.s32.totalorder %v276, %v295
        %vm360 = vcmp.eq.s32.totalorder %v276, %v296
        %vm361 = vcmp.eq.s32.totalorder %v276, %v297
        %vm362 = vcmp.eq.s32.totalorder %v277, %v294
        %vm363 = vcmp.eq.s32.totalorder %v277, %v295
        %vm364 = vcmp.eq.s32.totalorder %v277, %v296
        %vm365 = vcmp.eq.s32.totalorder %v277, %v297
        %vm366 = vcmp.eq.s32.totalorder %v278, %v294
        %vm367 = vcmp.eq.s32.totalorder %v278, %v295
        %vm368 = vcmp.eq.s32.totalorder %v278, %v296
        %vm369 = vcmp.eq.s32.totalorder %v278, %v297
        %vm370 = vcmp.eq.s32.totalorder %v279, %v294
        %vm371 = vcmp.eq.s32.totalorder %v279, %v295
        %vm372 = vcmp.eq.s32.totalorder %v279, %v296
        %vm373 = vcmp.eq.s32.totalorder %v279, %v297
        %vm374 = vcmp.eq.s32.totalorder %v280, %v294
        %vm375 = vcmp.eq.s32.totalorder %v280, %v295
        %vm376 = vcmp.eq.s32.totalorder %v280, %v296
        %vm377 = vcmp.eq.s32.totalorder %v280, %v297
        %vm378 = vcmp.eq.s32.totalorder %v281, %v294
        %vm379 = vcmp.eq.s32.totalorder %v281, %v295
        %vm380 = vcmp.eq.s32.totalorder %v281, %v296
        %vm381 = vcmp.eq.s32.totalorder %v281, %v297
        %vm382 = vcmp.eq.s32.totalorder %v282, %v294
        %vm383 = vcmp.eq.s32.totalorder %v282, %v295
        %vm384 = vcmp.eq.s32.totalorder %v282, %v296
        %vm385 = vcmp.eq.s32.totalorder %v282, %v297
        %vm386 = vcmp.eq.s32.totalorder %v283, %v294
        %vm387 = vcmp.eq.s32.totalorder %v283, %v295
        %vm388 = vcmp.eq.s32.totalorder %v283, %v296
        %vm389 = vcmp.eq.s32.totalorder %v283, %v297
        %vm390 = vcmp.eq.s32.totalorder %v284, %v294
        %vm391 = vcmp.eq.s32.totalorder %v284, %v295
        %vm392 = vcmp.eq.s32.totalorder %v284, %v296
        %vm393 = vcmp.eq.s32.totalorder %v284, %v297
        %vm394 = vcmp.eq.s32.totalorder %v285, %v294
        %vm395 = vcmp.eq.s32.totalorder %v285, %v295
        %vm396 = vcmp.eq.s32.totalorder %v285, %v296
        %vm397 = vcmp.eq.s32.totalorder %v285, %v297
        %vm398 = vcmp.eq.s32.totalorder %v286, %v294
        %vm399 = vcmp.eq.s32.totalorder %v286, %v295
        %vm400 = vcmp.eq.s32.totalorder %v286, %v296
        %vm401 = vcmp.eq.s32.totalorder %v286, %v297
        %vm402 = vcmp.eq.s32.totalorder %v287, %v294
        %vm403 = vcmp.eq.s32.totalorder %v287, %v295
        %vm404 = vcmp.eq.s32.totalorder %v287, %v296
        %vm405 = vcmp.eq.s32.totalorder %v287, %v297
        %vm406 = vcmp.eq.s32.totalorder %v288, %v294
        %vm407 = vcmp.eq.s32.totalorder %v288, %v295
        %vm408 = vcmp.eq.s32.totalorder %v288, %v296
        %vm409 = vcmp.eq.s32.totalorder %v288, %v297
        %vm410 = vcmp.eq.s32.totalorder %v289, %v294
        %vm411 = vcmp.eq.s32.totalorder %v289, %v295
        %vm412 = vcmp.eq.s32.totalorder %v289, %v296
        %vm413 = vcmp.eq.s32.totalorder %v289, %v297
        %vm414 = vcmp.eq.s32.totalorder %v290, %v294
        %vm415 = vcmp.eq.s32.totalorder %v290, %v295
        %vm416 = vcmp.eq.s32.totalorder %v290, %v296
        %vm417 = vcmp.eq.s32.totalorder %v290, %v297
        %vm418 = vcmp.eq.s32.totalorder %v291, %v294
        %vm419 = vcmp.eq.s32.totalorder %v291, %v295
        %vm420 = vcmp.eq.s32.totalorder %v291, %v296
        %vm421 = vcmp.eq.s32.totalorder %v291, %v297
        %vm422 = vcmp.eq.s32.totalorder %v292, %v294
        %vm423 = vcmp.eq.s32.totalorder %v292, %v295
        %vm424 = vcmp.eq.s32.totalorder %v292, %v296
        %vm425 = vcmp.eq.s32.totalorder %v292, %v297
        %v426 = vld [vmem:[%s252] sm:$0xf]
        %v427 = vperm.slane %v426, 0
        %v428 = vperm.slane %v426, 1
        %v429 = vperm.slane %v426, 2
        %v430 = vperm.slane %v426, 3
        %vm431 = vcmp.eq.s32.totalorder %v261, %v427
        %vm432 = vcmp.eq.s32.totalorder %v261, %v428
        %vm433 = vcmp.eq.s32.totalorder %v261, %v429
        %vm434 = vcmp.eq.s32.totalorder %v261, %v430
        %vm435 = vcmp.eq.s32.totalorder %v262, %v427
        %vm436 = vcmp.eq.s32.totalorder %v262, %v428
        %vm437 = vcmp.eq.s32.totalorder %v262, %v429
        %vm438 = vcmp.eq.s32.totalorder %v262, %v430
        %vm439 = vcmp.eq.s32.totalorder %v263, %v427
        %vm440 = vcmp.eq.s32.totalorder %v263, %v428
        %vm441 = vcmp.eq.s32.totalorder %v263, %v429
        %vm442 = vcmp.eq.s32.totalorder %v263, %v430
        %vm443 = vcmp.eq.s32.totalorder %v264, %v427
        %vm444 = vcmp.eq.s32.totalorder %v264, %v428
        %vm445 = vcmp.eq.s32.totalorder %v264, %v429
        %vm446 = vcmp.eq.s32.totalorder %v264, %v430
        %vm447 = vcmp.eq.s32.totalorder %v265, %v427
        %vm448 = vcmp.eq.s32.totalorder %v265, %v428
        %vm449 = vcmp.eq.s32.totalorder %v265, %v429
        %vm450 = vcmp.eq.s32.totalorder %v265, %v430
        %vm451 = vcmp.eq.s32.totalorder %v266, %v427
        %vm452 = vcmp.eq.s32.totalorder %v266, %v428
        %vm453 = vcmp.eq.s32.totalorder %v266, %v429
        %vm454 = vcmp.eq.s32.totalorder %v266, %v430
        %vm455 = vcmp.eq.s32.totalorder %v267, %v427
        %vm456 = vcmp.eq.s32.totalorder %v267, %v428
        %vm457 = vcmp.eq.s32.totalorder %v267, %v429
        %vm458 = vcmp.eq.s32.totalorder %v267, %v430
        %vm459 = vcmp.eq.s32.totalorder %v268, %v427
        %vm460 = vcmp.eq.s32.totalorder %v268, %v428
        %vm461 = vcmp.eq.s32.totalorder %v268, %v429
        %vm462 = vcmp.eq.s32.totalorder %v268, %v430
        %vm463 = vcmp.eq.s32.totalorder %v269, %v427
        %vm464 = vcmp.eq.s32.totalorder %v269, %v428
        %vm465 = vcmp.eq.s32.totalorder %v269, %v429
        %vm466 = vcmp.eq.s32.totalorder %v269, %v430
        %vm467 = vcmp.eq.s32.totalorder %v270, %v427
        %vm468 = vcmp.eq.s32.totalorder %v270, %v428
        %vm469 = vcmp.eq.s32.totalorder %v270, %v429
        %vm470 = vcmp.eq.s32.totalorder %v270, %v430
        %vm471 = vcmp.eq.s32.totalorder %v271, %v427
        %vm472 = vcmp.eq.s32.totalorder %v271, %v428
        %vm473 = vcmp.eq.s32.totalorder %v271, %v429
        %vm474 = vcmp.eq.s32.totalorder %v271, %v430
        %vm475 = vcmp.eq.s32.totalorder %v272, %v427
        %vm476 = vcmp.eq.s32.totalorder %v272, %v428
        %vm477 = vcmp.eq.s32.totalorder %v272, %v429
        %vm478 = vcmp.eq.s32.totalorder %v272, %v430
        %vm479 = vcmp.eq.s32.totalorder %v273, %v427
        %vm480 = vcmp.eq.s32.totalorder %v273, %v428
        %vm481 = vcmp.eq.s32.totalorder %v273, %v429
        %vm482 = vcmp.eq.s32.totalorder %v273, %v430
        %vm483 = vcmp.eq.s32.totalorder %v274, %v427
        %vm484 = vcmp.eq.s32.totalorder %v274, %v428
        %vm485 = vcmp.eq.s32.totalorder %v274, %v429
        %vm486 = vcmp.eq.s32.totalorder %v274, %v430
        %vm487 = vcmp.eq.s32.totalorder %v275, %v427
        %vm488 = vcmp.eq.s32.totalorder %v275, %v428
        %vm489 = vcmp.eq.s32.totalorder %v275, %v429
        %vm490 = vcmp.eq.s32.totalorder %v275, %v430
        %vm491 = vcmp.eq.s32.totalorder %v276, %v427
        %vm492 = vcmp.eq.s32.totalorder %v276, %v428
        %vm493 = vcmp.eq.s32.totalorder %v276, %v429
        %vm494 = vcmp.eq.s32.totalorder %v276, %v430
        %vm495 = vcmp.eq.s32.totalorder %v277, %v427
        %vm496 = vcmp.eq.s32.totalorder %v277, %v428
        %vm497 = vcmp.eq.s32.totalorder %v277, %v429
        %vm498 = vcmp.eq.s32.totalorder %v277, %v430
        %vm499 = vcmp.eq.s32.totalorder %v278, %v427
        %vm500 = vcmp.eq.s32.totalorder %v278, %v428
        %vm501 = vcmp.eq.s32.totalorder %v278, %v429
        %vm502 = vcmp.eq.s32.totalorder %v278, %v430
        %vm503 = vcmp.eq.s32.totalorder %v279, %v427
        %vm504 = vcmp.eq.s32.totalorder %v279, %v428
        %vm505 = vcmp.eq.s32.totalorder %v279, %v429
        %vm506 = vcmp.eq.s32.totalorder %v279, %v430
        %vm507 = vcmp.eq.s32.totalorder %v280, %v427
        %vm508 = vcmp.eq.s32.totalorder %v280, %v428
        %vm509 = vcmp.eq.s32.totalorder %v280, %v429
        %vm510 = vcmp.eq.s32.totalorder %v280, %v430
        %vm511 = vcmp.eq.s32.totalorder %v281, %v427
        %vm512 = vcmp.eq.s32.totalorder %v281, %v428
        %vm513 = vcmp.eq.s32.totalorder %v281, %v429
        %vm514 = vcmp.eq.s32.totalorder %v281, %v430
        %vm515 = vcmp.eq.s32.totalorder %v282, %v427
        %vm516 = vcmp.eq.s32.totalorder %v282, %v428
        %vm517 = vcmp.eq.s32.totalorder %v282, %v429
        %vm518 = vcmp.eq.s32.totalorder %v282, %v430
        %vm519 = vcmp.eq.s32.totalorder %v283, %v427
        %vm520 = vcmp.eq.s32.totalorder %v283, %v428
        %vm521 = vcmp.eq.s32.totalorder %v283, %v429
        %vm522 = vcmp.eq.s32.totalorder %v283, %v430
        %vm523 = vcmp.eq.s32.totalorder %v284, %v427
        %vm524 = vcmp.eq.s32.totalorder %v284, %v428
        %vm525 = vcmp.eq.s32.totalorder %v284, %v429
        %vm526 = vcmp.eq.s32.totalorder %v284, %v430
        %vm527 = vcmp.eq.s32.totalorder %v285, %v427
        %vm528 = vcmp.eq.s32.totalorder %v285, %v428
        %vm529 = vcmp.eq.s32.totalorder %v285, %v429
        %vm530 = vcmp.eq.s32.totalorder %v285, %v430
        %vm531 = vcmp.eq.s32.totalorder %v286, %v427
        %vm532 = vcmp.eq.s32.totalorder %v286, %v428
        %vm533 = vcmp.eq.s32.totalorder %v286, %v429
        %vm534 = vcmp.eq.s32.totalorder %v286, %v430
        %vm535 = vcmp.eq.s32.totalorder %v287, %v427
        %vm536 = vcmp.eq.s32.totalorder %v287, %v428
        %vm537 = vcmp.eq.s32.totalorder %v287, %v429
        %vm538 = vcmp.eq.s32.totalorder %v287, %v430
        %vm539 = vcmp.eq.s32.totalorder %v288, %v427
        %vm540 = vcmp.eq.s32.totalorder %v288, %v428
        %vm541 = vcmp.eq.s32.totalorder %v288, %v429
        %vm542 = vcmp.eq.s32.totalorder %v288, %v430
        %vm543 = vcmp.eq.s32.totalorder %v289, %v427
        %vm544 = vcmp.eq.s32.totalorder %v289, %v428
        %vm545 = vcmp.eq.s32.totalorder %v289, %v429
        %vm546 = vcmp.eq.s32.totalorder %v289, %v430
        %vm547 = vcmp.eq.s32.totalorder %v290, %v427
        %vm548 = vcmp.eq.s32.totalorder %v290, %v428
        %vm549 = vcmp.eq.s32.totalorder %v290, %v429
        %vm550 = vcmp.eq.s32.totalorder %v290, %v430
        %vm551 = vcmp.eq.s32.totalorder %v291, %v427
        %vm552 = vcmp.eq.s32.totalorder %v291, %v428
        %vm553 = vcmp.eq.s32.totalorder %v291, %v429
        %vm554 = vcmp.eq.s32.totalorder %v291, %v430
        %vm555 = vcmp.eq.s32.totalorder %v292, %v427
        %vm556 = vcmp.eq.s32.totalorder %v292, %v428
        %vm557 = vcmp.eq.s32.totalorder %v292, %v429
        %vm558 = vcmp.eq.s32.totalorder %v292, %v430
        %v559 = vsel %vm298, 1, 0
        %v560 = vsel %vm299, 1, 0
        %v561 = vsel %vm300, 1, 0
        %v562 = vsel %vm301, 1, 0
        %v563 = vsel %vm302, 1, 0
        %v564 = vsel %vm303, 1, 0
        %v565 = vsel %vm304, 1, 0
        %v566 = vsel %vm305, 1, 0
        %v567 = vsel %vm306, 1, 0
        %v568 = vsel %vm307, 1, 0
        %v569 = vsel %vm308, 1, 0
        %v570 = vsel %vm309, 1, 0
        %v571 = vsel %vm310, 1, 0
        %v572 = vsel %vm311, 1, 0
        %v573 = vsel %vm312, 1, 0
        %v574 = vsel %vm313, 1, 0
        %v575 = vsel %vm314, 1, 0
        %v576 = vsel %vm315, 1, 0
        %v577 = vsel %vm316, 1, 0
        %v578 = vsel %vm317, 1, 0
        %v579 = vsel %vm318, 1, 0
        %v580 = vsel %vm319, 1, 0
        %v581 = vsel %vm320, 1, 0
        %v582 = vsel %vm321, 1, 0
        %v583 = vsel %vm322, 1, 0
        %v584 = vsel %vm323, 1, 0
        %v585 = vsel %vm324, 1, 0
        %v586 = vsel %vm325, 1, 0
        %v587 = vsel %vm326, 1, 0
        %v588 = vsel %vm327, 1, 0
        %v589 = vsel %vm328, 1, 0
        %v590 = vsel %vm329, 1, 0
        %v591 = vsel %vm330, 1, 0
        %v592 = vsel %vm331, 1, 0
        %v593 = vsel %vm332, 1, 0
        %v594 = vsel %vm333, 1, 0
        %v595 = vsel %vm334, 1, 0
        %v596 = vsel %vm335, 1, 0
        %v597 = vsel %vm336, 1, 0
        %v598 = vsel %vm337, 1, 0
        %v599 = vsel %vm338, 1, 0
        %v600 = vsel %vm339, 1, 0
        %v601 = vsel %vm340, 1, 0
        %v602 = vsel %vm341, 1, 0
        %v603 = vsel %vm342, 1, 0
        %v604 = vsel %vm343, 1, 0
        %v605 = vsel %vm344, 1, 0
        %v606 = vsel %vm345, 1, 0
        %v607 = vsel %vm346, 1, 0
        %v608 = vsel %vm347, 1, 0
        %v609 = vsel %vm348, 1, 0
        %v610 = vsel %vm349, 1, 0
        %v611 = vsel %vm350, 1, 0
        %v612 = vsel %vm351, 1, 0
        %v613 = vsel %vm352, 1, 0
        %v614 = vsel %vm353, 1, 0
        %v615 = vsel %vm354, 1, 0
        %v616 = vsel %vm355, 1, 0
        %v617 = vsel %vm356, 1, 0
        %v618 = vsel %vm357, 1, 0
        %v619 = vsel %vm358, 1, 0
        %v620 = vsel %vm359, 1, 0
        %v621 = vsel %vm360, 1, 0
        %v622 = vsel %vm361, 1, 0
        %v623 = vsel %vm362, 1, 0
        %v624 = vsel %vm363, 1, 0
        %v625 = vsel %vm364, 1, 0
        %v626 = vsel %vm365, 1, 0
        %v627 = vsel %vm366, 1, 0
        %v628 = vsel %vm367, 1, 0
        %v629 = vsel %vm368, 1, 0
        %v630 = vsel %vm369, 1, 0
        %v631 = vsel %vm370, 1, 0
        %v632 = vsel %vm371, 1, 0
        %v633 = vsel %vm372, 1, 0
        %v634 = vsel %vm373, 1, 0
        %v635 = vsel %vm374, 1, 0
        %v636 = vsel %vm375, 1, 0
        %v637 = vsel %vm376, 1, 0
        %v638 = vsel %vm377, 1, 0
        %v639 = vsel %vm378, 1, 0
        %v640 = vsel %vm379, 1, 0
        %v641 = vsel %vm380, 1, 0
        %v642 = vsel %vm381, 1, 0
        %v643 = vsel %vm382, 1, 0
        %v644 = vsel %vm383, 1, 0
        %v645 = vsel %vm384, 1, 0
        %v646 = vsel %vm385, 1, 0
        %v647 = vsel %vm386, 1, 0
        %v648 = vsel %vm387, 1, 0
        %v649 = vsel %vm388, 1, 0
        %v650 = vsel %vm389, 1, 0
        %v651 = vsel %vm390, 1, 0
        %v652 = vsel %vm391, 1, 0
        %v653 = vsel %vm392, 1, 0
        %v654 = vsel %vm393, 1, 0
        %v655 = vsel %vm394, 1, 0
        %v656 = vsel %vm395, 1, 0
        %v657 = vsel %vm396, 1, 0
        %v658 = vsel %vm397, 1, 0
        %v659 = vsel %vm398, 1, 0
        %v660 = vsel %vm399, 1, 0
        %v661 = vsel %vm400, 1, 0
        %v662 = vsel %vm401, 1, 0
        %v663 = vsel %vm402, 1, 0
        %v664 = vsel %vm403, 1, 0
        %v665 = vsel %vm404, 1, 0
        %v666 = vsel %vm405, 1, 0
        %v667 = vsel %vm406, 1, 0
        %v668 = vsel %vm407, 1, 0
        %v669 = vsel %vm408, 1, 0
        %v670 = vsel %vm409, 1, 0
        %v671 = vsel %vm410, 1, 0
        %v672 = vsel %vm411, 1, 0
        %v673 = vsel %vm412, 1, 0
        %v674 = vsel %vm413, 1, 0
        %v675 = vsel %vm414, 1, 0
        %v676 = vsel %vm415, 1, 0
        %v677 = vsel %vm416, 1, 0
        %v678 = vsel %vm417, 1, 0
        %v679 = vsel %vm418, 1, 0
        %v680 = vsel %vm419, 1, 0
        %v681 = vsel %vm420, 1, 0
        %v682 = vsel %vm421, 1, 0
        %v683 = vsel %vm422, 1, 0
        %v684 = vsel %vm423, 1, 0
        %v685 = vsel %vm424, 1, 0
        %v686 = vsel %vm425, 1, 0
        %v687 = vcvt.s32.f32 %v559
        %v688 = vcvt.s32.f32 %v560
        %v689 = vcvt.s32.f32 %v561
        %v690 = vcvt.s32.f32 %v562
        %v691 = vcvt.s32.f32 %v563
        %v692 = vcvt.s32.f32 %v564
        %v693 = vcvt.s32.f32 %v565
        %v694 = vcvt.s32.f32 %v566
        %v695 = vcvt.s32.f32 %v567
        %v696 = vcvt.s32.f32 %v568
        %v697 = vcvt.s32.f32 %v569
        %v698 = vcvt.s32.f32 %v570
        %v699 = vcvt.s32.f32 %v571
        %v700 = vcvt.s32.f32 %v572
        %v701 = vcvt.s32.f32 %v573
        %v702 = vcvt.s32.f32 %v574
        %v703 = vcvt.s32.f32 %v575
        %v704 = vcvt.s32.f32 %v576
        %v705 = vcvt.s32.f32 %v577
        %v706 = vcvt.s32.f32 %v578
        %v707 = vcvt.s32.f32 %v579
        %v708 = vcvt.s32.f32 %v580
        %v709 = vcvt.s32.f32 %v581
        %v710 = vcvt.s32.f32 %v582
        %v711 = vcvt.s32.f32 %v583
        %v712 = vcvt.s32.f32 %v584
        %v713 = vcvt.s32.f32 %v585
        %v714 = vcvt.s32.f32 %v586
        %v715 = vcvt.s32.f32 %v587
        %v716 = vcvt.s32.f32 %v588
        %v717 = vcvt.s32.f32 %v589
        %v718 = vcvt.s32.f32 %v590
        %v719 = vcvt.s32.f32 %v591
        %v720 = vcvt.s32.f32 %v592
        %v721 = vcvt.s32.f32 %v593
        %v722 = vcvt.s32.f32 %v594
        %v723 = vcvt.s32.f32 %v595
        %v724 = vcvt.s32.f32 %v596
        %v725 = vcvt.s32.f32 %v597
        %v726 = vcvt.s32.f32 %v598
        %v727 = vcvt.s32.f32 %v599
        %v728 = vcvt.s32.f32 %v600
        %v729 = vcvt.s32.f32 %v601
        %v730 = vcvt.s32.f32 %v602
        %v731 = vcvt.s32.f32 %v603
        %v732 = vcvt.s32.f32 %v604
        %v733 = vcvt.s32.f32 %v605
        %v734 = vcvt.s32.f32 %v606
        %v735 = vcvt.s32.f32 %v607
        %v736 = vcvt.s32.f32 %v608
        %v737 = vcvt.s32.f32 %v609
        %v738 = vcvt.s32.f32 %v610
        %v739 = vcvt.s32.f32 %v611
        %v740 = vcvt.s32.f32 %v612
        %v741 = vcvt.s32.f32 %v613
        %v742 = vcvt.s32.f32 %v614
        %v743 = vcvt.s32.f32 %v615
        %v744 = vcvt.s32.f32 %v616
        %v745 = vcvt.s32.f32 %v617
        %v746 = vcvt.s32.f32 %v618
        %v747 = vcvt.s32.f32 %v619
        %v748 = vcvt.s32.f32 %v620
        %v749 = vcvt.s32.f32 %v621
        %v750 = vcvt.s32.f32 %v622
        %v751 = vcvt.s32.f32 %v623
        %v752 = vcvt.s32.f32 %v624
        %v753 = vcvt.s32.f32 %v625
        %v754 = vcvt.s32.f32 %v626
        %v755 = vcvt.s32.f32 %v627
        %v756 = vcvt.s32.f32 %v628
        %v757 = vcvt.s32.f32 %v629
        %v758 = vcvt.s32.f32 %v630
        %v759 = vcvt.s32.f32 %v631
        %v760 = vcvt.s32.f32 %v632
        %v761 = vcvt.s32.f32 %v633
        %v762 = vcvt.s32.f32 %v634
        %v763 = vcvt.s32.f32 %v635
        %v764 = vcvt.s32.f32 %v636
        %v765 = vcvt.s32.f32 %v637
        %v766 = vcvt.s32.f32 %v638
        %v767 = vcvt.s32.f32 %v639
        %v768 = vcvt.s32.f32 %v640
        %v769 = vcvt.s32.f32 %v641
        %v770 = vcvt.s32.f32 %v642
        %v771 = vcvt.s32.f32 %v643
        %v772 = vcvt.s32.f32 %v644
        %v773 = vcvt.s32.f32 %v645
        %v774 = vcvt.s32.f32 %v646
        %v775 = vcvt.s32.f32 %v647
        %v776 = vcvt.s32.f32 %v648
        %v777 = vcvt.s32.f32 %v649
        %v778 = vcvt.s32.f32 %v650
        %v779 = vcvt.s32.f32 %v651
        %v780 = vcvt.s32.f32 %v652
        %v781 = vcvt.s32.f32 %v653
        %v782 = vcvt.s32.f32 %v654
        %v783 = vcvt.s32.f32 %v655
        %v784 = vcvt.s32.f32 %v656
        %v785 = vcvt.s32.f32 %v657
        %v786 = vcvt.s32.f32 %v658
        %v787 = vcvt.s32.f32 %v659
        %v788 = vcvt.s32.f32 %v660
        %v789 = vcvt.s32.f32 %v661
        %v790 = vcvt.s32.f32 %v662
        %v791 = vcvt.s32.f32 %v663
        %v792 = vcvt.s32.f32 %v664
        %v793 = vcvt.s32.f32 %v665
        %v794 = vcvt.s32.f32 %v666
        %v795 = vcvt.s32.f32 %v667
        %v796 = vcvt.s32.f32 %v668
        %v797 = vcvt.s32.f32 %v669
        %v798 = vcvt.s32.f32 %v670
        %v799 = vcvt.s32.f32 %v671
        %v800 = vcvt.s32.f32 %v672
        %v801 = vcvt.s32.f32 %v673
        %v802 = vcvt.s32.f32 %v674
        %v803 = vcvt.s32.f32 %v675
        %v804 = vcvt.s32.f32 %v676
        %v805 = vcvt.s32.f32 %v677
        %v806 = vcvt.s32.f32 %v678
        %v807 = vcvt.s32.f32 %v679
        %v808 = vcvt.s32.f32 %v680
        %v809 = vcvt.s32.f32 %v681
        %v810 = vcvt.s32.f32 %v682
        %v811 = vcvt.s32.f32 %v683
        %v812 = vcvt.s32.f32 %v684
        %v813 = vcvt.s32.f32 %v685
        %v814 = vcvt.s32.f32 %v686
        %v815 = vpack.c.bf16 %v691, %v687
        %v816 = vpack.c.bf16 %v692, %v688
        %v817 = vpack.c.bf16 %v693, %v689
        %v818 = vpack.c.bf16 %v694, %v690
        %v819 = vpack.c.bf16 %v699, %v695
        %v820 = vpack.c.bf16 %v700, %v696
        %v821 = vpack.c.bf16 %v701, %v697
        %v822 = vpack.c.bf16 %v702, %v698
        %v823 = vpack.c.bf16 %v707, %v703
        %v824 = vpack.c.bf16 %v708, %v704
        %v825 = vpack.c.bf16 %v709, %v705
        %v826 = vpack.c.bf16 %v710, %v706
        %v827 = vpack.c.bf16 %v715, %v711
        %v828 = vpack.c.bf16 %v716, %v712
        %v829 = vpack.c.bf16 %v717, %v713
        %v830 = vpack.c.bf16 %v718, %v714
        %v831 = vpack.c.bf16 %v723, %v719
        %v832 = vpack.c.bf16 %v724, %v720
        %v833 = vpack.c.bf16 %v725, %v721
        %v834 = vpack.c.bf16 %v726, %v722
        %v835 = vpack.c.bf16 %v731, %v727
        %v836 = vpack.c.bf16 %v732, %v728
        %v837 = vpack.c.bf16 %v733, %v729
        %v838 = vpack.c.bf16 %v734, %v730
        %v839 = vpack.c.bf16 %v739, %v735
        %v840 = vpack.c.bf16 %v740, %v736
        %v841 = vpack.c.bf16 %v741, %v737
        %v842 = vpack.c.bf16 %v742, %v738
        %v843 = vpack.c.bf16 %v747, %v743
        %v844 = vpack.c.bf16 %v748, %v744
        %v845 = vpack.c.bf16 %v749, %v745
        %v846 = vpack.c.bf16 %v750, %v746
        %v847 = vpack.c.bf16 %v755, %v751
        %v848 = vpack.c.bf16 %v756, %v752
        %v849 = vpack.c.bf16 %v757, %v753
        %v850 = vpack.c.bf16 %v758, %v754
        %v851 = vpack.c.bf16 %v763, %v759
        %v852 = vpack.c.bf16 %v764, %v760
        %v853 = vpack.c.bf16 %v765, %v761
        %v854 = vpack.c.bf16 %v766, %v762
        %v855 = vpack.c.bf16 %v771, %v767
        %v856 = vpack.c.bf16 %v772, %v768
        %v857 = vpack.c.bf16 %v773, %v769
        %v858 = vpack.c.bf16 %v774, %v770
        %v859 = vpack.c.bf16 %v779, %v775
        %v860 = vpack.c.bf16 %v780, %v776
        %v861 = vpack.c.bf16 %v781, %v777
        %v862 = vpack.c.bf16 %v782, %v778
        %v863 = vpack.c.bf16 %v787, %v783
        %v864 = vpack.c.bf16 %v788, %v784
        %v865 = vpack.c.bf16 %v789, %v785
        %v866 = vpack.c.bf16 %v790, %v786
        %v867 = vpack.c.bf16 %v795, %v791
        %v868 = vpack.c.bf16 %v796, %v792
        %v869 = vpack.c.bf16 %v797, %v793
        %v870 = vpack.c.bf16 %v798, %v794
        %v871 = vpack.c.bf16 %v803, %v799
        %v872 = vpack.c.bf16 %v804, %v800
        %v873 = vpack.c.bf16 %v805, %v801
        %v874 = vpack.c.bf16 %v806, %v802
        %v875 = vpack.c.bf16 %v811, %v807
        %v876 = vpack.c.bf16 %v812, %v808
        %v877 = vpack.c.bf16 %v813, %v809
        %v878 = vpack.c.bf16 %v814, %v810
        %v879 = vsel %vm431, 1, 0
        %v880 = vsel %vm432, 1, 0
        %v881 = vsel %vm433, 1, 0
        %v882 = vsel %vm434, 1, 0
        %v883 = vsel %vm435, 1, 0
        %v884 = vsel %vm436, 1, 0
        %v885 = vsel %vm437, 1, 0
        %v886 = vsel %vm438, 1, 0
        %v887 = vsel %vm439, 1, 0
        %v888 = vsel %vm440, 1, 0
        %v889 = vsel %vm441, 1, 0
        %v890 = vsel %vm442, 1, 0
        %v891 = vsel %vm443, 1, 0
        %v892 = vsel %vm444, 1, 0
        %v893 = vsel %vm445, 1, 0
        %v894 = vsel %vm446, 1, 0
        %v895 = vsel %vm447, 1, 0
        %v896 = vsel %vm448, 1, 0
        %v897 = vsel %vm449, 1, 0
        %v898 = vsel %vm450, 1, 0
        %v899 = vsel %vm451, 1, 0
        %v900 = vsel %vm452, 1, 0
        %v901 = vsel %vm453, 1, 0
        %v902 = vsel %vm454, 1, 0
        %v903 = vsel %vm455, 1, 0
        %v904 = vsel %vm456, 1, 0
        %v905 = vsel %vm457, 1, 0
        %v906 = vsel %vm458, 1, 0
        %v907 = vsel %vm459, 1, 0
        %v908 = vsel %vm460, 1, 0
        %v909 = vsel %vm461, 1, 0
        %v910 = vsel %vm462, 1, 0
        %v911 = vsel %vm463, 1, 0
        %v912 = vsel %vm464, 1, 0
        %v913 = vsel %vm465, 1, 0
        %v914 = vsel %vm466, 1, 0
        %v915 = vsel %vm467, 1, 0
        %v916 = vsel %vm468, 1, 0
        %v917 = vsel %vm469, 1, 0
        %v918 = vsel %vm470, 1, 0
        %v919 = vsel %vm471, 1, 0
        %v920 = vsel %vm472, 1, 0
        %v921 = vsel %vm473, 1, 0
        %v922 = vsel %vm474, 1, 0
        %v923 = vsel %vm475, 1, 0
        %v924 = vsel %vm476, 1, 0
        %v925 = vsel %vm477, 1, 0
        %v926 = vsel %vm478, 1, 0
        %v927 = vsel %vm479, 1, 0
        %v928 = vsel %vm480, 1, 0
        %v929 = vsel %vm481, 1, 0
        %v930 = vsel %vm482, 1, 0
        %v931 = vsel %vm483, 1, 0
        %v932 = vsel %vm484, 1, 0
        %v933 = vsel %vm485, 1, 0
        %v934 = vsel %vm486, 1, 0
        %v935 = vsel %vm487, 1, 0
        %v936 = vsel %vm488, 1, 0
        %v937 = vsel %vm489, 1, 0
        %v938 = vsel %vm490, 1, 0
        %v939 = vsel %vm491, 1, 0
        %v940 = vsel %vm492, 1, 0
        %v941 = vsel %vm493, 1, 0
        %v942 = vsel %vm494, 1, 0
        %v943 = vsel %vm495, 1, 0
        %v944 = vsel %vm496, 1, 0
        %v945 = vsel %vm497, 1, 0
        %v946 = vsel %vm498, 1, 0
        %v947 = vsel %vm499, 1, 0
        %v948 = vsel %vm500, 1, 0
        %v949 = vsel %vm501, 1, 0
        %v950 = vsel %vm502, 1, 0
        %v951 = vsel %vm503, 1, 0
        %v952 = vsel %vm504, 1, 0
        %v953 = vsel %vm505, 1, 0
        %v954 = vsel %vm506, 1, 0
        %v955 = vsel %vm507, 1, 0
        %v956 = vsel %vm508, 1, 0
        %v957 = vsel %vm509, 1, 0
        %v958 = vsel %vm510, 1, 0
        %v959 = vsel %vm511, 1, 0
        %v960 = vsel %vm512, 1, 0
        %v961 = vsel %vm513, 1, 0
        %v962 = vsel %vm514, 1, 0
        %v963 = vsel %vm515, 1, 0
        %v964 = vsel %vm516, 1, 0
        %v965 = vsel %vm517, 1, 0
        %v966 = vsel %vm518, 1, 0
        %v967 = vsel %vm519, 1, 0
        %v968 = vsel %vm520, 1, 0
        %v969 = vsel %vm521, 1, 0
        %v970 = vsel %vm522, 1, 0
        %v971 = vsel %vm523, 1, 0
        %v972 = vsel %vm524, 1, 0
        %v973 = vsel %vm525, 1, 0
        %v974 = vsel %vm526, 1, 0
        %v975 = vsel %vm527, 1, 0
        %v976 = vsel %vm528, 1, 0
        %v977 = vsel %vm529, 1, 0
        %v978 = vsel %vm530, 1, 0
        %v979 = vsel %vm531, 1, 0
        %v980 = vsel %vm532, 1, 0
        %v981 = vsel %vm533, 1, 0
        %v982 = vsel %vm534, 1, 0
        %v983 = vsel %vm535, 1, 0
        %v984 = vsel %vm536, 1, 0
        %v985 = vsel %vm537, 1, 0
        %v986 = vsel %vm538, 1, 0
        %v987 = vsel %vm539, 1, 0
        %v988 = vsel %vm540, 1, 0
        %v989 = vsel %vm541, 1, 0
        %v990 = vsel %vm542, 1, 0
        %v991 = vsel %vm543, 1, 0
        %v992 = vsel %vm544, 1, 0
        %v993 = vsel %vm545, 1, 0
        %v994 = vsel %vm546, 1, 0
        %v995 = vsel %vm547, 1, 0
        %v996 = vsel %vm548, 1, 0
        %v997 = vsel %vm549, 1, 0
        %v998 = vsel %vm550, 1, 0
        %v999 = vsel %vm551, 1, 0
        %v1000 = vsel %vm552, 1, 0
        %v1001 = vsel %vm553, 1, 0
        %v1002 = vsel %vm554, 1, 0
        %v1003 = vsel %vm555, 1, 0
        %v1004 = vsel %vm556, 1, 0
        %v1005 = vsel %vm557, 1, 0
        %v1006 = vsel %vm558, 1, 0
        %v1007 = vcvt.s32.f32 %v879
        %v1008 = vcvt.s32.f32 %v880
        %v1009 = vcvt.s32.f32 %v881
        %v1010 = vcvt.s32.f32 %v882
        %v1011 = vcvt.s32.f32 %v883
        %v1012 = vcvt.s32.f32 %v884
        %v1013 = vcvt.s32.f32 %v885
        %v1014 = vcvt.s32.f32 %v886
        %v1015 = vcvt.s32.f32 %v887
        %v1016 = vcvt.s32.f32 %v888
        %v1017 = vcvt.s32.f32 %v889
        %v1018 = vcvt.s32.f32 %v890
        %v1019 = vcvt.s32.f32 %v891
        %v1020 = vcvt.s32.f32 %v892
        %v1021 = vcvt.s32.f32 %v893
        %v1022 = vcvt.s32.f32 %v894
        %v1023 = vcvt.s32.f32 %v895
        %v1024 = vcvt.s32.f32 %v896
        %v1025 = vcvt.s32.f32 %v897
        %v1026 = vcvt.s32.f32 %v898
        %v1027 = vcvt.s32.f32 %v899
        %v1028 = vcvt.s32.f32 %v900
        %v1029 = vcvt.s32.f32 %v901
        %v1030 = vcvt.s32.f32 %v902
        %v1031 = vcvt.s32.f32 %v903
        %v1032 = vcvt.s32.f32 %v904
        %v1033 = vcvt.s32.f32 %v905
        %v1034 = vcvt.s32.f32 %v906
        %v1035 = vcvt.s32.f32 %v907
        %v1036 = vcvt.s32.f32 %v908
        %v1037 = vcvt.s32.f32 %v909
        %v1038 = vcvt.s32.f32 %v910
        %v1039 = vcvt.s32.f32 %v911
        %v1040 = vcvt.s32.f32 %v912
        %v1041 = vcvt.s32.f32 %v913
        %v1042 = vcvt.s32.f32 %v914
        %v1043 = vcvt.s32.f32 %v915
        %v1044 = vcvt.s32.f32 %v916
        %v1045 = vcvt.s32.f32 %v917
        %v1046 = vcvt.s32.f32 %v918
        %v1047 = vcvt.s32.f32 %v919
        %v1048 = vcvt.s32.f32 %v920
        %v1049 = vcvt.s32.f32 %v921
        %v1050 = vcvt.s32.f32 %v922
        %v1051 = vcvt.s32.f32 %v923
        %v1052 = vcvt.s32.f32 %v924
        %v1053 = vcvt.s32.f32 %v925
        %v1054 = vcvt.s32.f32 %v926
        %v1055 = vcvt.s32.f32 %v927
        %v1056 = vcvt.s32.f32 %v928
        %v1057 = vcvt.s32.f32 %v929
        %v1058 = vcvt.s32.f32 %v930
        %v1059 = vcvt.s32.f32 %v931
        %v1060 = vcvt.s32.f32 %v932
        %v1061 = vcvt.s32.f32 %v933
        %v1062 = vcvt.s32.f32 %v934
        %v1063 = vcvt.s32.f32 %v935
        %v1064 = vcvt.s32.f32 %v936
        %v1065 = vcvt.s32.f32 %v937
        %v1066 = vcvt.s32.f32 %v938
        %v1067 = vcvt.s32.f32 %v939
        %v1068 = vcvt.s32.f32 %v940
        %v1069 = vcvt.s32.f32 %v941
        %v1070 = vcvt.s32.f32 %v942
        %v1071 = vcvt.s32.f32 %v943
        %v1072 = vcvt.s32.f32 %v944
        %v1073 = vcvt.s32.f32 %v945
        %v1074 = vcvt.s32.f32 %v946
        %v1075 = vcvt.s32.f32 %v947
        %v1076 = vcvt.s32.f32 %v948
        %v1077 = vcvt.s32.f32 %v949
        %v1078 = vcvt.s32.f32 %v950
        %v1079 = vcvt.s32.f32 %v951
        %v1080 = vcvt.s32.f32 %v952
        %v1081 = vcvt.s32.f32 %v953
        %v1082 = vcvt.s32.f32 %v954
        %v1083 = vcvt.s32.f32 %v955
        %v1084 = vcvt.s32.f32 %v956
        %v1085 = vcvt.s32.f32 %v957
        %v1086 = vcvt.s32.f32 %v958
        %v1087 = vcvt.s32.f32 %v959
        %v1088 = vcvt.s32.f32 %v960
        %v1089 = vcvt.s32.f32 %v961
        %v1090 = vcvt.s32.f32 %v962
        %v1091 = vcvt.s32.f32 %v963
        %v1092 = vcvt.s32.f32 %v964
        %v1093 = vcvt.s32.f32 %v965
        %v1094 = vcvt.s32.f32 %v966
        %v1095 = vcvt.s32.f32 %v967
        %v1096 = vcvt.s32.f32 %v968
        %v1097 = vcvt.s32.f32 %v969
        %v1098 = vcvt.s32.f32 %v970
        %v1099 = vcvt.s32.f32 %v971
        %v1100 = vcvt.s32.f32 %v972
        %v1101 = vcvt.s32.f32 %v973
        %v1102 = vcvt.s32.f32 %v974
        %v1103 = vcvt.s32.f32 %v975
        %v1104 = vcvt.s32.f32 %v976
        %v1105 = vcvt.s32.f32 %v977
        %v1106 = vcvt.s32.f32 %v978
        %v1107 = vcvt.s32.f32 %v979
        %v1108 = vcvt.s32.f32 %v980
        %v1109 = vcvt.s32.f32 %v981
        %v1110 = vcvt.s32.f32 %v982
        %v1111 = vcvt.s32.f32 %v983
        %v1112 = vcvt.s32.f32 %v984
        %v1113 = vcvt.s32.f32 %v985
        %v1114 = vcvt.s32.f32 %v986
        %v1115 = vcvt.s32.f32 %v987
        %v1116 = vcvt.s32.f32 %v988
        %v1117 = vcvt.s32.f32 %v989
        %v1118 = vcvt.s32.f32 %v990
        %v1119 = vcvt.s32.f32 %v991
        %v1120 = vcvt.s32.f32 %v992
        %v1121 = vcvt.s32.f32 %v993
        %v1122 = vcvt.s32.f32 %v994
        %v1123 = vcvt.s32.f32 %v995
        %v1124 = vcvt.s32.f32 %v996
        %v1125 = vcvt.s32.f32 %v997
        %v1126 = vcvt.s32.f32 %v998
        %v1127 = vcvt.s32.f32 %v999
        %v1128 = vcvt.s32.f32 %v1000
        %v1129 = vcvt.s32.f32 %v1001
        %v1130 = vcvt.s32.f32 %v1002
        %v1131 = vcvt.s32.f32 %v1003
        %v1132 = vcvt.s32.f32 %v1004
        %v1133 = vcvt.s32.f32 %v1005
        %v1134 = vcvt.s32.f32 %v1006
        %v1135 = vpack.c.bf16 %v1011, %v1007
        %v1136 = vpack.c.bf16 %v1012, %v1008
        %v1137 = vpack.c.bf16 %v1013, %v1009
        %v1138 = vpack.c.bf16 %v1014, %v1010
        %v1139 = vpack.c.bf16 %v1019, %v1015
        %v1140 = vpack.c.bf16 %v1020, %v1016
        %v1141 = vpack.c.bf16 %v1021, %v1017
        %v1142 = vpack.c.bf16 %v1022, %v1018
        %v1143 = vpack.c.bf16 %v1027, %v1023
        %v1144 = vpack.c.bf16 %v1028, %v1024
        %v1145 = vpack.c.bf16 %v1029, %v1025
        %v1146 = vpack.c.bf16 %v1030, %v1026
        %v1147 = vpack.c.bf16 %v1035, %v1031
        %v1148 = vpack.c.bf16 %v1036, %v1032
        %v1149 = vpack.c.bf16 %v1037, %v1033
        %v1150 = vpack.c.bf16 %v1038, %v1034
        %v1151 = vpack.c.bf16 %v1043, %v1039
        %v1152 = vpack.c.bf16 %v1044, %v1040
        %v1153 = vpack.c.bf16 %v1045, %v1041
        %v1154 = vpack.c.bf16 %v1046, %v1042
        %v1155 = vpack.c.bf16 %v1051, %v1047
        %v1156 = vpack.c.bf16 %v1052, %v1048
        %v1157 = vpack.c.bf16 %v1053, %v1049
        %v1158 = vpack.c.bf16 %v1054, %v1050
        %v1159 = vpack.c.bf16 %v1059, %v1055
        %v1160 = vpack.c.bf16 %v1060, %v1056
        %v1161 = vpack.c.bf16 %v1061, %v1057
        %v1162 = vpack.c.bf16 %v1062, %v1058
        %v1163 = vpack.c.bf16 %v1067, %v1063
        %v1164 = vpack.c.bf16 %v1068, %v1064
        %v1165 = vpack.c.bf16 %v1069, %v1065
        %v1166 = vpack.c.bf16 %v1070, %v1066
        %v1167 = vpack.c.bf16 %v1075, %v1071
        %v1168 = vpack.c.bf16 %v1076, %v1072
        %v1169 = vpack.c.bf16 %v1077, %v1073
        %v1170 = vpack.c.bf16 %v1078, %v1074
        %v1171 = vpack.c.bf16 %v1083, %v1079
        %v1172 = vpack.c.bf16 %v1084, %v1080
        %v1173 = vpack.c.bf16 %v1085, %v1081
        %v1174 = vpack.c.bf16 %v1086, %v1082
        %v1175 = vpack.c.bf16 %v1091, %v1087
        %v1176 = vpack.c.bf16 %v1092, %v1088
        %v1177 = vpack.c.bf16 %v1093, %v1089
        %v1178 = vpack.c.bf16 %v1094, %v1090
        %v1179 = vpack.c.bf16 %v1099, %v1095
        %v1180 = vpack.c.bf16 %v1100, %v1096
        %v1181 = vpack.c.bf16 %v1101, %v1097
        %v1182 = vpack.c.bf16 %v1102, %v1098
        %v1183 = vpack.c.bf16 %v1107, %v1103
        %v1184 = vpack.c.bf16 %v1108, %v1104
        %v1185 = vpack.c.bf16 %v1109, %v1105
        %v1186 = vpack.c.bf16 %v1110, %v1106
        %v1187 = vpack.c.bf16 %v1115, %v1111
        %v1188 = vpack.c.bf16 %v1116, %v1112
        %v1189 = vpack.c.bf16 %v1117, %v1113
        %v1190 = vpack.c.bf16 %v1118, %v1114
        %v1191 = vpack.c.bf16 %v1123, %v1119
        %v1192 = vpack.c.bf16 %v1124, %v1120
        %v1193 = vpack.c.bf16 %v1125, %v1121
        %v1194 = vpack.c.bf16 %v1126, %v1122
        %v1195 = vpack.c.bf16 %v1131, %v1127
        %v1196 = vpack.c.bf16 %v1132, %v1128
        %v1197 = vpack.c.bf16 %v1133, %v1129
        %v1198 = vpack.c.bf16 %v1134, %v1130
        %v1199 = vadd.f32 %v1007, %v1008
        %v1200 = vadd.f32 %v1199, %v1009
        %v1201 = vadd.f32 %v1200, %v1010
        %1202 = vadd.xlane.f32.xlu0 %v1201
        %v1203 = vpop.xlane.xlu0 %1202
        %v1204 = vadd.f32 %v1011, %v1012
        %v1205 = vadd.f32 %v1204, %v1013
        %v1206 = vadd.f32 %v1205, %v1014
        %1207 = vadd.xlane.f32.xlu0 %v1206
        %v1208 = vpop.xlane.xlu0 %1207
        %v1209 = vadd.f32 %v1015, %v1016
        %v1210 = vadd.f32 %v1209, %v1017
        %v1211 = vadd.f32 %v1210, %v1018
        %1212 = vadd.xlane.f32.xlu0 %v1211
        %v1213 = vpop.xlane.xlu0 %1212
        %v1214 = vadd.f32 %v1019, %v1020
        %v1215 = vadd.f32 %v1214, %v1021
        %v1216 = vadd.f32 %v1215, %v1022
        %1217 = vadd.xlane.f32.xlu0 %v1216
        %v1218 = vpop.xlane.xlu0 %1217
        %v1219 = vadd.f32 %v1023, %v1024
        %v1220 = vadd.f32 %v1219, %v1025
        %v1221 = vadd.f32 %v1220, %v1026
        %1222 = vadd.xlane.f32.xlu0 %v1221
        %v1223 = vpop.xlane.xlu0 %1222
        %v1224 = vadd.f32 %v1027, %v1028
        %v1225 = vadd.f32 %v1224, %v1029
        %v1226 = vadd.f32 %v1225, %v1030
        %1227 = vadd.xlane.f32.xlu0 %v1226
        %v1228 = vpop.xlane.xlu0 %1227
        %v1229 = vadd.f32 %v1031, %v1032
        %v1230 = vadd.f32 %v1229, %v1033
        %v1231 = vadd.f32 %v1230, %v1034
        %1232 = vadd.xlane.f32.xlu0 %v1231
        %v1233 = vpop.xlane.xlu0 %1232
        %v1234 = vadd.f32 %v1035, %v1036
        %v1235 = vadd.f32 %v1234, %v1037
        %v1236 = vadd.f32 %v1235, %v1038
        %1237 = vadd.xlane.f32.xlu0 %v1236
        %v1238 = vpop.xlane.xlu0 %1237
        %v1239 = vadd.f32 %v1039, %v1040
        %v1240 = vadd.f32 %v1239, %v1041
        %v1241 = vadd.f32 %v1240, %v1042
        %1242 = vadd.xlane.f32.xlu0 %v1241
        %v1243 = vpop.xlane.xlu0 %1242
        %v1244 = vadd.f32 %v1043, %v1044
        %v1245 = vadd.f32 %v1244, %v1045
        %v1246 = vadd.f32 %v1245, %v1046
        %1247 = vadd.xlane.f32.xlu0 %v1246
        %v1248 = vpop.xlane.xlu0 %1247
        %v1249 = vadd.f32 %v1047, %v1048
        %v1250 = vadd.f32 %v1249, %v1049
        %v1251 = vadd.f32 %v1250, %v1050
        %1252 = vadd.xlane.f32.xlu0 %v1251
        %v1253 = vpop.xlane.xlu0 %1252
        %v1254 = vadd.f32 %v1051, %v1052
        %v1255 = vadd.f32 %v1254, %v1053
        %v1256 = vadd.f32 %v1255, %v1054
        %1257 = vadd.xlane.f32.xlu0 %v1256
        %v1258 = vpop.xlane.xlu0 %1257
        %v1259 = vadd.f32 %v1055, %v1056
        %v1260 = vadd.f32 %v1259, %v1057
        %v1261 = vadd.f32 %v1260, %v1058
        %1262 = vadd.xlane.f32.xlu0 %v1261
        %v1263 = vpop.xlane.xlu0 %1262
        %v1264 = vadd.f32 %v1059, %v1060
        %v1265 = vadd.f32 %v1264, %v1061
        %v1266 = vadd.f32 %v1265, %v1062
        %1267 = vadd.xlane.f32.xlu0 %v1266
        %v1268 = vpop.xlane.xlu0 %1267
        %v1269 = vadd.f32 %v1063, %v1064
        %v1270 = vadd.f32 %v1269, %v1065
        %v1271 = vadd.f32 %v1270, %v1066
        %1272 = vadd.xlane.f32.xlu0 %v1271
        %v1273 = vpop.xlane.xlu0 %1272
        %v1274 = vadd.f32 %v1067, %v1068
        %v1275 = vadd.f32 %v1274, %v1069
        %v1276 = vadd.f32 %v1275, %v1070
        %1277 = vadd.xlane.f32.xlu0 %v1276
        %v1278 = vpop.xlane.xlu0 %1277
        %v1279 = vadd.f32 %v1071, %v1072
        %v1280 = vadd.f32 %v1279, %v1073
        %v1281 = vadd.f32 %v1280, %v1074
        %1282 = vadd.xlane.f32.xlu0 %v1281
        %v1283 = vpop.xlane.xlu0 %1282
        %v1284 = vadd.f32 %v1075, %v1076
        %v1285 = vadd.f32 %v1284, %v1077
        %v1286 = vadd.f32 %v1285, %v1078
        %1287 = vadd.xlane.f32.xlu0 %v1286
        %v1288 = vpop.xlane.xlu0 %1287
        %v1289 = vadd.f32 %v1079, %v1080
        %v1290 = vadd.f32 %v1289, %v1081
        %v1291 = vadd.f32 %v1290, %v1082
        %1292 = vadd.xlane.f32.xlu0 %v1291
        %v1293 = vpop.xlane.xlu0 %1292
        %v1294 = vadd.f32 %v1083, %v1084
        %v1295 = vadd.f32 %v1294, %v1085
        %v1296 = vadd.f32 %v1295, %v1086
        %1297 = vadd.xlane.f32.xlu0 %v1296
        %v1298 = vpop.xlane.xlu0 %1297
        %v1299 = vadd.f32 %v1087, %v1088
        %v1300 = vadd.f32 %v1299, %v1089
        %v1301 = vadd.f32 %v1300, %v1090
        %1302 = vadd.xlane.f32.xlu0 %v1301
        %v1303 = vpop.xlane.xlu0 %1302
        %v1304 = vadd.f32 %v1091, %v1092
        %v1305 = vadd.f32 %v1304, %v1093
        %v1306 = vadd.f32 %v1305, %v1094
        %1307 = vadd.xlane.f32.xlu0 %v1306
        %v1308 = vpop.xlane.xlu0 %1307
        %v1309 = vadd.f32 %v1095, %v1096
        %v1310 = vadd.f32 %v1309, %v1097
        %v1311 = vadd.f32 %v1310, %v1098
        %1312 = vadd.xlane.f32.xlu0 %v1311
        %v1313 = vpop.xlane.xlu0 %1312
        %v1314 = vadd.f32 %v1099, %v1100
        %v1315 = vadd.f32 %v1314, %v1101
        %v1316 = vadd.f32 %v1315, %v1102
        %1317 = vadd.xlane.f32.xlu0 %v1316
        %v1318 = vpop.xlane.xlu0 %1317
        %v1319 = vadd.f32 %v1103, %v1104
        %v1320 = vadd.f32 %v1319, %v1105
        %v1321 = vadd.f32 %v1320, %v1106
        %1322 = vadd.xlane.f32.xlu0 %v1321
        %v1323 = vpop.xlane.xlu0 %1322
        %v1324 = vadd.f32 %v1107, %v1108
        %v1325 = vadd.f32 %v1324, %v1109
        %v1326 = vadd.f32 %v1325, %v1110
        %1327 = vadd.xlane.f32.xlu0 %v1326
        %v1328 = vpop.xlane.xlu0 %1327
        %v1329 = vadd.f32 %v1111, %v1112
        %v1330 = vadd.f32 %v1329, %v1113
        %v1331 = vadd.f32 %v1330, %v1114
        %1332 = vadd.xlane.f32.xlu0 %v1331
        %v1333 = vpop.xlane.xlu0 %1332
        %v1334 = vadd.f32 %v1115, %v1116
        %v1335 = vadd.f32 %v1334, %v1117
        %v1336 = vadd.f32 %v1335, %v1118
        %1337 = vadd.xlane.f32.xlu0 %v1336
        %v1338 = vpop.xlane.xlu0 %1337
        %v1339 = vadd.f32 %v1119, %v1120
        %v1340 = vadd.f32 %v1339, %v1121
        %v1341 = vadd.f32 %v1340, %v1122
        %1342 = vadd.xlane.f32.xlu0 %v1341
        %v1343 = vpop.xlane.xlu0 %1342
        %v1344 = vadd.f32 %v1123, %v1124
        %v1345 = vadd.f32 %v1344, %v1125
        %v1346 = vadd.f32 %v1345, %v1126
        %1347 = vadd.xlane.f32.xlu0 %v1346
        %v1348 = vpop.xlane.xlu0 %1347
        %v1349 = vadd.f32 %v1127, %v1128
        %v1350 = vadd.f32 %v1349, %v1129
        %v1351 = vadd.f32 %v1350, %v1130
        %1352 = vadd.xlane.f32.xlu0 %v1351
        %v1353 = vpop.xlane.xlu0 %1352
        %v1354 = vadd.f32 %v1131, %v1132
        %v1355 = vadd.f32 %v1354, %v1133
        %v1356 = vadd.f32 %v1355, %v1134
        %1357 = vadd.xlane.f32.xlu0 %v1356
        %v1358 = vpop.xlane.xlu0 %1357
        %vm1359 = vcmp.gt.f32.partialorder %v1203, 0.0
        %vm1360 = vcmp.gt.f32.partialorder %v1208, 0.0
        %vm1361 = vcmp.gt.f32.partialorder %v1213, 0.0
        %vm1362 = vcmp.gt.f32.partialorder %v1218, 0.0
        %vm1363 = vcmp.gt.f32.partialorder %v1223, 0.0
        %vm1364 = vcmp.gt.f32.partialorder %v1228, 0.0
        %vm1365 = vcmp.gt.f32.partialorder %v1233, 0.0
        %vm1366 = vcmp.gt.f32.partialorder %v1238, 0.0
        %vm1367 = vcmp.gt.f32.partialorder %v1243, 0.0
        %vm1368 = vcmp.gt.f32.partialorder %v1248, 0.0
        %vm1369 = vcmp.gt.f32.partialorder %v1253, 0.0
        %vm1370 = vcmp.gt.f32.partialorder %v1258, 0.0
        %vm1371 = vcmp.gt.f32.partialorder %v1263, 0.0
        %vm1372 = vcmp.gt.f32.partialorder %v1268, 0.0
        %vm1373 = vcmp.gt.f32.partialorder %v1273, 0.0
        %vm1374 = vcmp.gt.f32.partialorder %v1278, 0.0
        %vm1375 = vcmp.gt.f32.partialorder %v1283, 0.0
        %vm1376 = vcmp.gt.f32.partialorder %v1288, 0.0
        %vm1377 = vcmp.gt.f32.partialorder %v1293, 0.0
        %vm1378 = vcmp.gt.f32.partialorder %v1298, 0.0
        %vm1379 = vcmp.gt.f32.partialorder %v1303, 0.0
        %vm1380 = vcmp.gt.f32.partialorder %v1308, 0.0
        %vm1381 = vcmp.gt.f32.partialorder %v1313, 0.0
        %vm1382 = vcmp.gt.f32.partialorder %v1318, 0.0
        %vm1383 = vcmp.gt.f32.partialorder %v1323, 0.0
        %vm1384 = vcmp.gt.f32.partialorder %v1328, 0.0
        %vm1385 = vcmp.gt.f32.partialorder %v1333, 0.0
        %vm1386 = vcmp.gt.f32.partialorder %v1338, 0.0
        %vm1387 = vcmp.gt.f32.partialorder %v1343, 0.0
        %vm1388 = vcmp.gt.f32.partialorder %v1348, 0.0
        %vm1389 = vcmp.gt.f32.partialorder %v1353, 0.0
        %vm1390 = vcmp.gt.f32.partialorder %v1358, 0.0
        %v1391 = vmax.f32 %v1203, 1.0
        %v1392 = vmax.f32 %v1208, 1.0
        %v1393 = vmax.f32 %v1213, 1.0
        %v1394 = vmax.f32 %v1218, 1.0
        %v1395 = vmax.f32 %v1223, 1.0
        %v1396 = vmax.f32 %v1228, 1.0
        %v1397 = vmax.f32 %v1233, 1.0
        %v1398 = vmax.f32 %v1238, 1.0
        %v1399 = vmax.f32 %v1243, 1.0
        %v1400 = vmax.f32 %v1248, 1.0
        %v1401 = vmax.f32 %v1253, 1.0
        %v1402 = vmax.f32 %v1258, 1.0
        %v1403 = vmax.f32 %v1263, 1.0
        %v1404 = vmax.f32 %v1268, 1.0
        %v1405 = vmax.f32 %v1273, 1.0
        %v1406 = vmax.f32 %v1278, 1.0
        %v1407 = vmax.f32 %v1283, 1.0
        %v1408 = vmax.f32 %v1288, 1.0
        %v1409 = vmax.f32 %v1293, 1.0
        %v1410 = vmax.f32 %v1298, 1.0
        %v1411 = vmax.f32 %v1303, 1.0
        %v1412 = vmax.f32 %v1308, 1.0
        %v1413 = vmax.f32 %v1313, 1.0
        %v1414 = vmax.f32 %v1318, 1.0
        %v1415 = vmax.f32 %v1323, 1.0
        %v1416 = vmax.f32 %v1328, 1.0
        %v1417 = vmax.f32 %v1333, 1.0
        %v1418 = vmax.f32 %v1338, 1.0
        %v1419 = vmax.f32 %v1343, 1.0
        %v1420 = vmax.f32 %v1348, 1.0
        %v1421 = vmax.f32 %v1353, 1.0
        %v1422 = vmax.f32 %v1358, 1.0
        %v1423 = vrcp.pop %v1391
        %v1424 = vmul.f32 %v1391, %v1423
        %v1425 = vsub.f32 1.0, %v1424
        %v1426 = vmul.f32 %v1423, %v1425
        %v1427 = vadd.f32 %v1423, %v1426
        %vm1428 = vweird.f32 %v1391
        %vm1429 = vweird.f32 %v1423
        %vm1430 = vmor %vm1428, %vm1429
        %v1431 = vsel %vm1430, %v1423, %v1427
        %v1432 = vand.u32 2147483647, %v1391
        %vm1433 = vcmp.eq.f32.partialorder %v1432, 8.507059e+37
        %v1434 = vand.u32 %v1391, 2147483648
        %v1435 = vor.u32 1.1754944e-38, %v1434
        %v1436 = vsel %vm1433, %v1435, %v1431
        %v1437 = vmul.f32 1.0, %v1436
        %v1438 = vrcp.pop %v1392
        %v1439 = vmul.f32 %v1392, %v1438
        %v1440 = vsub.f32 1.0, %v1439
        %v1441 = vmul.f32 %v1438, %v1440
        %v1442 = vadd.f32 %v1438, %v1441
        %vm1443 = vweird.f32 %v1392
        %vm1444 = vweird.f32 %v1438
        %vm1445 = vmor %vm1443, %vm1444
        %v1446 = vsel %vm1445, %v1438, %v1442
        %v1447 = vand.u32 2147483647, %v1392
        %vm1448 = vcmp.eq.f32.partialorder %v1447, 8.507059e+37
        %v1449 = vand.u32 %v1392, 2147483648
        %v1450 = vor.u32 1.1754944e-38, %v1449
        %v1451 = vsel %vm1448, %v1450, %v1446
        %v1452 = vmul.f32 1.0, %v1451
        %v1453 = vrcp.pop %v1393
        %v1454 = vmul.f32 %v1393, %v1453
        %v1455 = vsub.f32 1.0, %v1454
        %v1456 = vmul.f32 %v1453, %v1455
        %v1457 = vadd.f32 %v1453, %v1456
        %vm1458 = vweird.f32 %v1393
        %vm1459 = vweird.f32 %v1453
        %vm1460 = vmor %vm1458, %vm1459
        %v1461 = vsel %vm1460, %v1453, %v1457
        %v1462 = vand.u32 2147483647, %v1393
        %vm1463 = vcmp.eq.f32.partialorder %v1462, 8.507059e+37
        %v1464 = vand.u32 %v1393, 2147483648
        %v1465 = vor.u32 1.1754944e-38, %v1464
        %v1466 = vsel %vm1463, %v1465, %v1461
        %v1467 = vmul.f32 1.0, %v1466
        %v1468 = vrcp.pop %v1394
        %v1469 = vmul.f32 %v1394, %v1468
        %v1470 = vsub.f32 1.0, %v1469
        %v1471 = vmul.f32 %v1468, %v1470
        %v1472 = vadd.f32 %v1468, %v1471
        %vm1473 = vweird.f32 %v1394
        %vm1474 = vweird.f32 %v1468
        %vm1475 = vmor %vm1473, %vm1474
        %v1476 = vsel %vm1475, %v1468, %v1472
        %v1477 = vand.u32 2147483647, %v1394
        %vm1478 = vcmp.eq.f32.partialorder %v1477, 8.507059e+37
        %v1479 = vand.u32 %v1394, 2147483648
        %v1480 = vor.u32 1.1754944e-38, %v1479
        %v1481 = vsel %vm1478, %v1480, %v1476
        %v1482 = vmul.f32 1.0, %v1481
        %v1483 = vrcp.pop %v1395
        %v1484 = vmul.f32 %v1395, %v1483
        %v1485 = vsub.f32 1.0, %v1484
        %v1486 = vmul.f32 %v1483, %v1485
        %v1487 = vadd.f32 %v1483, %v1486
        %vm1488 = vweird.f32 %v1395
        %vm1489 = vweird.f32 %v1483
        %vm1490 = vmor %vm1488, %vm1489
        %v1491 = vsel %vm1490, %v1483, %v1487
        %v1492 = vand.u32 2147483647, %v1395
        %vm1493 = vcmp.eq.f32.partialorder %v1492, 8.507059e+37
        %v1494 = vand.u32 %v1395, 2147483648
        %v1495 = vor.u32 1.1754944e-38, %v1494
        %v1496 = vsel %vm1493, %v1495, %v1491
        %v1497 = vmul.f32 1.0, %v1496
        %v1498 = vrcp.pop %v1396
        %v1499 = vmul.f32 %v1396, %v1498
        %v1500 = vsub.f32 1.0, %v1499
        %v1501 = vmul.f32 %v1498, %v1500
        %v1502 = vadd.f32 %v1498, %v1501
        %vm1503 = vweird.f32 %v1396
        %vm1504 = vweird.f32 %v1498
        %vm1505 = vmor %vm1503, %vm1504
        %v1506 = vsel %vm1505, %v1498, %v1502
        %v1507 = vand.u32 2147483647, %v1396
        %vm1508 = vcmp.eq.f32.partialorder %v1507, 8.507059e+37
        %v1509 = vand.u32 %v1396, 2147483648
        %v1510 = vor.u32 1.1754944e-38, %v1509
        %v1511 = vsel %vm1508, %v1510, %v1506
        %v1512 = vmul.f32 1.0, %v1511
        %v1513 = vrcp.pop %v1397
        %v1514 = vmul.f32 %v1397, %v1513
        %v1515 = vsub.f32 1.0, %v1514
        %v1516 = vmul.f32 %v1513, %v1515
        %v1517 = vadd.f32 %v1513, %v1516
        %vm1518 = vweird.f32 %v1397
        %vm1519 = vweird.f32 %v1513
        %vm1520 = vmor %vm1518, %vm1519
        %v1521 = vsel %vm1520, %v1513, %v1517
        %v1522 = vand.u32 2147483647, %v1397
        %vm1523 = vcmp.eq.f32.partialorder %v1522, 8.507059e+37
        %v1524 = vand.u32 %v1397, 2147483648
        %v1525 = vor.u32 1.1754944e-38, %v1524
        %v1526 = vsel %vm1523, %v1525, %v1521
        %v1527 = vmul.f32 1.0, %v1526
        %v1528 = vrcp.pop %v1398
        %v1529 = vmul.f32 %v1398, %v1528
        %v1530 = vsub.f32 1.0, %v1529
        %v1531 = vmul.f32 %v1528, %v1530
        %v1532 = vadd.f32 %v1528, %v1531
        %vm1533 = vweird.f32 %v1398
        %vm1534 = vweird.f32 %v1528
        %vm1535 = vmor %vm1533, %vm1534
        %v1536 = vsel %vm1535, %v1528, %v1532
        %v1537 = vand.u32 2147483647, %v1398
        %vm1538 = vcmp.eq.f32.partialorder %v1537, 8.507059e+37
        %v1539 = vand.u32 %v1398, 2147483648
        %v1540 = vor.u32 1.1754944e-38, %v1539
        %v1541 = vsel %vm1538, %v1540, %v1536
        %v1542 = vmul.f32 1.0, %v1541
        %v1543 = vrcp.pop %v1399
        %v1544 = vmul.f32 %v1399, %v1543
        %v1545 = vsub.f32 1.0, %v1544
        %v1546 = vmul.f32 %v1543, %v1545
        %v1547 = vadd.f32 %v1543, %v1546
        %vm1548 = vweird.f32 %v1399
        %vm1549 = vweird.f32 %v1543
        %vm1550 = vmor %vm1548, %vm1549
        %v1551 = vsel %vm1550, %v1543, %v1547
        %v1552 = vand.u32 2147483647, %v1399
        %vm1553 = vcmp.eq.f32.partialorder %v1552, 8.507059e+37
        %v1554 = vand.u32 %v1399, 2147483648
        %v1555 = vor.u32 1.1754944e-38, %v1554
        %v1556 = vsel %vm1553, %v1555, %v1551
        %v1557 = vmul.f32 1.0, %v1556
        %v1558 = vrcp.pop %v1400
        %v1559 = vmul.f32 %v1400, %v1558
        %v1560 = vsub.f32 1.0, %v1559
        %v1561 = vmul.f32 %v1558, %v1560
        %v1562 = vadd.f32 %v1558, %v1561
        %vm1563 = vweird.f32 %v1400
        %vm1564 = vweird.f32 %v1558
        %vm1565 = vmor %vm1563, %vm1564
        %v1566 = vsel %vm1565, %v1558, %v1562
        %v1567 = vand.u32 2147483647, %v1400
        %vm1568 = vcmp.eq.f32.partialorder %v1567, 8.507059e+37
        %v1569 = vand.u32 %v1400, 2147483648
        %v1570 = vor.u32 1.1754944e-38, %v1569
        %v1571 = vsel %vm1568, %v1570, %v1566
        %v1572 = vmul.f32 1.0, %v1571
        %v1573 = vrcp.pop %v1401
        %v1574 = vmul.f32 %v1401, %v1573
        %v1575 = vsub.f32 1.0, %v1574
        %v1576 = vmul.f32 %v1573, %v1575
        %v1577 = vadd.f32 %v1573, %v1576
        %vm1578 = vweird.f32 %v1401
        %vm1579 = vweird.f32 %v1573
        %vm1580 = vmor %vm1578, %vm1579
        %v1581 = vsel %vm1580, %v1573, %v1577
        %v1582 = vand.u32 2147483647, %v1401
        %vm1583 = vcmp.eq.f32.partialorder %v1582, 8.507059e+37
        %v1584 = vand.u32 %v1401, 2147483648
        %v1585 = vor.u32 1.1754944e-38, %v1584
        %v1586 = vsel %vm1583, %v1585, %v1581
        %v1587 = vmul.f32 1.0, %v1586
        %v1588 = vrcp.pop %v1402
        %v1589 = vmul.f32 %v1402, %v1588
        %v1590 = vsub.f32 1.0, %v1589
        %v1591 = vmul.f32 %v1588, %v1590
        %v1592 = vadd.f32 %v1588, %v1591
        %vm1593 = vweird.f32 %v1402
        %vm1594 = vweird.f32 %v1588
        %vm1595 = vmor %vm1593, %vm1594
        %v1596 = vsel %vm1595, %v1588, %v1592
        %v1597 = vand.u32 2147483647, %v1402
        %vm1598 = vcmp.eq.f32.partialorder %v1597, 8.507059e+37
        %v1599 = vand.u32 %v1402, 2147483648
        %v1600 = vor.u32 1.1754944e-38, %v1599
        %v1601 = vsel %vm1598, %v1600, %v1596
        %v1602 = vmul.f32 1.0, %v1601
        %v1603 = vrcp.pop %v1403
        %v1604 = vmul.f32 %v1403, %v1603
        %v1605 = vsub.f32 1.0, %v1604
        %v1606 = vmul.f32 %v1603, %v1605
        %v1607 = vadd.f32 %v1603, %v1606
        %vm1608 = vweird.f32 %v1403
        %vm1609 = vweird.f32 %v1603
        %vm1610 = vmor %vm1608, %vm1609
        %v1611 = vsel %vm1610, %v1603, %v1607
        %v1612 = vand.u32 2147483647, %v1403
        %vm1613 = vcmp.eq.f32.partialorder %v1612, 8.507059e+37
        %v1614 = vand.u32 %v1403, 2147483648
        %v1615 = vor.u32 1.1754944e-38, %v1614
        %v1616 = vsel %vm1613, %v1615, %v1611
        %v1617 = vmul.f32 1.0, %v1616
        %v1618 = vrcp.pop %v1404
        %v1619 = vmul.f32 %v1404, %v1618
        %v1620 = vsub.f32 1.0, %v1619
        %v1621 = vmul.f32 %v1618, %v1620
        %v1622 = vadd.f32 %v1618, %v1621
        %vm1623 = vweird.f32 %v1404
        %vm1624 = vweird.f32 %v1618
        %vm1625 = vmor %vm1623, %vm1624
        %v1626 = vsel %vm1625, %v1618, %v1622
        %v1627 = vand.u32 2147483647, %v1404
        %vm1628 = vcmp.eq.f32.partialorder %v1627, 8.507059e+37
        %v1629 = vand.u32 %v1404, 2147483648
        %v1630 = vor.u32 1.1754944e-38, %v1629
        %v1631 = vsel %vm1628, %v1630, %v1626
        %v1632 = vmul.f32 1.0, %v1631
        %v1633 = vrcp.pop %v1405
        %v1634 = vmul.f32 %v1405, %v1633
        %v1635 = vsub.f32 1.0, %v1634
        %v1636 = vmul.f32 %v1633, %v1635
        %v1637 = vadd.f32 %v1633, %v1636
        %vm1638 = vweird.f32 %v1405
        %vm1639 = vweird.f32 %v1633
        %vm1640 = vmor %vm1638, %vm1639
        %v1641 = vsel %vm1640, %v1633, %v1637
        %v1642 = vand.u32 2147483647, %v1405
        %vm1643 = vcmp.eq.f32.partialorder %v1642, 8.507059e+37
        %v1644 = vand.u32 %v1405, 2147483648
        %v1645 = vor.u32 1.1754944e-38, %v1644
        %v1646 = vsel %vm1643, %v1645, %v1641
        %v1647 = vmul.f32 1.0, %v1646
        %v1648 = vrcp.pop %v1406
        %v1649 = vmul.f32 %v1406, %v1648
        %v1650 = vsub.f32 1.0, %v1649
        %v1651 = vmul.f32 %v1648, %v1650
        %v1652 = vadd.f32 %v1648, %v1651
        %vm1653 = vweird.f32 %v1406
        %vm1654 = vweird.f32 %v1648
        %vm1655 = vmor %vm1653, %vm1654
        %v1656 = vsel %vm1655, %v1648, %v1652
        %v1657 = vand.u32 2147483647, %v1406
        %vm1658 = vcmp.eq.f32.partialorder %v1657, 8.507059e+37
        %v1659 = vand.u32 %v1406, 2147483648
        %v1660 = vor.u32 1.1754944e-38, %v1659
        %v1661 = vsel %vm1658, %v1660, %v1656
        %v1662 = vmul.f32 1.0, %v1661
        %v1663 = vrcp.pop %v1407
        %v1664 = vmul.f32 %v1407, %v1663
        %v1665 = vsub.f32 1.0, %v1664
        %v1666 = vmul.f32 %v1663, %v1665
        %v1667 = vadd.f32 %v1663, %v1666
        %vm1668 = vweird.f32 %v1407
        %vm1669 = vweird.f32 %v1663
        %vm1670 = vmor %vm1668, %vm1669
        %v1671 = vsel %vm1670, %v1663, %v1667
        %v1672 = vand.u32 2147483647, %v1407
        %vm1673 = vcmp.eq.f32.partialorder %v1672, 8.507059e+37
        %v1674 = vand.u32 %v1407, 2147483648
        %v1675 = vor.u32 1.1754944e-38, %v1674
        %v1676 = vsel %vm1673, %v1675, %v1671
        %v1677 = vmul.f32 1.0, %v1676
        %v1678 = vrcp.pop %v1408
        %v1679 = vmul.f32 %v1408, %v1678
        %v1680 = vsub.f32 1.0, %v1679
        %v1681 = vmul.f32 %v1678, %v1680
        %v1682 = vadd.f32 %v1678, %v1681
        %vm1683 = vweird.f32 %v1408
        %vm1684 = vweird.f32 %v1678
        %vm1685 = vmor %vm1683, %vm1684
        %v1686 = vsel %vm1685, %v1678, %v1682
        %v1687 = vand.u32 2147483647, %v1408
        %vm1688 = vcmp.eq.f32.partialorder %v1687, 8.507059e+37
        %v1689 = vand.u32 %v1408, 2147483648
        %v1690 = vor.u32 1.1754944e-38, %v1689
        %v1691 = vsel %vm1688, %v1690, %v1686
        %v1692 = vmul.f32 1.0, %v1691
        %v1693 = vrcp.pop %v1409
        %v1694 = vmul.f32 %v1409, %v1693
        %v1695 = vsub.f32 1.0, %v1694
        %v1696 = vmul.f32 %v1693, %v1695
        %v1697 = vadd.f32 %v1693, %v1696
        %vm1698 = vweird.f32 %v1409
        %vm1699 = vweird.f32 %v1693
        %vm1700 = vmor %vm1698, %vm1699
        %v1701 = vsel %vm1700, %v1693, %v1697
        %v1702 = vand.u32 2147483647, %v1409
        %vm1703 = vcmp.eq.f32.partialorder %v1702, 8.507059e+37
        %v1704 = vand.u32 %v1409, 2147483648
        %v1705 = vor.u32 1.1754944e-38, %v1704
        %v1706 = vsel %vm1703, %v1705, %v1701
        %v1707 = vmul.f32 1.0, %v1706
        %v1708 = vrcp.pop %v1410
        %v1709 = vmul.f32 %v1410, %v1708
        %v1710 = vsub.f32 1.0, %v1709
        %v1711 = vmul.f32 %v1708, %v1710
        %v1712 = vadd.f32 %v1708, %v1711
        %vm1713 = vweird.f32 %v1410
        %vm1714 = vweird.f32 %v1708
        %vm1715 = vmor %vm1713, %vm1714
        %v1716 = vsel %vm1715, %v1708, %v1712
        %v1717 = vand.u32 2147483647, %v1410
        %vm1718 = vcmp.eq.f32.partialorder %v1717, 8.507059e+37
        %v1719 = vand.u32 %v1410, 2147483648
        %v1720 = vor.u32 1.1754944e-38, %v1719
        %v1721 = vsel %vm1718, %v1720, %v1716
        %v1722 = vmul.f32 1.0, %v1721
        %v1723 = vrcp.pop %v1411
        %v1724 = vmul.f32 %v1411, %v1723
        %v1725 = vsub.f32 1.0, %v1724
        %v1726 = vmul.f32 %v1723, %v1725
        %v1727 = vadd.f32 %v1723, %v1726
        %vm1728 = vweird.f32 %v1411
        %vm1729 = vweird.f32 %v1723
        %vm1730 = vmor %vm1728, %vm1729
        %v1731 = vsel %vm1730, %v1723, %v1727
        %v1732 = vand.u32 2147483647, %v1411
        %vm1733 = vcmp.eq.f32.partialorder %v1732, 8.507059e+37
        %v1734 = vand.u32 %v1411, 2147483648
        %v1735 = vor.u32 1.1754944e-38, %v1734
        %v1736 = vsel %vm1733, %v1735, %v1731
        %v1737 = vmul.f32 1.0, %v1736
        %v1738 = vrcp.pop %v1412
        %v1739 = vmul.f32 %v1412, %v1738
        %v1740 = vsub.f32 1.0, %v1739
        %v1741 = vmul.f32 %v1738, %v1740
        %v1742 = vadd.f32 %v1738, %v1741
        %vm1743 = vweird.f32 %v1412
        %vm1744 = vweird.f32 %v1738
        %vm1745 = vmor %vm1743, %vm1744
        %v1746 = vsel %vm1745, %v1738, %v1742
        %v1747 = vand.u32 2147483647, %v1412
        %vm1748 = vcmp.eq.f32.partialorder %v1747, 8.507059e+37
        %v1749 = vand.u32 %v1412, 2147483648
        %v1750 = vor.u32 1.1754944e-38, %v1749
        %v1751 = vsel %vm1748, %v1750, %v1746
        %v1752 = vmul.f32 1.0, %v1751
        %v1753 = vrcp.pop %v1413
        %v1754 = vmul.f32 %v1413, %v1753
        %v1755 = vsub.f32 1.0, %v1754
        %v1756 = vmul.f32 %v1753, %v1755
        %v1757 = vadd.f32 %v1753, %v1756
        %vm1758 = vweird.f32 %v1413
        %vm1759 = vweird.f32 %v1753
        %vm1760 = vmor %vm1758, %vm1759
        %v1761 = vsel %vm1760, %v1753, %v1757
        %v1762 = vand.u32 2147483647, %v1413
        %vm1763 = vcmp.eq.f32.partialorder %v1762, 8.507059e+37
        %v1764 = vand.u32 %v1413, 2147483648
        %v1765 = vor.u32 1.1754944e-38, %v1764
        %v1766 = vsel %vm1763, %v1765, %v1761
        %v1767 = vmul.f32 1.0, %v1766
        %v1768 = vrcp.pop %v1414
        %v1769 = vmul.f32 %v1414, %v1768
        %v1770 = vsub.f32 1.0, %v1769
        %v1771 = vmul.f32 %v1768, %v1770
        %v1772 = vadd.f32 %v1768, %v1771
        %vm1773 = vweird.f32 %v1414
        %vm1774 = vweird.f32 %v1768
        %vm1775 = vmor %vm1773, %vm1774
        %v1776 = vsel %vm1775, %v1768, %v1772
        %v1777 = vand.u32 2147483647, %v1414
        %vm1778 = vcmp.eq.f32.partialorder %v1777, 8.507059e+37
        %v1779 = vand.u32 %v1414, 2147483648
        %v1780 = vor.u32 1.1754944e-38, %v1779
        %v1781 = vsel %vm1778, %v1780, %v1776
        %v1782 = vmul.f32 1.0, %v1781
        %v1783 = vrcp.pop %v1415
        %v1784 = vmul.f32 %v1415, %v1783
        %v1785 = vsub.f32 1.0, %v1784
        %v1786 = vmul.f32 %v1783, %v1785
        %v1787 = vadd.f32 %v1783, %v1786
        %vm1788 = vweird.f32 %v1415
        %vm1789 = vweird.f32 %v1783
        %vm1790 = vmor %vm1788, %vm1789
        %v1791 = vsel %vm1790, %v1783, %v1787
        %v1792 = vand.u32 2147483647, %v1415
        %vm1793 = vcmp.eq.f32.partialorder %v1792, 8.507059e+37
        %v1794 = vand.u32 %v1415, 2147483648
        %v1795 = vor.u32 1.1754944e-38, %v1794
        %v1796 = vsel %vm1793, %v1795, %v1791
        %v1797 = vmul.f32 1.0, %v1796
        %v1798 = vrcp.pop %v1416
        %v1799 = vmul.f32 %v1416, %v1798
        %v1800 = vsub.f32 1.0, %v1799
        %v1801 = vmul.f32 %v1798, %v1800
        %v1802 = vadd.f32 %v1798, %v1801
        %vm1803 = vweird.f32 %v1416
        %vm1804 = vweird.f32 %v1798
        %vm1805 = vmor %vm1803, %vm1804
        %v1806 = vsel %vm1805, %v1798, %v1802
        %v1807 = vand.u32 2147483647, %v1416
        %vm1808 = vcmp.eq.f32.partialorder %v1807, 8.507059e+37
        %v1809 = vand.u32 %v1416, 2147483648
        %v1810 = vor.u32 1.1754944e-38, %v1809
        %v1811 = vsel %vm1808, %v1810, %v1806
        %v1812 = vmul.f32 1.0, %v1811
        %v1813 = vrcp.pop %v1417
        %v1814 = vmul.f32 %v1417, %v1813
        %v1815 = vsub.f32 1.0, %v1814
        %v1816 = vmul.f32 %v1813, %v1815
        %v1817 = vadd.f32 %v1813, %v1816
        %vm1818 = vweird.f32 %v1417
        %vm1819 = vweird.f32 %v1813
        %vm1820 = vmor %vm1818, %vm1819
        %v1821 = vsel %vm1820, %v1813, %v1817
        %v1822 = vand.u32 2147483647, %v1417
        %vm1823 = vcmp.eq.f32.partialorder %v1822, 8.507059e+37
        %v1824 = vand.u32 %v1417, 2147483648
        %v1825 = vor.u32 1.1754944e-38, %v1824
        %v1826 = vsel %vm1823, %v1825, %v1821
        %v1827 = vmul.f32 1.0, %v1826
        %v1828 = vrcp.pop %v1418
        %v1829 = vmul.f32 %v1418, %v1828
        %v1830 = vsub.f32 1.0, %v1829
        %v1831 = vmul.f32 %v1828, %v1830
        %v1832 = vadd.f32 %v1828, %v1831
        %vm1833 = vweird.f32 %v1418
        %vm1834 = vweird.f32 %v1828
        %vm1835 = vmor %vm1833, %vm1834
        %v1836 = vsel %vm1835, %v1828, %v1832
        %v1837 = vand.u32 2147483647, %v1418
        %vm1838 = vcmp.eq.f32.partialorder %v1837, 8.507059e+37
        %v1839 = vand.u32 %v1418, 2147483648
        %v1840 = vor.u32 1.1754944e-38, %v1839
        %v1841 = vsel %vm1838, %v1840, %v1836
        %v1842 = vmul.f32 1.0, %v1841
        %v1843 = vrcp.pop %v1419
        %v1844 = vmul.f32 %v1419, %v1843
        %v1845 = vsub.f32 1.0, %v1844
        %v1846 = vmul.f32 %v1843, %v1845
        %v1847 = vadd.f32 %v1843, %v1846
        %vm1848 = vweird.f32 %v1419
        %vm1849 = vweird.f32 %v1843
        %vm1850 = vmor %vm1848, %vm1849
        %v1851 = vsel %vm1850, %v1843, %v1847
        %v1852 = vand.u32 2147483647, %v1419
        %vm1853 = vcmp.eq.f32.partialorder %v1852, 8.507059e+37
        %v1854 = vand.u32 %v1419, 2147483648
        %v1855 = vor.u32 1.1754944e-38, %v1854
        %v1856 = vsel %vm1853, %v1855, %v1851
        %v1857 = vmul.f32 1.0, %v1856
        %v1858 = vrcp.pop %v1420
        %v1859 = vmul.f32 %v1420, %v1858
        %v1860 = vsub.f32 1.0, %v1859
        %v1861 = vmul.f32 %v1858, %v1860
        %v1862 = vadd.f32 %v1858, %v1861
        %vm1863 = vweird.f32 %v1420
        %vm1864 = vweird.f32 %v1858
        %vm1865 = vmor %vm1863, %vm1864
        %v1866 = vsel %vm1865, %v1858, %v1862
        %v1867 = vand.u32 2147483647, %v1420
        %vm1868 = vcmp.eq.f32.partialorder %v1867, 8.507059e+37
        %v1869 = vand.u32 %v1420, 2147483648
        %v1870 = vor.u32 1.1754944e-38, %v1869
        %v1871 = vsel %vm1868, %v1870, %v1866
        %v1872 = vmul.f32 1.0, %v1871
        %v1873 = vrcp.pop %v1421
        %v1874 = vmul.f32 %v1421, %v1873
        %v1875 = vsub.f32 1.0, %v1874
        %v1876 = vmul.f32 %v1873, %v1875
        %v1877 = vadd.f32 %v1873, %v1876
        %vm1878 = vweird.f32 %v1421
        %vm1879 = vweird.f32 %v1873
        %vm1880 = vmor %vm1878, %vm1879
        %v1881 = vsel %vm1880, %v1873, %v1877
        %v1882 = vand.u32 2147483647, %v1421
        %vm1883 = vcmp.eq.f32.partialorder %v1882, 8.507059e+37
        %v1884 = vand.u32 %v1421, 2147483648
        %v1885 = vor.u32 1.1754944e-38, %v1884
        %v1886 = vsel %vm1883, %v1885, %v1881
        %v1887 = vmul.f32 1.0, %v1886
        %v1888 = vrcp.pop %v1422
        %v1889 = vmul.f32 %v1422, %v1888
        %v1890 = vsub.f32 1.0, %v1889
        %v1891 = vmul.f32 %v1888, %v1890
        %v1892 = vadd.f32 %v1888, %v1891
        %vm1893 = vweird.f32 %v1422
        %vm1894 = vweird.f32 %v1888
        %vm1895 = vmor %vm1893, %vm1894
        %v1896 = vsel %vm1895, %v1888, %v1892
        %v1897 = vand.u32 2147483647, %v1422
        %vm1898 = vcmp.eq.f32.partialorder %v1897, 8.507059e+37
        %v1899 = vand.u32 %v1422, 2147483648
        %v1900 = vor.u32 1.1754944e-38, %v1899
        %v1901 = vsel %vm1898, %v1900, %v1896
        %v1902 = vmul.f32 1.0, %v1901
        %v1903 = vsel %vm1359, %v1437, 0.0
        %v1904 = vsel %vm1360, %v1452, 0.0
        %v1905 = vsel %vm1361, %v1467, 0.0
        %v1906 = vsel %vm1362, %v1482, 0.0
        %v1907 = vsel %vm1363, %v1497, 0.0
        %v1908 = vsel %vm1364, %v1512, 0.0
        %v1909 = vsel %vm1365, %v1527, 0.0
        %v1910 = vsel %vm1366, %v1542, 0.0
        %v1911 = vsel %vm1367, %v1557, 0.0
        %v1912 = vsel %vm1368, %v1572, 0.0
        %v1913 = vsel %vm1369, %v1587, 0.0
        %v1914 = vsel %vm1370, %v1602, 0.0
        %v1915 = vsel %vm1371, %v1617, 0.0
        %v1916 = vsel %vm1372, %v1632, 0.0
        %v1917 = vsel %vm1373, %v1647, 0.0
        %v1918 = vsel %vm1374, %v1662, 0.0
        %v1919 = vsel %vm1375, %v1677, 0.0
        %v1920 = vsel %vm1376, %v1692, 0.0
        %v1921 = vsel %vm1377, %v1707, 0.0
        %v1922 = vsel %vm1378, %v1722, 0.0
        %v1923 = vsel %vm1379, %v1737, 0.0
        %v1924 = vsel %vm1380, %v1752, 0.0
        %v1925 = vsel %vm1381, %v1767, 0.0
        %v1926 = vsel %vm1382, %v1782, 0.0
        %v1927 = vsel %vm1383, %v1797, 0.0
        %v1928 = vsel %vm1384, %v1812, 0.0
        %v1929 = vsel %vm1385, %v1827, 0.0
        %v1930 = vsel %vm1386, %v1842, 0.0
        %v1931 = vsel %vm1387, %v1857, 0.0
        %v1932 = vsel %vm1388, %v1872, 0.0
        %v1933 = vsel %vm1389, %v1887, 0.0
        %v1934 = vsel %vm1390, %v1902, 0.0
        %1935 = vmatpush.bf16.xpose.msra.mxu0 %v843
        %1936 = vmatpush.bf16.xpose.msra.mxu0 %v839
        %1937 = vmatpush.bf16.xpose.msra.mxu0 %v835
        %1938 = vmatpush.bf16.xpose.msra.mxu0 %v831
        %1939 = vmatpush.bf16.xpose.msra.mxu0 %v827
        %1940 = vmatpush.bf16.xpose.msra.mxu0 %v823
        %1941 = vmatpush.bf16.xpose.msra.mxu0 %v819
        %1942 = vmatpush.bf16.xpose.msra.mxu0 %v815
        %1943 = vmatmul.bf16.gmra.mxu0 %v1135
        %v1944 = vpop.f32.mrf.mxu0
        %v1945 = vadd.f32 0.0, %v1944
        %v1946 = vpop.f32.mrf.mxu0
        %v1947 = vadd.f32 0.0, %v1946
        %1948 = vmatmul.bf16.gmra.mxu0 %v1139
        %v1949 = vpop.f32.mrf.mxu0
        %v1950 = vadd.f32 0.0, %v1949
        %v1951 = vpop.f32.mrf.mxu0
        %v1952 = vadd.f32 0.0, %v1951
        %1953 = vmatmul.bf16.gmra.mxu0 %v1143
        %v1954 = vpop.f32.mrf.mxu0
        %v1955 = vadd.f32 0.0, %v1954
        %v1956 = vpop.f32.mrf.mxu0
        %v1957 = vadd.f32 0.0, %v1956
        %1958 = vmatmul.bf16.gmra.mxu0 %v1147
        %v1959 = vpop.f32.mrf.mxu0
        %v1960 = vadd.f32 0.0, %v1959
        %v1961 = vpop.f32.mrf.mxu0
        %v1962 = vadd.f32 0.0, %v1961
        %1963 = vmatmul.bf16.gmra.mxu0 %v1151
        %v1964 = vpop.f32.mrf.mxu0
        %v1965 = vadd.f32 0.0, %v1964
        %v1966 = vpop.f32.mrf.mxu0
        %v1967 = vadd.f32 0.0, %v1966
        %1968 = vmatmul.bf16.gmra.mxu0 %v1155
        %v1969 = vpop.f32.mrf.mxu0
        %v1970 = vadd.f32 0.0, %v1969
        %v1971 = vpop.f32.mrf.mxu0
        %v1972 = vadd.f32 0.0, %v1971
        %1973 = vmatmul.bf16.gmra.mxu0 %v1159
        %v1974 = vpop.f32.mrf.mxu0
        %v1975 = vadd.f32 0.0, %v1974
        %v1976 = vpop.f32.mrf.mxu0
        %v1977 = vadd.f32 0.0, %v1976
        %1978 = vmatmul.bf16.gmra.mxu0 %v1163
        %v1979 = vpop.f32.mrf.mxu0
        %v1980 = vadd.f32 0.0, %v1979
        %v1981 = vpop.f32.mrf.mxu0
        %v1982 = vadd.f32 0.0, %v1981
        %1983 = vmatmul.bf16.gmra.mxu0 %v1167
        %v1984 = vpop.f32.mrf.mxu0
        %v1985 = vadd.f32 0.0, %v1984
        %v1986 = vpop.f32.mrf.mxu0
        %v1987 = vadd.f32 0.0, %v1986
        %1988 = vmatmul.bf16.gmra.mxu0 %v1171
        %v1989 = vpop.f32.mrf.mxu0
        %v1990 = vadd.f32 0.0, %v1989
        %v1991 = vpop.f32.mrf.mxu0
        %v1992 = vadd.f32 0.0, %v1991
        %1993 = vmatmul.bf16.gmra.mxu0 %v1175
        %v1994 = vpop.f32.mrf.mxu0
        %v1995 = vadd.f32 0.0, %v1994
        %v1996 = vpop.f32.mrf.mxu0
        %v1997 = vadd.f32 0.0, %v1996
        %1998 = vmatmul.bf16.gmra.mxu0 %v1179
        %v1999 = vpop.f32.mrf.mxu0
        %v2000 = vadd.f32 0.0, %v1999
        %v2001 = vpop.f32.mrf.mxu0
        %v2002 = vadd.f32 0.0, %v2001
        %2003 = vmatmul.bf16.gmra.mxu0 %v1183
        %v2004 = vpop.f32.mrf.mxu0
        %v2005 = vadd.f32 0.0, %v2004
        %v2006 = vpop.f32.mrf.mxu0
        %v2007 = vadd.f32 0.0, %v2006
        %2008 = vmatmul.bf16.gmra.mxu0 %v1187
        %v2009 = vpop.f32.mrf.mxu0
        %v2010 = vadd.f32 0.0, %v2009
        %v2011 = vpop.f32.mrf.mxu0
        %v2012 = vadd.f32 0.0, %v2011
        %2013 = vmatmul.bf16.gmra.mxu0 %v1191
        %v2014 = vpop.f32.mrf.mxu0
        %v2015 = vadd.f32 0.0, %v2014
        %v2016 = vpop.f32.mrf.mxu0
        %v2017 = vadd.f32 0.0, %v2016
        %2018 = vmatmul.bf16.gmra.mxu0 %v1195
        %v2019 = vpop.f32.mrf.mxu0
        %v2020 = vadd.f32 0.0, %v2019
        %v2021 = vpop.f32.mrf.mxu0
        %v2022 = vadd.f32 0.0, %v2021
        %2023 = vdwg.mxu0
        %2024 = vmatpush.bf16.xpose.msra.mxu0 %v844
        %2025 = vmatpush.bf16.xpose.msra.mxu0 %v840
        %2026 = vmatpush.bf16.xpose.msra.mxu0 %v836
        %2027 = vmatpush.bf16.xpose.msra.mxu0 %v832
        %2028 = vmatpush.bf16.xpose.msra.mxu0 %v828
        %2029 = vmatpush.bf16.xpose.msra.mxu0 %v824
        %2030 = vmatpush.bf16.xpose.msra.mxu0 %v820
        %2031 = vmatpush.bf16.xpose.msra.mxu0 %v816
        %2032 = vmatmul.bf16.gmra.mxu0 %v1136
        %v2033 = vpop.f32.mrf.mxu0
        %v2034 = vadd.f32 %v1945, %v2033
        %v2035 = vpop.f32.mrf.mxu0
        %v2036 = vadd.f32 %v1947, %v2035
        %2037 = vmatmul.bf16.gmra.mxu0 %v1140
        %v2038 = vpop.f32.mrf.mxu0
        %v2039 = vadd.f32 %v1950, %v2038
        %v2040 = vpop.f32.mrf.mxu0
        %v2041 = vadd.f32 %v1952, %v2040
        %2042 = vmatmul.bf16.gmra.mxu0 %v1144
        %v2043 = vpop.f32.mrf.mxu0
        %v2044 = vadd.f32 %v1955, %v2043
        %v2045 = vpop.f32.mrf.mxu0
        %v2046 = vadd.f32 %v1957, %v2045
        %2047 = vmatmul.bf16.gmra.mxu0 %v1148
        %v2048 = vpop.f32.mrf.mxu0
        %v2049 = vadd.f32 %v1960, %v2048
        %v2050 = vpop.f32.mrf.mxu0
        %v2051 = vadd.f32 %v1962, %v2050
        %2052 = vmatmul.bf16.gmra.mxu0 %v1152
        %v2053 = vpop.f32.mrf.mxu0
        %v2054 = vadd.f32 %v1965, %v2053
        %v2055 = vpop.f32.mrf.mxu0
        %v2056 = vadd.f32 %v1967, %v2055
        %2057 = vmatmul.bf16.gmra.mxu0 %v1156
        %v2058 = vpop.f32.mrf.mxu0
        %v2059 = vadd.f32 %v1970, %v2058
        %v2060 = vpop.f32.mrf.mxu0
        %v2061 = vadd.f32 %v1972, %v2060
        %2062 = vmatmul.bf16.gmra.mxu0 %v1160
        %v2063 = vpop.f32.mrf.mxu0
        %v2064 = vadd.f32 %v1975, %v2063
        %v2065 = vpop.f32.mrf.mxu0
        %v2066 = vadd.f32 %v1977, %v2065
        %2067 = vmatmul.bf16.gmra.mxu0 %v1164
        %v2068 = vpop.f32.mrf.mxu0
        %v2069 = vadd.f32 %v1980, %v2068
        %v2070 = vpop.f32.mrf.mxu0
        %v2071 = vadd.f32 %v1982, %v2070
        %2072 = vmatmul.bf16.gmra.mxu0 %v1168
        %v2073 = vpop.f32.mrf.mxu0
        %v2074 = vadd.f32 %v1985, %v2073
        %v2075 = vpop.f32.mrf.mxu0
        %v2076 = vadd.f32 %v1987, %v2075
        %2077 = vmatmul.bf16.gmra.mxu0 %v1172
        %v2078 = vpop.f32.mrf.mxu0
        %v2079 = vadd.f32 %v1990, %v2078
        %v2080 = vpop.f32.mrf.mxu0
        %v2081 = vadd.f32 %v1992, %v2080
        %2082 = vmatmul.bf16.gmra.mxu0 %v1176
        %v2083 = vpop.f32.mrf.mxu0
        %v2084 = vadd.f32 %v1995, %v2083
        %v2085 = vpop.f32.mrf.mxu0
        %v2086 = vadd.f32 %v1997, %v2085
        %2087 = vmatmul.bf16.gmra.mxu0 %v1180
        %v2088 = vpop.f32.mrf.mxu0
        %v2089 = vadd.f32 %v2000, %v2088
        %v2090 = vpop.f32.mrf.mxu0
        %v2091 = vadd.f32 %v2002, %v2090
        %2092 = vmatmul.bf16.gmra.mxu0 %v1184
        %v2093 = vpop.f32.mrf.mxu0
        %v2094 = vadd.f32 %v2005, %v2093
        %v2095 = vpop.f32.mrf.mxu0
        %v2096 = vadd.f32 %v2007, %v2095
        %2097 = vmatmul.bf16.gmra.mxu0 %v1188
        %v2098 = vpop.f32.mrf.mxu0
        %v2099 = vadd.f32 %v2010, %v2098
        %v2100 = vpop.f32.mrf.mxu0
        %v2101 = vadd.f32 %v2012, %v2100
        %2102 = vmatmul.bf16.gmra.mxu0 %v1192
        %v2103 = vpop.f32.mrf.mxu0
        %v2104 = vadd.f32 %v2015, %v2103
        %v2105 = vpop.f32.mrf.mxu0
        %v2106 = vadd.f32 %v2017, %v2105
        %2107 = vmatmul.bf16.gmra.mxu0 %v1196
        %v2108 = vpop.f32.mrf.mxu0
        %v2109 = vadd.f32 %v2020, %v2108
        %v2110 = vpop.f32.mrf.mxu0
        %v2111 = vadd.f32 %v2022, %v2110
        %2112 = vdwg.mxu0
        %2113 = vmatpush.bf16.xpose.msra.mxu0 %v845
        %2114 = vmatpush.bf16.xpose.msra.mxu0 %v841
        %2115 = vmatpush.bf16.xpose.msra.mxu0 %v837
        %2116 = vmatpush.bf16.xpose.msra.mxu0 %v833
        %2117 = vmatpush.bf16.xpose.msra.mxu0 %v829
        %2118 = vmatpush.bf16.xpose.msra.mxu0 %v825
        %2119 = vmatpush.bf16.xpose.msra.mxu0 %v821
        %2120 = vmatpush.bf16.xpose.msra.mxu0 %v817
        %2121 = vmatmul.bf16.gmra.mxu0 %v1137
        %v2122 = vpop.f32.mrf.mxu0
        %v2123 = vadd.f32 %v2034, %v2122
        %v2124 = vpop.f32.mrf.mxu0
        %v2125 = vadd.f32 %v2036, %v2124
        %2126 = vmatmul.bf16.gmra.mxu0 %v1141
        %v2127 = vpop.f32.mrf.mxu0
        %v2128 = vadd.f32 %v2039, %v2127
        %v2129 = vpop.f32.mrf.mxu0
        %v2130 = vadd.f32 %v2041, %v2129
        %2131 = vmatmul.bf16.gmra.mxu0 %v1145
        %v2132 = vpop.f32.mrf.mxu0
        %v2133 = vadd.f32 %v2044, %v2132
        %v2134 = vpop.f32.mrf.mxu0
        %v2135 = vadd.f32 %v2046, %v2134
        %2136 = vmatmul.bf16.gmra.mxu0 %v1149
        %v2137 = vpop.f32.mrf.mxu0
        %v2138 = vadd.f32 %v2049, %v2137
        %v2139 = vpop.f32.mrf.mxu0
        %v2140 = vadd.f32 %v2051, %v2139
        %2141 = vmatmul.bf16.gmra.mxu0 %v1153
        %v2142 = vpop.f32.mrf.mxu0
        %v2143 = vadd.f32 %v2054, %v2142
        %v2144 = vpop.f32.mrf.mxu0
        %v2145 = vadd.f32 %v2056, %v2144
        %2146 = vmatmul.bf16.gmra.mxu0 %v1157
        %v2147 = vpop.f32.mrf.mxu0
        %v2148 = vadd.f32 %v2059, %v2147
        %v2149 = vpop.f32.mrf.mxu0
        %v2150 = vadd.f32 %v2061, %v2149
        %2151 = vmatmul.bf16.gmra.mxu0 %v1161
        %v2152 = vpop.f32.mrf.mxu0
        %v2153 = vadd.f32 %v2064, %v2152
        %v2154 = vpop.f32.mrf.mxu0
        %v2155 = vadd.f32 %v2066, %v2154
        %2156 = vmatmul.bf16.gmra.mxu0 %v1165
        %v2157 = vpop.f32.mrf.mxu0
        %v2158 = vadd.f32 %v2069, %v2157
        %v2159 = vpop.f32.mrf.mxu0
        %v2160 = vadd.f32 %v2071, %v2159
        %2161 = vmatmul.bf16.gmra.mxu0 %v1169
        %v2162 = vpop.f32.mrf.mxu0
        %v2163 = vadd.f32 %v2074, %v2162
        %v2164 = vpop.f32.mrf.mxu0
        %v2165 = vadd.f32 %v2076, %v2164
        %2166 = vmatmul.bf16.gmra.mxu0 %v1173
        %v2167 = vpop.f32.mrf.mxu0
        %v2168 = vadd.f32 %v2079, %v2167
        %v2169 = vpop.f32.mrf.mxu0
        %v2170 = vadd.f32 %v2081, %v2169
        %2171 = vmatmul.bf16.gmra.mxu0 %v1177
        %v2172 = vpop.f32.mrf.mxu0
        %v2173 = vadd.f32 %v2084, %v2172
        %v2174 = vpop.f32.mrf.mxu0
        %v2175 = vadd.f32 %v2086, %v2174
        %2176 = vmatmul.bf16.gmra.mxu0 %v1181
        %v2177 = vpop.f32.mrf.mxu0
        %v2178 = vadd.f32 %v2089, %v2177
        %v2179 = vpop.f32.mrf.mxu0
        %v2180 = vadd.f32 %v2091, %v2179
        %2181 = vmatmul.bf16.gmra.mxu0 %v1185
        %v2182 = vpop.f32.mrf.mxu0
        %v2183 = vadd.f32 %v2094, %v2182
        %v2184 = vpop.f32.mrf.mxu0
        %v2185 = vadd.f32 %v2096, %v2184
        %2186 = vmatmul.bf16.gmra.mxu0 %v1189
        %v2187 = vpop.f32.mrf.mxu0
        %v2188 = vadd.f32 %v2099, %v2187
        %v2189 = vpop.f32.mrf.mxu0
        %v2190 = vadd.f32 %v2101, %v2189
        %2191 = vmatmul.bf16.gmra.mxu0 %v1193
        %v2192 = vpop.f32.mrf.mxu0
        %v2193 = vadd.f32 %v2104, %v2192
        %v2194 = vpop.f32.mrf.mxu0
        %v2195 = vadd.f32 %v2106, %v2194
        %2196 = vmatmul.bf16.gmra.mxu0 %v1197
        %v2197 = vpop.f32.mrf.mxu0
        %v2198 = vadd.f32 %v2109, %v2197
        %v2199 = vpop.f32.mrf.mxu0
        %v2200 = vadd.f32 %v2111, %v2199
        %2201 = vdwg.mxu0
        %2202 = vmatpush.bf16.xpose.msra.mxu0 %v846
        %2203 = vmatpush.bf16.xpose.msra.mxu0 %v842
        %2204 = vmatpush.bf16.xpose.msra.mxu0 %v838
        %2205 = vmatpush.bf16.xpose.msra.mxu0 %v834
        %2206 = vmatpush.bf16.xpose.msra.mxu0 %v830
        %2207 = vmatpush.bf16.xpose.msra.mxu0 %v826
        %2208 = vmatpush.bf16.xpose.msra.mxu0 %v822
        %2209 = vmatpush.bf16.xpose.msra.mxu0 %v818
        %2210 = vmatmul.bf16.gmra.mxu0 %v1138
        %v2211 = vpop.f32.mrf.mxu0
        %v2212 = vadd.f32 %v2123, %v2211
        %v2213 = vpop.f32.mrf.mxu0
        %v2214 = vadd.f32 %v2125, %v2213
        %2215 = vmatmul.bf16.gmra.mxu0 %v1142
        %v2216 = vpop.f32.mrf.mxu0
        %v2217 = vadd.f32 %v2128, %v2216
        %v2218 = vpop.f32.mrf.mxu0
        %v2219 = vadd.f32 %v2130, %v2218
        %2220 = vmatmul.bf16.gmra.mxu0 %v1146
        %v2221 = vpop.f32.mrf.mxu0
        %v2222 = vadd.f32 %v2133, %v2221
        %v2223 = vpop.f32.mrf.mxu0
        %v2224 = vadd.f32 %v2135, %v2223
        %2225 = vmatmul.bf16.gmra.mxu0 %v1150
        %v2226 = vpop.f32.mrf.mxu0
        %v2227 = vadd.f32 %v2138, %v2226
        %v2228 = vpop.f32.mrf.mxu0
        %v2229 = vadd.f32 %v2140, %v2228
        %2230 = vmatmul.bf16.gmra.mxu0 %v1154
        %v2231 = vpop.f32.mrf.mxu0
        %v2232 = vadd.f32 %v2143, %v2231
        %v2233 = vpop.f32.mrf.mxu0
        %v2234 = vadd.f32 %v2145, %v2233
        %2235 = vmatmul.bf16.gmra.mxu0 %v1158
        %v2236 = vpop.f32.mrf.mxu0
        %v2237 = vadd.f32 %v2148, %v2236
        %v2238 = vpop.f32.mrf.mxu0
        %v2239 = vadd.f32 %v2150, %v2238
        %2240 = vmatmul.bf16.gmra.mxu0 %v1162
        %v2241 = vpop.f32.mrf.mxu0
        %v2242 = vadd.f32 %v2153, %v2241
        %v2243 = vpop.f32.mrf.mxu0
        %v2244 = vadd.f32 %v2155, %v2243
        %2245 = vmatmul.bf16.gmra.mxu0 %v1166
        %v2246 = vpop.f32.mrf.mxu0
        %v2247 = vadd.f32 %v2158, %v2246
        %v2248 = vpop.f32.mrf.mxu0
        %v2249 = vadd.f32 %v2160, %v2248
        %2250 = vmatmul.bf16.gmra.mxu0 %v1170
        %v2251 = vpop.f32.mrf.mxu0
        %v2252 = vadd.f32 %v2163, %v2251
        %v2253 = vpop.f32.mrf.mxu0
        %v2254 = vadd.f32 %v2165, %v2253
        %2255 = vmatmul.bf16.gmra.mxu0 %v1174
        %v2256 = vpop.f32.mrf.mxu0
        %v2257 = vadd.f32 %v2168, %v2256
        %v2258 = vpop.f32.mrf.mxu0
        %v2259 = vadd.f32 %v2170, %v2258
        %2260 = vmatmul.bf16.gmra.mxu0 %v1178
        %v2261 = vpop.f32.mrf.mxu0
        %v2262 = vadd.f32 %v2173, %v2261
        %v2263 = vpop.f32.mrf.mxu0
        %v2264 = vadd.f32 %v2175, %v2263
        %2265 = vmatmul.bf16.gmra.mxu0 %v1182
        %v2266 = vpop.f32.mrf.mxu0
        %v2267 = vadd.f32 %v2178, %v2266
        %v2268 = vpop.f32.mrf.mxu0
        %v2269 = vadd.f32 %v2180, %v2268
        %2270 = vmatmul.bf16.gmra.mxu0 %v1186
        %v2271 = vpop.f32.mrf.mxu0
        %v2272 = vadd.f32 %v2183, %v2271
        %v2273 = vpop.f32.mrf.mxu0
        %v2274 = vadd.f32 %v2185, %v2273
        %2275 = vmatmul.bf16.gmra.mxu0 %v1190
        %v2276 = vpop.f32.mrf.mxu0
        %v2277 = vadd.f32 %v2188, %v2276
        %v2278 = vpop.f32.mrf.mxu0
        %v2279 = vadd.f32 %v2190, %v2278
        %2280 = vmatmul.bf16.gmra.mxu0 %v1194
        %v2281 = vpop.f32.mrf.mxu0
        %v2282 = vadd.f32 %v2193, %v2281
        %v2283 = vpop.f32.mrf.mxu0
        %v2284 = vadd.f32 %v2195, %v2283
        %2285 = vmatmul.bf16.gmra.mxu0 %v1198
        %v2286 = vpop.f32.mrf.mxu0
        %v2287 = vadd.f32 %v2198, %v2286
        %v2288 = vpop.f32.mrf.mxu0
        %v2289 = vadd.f32 %v2200, %v2288
        %2290 = vdwg.mxu0
        %2291 = vmatpush.bf16.xpose.msra.mxu0 %v875
        %2292 = vmatpush.bf16.xpose.msra.mxu0 %v871
        %2293 = vmatpush.bf16.xpose.msra.mxu0 %v867
        %2294 = vmatpush.bf16.xpose.msra.mxu0 %v863
        %2295 = vmatpush.bf16.xpose.msra.mxu0 %v859
        %2296 = vmatpush.bf16.xpose.msra.mxu0 %v855
        %2297 = vmatpush.bf16.xpose.msra.mxu0 %v851
        %2298 = vmatpush.bf16.xpose.msra.mxu0 %v847
        %2299 = vmatmul.bf16.gmra.mxu0 %v1135
        %v2300 = vpop.f32.mrf.mxu0
        %v2301 = vadd.f32 0.0, %v2300
        %v2302 = vpop.f32.mrf.mxu0
        %v2303 = vadd.f32 0.0, %v2302
        %2304 = vmatmul.bf16.gmra.mxu0 %v1139
        %v2305 = vpop.f32.mrf.mxu0
        %v2306 = vadd.f32 0.0, %v2305
        %v2307 = vpop.f32.mrf.mxu0
        %v2308 = vadd.f32 0.0, %v2307
        %2309 = vmatmul.bf16.gmra.mxu0 %v1143
        %v2310 = vpop.f32.mrf.mxu0
        %v2311 = vadd.f32 0.0, %v2310
        %v2312 = vpop.f32.mrf.mxu0
        %v2313 = vadd.f32 0.0, %v2312
        %2314 = vmatmul.bf16.gmra.mxu0 %v1147
        %v2315 = vpop.f32.mrf.mxu0
        %v2316 = vadd.f32 0.0, %v2315
        %v2317 = vpop.f32.mrf.mxu0
        %v2318 = vadd.f32 0.0, %v2317
        %2319 = vmatmul.bf16.gmra.mxu0 %v1151
        %v2320 = vpop.f32.mrf.mxu0
        %v2321 = vadd.f32 0.0, %v2320
        %v2322 = vpop.f32.mrf.mxu0
        %v2323 = vadd.f32 0.0, %v2322
        %2324 = vmatmul.bf16.gmra.mxu0 %v1155
        %v2325 = vpop.f32.mrf.mxu0
        %v2326 = vadd.f32 0.0, %v2325
        %v2327 = vpop.f32.mrf.mxu0
        %v2328 = vadd.f32 0.0, %v2327
        %2329 = vmatmul.bf16.gmra.mxu0 %v1159
        %v2330 = vpop.f32.mrf.mxu0
        %v2331 = vadd.f32 0.0, %v2330
        %v2332 = vpop.f32.mrf.mxu0
        %v2333 = vadd.f32 0.0, %v2332
        %2334 = vmatmul.bf16.gmra.mxu0 %v1163
        %v2335 = vpop.f32.mrf.mxu0
        %v2336 = vadd.f32 0.0, %v2335
        %v2337 = vpop.f32.mrf.mxu0
        %v2338 = vadd.f32 0.0, %v2337
        %2339 = vmatmul.bf16.gmra.mxu0 %v1167
        %v2340 = vpop.f32.mrf.mxu0
        %v2341 = vadd.f32 0.0, %v2340
        %v2342 = vpop.f32.mrf.mxu0
        %v2343 = vadd.f32 0.0, %v2342
        %2344 = vmatmul.bf16.gmra.mxu0 %v1171
        %v2345 = vpop.f32.mrf.mxu0
        %v2346 = vadd.f32 0.0, %v2345
        %v2347 = vpop.f32.mrf.mxu0
        %v2348 = vadd.f32 0.0, %v2347
        %2349 = vmatmul.bf16.gmra.mxu0 %v1175
        %v2350 = vpop.f32.mrf.mxu0
        %v2351 = vadd.f32 0.0, %v2350
        %v2352 = vpop.f32.mrf.mxu0
        %v2353 = vadd.f32 0.0, %v2352
        %2354 = vmatmul.bf16.gmra.mxu0 %v1179
        %v2355 = vpop.f32.mrf.mxu0
        %v2356 = vadd.f32 0.0, %v2355
        %v2357 = vpop.f32.mrf.mxu0
        %v2358 = vadd.f32 0.0, %v2357
        %2359 = vmatmul.bf16.gmra.mxu0 %v1183
        %v2360 = vpop.f32.mrf.mxu0
        %v2361 = vadd.f32 0.0, %v2360
        %v2362 = vpop.f32.mrf.mxu0
        %v2363 = vadd.f32 0.0, %v2362
        %2364 = vmatmul.bf16.gmra.mxu0 %v1187
        %v2365 = vpop.f32.mrf.mxu0
        %v2366 = vadd.f32 0.0, %v2365
        %v2367 = vpop.f32.mrf.mxu0
        %v2368 = vadd.f32 0.0, %v2367
        %2369 = vmatmul.bf16.gmra.mxu0 %v1191
        %v2370 = vpop.f32.mrf.mxu0
        %v2371 = vadd.f32 0.0, %v2370
        %v2372 = vpop.f32.mrf.mxu0
        %v2373 = vadd.f32 0.0, %v2372
        %2374 = vmatmul.bf16.gmra.mxu0 %v1195
        %v2375 = vpop.f32.mrf.mxu0
        %v2376 = vadd.f32 0.0, %v2375
        %v2377 = vpop.f32.mrf.mxu0
        %v2378 = vadd.f32 0.0, %v2377
        %2379 = vdwg.mxu0
        %2380 = vmatpush.bf16.xpose.msra.mxu0 %v876
        %2381 = vmatpush.bf16.xpose.msra.mxu0 %v872
        %2382 = vmatpush.bf16.xpose.msra.mxu0 %v868
        %2383 = vmatpush.bf16.xpose.msra.mxu0 %v864
        %2384 = vmatpush.bf16.xpose.msra.mxu0 %v860
        %2385 = vmatpush.bf16.xpose.msra.mxu0 %v856
        %2386 = vmatpush.bf16.xpose.msra.mxu0 %v852
        %2387 = vmatpush.bf16.xpose.msra.mxu0 %v848
        %2388 = vmatmul.bf16.gmra.mxu0 %v1136
        %v2389 = vpop.f32.mrf.mxu0
        %v2390 = vadd.f32 %v2301, %v2389
        %v2391 = vpop.f32.mrf.mxu0
        %v2392 = vadd.f32 %v2303, %v2391
        %2393 = vmatmul.bf16.gmra.mxu0 %v1140
        %v2394 = vpop.f32.mrf.mxu0
        %v2395 = vadd.f32 %v2306, %v2394
        %v2396 = vpop.f32.mrf.mxu0
        %v2397 = vadd.f32 %v2308, %v2396
        %2398 = vmatmul.bf16.gmra.mxu0 %v1144
        %v2399 = vpop.f32.mrf.mxu0
        %v2400 = vadd.f32 %v2311, %v2399
        %v2401 = vpop.f32.mrf.mxu0
        %v2402 = vadd.f32 %v2313, %v2401
        %2403 = vmatmul.bf16.gmra.mxu0 %v1148
        %v2404 = vpop.f32.mrf.mxu0
        %v2405 = vadd.f32 %v2316, %v2404
        %v2406 = vpop.f32.mrf.mxu0
        %v2407 = vadd.f32 %v2318, %v2406
        %2408 = vmatmul.bf16.gmra.mxu0 %v1152
        %v2409 = vpop.f32.mrf.mxu0
        %v2410 = vadd.f32 %v2321, %v2409
        %v2411 = vpop.f32.mrf.mxu0
        %v2412 = vadd.f32 %v2323, %v2411
        %2413 = vmatmul.bf16.gmra.mxu0 %v1156
        %v2414 = vpop.f32.mrf.mxu0
        %v2415 = vadd.f32 %v2326, %v2414
        %v2416 = vpop.f32.mrf.mxu0
        %v2417 = vadd.f32 %v2328, %v2416
        %2418 = vmatmul.bf16.gmra.mxu0 %v1160
        %v2419 = vpop.f32.mrf.mxu0
        %v2420 = vadd.f32 %v2331, %v2419
        %v2421 = vpop.f32.mrf.mxu0
        %v2422 = vadd.f32 %v2333, %v2421
        %2423 = vmatmul.bf16.gmra.mxu0 %v1164
        %v2424 = vpop.f32.mrf.mxu0
        %v2425 = vadd.f32 %v2336, %v2424
        %v2426 = vpop.f32.mrf.mxu0
        %v2427 = vadd.f32 %v2338, %v2426
        %2428 = vmatmul.bf16.gmra.mxu0 %v1168
        %v2429 = vpop.f32.mrf.mxu0
        %v2430 = vadd.f32 %v2341, %v2429
        %v2431 = vpop.f32.mrf.mxu0
        %v2432 = vadd.f32 %v2343, %v2431
        %2433 = vmatmul.bf16.gmra.mxu0 %v1172
        %v2434 = vpop.f32.mrf.mxu0
        %v2435 = vadd.f32 %v2346, %v2434
        %v2436 = vpop.f32.mrf.mxu0
        %v2437 = vadd.f32 %v2348, %v2436
        %2438 = vmatmul.bf16.gmra.mxu0 %v1176
        %v2439 = vpop.f32.mrf.mxu0
        %v2440 = vadd.f32 %v2351, %v2439
        %v2441 = vpop.f32.mrf.mxu0
        %v2442 = vadd.f32 %v2353, %v2441
        %2443 = vmatmul.bf16.gmra.mxu0 %v1180
        %v2444 = vpop.f32.mrf.mxu0
        %v2445 = vadd.f32 %v2356, %v2444
        %v2446 = vpop.f32.mrf.mxu0
        %v2447 = vadd.f32 %v2358, %v2446
        %2448 = vmatmul.bf16.gmra.mxu0 %v1184
        %v2449 = vpop.f32.mrf.mxu0
        %v2450 = vadd.f32 %v2361, %v2449
        %v2451 = vpop.f32.mrf.mxu0
        %v2452 = vadd.f32 %v2363, %v2451
        %2453 = vmatmul.bf16.gmra.mxu0 %v1188
        %v2454 = vpop.f32.mrf.mxu0
        %v2455 = vadd.f32 %v2366, %v2454
        %v2456 = vpop.f32.mrf.mxu0
        %v2457 = vadd.f32 %v2368, %v2456
        %2458 = vmatmul.bf16.gmra.mxu0 %v1192
        %v2459 = vpop.f32.mrf.mxu0
        %v2460 = vadd.f32 %v2371, %v2459
        %v2461 = vpop.f32.mrf.mxu0
        %v2462 = vadd.f32 %v2373, %v2461
        %2463 = vmatmul.bf16.gmra.mxu0 %v1196
        %v2464 = vpop.f32.mrf.mxu0
        %v2465 = vadd.f32 %v2376, %v2464
        %v2466 = vpop.f32.mrf.mxu0
        %v2467 = vadd.f32 %v2378, %v2466
        %2468 = vdwg.mxu0
        %2469 = vmatpush.bf16.xpose.msra.mxu0 %v877
        %2470 = vmatpush.bf16.xpose.msra.mxu0 %v873
        %2471 = vmatpush.bf16.xpose.msra.mxu0 %v869
        %2472 = vmatpush.bf16.xpose.msra.mxu0 %v865
        %2473 = vmatpush.bf16.xpose.msra.mxu0 %v861
        %2474 = vmatpush.bf16.xpose.msra.mxu0 %v857
        %2475 = vmatpush.bf16.xpose.msra.mxu0 %v853
        %2476 = vmatpush.bf16.xpose.msra.mxu0 %v849
        %2477 = vmatmul.bf16.gmra.mxu0 %v1137
        %v2478 = vpop.f32.mrf.mxu0
        %v2479 = vadd.f32 %v2390, %v2478
        %v2480 = vpop.f32.mrf.mxu0
        %v2481 = vadd.f32 %v2392, %v2480
        %2482 = vmatmul.bf16.gmra.mxu0 %v1141
        %v2483 = vpop.f32.mrf.mxu0
        %v2484 = vadd.f32 %v2395, %v2483
        %v2485 = vpop.f32.mrf.mxu0
        %v2486 = vadd.f32 %v2397, %v2485
        %2487 = vmatmul.bf16.gmra.mxu0 %v1145
        %v2488 = vpop.f32.mrf.mxu0
        %v2489 = vadd.f32 %v2400, %v2488
        %v2490 = vpop.f32.mrf.mxu0
        %v2491 = vadd.f32 %v2402, %v2490
        %2492 = vmatmul.bf16.gmra.mxu0 %v1149
        %v2493 = vpop.f32.mrf.mxu0
        %v2494 = vadd.f32 %v2405, %v2493
        %v2495 = vpop.f32.mrf.mxu0
        %v2496 = vadd.f32 %v2407, %v2495
        %2497 = vmatmul.bf16.gmra.mxu0 %v1153
        %v2498 = vpop.f32.mrf.mxu0
        %v2499 = vadd.f32 %v2410, %v2498
        %v2500 = vpop.f32.mrf.mxu0
        %v2501 = vadd.f32 %v2412, %v2500
        %2502 = vmatmul.bf16.gmra.mxu0 %v1157
        %v2503 = vpop.f32.mrf.mxu0
        %v2504 = vadd.f32 %v2415, %v2503
        %v2505 = vpop.f32.mrf.mxu0
        %v2506 = vadd.f32 %v2417, %v2505
        %2507 = vmatmul.bf16.gmra.mxu0 %v1161
        %v2508 = vpop.f32.mrf.mxu0
        %v2509 = vadd.f32 %v2420, %v2508
        %v2510 = vpop.f32.mrf.mxu0
        %v2511 = vadd.f32 %v2422, %v2510
        %2512 = vmatmul.bf16.gmra.mxu0 %v1165
        %v2513 = vpop.f32.mrf.mxu0
        %v2514 = vadd.f32 %v2425, %v2513
        %v2515 = vpop.f32.mrf.mxu0
        %v2516 = vadd.f32 %v2427, %v2515
        %2517 = vmatmul.bf16.gmra.mxu0 %v1169
        %v2518 = vpop.f32.mrf.mxu0
        %v2519 = vadd.f32 %v2430, %v2518
        %v2520 = vpop.f32.mrf.mxu0
        %v2521 = vadd.f32 %v2432, %v2520
        %2522 = vmatmul.bf16.gmra.mxu0 %v1173
        %v2523 = vpop.f32.mrf.mxu0
        %v2524 = vadd.f32 %v2435, %v2523
        %v2525 = vpop.f32.mrf.mxu0
        %v2526 = vadd.f32 %v2437, %v2525
        %2527 = vmatmul.bf16.gmra.mxu0 %v1177
        %v2528 = vpop.f32.mrf.mxu0
        %v2529 = vadd.f32 %v2440, %v2528
        %v2530 = vpop.f32.mrf.mxu0
        %v2531 = vadd.f32 %v2442, %v2530
        %2532 = vmatmul.bf16.gmra.mxu0 %v1181
        %v2533 = vpop.f32.mrf.mxu0
        %v2534 = vadd.f32 %v2445, %v2533
        %v2535 = vpop.f32.mrf.mxu0
        %v2536 = vadd.f32 %v2447, %v2535
        %2537 = vmatmul.bf16.gmra.mxu0 %v1185
        %v2538 = vpop.f32.mrf.mxu0
        %v2539 = vadd.f32 %v2450, %v2538
        %v2540 = vpop.f32.mrf.mxu0
        %v2541 = vadd.f32 %v2452, %v2540
        %2542 = vmatmul.bf16.gmra.mxu0 %v1189
        %v2543 = vpop.f32.mrf.mxu0
        %v2544 = vadd.f32 %v2455, %v2543
        %v2545 = vpop.f32.mrf.mxu0
        %v2546 = vadd.f32 %v2457, %v2545
        %2547 = vmatmul.bf16.gmra.mxu0 %v1193
        %v2548 = vpop.f32.mrf.mxu0
        %v2549 = vadd.f32 %v2460, %v2548
        %v2550 = vpop.f32.mrf.mxu0
        %v2551 = vadd.f32 %v2462, %v2550
        %2552 = vmatmul.bf16.gmra.mxu0 %v1197
        %v2553 = vpop.f32.mrf.mxu0
        %v2554 = vadd.f32 %v2465, %v2553
        %v2555 = vpop.f32.mrf.mxu0
        %v2556 = vadd.f32 %v2467, %v2555
        %2557 = vdwg.mxu0
        %2558 = vmatpush.bf16.xpose.msra.mxu0 %v878
        %2559 = vmatpush.bf16.xpose.msra.mxu0 %v874
        %2560 = vmatpush.bf16.xpose.msra.mxu0 %v870
        %2561 = vmatpush.bf16.xpose.msra.mxu0 %v866
        %2562 = vmatpush.bf16.xpose.msra.mxu0 %v862
        %2563 = vmatpush.bf16.xpose.msra.mxu0 %v858
        %2564 = vmatpush.bf16.xpose.msra.mxu0 %v854
        %2565 = vmatpush.bf16.xpose.msra.mxu0 %v850
        %2566 = vmatmul.bf16.gmra.mxu0 %v1138
        %v2567 = vpop.f32.mrf.mxu0
        %v2568 = vadd.f32 %v2479, %v2567
        %v2569 = vpop.f32.mrf.mxu0
        %v2570 = vadd.f32 %v2481, %v2569
        %2571 = vmatmul.bf16.gmra.mxu0 %v1142
        %v2572 = vpop.f32.mrf.mxu0
        %v2573 = vadd.f32 %v2484, %v2572
        %v2574 = vpop.f32.mrf.mxu0
        %v2575 = vadd.f32 %v2486, %v2574
        %2576 = vmatmul.bf16.gmra.mxu0 %v1146
        %v2577 = vpop.f32.mrf.mxu0
        %v2578 = vadd.f32 %v2489, %v2577
        %v2579 = vpop.f32.mrf.mxu0
        %v2580 = vadd.f32 %v2491, %v2579
        %2581 = vmatmul.bf16.gmra.mxu0 %v1150
        %v2582 = vpop.f32.mrf.mxu0
        %v2583 = vadd.f32 %v2494, %v2582
        %v2584 = vpop.f32.mrf.mxu0
        %v2585 = vadd.f32 %v2496, %v2584
        %2586 = vmatmul.bf16.gmra.mxu0 %v1154
        %v2587 = vpop.f32.mrf.mxu0
        %v2588 = vadd.f32 %v2499, %v2587
        %v2589 = vpop.f32.mrf.mxu0
        %v2590 = vadd.f32 %v2501, %v2589
        %2591 = vmatmul.bf16.gmra.mxu0 %v1158
        %v2592 = vpop.f32.mrf.mxu0
        %v2593 = vadd.f32 %v2504, %v2592
        %v2594 = vpop.f32.mrf.mxu0
        %v2595 = vadd.f32 %v2506, %v2594
        %2596 = vmatmul.bf16.gmra.mxu0 %v1162
        %v2597 = vpop.f32.mrf.mxu0
        %v2598 = vadd.f32 %v2509, %v2597
        %v2599 = vpop.f32.mrf.mxu0
        %v2600 = vadd.f32 %v2511, %v2599
        %2601 = vmatmul.bf16.gmra.mxu0 %v1166
        %v2602 = vpop.f32.mrf.mxu0
        %v2603 = vadd.f32 %v2514, %v2602
        %v2604 = vpop.f32.mrf.mxu0
        %v2605 = vadd.f32 %v2516, %v2604
        %2606 = vmatmul.bf16.gmra.mxu0 %v1170
        %v2607 = vpop.f32.mrf.mxu0
        %v2608 = vadd.f32 %v2519, %v2607
        %v2609 = vpop.f32.mrf.mxu0
        %v2610 = vadd.f32 %v2521, %v2609
        %2611 = vmatmul.bf16.gmra.mxu0 %v1174
        %v2612 = vpop.f32.mrf.mxu0
        %v2613 = vadd.f32 %v2524, %v2612
        %v2614 = vpop.f32.mrf.mxu0
        %v2615 = vadd.f32 %v2526, %v2614
        %2616 = vmatmul.bf16.gmra.mxu0 %v1178
        %v2617 = vpop.f32.mrf.mxu0
        %v2618 = vadd.f32 %v2529, %v2617
        %v2619 = vpop.f32.mrf.mxu0
        %v2620 = vadd.f32 %v2531, %v2619
        %2621 = vmatmul.bf16.gmra.mxu0 %v1182
        %v2622 = vpop.f32.mrf.mxu0
        %v2623 = vadd.f32 %v2534, %v2622
        %v2624 = vpop.f32.mrf.mxu0
        %v2625 = vadd.f32 %v2536, %v2624
        %2626 = vmatmul.bf16.gmra.mxu0 %v1186
        %v2627 = vpop.f32.mrf.mxu0
        %v2628 = vadd.f32 %v2539, %v2627
        %v2629 = vpop.f32.mrf.mxu0
        %v2630 = vadd.f32 %v2541, %v2629
        %2631 = vmatmul.bf16.gmra.mxu0 %v1190
        %v2632 = vpop.f32.mrf.mxu0
        %v2633 = vadd.f32 %v2544, %v2632
        %v2634 = vpop.f32.mrf.mxu0
        %v2635 = vadd.f32 %v2546, %v2634
        %2636 = vmatmul.bf16.gmra.mxu0 %v1194
        %v2637 = vpop.f32.mrf.mxu0
        %v2638 = vadd.f32 %v2549, %v2637
        %v2639 = vpop.f32.mrf.mxu0
        %v2640 = vadd.f32 %v2551, %v2639
        %2641 = vmatmul.bf16.gmra.mxu0 %v1198
        %v2642 = vpop.f32.mrf.mxu0
        %v2643 = vadd.f32 %v2554, %v2642
        %v2644 = vpop.f32.mrf.mxu0
        %v2645 = vadd.f32 %v2556, %v2644
        %2646 = vdwg.mxu0
        %v2647 = vpack.c.bf16 %v2214, %v2212
        %v2648 = vpack.c.bf16 %v2570, %v2568
        %v2649 = vpack.c.bf16 %v2219, %v2217
        %v2650 = vpack.c.bf16 %v2575, %v2573
        %v2651 = vpack.c.bf16 %v2224, %v2222
        %v2652 = vpack.c.bf16 %v2580, %v2578
        %v2653 = vpack.c.bf16 %v2229, %v2227
        %v2654 = vpack.c.bf16 %v2585, %v2583
        %v2655 = vpack.c.bf16 %v2234, %v2232
        %v2656 = vpack.c.bf16 %v2590, %v2588
        %v2657 = vpack.c.bf16 %v2239, %v2237
        %v2658 = vpack.c.bf16 %v2595, %v2593
        %v2659 = vpack.c.bf16 %v2244, %v2242
        %v2660 = vpack.c.bf16 %v2600, %v2598
        %v2661 = vpack.c.bf16 %v2249, %v2247
        %v2662 = vpack.c.bf16 %v2605, %v2603
        %v2663 = vpack.c.bf16 %v2254, %v2252
        %v2664 = vpack.c.bf16 %v2610, %v2608
        %v2665 = vpack.c.bf16 %v2259, %v2257
        %v2666 = vpack.c.bf16 %v2615, %v2613
        %v2667 = vpack.c.bf16 %v2264, %v2262
        %v2668 = vpack.c.bf16 %v2620, %v2618
        %v2669 = vpack.c.bf16 %v2269, %v2267
        %v2670 = vpack.c.bf16 %v2625, %v2623
        %v2671 = vpack.c.bf16 %v2274, %v2272
        %v2672 = vpack.c.bf16 %v2630, %v2628
        %v2673 = vpack.c.bf16 %v2279, %v2277
        %v2674 = vpack.c.bf16 %v2635, %v2633
        %v2675 = vpack.c.bf16 %v2284, %v2282
        %v2676 = vpack.c.bf16 %v2640, %v2638
        %v2677 = vpack.c.bf16 %v2289, %v2287
        %v2678 = vpack.c.bf16 %v2645, %v2643
        %v2679 = vld [vmem:[%s257] sm:$0xf]
        %v2680 = vld [vmem:[%s257 + $0x4] sm:$0xf]
        %v2681 = vld [vmem:[%s257 + $0x8] sm:$0xf]
        %v2682 = vld [vmem:[%s257 + $0xc] sm:$0xf]
        %v2683 = vld [vmem:[%s257 + $0x10] sm:$0xf]
        %v2684 = vld [vmem:[%s257 + $0x14] sm:$0xf]
        %v2685 = vld [vmem:[%s257 + $0x18] sm:$0xf]
        %v2686 = vld [vmem:[%s257 + $0x1c] sm:$0xf]
        %v2687 = vld [vmem:[%s257 + $0x20] sm:$0xf]
        %v2688 = vld [vmem:[%s257 + $0x24] sm:$0xf]
        %v2689 = vld [vmem:[%s257 + $0x28] sm:$0xf]
        %v2690 = vld [vmem:[%s257 + $0x2c] sm:$0xf]
        %v2691 = vld [vmem:[%s257 + $0x30] sm:$0xf]
        %v2692 = vld [vmem:[%s257 + $0x34] sm:$0xf]
        %v2693 = vld [vmem:[%s257 + $0x38] sm:$0xf]
        %v2694 = vld [vmem:[%s257 + $0x3c] sm:$0xf]
        %v2695 = vld [vmem:[%s257 + $0x40] sm:$0xf]
        %v2696 = vld [vmem:[%s257 + $0x44] sm:$0xf]
        %v2697 = vld [vmem:[%s257 + $0x48] sm:$0xf]
        %v2698 = vld [vmem:[%s257 + $0x4c] sm:$0xf]
        %v2699 = vld [vmem:[%s257 + $0x50] sm:$0xf]
        %v2700 = vld [vmem:[%s257 + $0x54] sm:$0xf]
        %v2701 = vld [vmem:[%s257 + $0x58] sm:$0xf]
        %v2702 = vld [vmem:[%s257 + $0x5c] sm:$0xf]
        %v2703 = vld [vmem:[%s257 + $0x60] sm:$0xf]
        %v2704 = vld [vmem:[%s257 + $0x64] sm:$0xf]
        %v2705 = vld [vmem:[%s257 + $0x68] sm:$0xf]
        %v2706 = vld [vmem:[%s257 + $0x6c] sm:$0xf]
        %v2707 = vld [vmem:[%s257 + $0x70] sm:$0xf]
        %v2708 = vld [vmem:[%s257 + $0x74] sm:$0xf]
        %v2709 = vld [vmem:[%s257 + $0x78] sm:$0xf]
        %v2710 = vld [vmem:[%s257 + $0x7c] sm:$0xf]
        %v2711 = vld [vmem:[%s3] sm:$0xf]
        %v2712 = vld [vmem:[%s3 + $0x4] sm:$0xf]
        %v2713 = vld [vmem:[%s3 + $0x8] sm:$0xf]
        %v2714 = vld [vmem:[%s3 + $0xc] sm:$0xf]
        %v2715 = vld [vmem:[%s3 + $0x10] sm:$0xf]
        %v2716 = vld [vmem:[%s3 + $0x14] sm:$0xf]
        %v2717 = vld [vmem:[%s3 + $0x18] sm:$0xf]
        %v2718 = vld [vmem:[%s3 + $0x1c] sm:$0xf]
        %v2719 = vld [vmem:[%s4] sm:$0x1]
        %v2752 = vunpack.c.l.b16 %v2679
        %v2753 = vunpack.c.l.b16 %v2680
        %v2754 = vunpack.c.l.b16 %v2681
        %v2755 = vunpack.c.l.b16 %v2682
        %v2756 = vunpack.c.l.b16 %v2683
        %v2757 = vunpack.c.l.b16 %v2684
        %v2758 = vunpack.c.l.b16 %v2685
        %v2759 = vunpack.c.l.b16 %v2686
        %v2760 = vunpack.c.l.b16 %v2687
        %v2761 = vunpack.c.l.b16 %v2688
        %v2762 = vunpack.c.l.b16 %v2689
        %v2763 = vunpack.c.l.b16 %v2690
        %v2764 = vunpack.c.l.b16 %v2691
        %v2765 = vunpack.c.l.b16 %v2692
        %v2766 = vunpack.c.l.b16 %v2693
        %v2767 = vunpack.c.l.b16 %v2694
        %v2768 = vunpack.c.l.b16 %v2695
        %v2769 = vunpack.c.l.b16 %v2696
        %v2770 = vunpack.c.l.b16 %v2697
        %v2771 = vunpack.c.l.b16 %v2698
        %v2772 = vunpack.c.l.b16 %v2699
        %v2773 = vunpack.c.l.b16 %v2700
        %v2774 = vunpack.c.l.b16 %v2701
        %v2775 = vunpack.c.l.b16 %v2702
        %v2776 = vunpack.c.l.b16 %v2703
        %v2777 = vunpack.c.l.b16 %v2704
        %v2778 = vunpack.c.l.b16 %v2705
        %v2779 = vunpack.c.l.b16 %v2706
        %v2780 = vunpack.c.l.b16 %v2707
        %v2781 = vunpack.c.l.b16 %v2708
        %v2782 = vunpack.c.l.b16 %v2709
        %v2783 = vunpack.c.l.b16 %v2710
        %v2784 = vpack.c.b16 %v2753, %v2752
        %v2785 = vpack.c.b16 %v2755, %v2754
        %v2786 = vpack.c.b16 %v2757, %v2756
        %v2787 = vpack.c.b16 %v2759, %v2758
        %v2788 = vpack.c.b16 %v2761, %v2760
        %v2789 = vpack.c.b16 %v2763, %v2762
        %v2790 = vpack.c.b16 %v2765, %v2764
        %v2791 = vpack.c.b16 %v2767, %v2766
        %v2792 = vpack.c.b16 %v2769, %v2768
        %v2793 = vpack.c.b16 %v2771, %v2770
        %v2794 = vpack.c.b16 %v2773, %v2772
        %v2795 = vpack.c.b16 %v2775, %v2774
        %v2796 = vpack.c.b16 %v2777, %v2776
        %v2797 = vpack.c.b16 %v2779, %v2778
        %v2798 = vpack.c.b16 %v2781, %v2780
        %v2799 = vpack.c.b16 %v2783, %v2782
        %v2808 = vunpack.c.l.b16 %v2711
        %v2809 = vunpack.c.l.b16 %v2712
        %v2810 = vunpack.c.l.b16 %v2713
        %v2811 = vunpack.c.l.b16 %v2714
        %v2812 = vunpack.c.l.b16 %v2715
        %v2813 = vunpack.c.l.b16 %v2716
        %v2814 = vunpack.c.l.b16 %v2717
        %v2815 = vunpack.c.l.b16 %v2718
        %v2816 = vpack.c.b16 %v2809, %v2808
        %v2817 = vpack.c.b16 %v2811, %v2810
        %v2818 = vpack.c.b16 %v2813, %v2812
        %v2819 = vpack.c.b16 %v2815, %v2814
        %vm2824 = vcmask 523264
        %v2826 = vsel %vm2824, %v2784, 0
        %v2829 = vsel %vm2824, %v2785, 0
        %v2832 = vsel %vm2824, %v2786, 0
        %v2835 = vsel %vm2824, %v2787, 0
        %v2838 = vsel %vm2824, %v2788, 0
        %v2841 = vsel %vm2824, %v2789, 0
        %v2844 = vsel %vm2824, %v2790, 0
        %v2847 = vsel %vm2824, %v2791, 0
        %v2850 = vsel %vm2824, %v2792, 0
        %v2853 = vsel %vm2824, %v2793, 0
        %v2856 = vsel %vm2824, %v2794, 0
        %v2859 = vsel %vm2824, %v2795, 0
        %v2862 = vsel %vm2824, %v2796, 0
        %v2865 = vsel %vm2824, %v2797, 0
        %v2868 = vsel %vm2824, %v2798, 0
        %v2871 = vsel %vm2824, %v2799, 0
        %2873 = vmatpush.bf16.msra.mxu0 0
        %2874 = vmatpush.bf16.msra.mxu0 0
        %2875 = vmatpush.bf16.msra.mxu0 0
        %2876 = vmatpush.bf16.msra.mxu0 0
        %2877 = vmatpush.bf16.msra.mxu0 %v2819
        %2878 = vmatpush.bf16.msra.mxu0 %v2818
        %2879 = vmatpush.bf16.msra.mxu0 %v2817
        %2880 = vmatpush.bf16.msra.mxu0 %v2816
        %2881 = vmatmul.bf16.gmra.mxu0 %v2826
        %v2882 = vpop.f32.mrf.mxu0
        %v2883 = vadd.f32 0.0, %v2882
        %v2884 = vpop.f32.mrf.mxu0
        %v2885 = vadd.f32 0.0, %v2884
        %2886 = vmatmul.bf16.gmra.mxu0 %v2829
        %v2887 = vpop.f32.mrf.mxu0
        %v2888 = vadd.f32 0.0, %v2887
        %v2889 = vpop.f32.mrf.mxu0
        %v2890 = vadd.f32 0.0, %v2889
        %2891 = vmatmul.bf16.gmra.mxu0 %v2832
        %v2892 = vpop.f32.mrf.mxu0
        %v2893 = vadd.f32 0.0, %v2892
        %v2894 = vpop.f32.mrf.mxu0
        %v2895 = vadd.f32 0.0, %v2894
        %2896 = vmatmul.bf16.gmra.mxu0 %v2835
        %v2897 = vpop.f32.mrf.mxu0
        %v2898 = vadd.f32 0.0, %v2897
        %v2899 = vpop.f32.mrf.mxu0
        %v2900 = vadd.f32 0.0, %v2899
        %2901 = vmatmul.bf16.gmra.mxu0 %v2838
        %v2902 = vpop.f32.mrf.mxu0
        %v2903 = vadd.f32 0.0, %v2902
        %v2904 = vpop.f32.mrf.mxu0
        %v2905 = vadd.f32 0.0, %v2904
        %2906 = vmatmul.bf16.gmra.mxu0 %v2841
        %v2907 = vpop.f32.mrf.mxu0
        %v2908 = vadd.f32 0.0, %v2907
        %v2909 = vpop.f32.mrf.mxu0
        %v2910 = vadd.f32 0.0, %v2909
        %2911 = vmatmul.bf16.gmra.mxu0 %v2844
        %v2912 = vpop.f32.mrf.mxu0
        %v2913 = vadd.f32 0.0, %v2912
        %v2914 = vpop.f32.mrf.mxu0
        %v2915 = vadd.f32 0.0, %v2914
        %2916 = vmatmul.bf16.gmra.mxu0 %v2847
        %v2917 = vpop.f32.mrf.mxu0
        %v2918 = vadd.f32 0.0, %v2917
        %v2919 = vpop.f32.mrf.mxu0
        %v2920 = vadd.f32 0.0, %v2919
        %2921 = vmatmul.bf16.gmra.mxu0 %v2850
        %v2922 = vpop.f32.mrf.mxu0
        %v2923 = vadd.f32 0.0, %v2922
        %v2924 = vpop.f32.mrf.mxu0
        %v2925 = vadd.f32 0.0, %v2924
        %2926 = vmatmul.bf16.gmra.mxu0 %v2853
        %v2927 = vpop.f32.mrf.mxu0
        %v2928 = vadd.f32 0.0, %v2927
        %v2929 = vpop.f32.mrf.mxu0
        %v2930 = vadd.f32 0.0, %v2929
        %2931 = vmatmul.bf16.gmra.mxu0 %v2856
        %v2932 = vpop.f32.mrf.mxu0
        %v2933 = vadd.f32 0.0, %v2932
        %v2934 = vpop.f32.mrf.mxu0
        %v2935 = vadd.f32 0.0, %v2934
        %2936 = vmatmul.bf16.gmra.mxu0 %v2859
        %v2937 = vpop.f32.mrf.mxu0
        %v2938 = vadd.f32 0.0, %v2937
        %v2939 = vpop.f32.mrf.mxu0
        %v2940 = vadd.f32 0.0, %v2939
        %2941 = vmatmul.bf16.gmra.mxu0 %v2862
        %v2942 = vpop.f32.mrf.mxu0
        %v2943 = vadd.f32 0.0, %v2942
        %v2944 = vpop.f32.mrf.mxu0
        %v2945 = vadd.f32 0.0, %v2944
        %2946 = vmatmul.bf16.gmra.mxu0 %v2865
        %v2947 = vpop.f32.mrf.mxu0
        %v2948 = vadd.f32 0.0, %v2947
        %v2949 = vpop.f32.mrf.mxu0
        %v2950 = vadd.f32 0.0, %v2949
        %2951 = vmatmul.bf16.gmra.mxu0 %v2868
        %v2952 = vpop.f32.mrf.mxu0
        %v2953 = vadd.f32 0.0, %v2952
        %v2954 = vpop.f32.mrf.mxu0
        %v2955 = vadd.f32 0.0, %v2954
        %2956 = vmatmul.bf16.gmra.mxu0 %v2871
        %v2957 = vpop.f32.mrf.mxu0
        %v2958 = vadd.f32 0.0, %v2957
        %v2959 = vpop.f32.mrf.mxu0
        %v2960 = vadd.f32 0.0, %v2959
        %2961 = vdwg.mxu0
        %v2962 = vpack.c.bf16 %v2885, %v2883
        %v2963 = vpack.c.bf16 %v2890, %v2888
        %v2964 = vpack.c.bf16 %v2895, %v2893
        %v2965 = vpack.c.bf16 %v2900, %v2898
        %v2966 = vpack.c.bf16 %v2905, %v2903
        %v2967 = vpack.c.bf16 %v2910, %v2908
        %v2968 = vpack.c.bf16 %v2915, %v2913
        %v2969 = vpack.c.bf16 %v2920, %v2918
        %v2970 = vpack.c.bf16 %v2925, %v2923
        %v2971 = vpack.c.bf16 %v2930, %v2928
        %v2972 = vpack.c.bf16 %v2935, %v2933
        %v2973 = vpack.c.bf16 %v2940, %v2938
        %v2974 = vpack.c.bf16 %v2945, %v2943
        %v2975 = vpack.c.bf16 %v2950, %v2948
        %v2976 = vpack.c.bf16 %v2955, %v2953
        %v2977 = vpack.c.bf16 %v2960, %v2958
        %2994 = vrot.lane.b32.xlu0 %v2962, 96
        %v2995 = vpop.permute.xlu0 %2994
        %2996 = vrot.lane.b32.xlu0 %v2963, 96
        %v2997 = vpop.permute.xlu0 %2996
        %2998 = vrot.lane.b32.xlu0 %v2964, 96
        %v2999 = vpop.permute.xlu0 %2998
        %3000 = vrot.lane.b32.xlu0 %v2965, 96
        %v3001 = vpop.permute.xlu0 %3000
        %3002 = vrot.lane.b32.xlu0 %v2966, 96
        %v3003 = vpop.permute.xlu0 %3002
        %3004 = vrot.lane.b32.xlu0 %v2967, 96
        %v3005 = vpop.permute.xlu0 %3004
        %3006 = vrot.lane.b32.xlu0 %v2968, 96
        %v3007 = vpop.permute.xlu0 %3006
        %3008 = vrot.lane.b32.xlu0 %v2969, 96
        %v3009 = vpop.permute.xlu0 %3008
        %3010 = vrot.lane.b32.xlu0 %v2970, 96
        %v3011 = vpop.permute.xlu0 %3010
        %3012 = vrot.lane.b32.xlu0 %v2971, 96
        %v3013 = vpop.permute.xlu0 %3012
        %3014 = vrot.lane.b32.xlu0 %v2972, 96
        %v3015 = vpop.permute.xlu0 %3014
        %3016 = vrot.lane.b32.xlu0 %v2973, 96
        %v3017 = vpop.permute.xlu0 %3016
        %3018 = vrot.lane.b32.xlu0 %v2974, 96
        %v3019 = vpop.permute.xlu0 %3018
        %3020 = vrot.lane.b32.xlu0 %v2975, 96
        %v3021 = vpop.permute.xlu0 %3020
        %3022 = vrot.lane.b32.xlu0 %v2976, 96
        %v3023 = vpop.permute.xlu0 %3022
        %3024 = vrot.lane.b32.xlu0 %v2977, 96
        %v3025 = vpop.permute.xlu0 %3024
        %3042 = vmatpush.bf16.msra.mxu0 %v3009
        %3043 = vmatpush.bf16.msra.mxu0 %v3007
        %3044 = vmatpush.bf16.msra.mxu0 %v3005
        %3045 = vmatpush.bf16.msra.mxu0 %v3003
        %3046 = vmatpush.bf16.msra.mxu0 %v3001
        %3047 = vmatpush.bf16.msra.mxu0 %v2999
        %3048 = vmatpush.bf16.msra.mxu0 %v2997
        %3049 = vmatpush.bf16.msra.mxu0 %v2995
        %3050 = vmatmul.bf16.gmra.mxu0 %v2647
        %v3051 = vpop.f32.mrf.mxu0
        %v3052 = vadd.f32 0.0, %v3051
        %v3053 = vpop.f32.mrf.mxu0
        %v3054 = vadd.f32 0.0, %v3053
        %3055 = vmatmul.bf16.gmra.mxu0 %v2649
        %v3056 = vpop.f32.mrf.mxu0
        %v3057 = vadd.f32 0.0, %v3056
        %v3058 = vpop.f32.mrf.mxu0
        %v3059 = vadd.f32 0.0, %v3058
        %3060 = vmatmul.bf16.gmra.mxu0 %v2651
        %v3061 = vpop.f32.mrf.mxu0
        %v3062 = vadd.f32 0.0, %v3061
        %v3063 = vpop.f32.mrf.mxu0
        %v3064 = vadd.f32 0.0, %v3063
        %3065 = vmatmul.bf16.gmra.mxu0 %v2653
        %v3066 = vpop.f32.mrf.mxu0
        %v3067 = vadd.f32 0.0, %v3066
        %v3068 = vpop.f32.mrf.mxu0
        %v3069 = vadd.f32 0.0, %v3068
        %3070 = vmatmul.bf16.gmra.mxu0 %v2655
        %v3071 = vpop.f32.mrf.mxu0
        %v3072 = vadd.f32 0.0, %v3071
        %v3073 = vpop.f32.mrf.mxu0
        %v3074 = vadd.f32 0.0, %v3073
        %3075 = vmatmul.bf16.gmra.mxu0 %v2657
        %v3076 = vpop.f32.mrf.mxu0
        %v3077 = vadd.f32 0.0, %v3076
        %v3078 = vpop.f32.mrf.mxu0
        %v3079 = vadd.f32 0.0, %v3078
        %3080 = vmatmul.bf16.gmra.mxu0 %v2659
        %v3081 = vpop.f32.mrf.mxu0
        %v3082 = vadd.f32 0.0, %v3081
        %v3083 = vpop.f32.mrf.mxu0
        %v3084 = vadd.f32 0.0, %v3083
        %3085 = vmatmul.bf16.gmra.mxu0 %v2661
        %v3086 = vpop.f32.mrf.mxu0
        %v3087 = vadd.f32 0.0, %v3086
        %v3088 = vpop.f32.mrf.mxu0
        %v3089 = vadd.f32 0.0, %v3088
        %3090 = vmatmul.bf16.gmra.mxu0 %v2663
        %v3091 = vpop.f32.mrf.mxu0
        %v3092 = vadd.f32 0.0, %v3091
        %v3093 = vpop.f32.mrf.mxu0
        %v3094 = vadd.f32 0.0, %v3093
        %3095 = vmatmul.bf16.gmra.mxu0 %v2665
        %v3096 = vpop.f32.mrf.mxu0
        %v3097 = vadd.f32 0.0, %v3096
        %v3098 = vpop.f32.mrf.mxu0
        %v3099 = vadd.f32 0.0, %v3098
        %3100 = vmatmul.bf16.gmra.mxu0 %v2667
        %v3101 = vpop.f32.mrf.mxu0
        %v3102 = vadd.f32 0.0, %v3101
        %v3103 = vpop.f32.mrf.mxu0
        %v3104 = vadd.f32 0.0, %v3103
        %3105 = vmatmul.bf16.gmra.mxu0 %v2669
        %v3106 = vpop.f32.mrf.mxu0
        %v3107 = vadd.f32 0.0, %v3106
        %v3108 = vpop.f32.mrf.mxu0
        %v3109 = vadd.f32 0.0, %v3108
        %3110 = vmatmul.bf16.gmra.mxu0 %v2671
        %v3111 = vpop.f32.mrf.mxu0
        %v3112 = vadd.f32 0.0, %v3111
        %v3113 = vpop.f32.mrf.mxu0
        %v3114 = vadd.f32 0.0, %v3113
        %3115 = vmatmul.bf16.gmra.mxu0 %v2673
        %v3116 = vpop.f32.mrf.mxu0
        %v3117 = vadd.f32 0.0, %v3116
        %v3118 = vpop.f32.mrf.mxu0
        %v3119 = vadd.f32 0.0, %v3118
        %3120 = vmatmul.bf16.gmra.mxu0 %v2675
        %v3121 = vpop.f32.mrf.mxu0
        %v3122 = vadd.f32 0.0, %v3121
        %v3123 = vpop.f32.mrf.mxu0
        %v3124 = vadd.f32 0.0, %v3123
        %3125 = vmatmul.bf16.gmra.mxu0 %v2677
        %v3126 = vpop.f32.mrf.mxu0
        %v3127 = vadd.f32 0.0, %v3126
        %v3128 = vpop.f32.mrf.mxu0
        %v3129 = vadd.f32 0.0, %v3128
        %3130 = vdwg.mxu0
        %3131 = vmatpush.bf16.msra.mxu0 %v3025
        %3132 = vmatpush.bf16.msra.mxu0 %v3023
        %3133 = vmatpush.bf16.msra.mxu0 %v3021
        %3134 = vmatpush.bf16.msra.mxu0 %v3019
        %3135 = vmatpush.bf16.msra.mxu0 %v3017
        %3136 = vmatpush.bf16.msra.mxu0 %v3015
        %3137 = vmatpush.bf16.msra.mxu0 %v3013
        %3138 = vmatpush.bf16.msra.mxu0 %v3011
        %3139 = vmatmul.bf16.gmra.mxu0 %v2648
        %v3140 = vpop.f32.mrf.mxu0
        %v3141 = vadd.f32 %v3052, %v3140
        %v3142 = vpop.f32.mrf.mxu0
        %v3143 = vadd.f32 %v3054, %v3142
        %3144 = vmatmul.bf16.gmra.mxu0 %v2650
        %v3145 = vpop.f32.mrf.mxu0
        %v3146 = vadd.f32 %v3057, %v3145
        %v3147 = vpop.f32.mrf.mxu0
        %v3148 = vadd.f32 %v3059, %v3147
        %3149 = vmatmul.bf16.gmra.mxu0 %v2652
        %v3150 = vpop.f32.mrf.mxu0
        %v3151 = vadd.f32 %v3062, %v3150
        %v3152 = vpop.f32.mrf.mxu0
        %v3153 = vadd.f32 %v3064, %v3152
        %3154 = vmatmul.bf16.gmra.mxu0 %v2654
        %v3155 = vpop.f32.mrf.mxu0
        %v3156 = vadd.f32 %v3067, %v3155
        %v3157 = vpop.f32.mrf.mxu0
        %v3158 = vadd.f32 %v3069, %v3157
        %3159 = vmatmul.bf16.gmra.mxu0 %v2656
        %v3160 = vpop.f32.mrf.mxu0
        %v3161 = vadd.f32 %v3072, %v3160
        %v3162 = vpop.f32.mrf.mxu0
        %v3163 = vadd.f32 %v3074, %v3162
        %3164 = vmatmul.bf16.gmra.mxu0 %v2658
        %v3165 = vpop.f32.mrf.mxu0
        %v3166 = vadd.f32 %v3077, %v3165
        %v3167 = vpop.f32.mrf.mxu0
        %v3168 = vadd.f32 %v3079, %v3167
        %3169 = vmatmul.bf16.gmra.mxu0 %v2660
        %v3170 = vpop.f32.mrf.mxu0
        %v3171 = vadd.f32 %v3082, %v3170
        %v3172 = vpop.f32.mrf.mxu0
        %v3173 = vadd.f32 %v3084, %v3172
        %3174 = vmatmul.bf16.gmra.mxu0 %v2662
        %v3175 = vpop.f32.mrf.mxu0
        %v3176 = vadd.f32 %v3087, %v3175
        %v3177 = vpop.f32.mrf.mxu0
        %v3178 = vadd.f32 %v3089, %v3177
        %3179 = vmatmul.bf16.gmra.mxu0 %v2664
        %v3180 = vpop.f32.mrf.mxu0
        %v3181 = vadd.f32 %v3092, %v3180
        %v3182 = vpop.f32.mrf.mxu0
        %v3183 = vadd.f32 %v3094, %v3182
        %3184 = vmatmul.bf16.gmra.mxu0 %v2666
        %v3185 = vpop.f32.mrf.mxu0
        %v3186 = vadd.f32 %v3097, %v3185
        %v3187 = vpop.f32.mrf.mxu0
        %v3188 = vadd.f32 %v3099, %v3187
        %3189 = vmatmul.bf16.gmra.mxu0 %v2668
        %v3190 = vpop.f32.mrf.mxu0
        %v3191 = vadd.f32 %v3102, %v3190
        %v3192 = vpop.f32.mrf.mxu0
        %v3193 = vadd.f32 %v3104, %v3192
        %3194 = vmatmul.bf16.gmra.mxu0 %v2670
        %v3195 = vpop.f32.mrf.mxu0
        %v3196 = vadd.f32 %v3107, %v3195
        %v3197 = vpop.f32.mrf.mxu0
        %v3198 = vadd.f32 %v3109, %v3197
        %3199 = vmatmul.bf16.gmra.mxu0 %v2672
        %v3200 = vpop.f32.mrf.mxu0
        %v3201 = vadd.f32 %v3112, %v3200
        %v3202 = vpop.f32.mrf.mxu0
        %v3203 = vadd.f32 %v3114, %v3202
        %3204 = vmatmul.bf16.gmra.mxu0 %v2674
        %v3205 = vpop.f32.mrf.mxu0
        %v3206 = vadd.f32 %v3117, %v3205
        %v3207 = vpop.f32.mrf.mxu0
        %v3208 = vadd.f32 %v3119, %v3207
        %3209 = vmatmul.bf16.gmra.mxu0 %v2676
        %v3210 = vpop.f32.mrf.mxu0
        %v3211 = vadd.f32 %v3122, %v3210
        %v3212 = vpop.f32.mrf.mxu0
        %v3213 = vadd.f32 %v3124, %v3212
        %3214 = vmatmul.bf16.gmra.mxu0 %v2678
        %v3215 = vpop.f32.mrf.mxu0
        %v3216 = vadd.f32 %v3127, %v3215
        %v3217 = vpop.f32.mrf.mxu0
        %v3218 = vadd.f32 %v3129, %v3217
        %3219 = vdwg.mxu0
        %v3220 = vmul.f32 %v1903, %v3141
        %v3221 = vmul.f32 %v1904, %v3143
        %v3222 = vmul.f32 %v1905, %v3146
        %v3223 = vmul.f32 %v1906, %v3148
        %v3224 = vmul.f32 %v1907, %v3151
        %v3225 = vmul.f32 %v1908, %v3153
        %v3226 = vmul.f32 %v1909, %v3156
        %v3227 = vmul.f32 %v1910, %v3158
        %v3228 = vmul.f32 %v1911, %v3161
        %v3229 = vmul.f32 %v1912, %v3163
        %v3230 = vmul.f32 %v1913, %v3166
        %v3231 = vmul.f32 %v1914, %v3168
        %v3232 = vmul.f32 %v1915, %v3171
        %v3233 = vmul.f32 %v1916, %v3173
        %v3234 = vmul.f32 %v1917, %v3176
        %v3235 = vmul.f32 %v1918, %v3178
        %v3236 = vmul.f32 %v1919, %v3181
        %v3237 = vmul.f32 %v1920, %v3183
        %v3238 = vmul.f32 %v1921, %v3186
        %v3239 = vmul.f32 %v1922, %v3188
        %v3240 = vmul.f32 %v1923, %v3191
        %v3241 = vmul.f32 %v1924, %v3193
        %v3242 = vmul.f32 %v1925, %v3196
        %v3243 = vmul.f32 %v1926, %v3198
        %v3244 = vmul.f32 %v1927, %v3201
        %v3245 = vmul.f32 %v1928, %v3203
        %v3246 = vmul.f32 %v1929, %v3206
        %v3247 = vmul.f32 %v1930, %v3208
        %v3248 = vmul.f32 %v1931, %v3211
        %v3249 = vmul.f32 %v1932, %v3213
        %v3250 = vmul.f32 %v1933, %v3216
        %v3251 = vmul.f32 %v1934, %v3218
        %v3252 = vadd.f32 %v2883, %v3220
        %v3253 = vadd.f32 %v2885, %v3221
        %v3254 = vadd.f32 %v2888, %v3222
        %v3255 = vadd.f32 %v2890, %v3223
        %v3256 = vadd.f32 %v2893, %v3224
        %v3257 = vadd.f32 %v2895, %v3225
        %v3258 = vadd.f32 %v2898, %v3226
        %v3259 = vadd.f32 %v2900, %v3227
        %v3260 = vadd.f32 %v2903, %v3228
        %v3261 = vadd.f32 %v2905, %v3229
        %v3262 = vadd.f32 %v2908, %v3230
        %v3263 = vadd.f32 %v2910, %v3231
        %v3264 = vadd.f32 %v2913, %v3232
        %v3265 = vadd.f32 %v2915, %v3233
        %v3266 = vadd.f32 %v2918, %v3234
        %v3267 = vadd.f32 %v2920, %v3235
        %v3268 = vadd.f32 %v2923, %v3236
        %v3269 = vadd.f32 %v2925, %v3237
        %v3270 = vadd.f32 %v2928, %v3238
        %v3271 = vadd.f32 %v2930, %v3239
        %v3272 = vadd.f32 %v2933, %v3240
        %v3273 = vadd.f32 %v2935, %v3241
        %v3274 = vadd.f32 %v2938, %v3242
        %v3275 = vadd.f32 %v2940, %v3243
        %v3276 = vadd.f32 %v2943, %v3244
        %v3277 = vadd.f32 %v2945, %v3245
        %v3278 = vadd.f32 %v2948, %v3246
        %v3279 = vadd.f32 %v2950, %v3247
        %v3280 = vadd.f32 %v2953, %v3248
        %v3281 = vadd.f32 %v2955, %v3249
        %v3282 = vadd.f32 %v2958, %v3250
        %v3283 = vadd.f32 %v2960, %v3251
        %v3284 = vperm.slane %v2719, 0
        %v3285 = vadd.f32 %v3252, %v3284
        %v3286 = vadd.f32 %v3253, %v3284
        %v3287 = vadd.f32 %v3254, %v3284
        %v3288 = vadd.f32 %v3255, %v3284
        %v3289 = vadd.f32 %v3256, %v3284
        %v3290 = vadd.f32 %v3257, %v3284
        %v3291 = vadd.f32 %v3258, %v3284
        %v3292 = vadd.f32 %v3259, %v3284
        %v3293 = vadd.f32 %v3260, %v3284
        %v3294 = vadd.f32 %v3261, %v3284
        %v3295 = vadd.f32 %v3262, %v3284
        %v3296 = vadd.f32 %v3263, %v3284
        %v3297 = vadd.f32 %v3264, %v3284
        %v3298 = vadd.f32 %v3265, %v3284
        %v3299 = vadd.f32 %v3266, %v3284
        %v3300 = vadd.f32 %v3267, %v3284
        %v3301 = vadd.f32 %v3268, %v3284
        %v3302 = vadd.f32 %v3269, %v3284
        %v3303 = vadd.f32 %v3270, %v3284
        %v3304 = vadd.f32 %v3271, %v3284
        %v3305 = vadd.f32 %v3272, %v3284
        %v3306 = vadd.f32 %v3273, %v3284
        %v3307 = vadd.f32 %v3274, %v3284
        %v3308 = vadd.f32 %v3275, %v3284
        %v3309 = vadd.f32 %v3276, %v3284
        %v3310 = vadd.f32 %v3277, %v3284
        %v3311 = vadd.f32 %v3278, %v3284
        %v3312 = vadd.f32 %v3279, %v3284
        %v3313 = vadd.f32 %v3280, %v3284
        %v3314 = vadd.f32 %v3281, %v3284
        %v3315 = vadd.f32 %v3282, %v3284
        %v3316 = vadd.f32 %v3283, %v3284
        %v3317 = vmax.f32 %v3285, 0.0
        %v3318 = vmax.f32 %v3286, 0.0
        %v3319 = vmax.f32 %v3287, 0.0
        %v3320 = vmax.f32 %v3288, 0.0
        %v3321 = vmax.f32 %v3289, 0.0
        %v3322 = vmax.f32 %v3290, 0.0
        %v3323 = vmax.f32 %v3291, 0.0
        %v3324 = vmax.f32 %v3292, 0.0
        %v3325 = vmax.f32 %v3293, 0.0
        %v3326 = vmax.f32 %v3294, 0.0
        %v3327 = vmax.f32 %v3295, 0.0
        %v3328 = vmax.f32 %v3296, 0.0
        %v3329 = vmax.f32 %v3297, 0.0
        %v3330 = vmax.f32 %v3298, 0.0
        %v3331 = vmax.f32 %v3299, 0.0
        %v3332 = vmax.f32 %v3300, 0.0
        %v3333 = vmax.f32 %v3301, 0.0
        %v3334 = vmax.f32 %v3302, 0.0
        %v3335 = vmax.f32 %v3303, 0.0
        %v3336 = vmax.f32 %v3304, 0.0
        %v3337 = vmax.f32 %v3305, 0.0
        %v3338 = vmax.f32 %v3306, 0.0
        %v3339 = vmax.f32 %v3307, 0.0
        %v3340 = vmax.f32 %v3308, 0.0
        %v3341 = vmax.f32 %v3309, 0.0
        %v3342 = vmax.f32 %v3310, 0.0
        %v3343 = vmax.f32 %v3311, 0.0
        %v3344 = vmax.f32 %v3312, 0.0
        %v3345 = vmax.f32 %v3313, 0.0
        %v3346 = vmax.f32 %v3314, 0.0
        %v3347 = vmax.f32 %v3315, 0.0
        %v3348 = vmax.f32 %v3316, 0.0
        %v3349 = vpack.c.bf16 %v3318, %v3317
        %v3350 = vpack.c.bf16 %v3320, %v3319
        %v3351 = vpack.c.bf16 %v3322, %v3321
        %v3352 = vpack.c.bf16 %v3324, %v3323
        %v3353 = vpack.c.bf16 %v3326, %v3325
        %v3354 = vpack.c.bf16 %v3328, %v3327
        %v3355 = vpack.c.bf16 %v3330, %v3329
        %v3356 = vpack.c.bf16 %v3332, %v3331
        %v3357 = vpack.c.bf16 %v3334, %v3333
        %v3358 = vpack.c.bf16 %v3336, %v3335
        %v3359 = vpack.c.bf16 %v3338, %v3337
        %v3360 = vpack.c.bf16 %v3340, %v3339
        %v3361 = vpack.c.bf16 %v3342, %v3341
        %v3362 = vpack.c.bf16 %v3344, %v3343
        %v3363 = vpack.c.bf16 %v3346, %v3345
        %v3364 = vpack.c.bf16 %v3348, %v3347
        %v3365 = vld [vmem:[%s3 + $0x20] sm:$0xf]
        %v3366 = vld [vmem:[%s3 + $0x24] sm:$0xf]
        %v3367 = vld [vmem:[%s3 + $0x28] sm:$0xf]
        %v3368 = vld [vmem:[%s3 + $0x2c] sm:$0xf]
        %v3369 = vld [vmem:[%s4 + $0x1] sm:$0x1]
        %v3374 = vunpack.c.l.b16 %v3365
        %v3375 = vunpack.c.l.b16 %v3366
        %v3376 = vunpack.c.l.b16 %v3367
        %v3377 = vunpack.c.l.b16 %v3368
        %v3378 = vpack.c.b16 %v3375, %v3374
        %v3379 = vpack.c.b16 %v3377, %v3376
        %vm3382 = vcmask 261120
        %v3384 = vsel %vm3382, %v3349, 0
        %v3387 = vsel %vm3382, %v3350, 0
        %v3390 = vsel %vm3382, %v3351, 0
        %v3393 = vsel %vm3382, %v3352, 0
        %v3396 = vsel %vm3382, %v3353, 0
        %v3399 = vsel %vm3382, %v3354, 0
        %v3402 = vsel %vm3382, %v3355, 0
        %v3405 = vsel %vm3382, %v3356, 0
        %v3408 = vsel %vm3382, %v3357, 0
        %v3411 = vsel %vm3382, %v3358, 0
        %v3414 = vsel %vm3382, %v3359, 0
        %v3417 = vsel %vm3382, %v3360, 0
        %v3420 = vsel %vm3382, %v3361, 0
        %v3423 = vsel %vm3382, %v3362, 0
        %v3426 = vsel %vm3382, %v3363, 0
        %v3429 = vsel %vm3382, %v3364, 0
        %3431 = vmatpush.bf16.msra.mxu0 0
        %3432 = vmatpush.bf16.msra.mxu0 0
        %3433 = vmatpush.bf16.msra.mxu0 0
        %3434 = vmatpush.bf16.msra.mxu0 0
        %3435 = vmatpush.bf16.msra.mxu0 0
        %3436 = vmatpush.bf16.msra.mxu0 0
        %3437 = vmatpush.bf16.msra.mxu0 %v3379
        %3438 = vmatpush.bf16.msra.mxu0 %v3378
        %3439 = vmatmul.bf16.gmra.mxu0 %v3384
        %v3440 = vpop.f32.mrf.mxu0
        %v3441 = vadd.f32 0.0, %v3440
        %v3442 = vpop.f32.mrf.mxu0
        %v3443 = vadd.f32 0.0, %v3442
        %3444 = vmatmul.bf16.gmra.mxu0 %v3387
        %v3445 = vpop.f32.mrf.mxu0
        %v3446 = vadd.f32 0.0, %v3445
        %v3447 = vpop.f32.mrf.mxu0
        %v3448 = vadd.f32 0.0, %v3447
        %3449 = vmatmul.bf16.gmra.mxu0 %v3390
        %v3450 = vpop.f32.mrf.mxu0
        %v3451 = vadd.f32 0.0, %v3450
        %v3452 = vpop.f32.mrf.mxu0
        %v3453 = vadd.f32 0.0, %v3452
        %3454 = vmatmul.bf16.gmra.mxu0 %v3393
        %v3455 = vpop.f32.mrf.mxu0
        %v3456 = vadd.f32 0.0, %v3455
        %v3457 = vpop.f32.mrf.mxu0
        %v3458 = vadd.f32 0.0, %v3457
        %3459 = vmatmul.bf16.gmra.mxu0 %v3396
        %v3460 = vpop.f32.mrf.mxu0
        %v3461 = vadd.f32 0.0, %v3460
        %v3462 = vpop.f32.mrf.mxu0
        %v3463 = vadd.f32 0.0, %v3462
        %3464 = vmatmul.bf16.gmra.mxu0 %v3399
        %v3465 = vpop.f32.mrf.mxu0
        %v3466 = vadd.f32 0.0, %v3465
        %v3467 = vpop.f32.mrf.mxu0
        %v3468 = vadd.f32 0.0, %v3467
        %3469 = vmatmul.bf16.gmra.mxu0 %v3402
        %v3470 = vpop.f32.mrf.mxu0
        %v3471 = vadd.f32 0.0, %v3470
        %v3472 = vpop.f32.mrf.mxu0
        %v3473 = vadd.f32 0.0, %v3472
        %3474 = vmatmul.bf16.gmra.mxu0 %v3405
        %v3475 = vpop.f32.mrf.mxu0
        %v3476 = vadd.f32 0.0, %v3475
        %v3477 = vpop.f32.mrf.mxu0
        %v3478 = vadd.f32 0.0, %v3477
        %3479 = vmatmul.bf16.gmra.mxu0 %v3408
        %v3480 = vpop.f32.mrf.mxu0
        %v3481 = vadd.f32 0.0, %v3480
        %v3482 = vpop.f32.mrf.mxu0
        %v3483 = vadd.f32 0.0, %v3482
        %3484 = vmatmul.bf16.gmra.mxu0 %v3411
        %v3485 = vpop.f32.mrf.mxu0
        %v3486 = vadd.f32 0.0, %v3485
        %v3487 = vpop.f32.mrf.mxu0
        %v3488 = vadd.f32 0.0, %v3487
        %3489 = vmatmul.bf16.gmra.mxu0 %v3414
        %v3490 = vpop.f32.mrf.mxu0
        %v3491 = vadd.f32 0.0, %v3490
        %v3492 = vpop.f32.mrf.mxu0
        %v3493 = vadd.f32 0.0, %v3492
        %3494 = vmatmul.bf16.gmra.mxu0 %v3417
        %v3495 = vpop.f32.mrf.mxu0
        %v3496 = vadd.f32 0.0, %v3495
        %v3497 = vpop.f32.mrf.mxu0
        %v3498 = vadd.f32 0.0, %v3497
        %3499 = vmatmul.bf16.gmra.mxu0 %v3420
        %v3500 = vpop.f32.mrf.mxu0
        %v3501 = vadd.f32 0.0, %v3500
        %v3502 = vpop.f32.mrf.mxu0
        %v3503 = vadd.f32 0.0, %v3502
        %3504 = vmatmul.bf16.gmra.mxu0 %v3423
        %v3505 = vpop.f32.mrf.mxu0
        %v3506 = vadd.f32 0.0, %v3505
        %v3507 = vpop.f32.mrf.mxu0
        %v3508 = vadd.f32 0.0, %v3507
        %3509 = vmatmul.bf16.gmra.mxu0 %v3426
        %v3510 = vpop.f32.mrf.mxu0
        %v3511 = vadd.f32 0.0, %v3510
        %v3512 = vpop.f32.mrf.mxu0
        %v3513 = vadd.f32 0.0, %v3512
        %3514 = vmatmul.bf16.gmra.mxu0 %v3429
        %v3515 = vpop.f32.mrf.mxu0
        %v3516 = vadd.f32 0.0, %v3515
        %v3517 = vpop.f32.mrf.mxu0
        %v3518 = vadd.f32 0.0, %v3517
        %3519 = vdwg.mxu0
        %v3520 = vpack.c.bf16 %v3443, %v3441
        %v3521 = vpack.c.bf16 %v3448, %v3446
        %v3522 = vpack.c.bf16 %v3453, %v3451
        %v3523 = vpack.c.bf16 %v3458, %v3456
        %v3524 = vpack.c.bf16 %v3463, %v3461
        %v3525 = vpack.c.bf16 %v3468, %v3466
        %v3526 = vpack.c.bf16 %v3473, %v3471
        %v3527 = vpack.c.bf16 %v3478, %v3476
        %v3528 = vpack.c.bf16 %v3483, %v3481
        %v3529 = vpack.c.bf16 %v3488, %v3486
        %v3530 = vpack.c.bf16 %v3493, %v3491
        %v3531 = vpack.c.bf16 %v3498, %v3496
        %v3532 = vpack.c.bf16 %v3503, %v3501
        %v3533 = vpack.c.bf16 %v3508, %v3506
        %v3534 = vpack.c.bf16 %v3513, %v3511
        %v3535 = vpack.c.bf16 %v3518, %v3516
        %3552 = vrot.lane.b32.xlu0 %v3520, 96
        %v3553 = vpop.permute.xlu0 %3552
        %3554 = vrot.lane.b32.xlu0 %v3521, 96
        %v3555 = vpop.permute.xlu0 %3554
        %3556 = vrot.lane.b32.xlu0 %v3522, 96
        %v3557 = vpop.permute.xlu0 %3556
        %3558 = vrot.lane.b32.xlu0 %v3523, 96
        %v3559 = vpop.permute.xlu0 %3558
        %3560 = vrot.lane.b32.xlu0 %v3524, 96
        %v3561 = vpop.permute.xlu0 %3560
        %3562 = vrot.lane.b32.xlu0 %v3525, 96
        %v3563 = vpop.permute.xlu0 %3562
        %3564 = vrot.lane.b32.xlu0 %v3526, 96
        %v3565 = vpop.permute.xlu0 %3564
        %3566 = vrot.lane.b32.xlu0 %v3527, 96
        %v3567 = vpop.permute.xlu0 %3566
        %3568 = vrot.lane.b32.xlu0 %v3528, 96
        %v3569 = vpop.permute.xlu0 %3568
        %3570 = vrot.lane.b32.xlu0 %v3529, 96
        %v3571 = vpop.permute.xlu0 %3570
        %3572 = vrot.lane.b32.xlu0 %v3530, 96
        %v3573 = vpop.permute.xlu0 %3572
        %3574 = vrot.lane.b32.xlu0 %v3531, 96
        %v3575 = vpop.permute.xlu0 %3574
        %3576 = vrot.lane.b32.xlu0 %v3532, 96
        %v3577 = vpop.permute.xlu0 %3576
        %3578 = vrot.lane.b32.xlu0 %v3533, 96
        %v3579 = vpop.permute.xlu0 %3578
        %3580 = vrot.lane.b32.xlu0 %v3534, 96
        %v3581 = vpop.permute.xlu0 %3580
        %3582 = vrot.lane.b32.xlu0 %v3535, 96
        %v3583 = vpop.permute.xlu0 %3582
        %3600 = vmatpush.bf16.msra.mxu0 %v3567
        %3601 = vmatpush.bf16.msra.mxu0 %v3565
        %3602 = vmatpush.bf16.msra.mxu0 %v3563
        %3603 = vmatpush.bf16.msra.mxu0 %v3561
        %3604 = vmatpush.bf16.msra.mxu0 %v3559
        %3605 = vmatpush.bf16.msra.mxu0 %v3557
        %3606 = vmatpush.bf16.msra.mxu0 %v3555
        %3607 = vmatpush.bf16.msra.mxu0 %v3553
        %3608 = vmatmul.bf16.gmra.mxu0 %v2647
        %v3609 = vpop.f32.mrf.mxu0
        %v3610 = vadd.f32 0.0, %v3609
        %v3611 = vpop.f32.mrf.mxu0
        %v3612 = vadd.f32 0.0, %v3611
        %3613 = vmatmul.bf16.gmra.mxu0 %v2649
        %v3614 = vpop.f32.mrf.mxu0
        %v3615 = vadd.f32 0.0, %v3614
        %v3616 = vpop.f32.mrf.mxu0
        %v3617 = vadd.f32 0.0, %v3616
        %3618 = vmatmul.bf16.gmra.mxu0 %v2651
        %v3619 = vpop.f32.mrf.mxu0
        %v3620 = vadd.f32 0.0, %v3619
        %v3621 = vpop.f32.mrf.mxu0
        %v3622 = vadd.f32 0.0, %v3621
        %3623 = vmatmul.bf16.gmra.mxu0 %v2653
        %v3624 = vpop.f32.mrf.mxu0
        %v3625 = vadd.f32 0.0, %v3624
        %v3626 = vpop.f32.mrf.mxu0
        %v3627 = vadd.f32 0.0, %v3626
        %3628 = vmatmul.bf16.gmra.mxu0 %v2655
        %v3629 = vpop.f32.mrf.mxu0
        %v3630 = vadd.f32 0.0, %v3629
        %v3631 = vpop.f32.mrf.mxu0
        %v3632 = vadd.f32 0.0, %v3631
        %3633 = vmatmul.bf16.gmra.mxu0 %v2657
        %v3634 = vpop.f32.mrf.mxu0
        %v3635 = vadd.f32 0.0, %v3634
        %v3636 = vpop.f32.mrf.mxu0
        %v3637 = vadd.f32 0.0, %v3636
        %3638 = vmatmul.bf16.gmra.mxu0 %v2659
        %v3639 = vpop.f32.mrf.mxu0
        %v3640 = vadd.f32 0.0, %v3639
        %v3641 = vpop.f32.mrf.mxu0
        %v3642 = vadd.f32 0.0, %v3641
        %3643 = vmatmul.bf16.gmra.mxu0 %v2661
        %v3644 = vpop.f32.mrf.mxu0
        %v3645 = vadd.f32 0.0, %v3644
        %v3646 = vpop.f32.mrf.mxu0
        %v3647 = vadd.f32 0.0, %v3646
        %3648 = vmatmul.bf16.gmra.mxu0 %v2663
        %v3649 = vpop.f32.mrf.mxu0
        %v3650 = vadd.f32 0.0, %v3649
        %v3651 = vpop.f32.mrf.mxu0
        %v3652 = vadd.f32 0.0, %v3651
        %3653 = vmatmul.bf16.gmra.mxu0 %v2665
        %v3654 = vpop.f32.mrf.mxu0
        %v3655 = vadd.f32 0.0, %v3654
        %v3656 = vpop.f32.mrf.mxu0
        %v3657 = vadd.f32 0.0, %v3656
        %3658 = vmatmul.bf16.gmra.mxu0 %v2667
        %v3659 = vpop.f32.mrf.mxu0
        %v3660 = vadd.f32 0.0, %v3659
        %v3661 = vpop.f32.mrf.mxu0
        %v3662 = vadd.f32 0.0, %v3661
        %3663 = vmatmul.bf16.gmra.mxu0 %v2669
        %v3664 = vpop.f32.mrf.mxu0
        %v3665 = vadd.f32 0.0, %v3664
        %v3666 = vpop.f32.mrf.mxu0
        %v3667 = vadd.f32 0.0, %v3666
        %3668 = vmatmul.bf16.gmra.mxu0 %v2671
        %v3669 = vpop.f32.mrf.mxu0
        %v3670 = vadd.f32 0.0, %v3669
        %v3671 = vpop.f32.mrf.mxu0
        %v3672 = vadd.f32 0.0, %v3671
        %3673 = vmatmul.bf16.gmra.mxu0 %v2673
        %v3674 = vpop.f32.mrf.mxu0
        %v3675 = vadd.f32 0.0, %v3674
        %v3676 = vpop.f32.mrf.mxu0
        %v3677 = vadd.f32 0.0, %v3676
        %3678 = vmatmul.bf16.gmra.mxu0 %v2675
        %v3679 = vpop.f32.mrf.mxu0
        %v3680 = vadd.f32 0.0, %v3679
        %v3681 = vpop.f32.mrf.mxu0
        %v3682 = vadd.f32 0.0, %v3681
        %3683 = vmatmul.bf16.gmra.mxu0 %v2677
        %v3684 = vpop.f32.mrf.mxu0
        %v3685 = vadd.f32 0.0, %v3684
        %v3686 = vpop.f32.mrf.mxu0
        %v3687 = vadd.f32 0.0, %v3686
        %3688 = vdwg.mxu0
        %3689 = vmatpush.bf16.msra.mxu0 %v3583
        %3690 = vmatpush.bf16.msra.mxu0 %v3581
        %3691 = vmatpush.bf16.msra.mxu0 %v3579
        %3692 = vmatpush.bf16.msra.mxu0 %v3577
        %3693 = vmatpush.bf16.msra.mxu0 %v3575
        %3694 = vmatpush.bf16.msra.mxu0 %v3573
        %3695 = vmatpush.bf16.msra.mxu0 %v3571
        %3696 = vmatpush.bf16.msra.mxu0 %v3569
        %3697 = vmatmul.bf16.gmra.mxu0 %v2648
        %v3698 = vpop.f32.mrf.mxu0
        %v3699 = vadd.f32 %v3610, %v3698
        %v3700 = vpop.f32.mrf.mxu0
        %v3701 = vadd.f32 %v3612, %v3700
        %3702 = vmatmul.bf16.gmra.mxu0 %v2650
        %v3703 = vpop.f32.mrf.mxu0
        %v3704 = vadd.f32 %v3615, %v3703
        %v3705 = vpop.f32.mrf.mxu0
        %v3706 = vadd.f32 %v3617, %v3705
        %3707 = vmatmul.bf16.gmra.mxu0 %v2652
        %v3708 = vpop.f32.mrf.mxu0
        %v3709 = vadd.f32 %v3620, %v3708
        %v3710 = vpop.f32.mrf.mxu0
        %v3711 = vadd.f32 %v3622, %v3710
        %3712 = vmatmul.bf16.gmra.mxu0 %v2654
        %v3713 = vpop.f32.mrf.mxu0
        %v3714 = vadd.f32 %v3625, %v3713
        %v3715 = vpop.f32.mrf.mxu0
        %v3716 = vadd.f32 %v3627, %v3715
        %3717 = vmatmul.bf16.gmra.mxu0 %v2656
        %v3718 = vpop.f32.mrf.mxu0
        %v3719 = vadd.f32 %v3630, %v3718
        %v3720 = vpop.f32.mrf.mxu0
        %v3721 = vadd.f32 %v3632, %v3720
        %3722 = vmatmul.bf16.gmra.mxu0 %v2658
        %v3723 = vpop.f32.mrf.mxu0
        %v3724 = vadd.f32 %v3635, %v3723
        %v3725 = vpop.f32.mrf.mxu0
        %v3726 = vadd.f32 %v3637, %v3725
        %3727 = vmatmul.bf16.gmra.mxu0 %v2660
        %v3728 = vpop.f32.mrf.mxu0
        %v3729 = vadd.f32 %v3640, %v3728
        %v3730 = vpop.f32.mrf.mxu0
        %v3731 = vadd.f32 %v3642, %v3730
        %3732 = vmatmul.bf16.gmra.mxu0 %v2662
        %v3733 = vpop.f32.mrf.mxu0
        %v3734 = vadd.f32 %v3645, %v3733
        %v3735 = vpop.f32.mrf.mxu0
        %v3736 = vadd.f32 %v3647, %v3735
        %3737 = vmatmul.bf16.gmra.mxu0 %v2664
        %v3738 = vpop.f32.mrf.mxu0
        %v3739 = vadd.f32 %v3650, %v3738
        %v3740 = vpop.f32.mrf.mxu0
        %v3741 = vadd.f32 %v3652, %v3740
        %3742 = vmatmul.bf16.gmra.mxu0 %v2666
        %v3743 = vpop.f32.mrf.mxu0
        %v3744 = vadd.f32 %v3655, %v3743
        %v3745 = vpop.f32.mrf.mxu0
        %v3746 = vadd.f32 %v3657, %v3745
        %3747 = vmatmul.bf16.gmra.mxu0 %v2668
        %v3748 = vpop.f32.mrf.mxu0
        %v3749 = vadd.f32 %v3660, %v3748
        %v3750 = vpop.f32.mrf.mxu0
        %v3751 = vadd.f32 %v3662, %v3750
        %3752 = vmatmul.bf16.gmra.mxu0 %v2670
        %v3753 = vpop.f32.mrf.mxu0
        %v3754 = vadd.f32 %v3665, %v3753
        %v3755 = vpop.f32.mrf.mxu0
        %v3756 = vadd.f32 %v3667, %v3755
        %3757 = vmatmul.bf16.gmra.mxu0 %v2672
        %v3758 = vpop.f32.mrf.mxu0
        %v3759 = vadd.f32 %v3670, %v3758
        %v3760 = vpop.f32.mrf.mxu0
        %v3761 = vadd.f32 %v3672, %v3760
        %3762 = vmatmul.bf16.gmra.mxu0 %v2674
        %v3763 = vpop.f32.mrf.mxu0
        %v3764 = vadd.f32 %v3675, %v3763
        %v3765 = vpop.f32.mrf.mxu0
        %v3766 = vadd.f32 %v3677, %v3765
        %3767 = vmatmul.bf16.gmra.mxu0 %v2676
        %v3768 = vpop.f32.mrf.mxu0
        %v3769 = vadd.f32 %v3680, %v3768
        %v3770 = vpop.f32.mrf.mxu0
        %v3771 = vadd.f32 %v3682, %v3770
        %3772 = vmatmul.bf16.gmra.mxu0 %v2678
        %v3773 = vpop.f32.mrf.mxu0
        %v3774 = vadd.f32 %v3685, %v3773
        %v3775 = vpop.f32.mrf.mxu0
        %v3776 = vadd.f32 %v3687, %v3775
        %3777 = vdwg.mxu0
        %v3778 = vmul.f32 %v1903, %v3699
        %v3779 = vmul.f32 %v1904, %v3701
        %v3780 = vmul.f32 %v1905, %v3704
        %v3781 = vmul.f32 %v1906, %v3706
        %v3782 = vmul.f32 %v1907, %v3709
        %v3783 = vmul.f32 %v1908, %v3711
        %v3784 = vmul.f32 %v1909, %v3714
        %v3785 = vmul.f32 %v1910, %v3716
        %v3786 = vmul.f32 %v1911, %v3719
        %v3787 = vmul.f32 %v1912, %v3721
        %v3788 = vmul.f32 %v1913, %v3724
        %v3789 = vmul.f32 %v1914, %v3726
        %v3790 = vmul.f32 %v1915, %v3729
        %v3791 = vmul.f32 %v1916, %v3731
        %v3792 = vmul.f32 %v1917, %v3734
        %v3793 = vmul.f32 %v1918, %v3736
        %v3794 = vmul.f32 %v1919, %v3739
        %v3795 = vmul.f32 %v1920, %v3741
        %v3796 = vmul.f32 %v1921, %v3744
        %v3797 = vmul.f32 %v1922, %v3746
        %v3798 = vmul.f32 %v1923, %v3749
        %v3799 = vmul.f32 %v1924, %v3751
        %v3800 = vmul.f32 %v1925, %v3754
        %v3801 = vmul.f32 %v1926, %v3756
        %v3802 = vmul.f32 %v1927, %v3759
        %v3803 = vmul.f32 %v1928, %v3761
        %v3804 = vmul.f32 %v1929, %v3764
        %v3805 = vmul.f32 %v1930, %v3766
        %v3806 = vmul.f32 %v1931, %v3769
        %v3807 = vmul.f32 %v1932, %v3771
        %v3808 = vmul.f32 %v1933, %v3774
        %v3809 = vmul.f32 %v1934, %v3776
        %v3810 = vadd.f32 %v3441, %v3778
        %v3811 = vadd.f32 %v3443, %v3779
        %v3812 = vadd.f32 %v3446, %v3780
        %v3813 = vadd.f32 %v3448, %v3781
        %v3814 = vadd.f32 %v3451, %v3782
        %v3815 = vadd.f32 %v3453, %v3783
        %v3816 = vadd.f32 %v3456, %v3784
        %v3817 = vadd.f32 %v3458, %v3785
        %v3818 = vadd.f32 %v3461, %v3786
        %v3819 = vadd.f32 %v3463, %v3787
        %v3820 = vadd.f32 %v3466, %v3788
        %v3821 = vadd.f32 %v3468, %v3789
        %v3822 = vadd.f32 %v3471, %v3790
        %v3823 = vadd.f32 %v3473, %v3791
        %v3824 = vadd.f32 %v3476, %v3792
        %v3825 = vadd.f32 %v3478, %v3793
        %v3826 = vadd.f32 %v3481, %v3794
        %v3827 = vadd.f32 %v3483, %v3795
        %v3828 = vadd.f32 %v3486, %v3796
        %v3829 = vadd.f32 %v3488, %v3797
        %v3830 = vadd.f32 %v3491, %v3798
        %v3831 = vadd.f32 %v3493, %v3799
        %v3832 = vadd.f32 %v3496, %v3800
        %v3833 = vadd.f32 %v3498, %v3801
        %v3834 = vadd.f32 %v3501, %v3802
        %v3835 = vadd.f32 %v3503, %v3803
        %v3836 = vadd.f32 %v3506, %v3804
        %v3837 = vadd.f32 %v3508, %v3805
        %v3838 = vadd.f32 %v3511, %v3806
        %v3839 = vadd.f32 %v3513, %v3807
        %v3840 = vadd.f32 %v3516, %v3808
        %v3841 = vadd.f32 %v3518, %v3809
        %v3842 = vperm.slane %v3369, 0
        %v3843 = vadd.f32 %v3810, %v3842
        %v3844 = vadd.f32 %v3811, %v3842
        %v3845 = vadd.f32 %v3812, %v3842
        %v3846 = vadd.f32 %v3813, %v3842
        %v3847 = vadd.f32 %v3814, %v3842
        %v3848 = vadd.f32 %v3815, %v3842
        %v3849 = vadd.f32 %v3816, %v3842
        %v3850 = vadd.f32 %v3817, %v3842
        %v3851 = vadd.f32 %v3818, %v3842
        %v3852 = vadd.f32 %v3819, %v3842
        %v3853 = vadd.f32 %v3820, %v3842
        %v3854 = vadd.f32 %v3821, %v3842
        %v3855 = vadd.f32 %v3822, %v3842
        %v3856 = vadd.f32 %v3823, %v3842
        %v3857 = vadd.f32 %v3824, %v3842
        %v3858 = vadd.f32 %v3825, %v3842
        %v3859 = vadd.f32 %v3826, %v3842
        %v3860 = vadd.f32 %v3827, %v3842
        %v3861 = vadd.f32 %v3828, %v3842
        %v3862 = vadd.f32 %v3829, %v3842
        %v3863 = vadd.f32 %v3830, %v3842
        %v3864 = vadd.f32 %v3831, %v3842
        %v3865 = vadd.f32 %v3832, %v3842
        %v3866 = vadd.f32 %v3833, %v3842
        %v3867 = vadd.f32 %v3834, %v3842
        %v3868 = vadd.f32 %v3835, %v3842
        %v3869 = vadd.f32 %v3836, %v3842
        %v3870 = vadd.f32 %v3837, %v3842
        %v3871 = vadd.f32 %v3838, %v3842
        %v3872 = vadd.f32 %v3839, %v3842
        %v3873 = vadd.f32 %v3840, %v3842
        %v3874 = vadd.f32 %v3841, %v3842
        %v3875 = vmax.f32 %v3843, 0.0
        %v3876 = vmax.f32 %v3844, 0.0
        %v3877 = vmax.f32 %v3845, 0.0
        %v3878 = vmax.f32 %v3846, 0.0
        %v3879 = vmax.f32 %v3847, 0.0
        %v3880 = vmax.f32 %v3848, 0.0
        %v3881 = vmax.f32 %v3849, 0.0
        %v3882 = vmax.f32 %v3850, 0.0
        %v3883 = vmax.f32 %v3851, 0.0
        %v3884 = vmax.f32 %v3852, 0.0
        %v3885 = vmax.f32 %v3853, 0.0
        %v3886 = vmax.f32 %v3854, 0.0
        %v3887 = vmax.f32 %v3855, 0.0
        %v3888 = vmax.f32 %v3856, 0.0
        %v3889 = vmax.f32 %v3857, 0.0
        %v3890 = vmax.f32 %v3858, 0.0
        %v3891 = vmax.f32 %v3859, 0.0
        %v3892 = vmax.f32 %v3860, 0.0
        %v3893 = vmax.f32 %v3861, 0.0
        %v3894 = vmax.f32 %v3862, 0.0
        %v3895 = vmax.f32 %v3863, 0.0
        %v3896 = vmax.f32 %v3864, 0.0
        %v3897 = vmax.f32 %v3865, 0.0
        %v3898 = vmax.f32 %v3866, 0.0
        %v3899 = vmax.f32 %v3867, 0.0
        %v3900 = vmax.f32 %v3868, 0.0
        %v3901 = vmax.f32 %v3869, 0.0
        %v3902 = vmax.f32 %v3870, 0.0
        %v3903 = vmax.f32 %v3871, 0.0
        %v3904 = vmax.f32 %v3872, 0.0
        %v3905 = vmax.f32 %v3873, 0.0
        %v3906 = vmax.f32 %v3874, 0.0
        %v3907 = vpack.c.bf16 %v3876, %v3875
        %v3908 = vpack.c.bf16 %v3878, %v3877
        %v3909 = vpack.c.bf16 %v3880, %v3879
        %v3910 = vpack.c.bf16 %v3882, %v3881
        %v3911 = vpack.c.bf16 %v3884, %v3883
        %v3912 = vpack.c.bf16 %v3886, %v3885
        %v3913 = vpack.c.bf16 %v3888, %v3887
        %v3914 = vpack.c.bf16 %v3890, %v3889
        %v3915 = vpack.c.bf16 %v3892, %v3891
        %v3916 = vpack.c.bf16 %v3894, %v3893
        %v3917 = vpack.c.bf16 %v3896, %v3895
        %v3918 = vpack.c.bf16 %v3898, %v3897
        %v3919 = vpack.c.bf16 %v3900, %v3899
        %v3920 = vpack.c.bf16 %v3902, %v3901
        %v3921 = vpack.c.bf16 %v3904, %v3903
        %v3922 = vpack.c.bf16 %v3906, %v3905
        %v3923 = vld [vmem:[%s3 + $0x30] sm:$0xf]
        %v3924 = vld [vmem:[%s3 + $0x34] sm:$0xf]
        %v3925 = vld [vmem:[%s3 + $0x38] sm:$0xf]
        %v3926 = vld [vmem:[%s3 + $0x3c] sm:$0xf]
        %v3927 = vld [vmem:[%s4 + $0x2] sm:$0x1]
        %v3932 = vunpack.c.l.b16 %v3923
        %v3933 = vunpack.c.l.b16 %v3924
        %v3934 = vunpack.c.l.b16 %v3925
        %v3935 = vunpack.c.l.b16 %v3926
        %v3936 = vpack.c.b16 %v3933, %v3932
        %v3937 = vpack.c.b16 %v3935, %v3934
        %v3941 = vsel %vm3382, %v3907, 0
        %v3944 = vsel %vm3382, %v3908, 0
        %v3947 = vsel %vm3382, %v3909, 0
        %v3950 = vsel %vm3382, %v3910, 0
        %v3953 = vsel %vm3382, %v3911, 0
        %v3956 = vsel %vm3382, %v3912, 0
        %v3959 = vsel %vm3382, %v3913, 0
        %v3962 = vsel %vm3382, %v3914, 0
        %v3965 = vsel %vm3382, %v3915, 0
        %v3968 = vsel %vm3382, %v3916, 0
        %v3971 = vsel %vm3382, %v3917, 0
        %v3974 = vsel %vm3382, %v3918, 0
        %v3977 = vsel %vm3382, %v3919, 0
        %v3980 = vsel %vm3382, %v3920, 0
        %v3983 = vsel %vm3382, %v3921, 0
        %v3986 = vsel %vm3382, %v3922, 0
        %3988 = vmatpush.bf16.msra.mxu0 0
        %3989 = vmatpush.bf16.msra.mxu0 0
        %3990 = vmatpush.bf16.msra.mxu0 0
        %3991 = vmatpush.bf16.msra.mxu0 0
        %3992 = vmatpush.bf16.msra.mxu0 0
        %3993 = vmatpush.bf16.msra.mxu0 0
        %3994 = vmatpush.bf16.msra.mxu0 %v3937
        %3995 = vmatpush.bf16.msra.mxu0 %v3936
        %3996 = vmatmul.bf16.gmra.mxu0 %v3941
        %v3997 = vpop.f32.mrf.mxu0
        %v3998 = vadd.f32 0.0, %v3997
        %v3999 = vpop.f32.mrf.mxu0
        %v4000 = vadd.f32 0.0, %v3999
        %4001 = vmatmul.bf16.gmra.mxu0 %v3944
        %v4002 = vpop.f32.mrf.mxu0
        %v4003 = vadd.f32 0.0, %v4002
        %v4004 = vpop.f32.mrf.mxu0
        %v4005 = vadd.f32 0.0, %v4004
        %4006 = vmatmul.bf16.gmra.mxu0 %v3947
        %v4007 = vpop.f32.mrf.mxu0
        %v4008 = vadd.f32 0.0, %v4007
        %v4009 = vpop.f32.mrf.mxu0
        %v4010 = vadd.f32 0.0, %v4009
        %4011 = vmatmul.bf16.gmra.mxu0 %v3950
        %v4012 = vpop.f32.mrf.mxu0
        %v4013 = vadd.f32 0.0, %v4012
        %v4014 = vpop.f32.mrf.mxu0
        %v4015 = vadd.f32 0.0, %v4014
        %4016 = vmatmul.bf16.gmra.mxu0 %v3953
        %v4017 = vpop.f32.mrf.mxu0
        %v4018 = vadd.f32 0.0, %v4017
        %v4019 = vpop.f32.mrf.mxu0
        %v4020 = vadd.f32 0.0, %v4019
        %4021 = vmatmul.bf16.gmra.mxu0 %v3956
        %v4022 = vpop.f32.mrf.mxu0
        %v4023 = vadd.f32 0.0, %v4022
        %v4024 = vpop.f32.mrf.mxu0
        %v4025 = vadd.f32 0.0, %v4024
        %4026 = vmatmul.bf16.gmra.mxu0 %v3959
        %v4027 = vpop.f32.mrf.mxu0
        %v4028 = vadd.f32 0.0, %v4027
        %v4029 = vpop.f32.mrf.mxu0
        %v4030 = vadd.f32 0.0, %v4029
        %4031 = vmatmul.bf16.gmra.mxu0 %v3962
        %v4032 = vpop.f32.mrf.mxu0
        %v4033 = vadd.f32 0.0, %v4032
        %v4034 = vpop.f32.mrf.mxu0
        %v4035 = vadd.f32 0.0, %v4034
        %4036 = vmatmul.bf16.gmra.mxu0 %v3965
        %v4037 = vpop.f32.mrf.mxu0
        %v4038 = vadd.f32 0.0, %v4037
        %v4039 = vpop.f32.mrf.mxu0
        %v4040 = vadd.f32 0.0, %v4039
        %4041 = vmatmul.bf16.gmra.mxu0 %v3968
        %v4042 = vpop.f32.mrf.mxu0
        %v4043 = vadd.f32 0.0, %v4042
        %v4044 = vpop.f32.mrf.mxu0
        %v4045 = vadd.f32 0.0, %v4044
        %4046 = vmatmul.bf16.gmra.mxu0 %v3971
        %v4047 = vpop.f32.mrf.mxu0
        %v4048 = vadd.f32 0.0, %v4047
        %v4049 = vpop.f32.mrf.mxu0
        %v4050 = vadd.f32 0.0, %v4049
        %4051 = vmatmul.bf16.gmra.mxu0 %v3974
        %v4052 = vpop.f32.mrf.mxu0
        %v4053 = vadd.f32 0.0, %v4052
        %v4054 = vpop.f32.mrf.mxu0
        %v4055 = vadd.f32 0.0, %v4054
        %4056 = vmatmul.bf16.gmra.mxu0 %v3977
        %v4057 = vpop.f32.mrf.mxu0
        %v4058 = vadd.f32 0.0, %v4057
        %v4059 = vpop.f32.mrf.mxu0
        %v4060 = vadd.f32 0.0, %v4059
        %4061 = vmatmul.bf16.gmra.mxu0 %v3980
        %v4062 = vpop.f32.mrf.mxu0
        %v4063 = vadd.f32 0.0, %v4062
        %v4064 = vpop.f32.mrf.mxu0
        %v4065 = vadd.f32 0.0, %v4064
        %4066 = vmatmul.bf16.gmra.mxu0 %v3983
        %v4067 = vpop.f32.mrf.mxu0
        %v4068 = vadd.f32 0.0, %v4067
        %v4069 = vpop.f32.mrf.mxu0
        %v4070 = vadd.f32 0.0, %v4069
        %4071 = vmatmul.bf16.gmra.mxu0 %v3986
        %v4072 = vpop.f32.mrf.mxu0
        %v4073 = vadd.f32 0.0, %v4072
        %v4074 = vpop.f32.mrf.mxu0
        %v4075 = vadd.f32 0.0, %v4074
        %4076 = vdwg.mxu0
        %v4077 = vpack.c.bf16 %v4000, %v3998
        %v4078 = vpack.c.bf16 %v4005, %v4003
        %v4079 = vpack.c.bf16 %v4010, %v4008
        %v4080 = vpack.c.bf16 %v4015, %v4013
        %v4081 = vpack.c.bf16 %v4020, %v4018
        %v4082 = vpack.c.bf16 %v4025, %v4023
        %v4083 = vpack.c.bf16 %v4030, %v4028
        %v4084 = vpack.c.bf16 %v4035, %v4033
        %v4085 = vpack.c.bf16 %v4040, %v4038
        %v4086 = vpack.c.bf16 %v4045, %v4043
        %v4087 = vpack.c.bf16 %v4050, %v4048
        %v4088 = vpack.c.bf16 %v4055, %v4053
        %v4089 = vpack.c.bf16 %v4060, %v4058
        %v4090 = vpack.c.bf16 %v4065, %v4063
        %v4091 = vpack.c.bf16 %v4070, %v4068
        %v4092 = vpack.c.bf16 %v4075, %v4073
        %4109 = vrot.lane.b32.xlu0 %v4077, 112
        %v4110 = vpop.permute.xlu0 %4109
        %4111 = vrot.lane.b32.xlu0 %v4078, 112
        %v4112 = vpop.permute.xlu0 %4111
        %4113 = vrot.lane.b32.xlu0 %v4079, 112
        %v4114 = vpop.permute.xlu0 %4113
        %4115 = vrot.lane.b32.xlu0 %v4080, 112
        %v4116 = vpop.permute.xlu0 %4115
        %4117 = vrot.lane.b32.xlu0 %v4081, 112
        %v4118 = vpop.permute.xlu0 %4117
        %4119 = vrot.lane.b32.xlu0 %v4082, 112
        %v4120 = vpop.permute.xlu0 %4119
        %4121 = vrot.lane.b32.xlu0 %v4083, 112
        %v4122 = vpop.permute.xlu0 %4121
        %4123 = vrot.lane.b32.xlu0 %v4084, 112
        %v4124 = vpop.permute.xlu0 %4123
        %4125 = vrot.lane.b32.xlu0 %v4085, 112
        %v4126 = vpop.permute.xlu0 %4125
        %4127 = vrot.lane.b32.xlu0 %v4086, 112
        %v4128 = vpop.permute.xlu0 %4127
        %4129 = vrot.lane.b32.xlu0 %v4087, 112
        %v4130 = vpop.permute.xlu0 %4129
        %4131 = vrot.lane.b32.xlu0 %v4088, 112
        %v4132 = vpop.permute.xlu0 %4131
        %4133 = vrot.lane.b32.xlu0 %v4089, 112
        %v4134 = vpop.permute.xlu0 %4133
        %4135 = vrot.lane.b32.xlu0 %v4090, 112
        %v4136 = vpop.permute.xlu0 %4135
        %4137 = vrot.lane.b32.xlu0 %v4091, 112
        %v4138 = vpop.permute.xlu0 %4137
        %4139 = vrot.lane.b32.xlu0 %v4092, 112
        %v4140 = vpop.permute.xlu0 %4139
        %4157 = vmatpush.bf16.msra.mxu0 %v4124
        %4158 = vmatpush.bf16.msra.mxu0 %v4122
        %4159 = vmatpush.bf16.msra.mxu0 %v4120
        %4160 = vmatpush.bf16.msra.mxu0 %v4118
        %4161 = vmatpush.bf16.msra.mxu0 %v4116
        %4162 = vmatpush.bf16.msra.mxu0 %v4114
        %4163 = vmatpush.bf16.msra.mxu0 %v4112
        %4164 = vmatpush.bf16.msra.mxu0 %v4110
        %4165 = vmatmul.bf16.gmra.mxu0 %v2647
        %v4166 = vpop.f32.mrf.mxu0
        %v4167 = vadd.f32 0.0, %v4166
        %v4168 = vpop.f32.mrf.mxu0
        %v4169 = vadd.f32 0.0, %v4168
        %4170 = vmatmul.bf16.gmra.mxu0 %v2649
        %v4171 = vpop.f32.mrf.mxu0
        %v4172 = vadd.f32 0.0, %v4171
        %v4173 = vpop.f32.mrf.mxu0
        %v4174 = vadd.f32 0.0, %v4173
        %4175 = vmatmul.bf16.gmra.mxu0 %v2651
        %v4176 = vpop.f32.mrf.mxu0
        %v4177 = vadd.f32 0.0, %v4176
        %v4178 = vpop.f32.mrf.mxu0
        %v4179 = vadd.f32 0.0, %v4178
        %4180 = vmatmul.bf16.gmra.mxu0 %v2653
        %v4181 = vpop.f32.mrf.mxu0
        %v4182 = vadd.f32 0.0, %v4181
        %v4183 = vpop.f32.mrf.mxu0
        %v4184 = vadd.f32 0.0, %v4183
        %4185 = vmatmul.bf16.gmra.mxu0 %v2655
        %v4186 = vpop.f32.mrf.mxu0
        %v4187 = vadd.f32 0.0, %v4186
        %v4188 = vpop.f32.mrf.mxu0
        %v4189 = vadd.f32 0.0, %v4188
        %4190 = vmatmul.bf16.gmra.mxu0 %v2657
        %v4191 = vpop.f32.mrf.mxu0
        %v4192 = vadd.f32 0.0, %v4191
        %v4193 = vpop.f32.mrf.mxu0
        %v4194 = vadd.f32 0.0, %v4193
        %4195 = vmatmul.bf16.gmra.mxu0 %v2659
        %v4196 = vpop.f32.mrf.mxu0
        %v4197 = vadd.f32 0.0, %v4196
        %v4198 = vpop.f32.mrf.mxu0
        %v4199 = vadd.f32 0.0, %v4198
        %4200 = vmatmul.bf16.gmra.mxu0 %v2661
        %v4201 = vpop.f32.mrf.mxu0
        %v4202 = vadd.f32 0.0, %v4201
        %v4203 = vpop.f32.mrf.mxu0
        %v4204 = vadd.f32 0.0, %v4203
        %4205 = vmatmul.bf16.gmra.mxu0 %v2663
        %v4206 = vpop.f32.mrf.mxu0
        %v4207 = vadd.f32 0.0, %v4206
        %v4208 = vpop.f32.mrf.mxu0
        %v4209 = vadd.f32 0.0, %v4208
        %4210 = vmatmul.bf16.gmra.mxu0 %v2665
        %v4211 = vpop.f32.mrf.mxu0
        %v4212 = vadd.f32 0.0, %v4211
        %v4213 = vpop.f32.mrf.mxu0
        %v4214 = vadd.f32 0.0, %v4213
        %4215 = vmatmul.bf16.gmra.mxu0 %v2667
        %v4216 = vpop.f32.mrf.mxu0
        %v4217 = vadd.f32 0.0, %v4216
        %v4218 = vpop.f32.mrf.mxu0
        %v4219 = vadd.f32 0.0, %v4218
        %4220 = vmatmul.bf16.gmra.mxu0 %v2669
        %v4221 = vpop.f32.mrf.mxu0
        %v4222 = vadd.f32 0.0, %v4221
        %v4223 = vpop.f32.mrf.mxu0
        %v4224 = vadd.f32 0.0, %v4223
        %4225 = vmatmul.bf16.gmra.mxu0 %v2671
        %v4226 = vpop.f32.mrf.mxu0
        %v4227 = vadd.f32 0.0, %v4226
        %v4228 = vpop.f32.mrf.mxu0
        %v4229 = vadd.f32 0.0, %v4228
        %4230 = vmatmul.bf16.gmra.mxu0 %v2673
        %v4231 = vpop.f32.mrf.mxu0
        %v4232 = vadd.f32 0.0, %v4231
        %v4233 = vpop.f32.mrf.mxu0
        %v4234 = vadd.f32 0.0, %v4233
        %4235 = vmatmul.bf16.gmra.mxu0 %v2675
        %v4236 = vpop.f32.mrf.mxu0
        %v4237 = vadd.f32 0.0, %v4236
        %v4238 = vpop.f32.mrf.mxu0
        %v4239 = vadd.f32 0.0, %v4238
        %4240 = vmatmul.bf16.gmra.mxu0 %v2677
        %v4241 = vpop.f32.mrf.mxu0
        %v4242 = vadd.f32 0.0, %v4241
        %v4243 = vpop.f32.mrf.mxu0
        %v4244 = vadd.f32 0.0, %v4243
        %4245 = vdwg.mxu0
        %4246 = vmatpush.bf16.msra.mxu0 %v4140
        %4247 = vmatpush.bf16.msra.mxu0 %v4138
        %4248 = vmatpush.bf16.msra.mxu0 %v4136
        %4249 = vmatpush.bf16.msra.mxu0 %v4134
        %4250 = vmatpush.bf16.msra.mxu0 %v4132
        %4251 = vmatpush.bf16.msra.mxu0 %v4130
        %4252 = vmatpush.bf16.msra.mxu0 %v4128
        %4253 = vmatpush.bf16.msra.mxu0 %v4126
        %4254 = vmatmul.bf16.gmra.mxu0 %v2648
        %v4255 = vpop.f32.mrf.mxu0
        %v4256 = vadd.f32 %v4167, %v4255
        %v4257 = vpop.f32.mrf.mxu0
        %v4258 = vadd.f32 %v4169, %v4257
        %4259 = vmatmul.bf16.gmra.mxu0 %v2650
        %v4260 = vpop.f32.mrf.mxu0
        %v4261 = vadd.f32 %v4172, %v4260
        %v4262 = vpop.f32.mrf.mxu0
        %v4263 = vadd.f32 %v4174, %v4262
        %4264 = vmatmul.bf16.gmra.mxu0 %v2652
        %v4265 = vpop.f32.mrf.mxu0
        %v4266 = vadd.f32 %v4177, %v4265
        %v4267 = vpop.f32.mrf.mxu0
        %v4268 = vadd.f32 %v4179, %v4267
        %4269 = vmatmul.bf16.gmra.mxu0 %v2654
        %v4270 = vpop.f32.mrf.mxu0
        %v4271 = vadd.f32 %v4182, %v4270
        %v4272 = vpop.f32.mrf.mxu0
        %v4273 = vadd.f32 %v4184, %v4272
        %4274 = vmatmul.bf16.gmra.mxu0 %v2656
        %v4275 = vpop.f32.mrf.mxu0
        %v4276 = vadd.f32 %v4187, %v4275
        %v4277 = vpop.f32.mrf.mxu0
        %v4278 = vadd.f32 %v4189, %v4277
        %4279 = vmatmul.bf16.gmra.mxu0 %v2658
        %v4280 = vpop.f32.mrf.mxu0
        %v4281 = vadd.f32 %v4192, %v4280
        %v4282 = vpop.f32.mrf.mxu0
        %v4283 = vadd.f32 %v4194, %v4282
        %4284 = vmatmul.bf16.gmra.mxu0 %v2660
        %v4285 = vpop.f32.mrf.mxu0
        %v4286 = vadd.f32 %v4197, %v4285
        %v4287 = vpop.f32.mrf.mxu0
        %v4288 = vadd.f32 %v4199, %v4287
        %4289 = vmatmul.bf16.gmra.mxu0 %v2662
        %v4290 = vpop.f32.mrf.mxu0
        %v4291 = vadd.f32 %v4202, %v4290
        %v4292 = vpop.f32.mrf.mxu0
        %v4293 = vadd.f32 %v4204, %v4292
        %4294 = vmatmul.bf16.gmra.mxu0 %v2664
        %v4295 = vpop.f32.mrf.mxu0
        %v4296 = vadd.f32 %v4207, %v4295
        %v4297 = vpop.f32.mrf.mxu0
        %v4298 = vadd.f32 %v4209, %v4297
        %4299 = vmatmul.bf16.gmra.mxu0 %v2666
        %v4300 = vpop.f32.mrf.mxu0
        %v4301 = vadd.f32 %v4212, %v4300
        %v4302 = vpop.f32.mrf.mxu0
        %v4303 = vadd.f32 %v4214, %v4302
        %4304 = vmatmul.bf16.gmra.mxu0 %v2668
        %v4305 = vpop.f32.mrf.mxu0
        %v4306 = vadd.f32 %v4217, %v4305
        %v4307 = vpop.f32.mrf.mxu0
        %v4308 = vadd.f32 %v4219, %v4307
        %4309 = vmatmul.bf16.gmra.mxu0 %v2670
        %v4310 = vpop.f32.mrf.mxu0
        %v4311 = vadd.f32 %v4222, %v4310
        %v4312 = vpop.f32.mrf.mxu0
        %v4313 = vadd.f32 %v4224, %v4312
        %4314 = vmatmul.bf16.gmra.mxu0 %v2672
        %v4315 = vpop.f32.mrf.mxu0
        %v4316 = vadd.f32 %v4227, %v4315
        %v4317 = vpop.f32.mrf.mxu0
        %v4318 = vadd.f32 %v4229, %v4317
        %4319 = vmatmul.bf16.gmra.mxu0 %v2674
        %v4320 = vpop.f32.mrf.mxu0
        %v4321 = vadd.f32 %v4232, %v4320
        %v4322 = vpop.f32.mrf.mxu0
        %v4323 = vadd.f32 %v4234, %v4322
        %4324 = vmatmul.bf16.gmra.mxu0 %v2676
        %v4325 = vpop.f32.mrf.mxu0
        %v4326 = vadd.f32 %v4237, %v4325
        %v4327 = vpop.f32.mrf.mxu0
        %v4328 = vadd.f32 %v4239, %v4327
        %4329 = vmatmul.bf16.gmra.mxu0 %v2678
        %v4330 = vpop.f32.mrf.mxu0
        %v4331 = vadd.f32 %v4242, %v4330
        %v4332 = vpop.f32.mrf.mxu0
        %v4333 = vadd.f32 %v4244, %v4332
        %4334 = vdwg.mxu0
        %v4335 = vmul.f32 %v1903, %v4256
        %v4336 = vmul.f32 %v1904, %v4258
        %v4337 = vmul.f32 %v1905, %v4261
        %v4338 = vmul.f32 %v1906, %v4263
        %v4339 = vmul.f32 %v1907, %v4266
        %v4340 = vmul.f32 %v1908, %v4268
        %v4341 = vmul.f32 %v1909, %v4271
        %v4342 = vmul.f32 %v1910, %v4273
        %v4343 = vmul.f32 %v1911, %v4276
        %v4344 = vmul.f32 %v1912, %v4278
        %v4345 = vmul.f32 %v1913, %v4281
        %v4346 = vmul.f32 %v1914, %v4283
        %v4347 = vmul.f32 %v1915, %v4286
        %v4348 = vmul.f32 %v1916, %v4288
        %v4349 = vmul.f32 %v1917, %v4291
        %v4350 = vmul.f32 %v1918, %v4293
        %v4351 = vmul.f32 %v1919, %v4296
        %v4352 = vmul.f32 %v1920, %v4298
        %v4353 = vmul.f32 %v1921, %v4301
        %v4354 = vmul.f32 %v1922, %v4303
        %v4355 = vmul.f32 %v1923, %v4306
        %v4356 = vmul.f32 %v1924, %v4308
        %v4357 = vmul.f32 %v1925, %v4311
        %v4358 = vmul.f32 %v1926, %v4313
        %v4359 = vmul.f32 %v1927, %v4316
        %v4360 = vmul.f32 %v1928, %v4318
        %v4361 = vmul.f32 %v1929, %v4321
        %v4362 = vmul.f32 %v1930, %v4323
        %v4363 = vmul.f32 %v1931, %v4326
        %v4364 = vmul.f32 %v1932, %v4328
        %v4365 = vmul.f32 %v1933, %v4331
        %v4366 = vmul.f32 %v1934, %v4333
        %v4367 = vadd.f32 %v3998, %v4335
        %v4368 = vadd.f32 %v4000, %v4336
        %v4369 = vadd.f32 %v4003, %v4337
        %v4370 = vadd.f32 %v4005, %v4338
        %v4371 = vadd.f32 %v4008, %v4339
        %v4372 = vadd.f32 %v4010, %v4340
        %v4373 = vadd.f32 %v4013, %v4341
        %v4374 = vadd.f32 %v4015, %v4342
        %v4375 = vadd.f32 %v4018, %v4343
        %v4376 = vadd.f32 %v4020, %v4344
        %v4377 = vadd.f32 %v4023, %v4345
        %v4378 = vadd.f32 %v4025, %v4346
        %v4379 = vadd.f32 %v4028, %v4347
        %v4380 = vadd.f32 %v4030, %v4348
        %v4381 = vadd.f32 %v4033, %v4349
        %v4382 = vadd.f32 %v4035, %v4350
        %v4383 = vadd.f32 %v4038, %v4351
        %v4384 = vadd.f32 %v4040, %v4352
        %v4385 = vadd.f32 %v4043, %v4353
        %v4386 = vadd.f32 %v4045, %v4354
        %v4387 = vadd.f32 %v4048, %v4355
        %v4388 = vadd.f32 %v4050, %v4356
        %v4389 = vadd.f32 %v4053, %v4357
        %v4390 = vadd.f32 %v4055, %v4358
        %v4391 = vadd.f32 %v4058, %v4359
        %v4392 = vadd.f32 %v4060, %v4360
        %v4393 = vadd.f32 %v4063, %v4361
        %v4394 = vadd.f32 %v4065, %v4362
        %v4395 = vadd.f32 %v4068, %v4363
        %v4396 = vadd.f32 %v4070, %v4364
        %v4397 = vadd.f32 %v4073, %v4365
        %v4398 = vadd.f32 %v4075, %v4366
        %v4399 = vperm.slane %v3927, 0
        %v4400 = vadd.f32 %v4367, %v4399
        %v4401 = vadd.f32 %v4368, %v4399
        %v4402 = vadd.f32 %v4369, %v4399
        %v4403 = vadd.f32 %v4370, %v4399
        %v4404 = vadd.f32 %v4371, %v4399
        %v4405 = vadd.f32 %v4372, %v4399
        %v4406 = vadd.f32 %v4373, %v4399
        %v4407 = vadd.f32 %v4374, %v4399
        %v4408 = vadd.f32 %v4375, %v4399
        %v4409 = vadd.f32 %v4376, %v4399
        %v4410 = vadd.f32 %v4377, %v4399
        %v4411 = vadd.f32 %v4378, %v4399
        %v4412 = vadd.f32 %v4379, %v4399
        %v4413 = vadd.f32 %v4380, %v4399
        %v4414 = vadd.f32 %v4381, %v4399
        %v4415 = vadd.f32 %v4382, %v4399
        %v4416 = vadd.f32 %v4383, %v4399
        %v4417 = vadd.f32 %v4384, %v4399
        %v4418 = vadd.f32 %v4385, %v4399
        %v4419 = vadd.f32 %v4386, %v4399
        %v4420 = vadd.f32 %v4387, %v4399
        %v4421 = vadd.f32 %v4388, %v4399
        %v4422 = vadd.f32 %v4389, %v4399
        %v4423 = vadd.f32 %v4390, %v4399
        %v4424 = vadd.f32 %v4391, %v4399
        %v4425 = vadd.f32 %v4392, %v4399
        %v4426 = vadd.f32 %v4393, %v4399
        %v4427 = vadd.f32 %v4394, %v4399
        %v4428 = vadd.f32 %v4395, %v4399
        %v4429 = vadd.f32 %v4396, %v4399
        %v4430 = vadd.f32 %v4397, %v4399
        %v4431 = vadd.f32 %v4398, %v4399
        %v4432 = vmax.f32 %v4400, 0.0
        %v4433 = vmax.f32 %v4401, 0.0
        %v4434 = vmax.f32 %v4402, 0.0
        %v4435 = vmax.f32 %v4403, 0.0
        %v4436 = vmax.f32 %v4404, 0.0
        %v4437 = vmax.f32 %v4405, 0.0
        %v4438 = vmax.f32 %v4406, 0.0
        %v4439 = vmax.f32 %v4407, 0.0
        %v4440 = vmax.f32 %v4408, 0.0
        %v4441 = vmax.f32 %v4409, 0.0
        %v4442 = vmax.f32 %v4410, 0.0
        %v4443 = vmax.f32 %v4411, 0.0
        %v4444 = vmax.f32 %v4412, 0.0
        %v4445 = vmax.f32 %v4413, 0.0
        %v4446 = vmax.f32 %v4414, 0.0
        %v4447 = vmax.f32 %v4415, 0.0
        %v4448 = vmax.f32 %v4416, 0.0
        %v4449 = vmax.f32 %v4417, 0.0
        %v4450 = vmax.f32 %v4418, 0.0
        %v4451 = vmax.f32 %v4419, 0.0
        %v4452 = vmax.f32 %v4420, 0.0
        %v4453 = vmax.f32 %v4421, 0.0
        %v4454 = vmax.f32 %v4422, 0.0
        %v4455 = vmax.f32 %v4423, 0.0
        %v4456 = vmax.f32 %v4424, 0.0
        %v4457 = vmax.f32 %v4425, 0.0
        %v4458 = vmax.f32 %v4426, 0.0
        %v4459 = vmax.f32 %v4427, 0.0
        %v4460 = vmax.f32 %v4428, 0.0
        %v4461 = vmax.f32 %v4429, 0.0
        %v4462 = vmax.f32 %v4430, 0.0
        %v4463 = vmax.f32 %v4431, 0.0
        %v4464 = vpack.c.bf16 %v4433, %v4432
        %v4465 = vpack.c.bf16 %v4435, %v4434
        %v4466 = vpack.c.bf16 %v4437, %v4436
        %v4467 = vpack.c.bf16 %v4439, %v4438
        %v4468 = vpack.c.bf16 %v4441, %v4440
        %v4469 = vpack.c.bf16 %v4443, %v4442
        %v4470 = vpack.c.bf16 %v4445, %v4444
        %v4471 = vpack.c.bf16 %v4447, %v4446
        %v4472 = vpack.c.bf16 %v4449, %v4448
        %v4473 = vpack.c.bf16 %v4451, %v4450
        %v4474 = vpack.c.bf16 %v4453, %v4452
        %v4475 = vpack.c.bf16 %v4455, %v4454
        %v4476 = vpack.c.bf16 %v4457, %v4456
        %v4477 = vpack.c.bf16 %v4459, %v4458
        %v4478 = vpack.c.bf16 %v4461, %v4460
        %v4479 = vpack.c.bf16 %v4463, %v4462
        %v4480 = vld [vmem:[%s3 + $0x40] sm:$0xf]
        %v4481 = vld [vmem:[%s3 + $0x44] sm:$0xf]
        %v4484 = vunpack.c.l.b16 %v4480
        %v4485 = vunpack.c.l.b16 %v4481
        %v4486 = vpack.c.b16 %v4485, %v4484
        %vm4488 = vcmask 130048
        %v4490 = vsel %vm4488, %v4464, 0
        %v4493 = vsel %vm4488, %v4465, 0
        %v4496 = vsel %vm4488, %v4466, 0
        %v4499 = vsel %vm4488, %v4467, 0
        %v4502 = vsel %vm4488, %v4468, 0
        %v4505 = vsel %vm4488, %v4469, 0
        %v4508 = vsel %vm4488, %v4470, 0
        %v4511 = vsel %vm4488, %v4471, 0
        %v4514 = vsel %vm4488, %v4472, 0
        %v4517 = vsel %vm4488, %v4473, 0
        %v4520 = vsel %vm4488, %v4474, 0
        %v4523 = vsel %vm4488, %v4475, 0
        %v4526 = vsel %vm4488, %v4476, 0
        %v4529 = vsel %vm4488, %v4477, 0
        %v4532 = vsel %vm4488, %v4478, 0
        %v4535 = vsel %vm4488, %v4479, 0
        %4537 = vmatpush.bf16.msra.mxu0 0
        %4538 = vmatpush.bf16.msra.mxu0 0
        %4539 = vmatpush.bf16.msra.mxu0 0
        %4540 = vmatpush.bf16.msra.mxu0 0
        %4541 = vmatpush.bf16.msra.mxu0 0
        %4542 = vmatpush.bf16.msra.mxu0 0
        %4543 = vmatpush.bf16.msra.mxu0 0
        %4544 = vmatpush.bf16.msra.mxu0 %v4486
        %4545 = vmatmul.bf16.gmra.mxu0 %v4490
        %v4546 = vpop.f32.mrf.mxu0
        %v4547 = vadd.f32 0.0, %v4546
        %v4548 = vpop.f32.mrf.mxu0
        %v4549 = vadd.f32 0.0, %v4548
        %4550 = vmatmul.bf16.gmra.mxu0 %v4493
        %v4551 = vpop.f32.mrf.mxu0
        %v4552 = vadd.f32 0.0, %v4551
        %v4553 = vpop.f32.mrf.mxu0
        %v4554 = vadd.f32 0.0, %v4553
        %4555 = vmatmul.bf16.gmra.mxu0 %v4496
        %v4556 = vpop.f32.mrf.mxu0
        %v4557 = vadd.f32 0.0, %v4556
        %v4558 = vpop.f32.mrf.mxu0
        %v4559 = vadd.f32 0.0, %v4558
        %4560 = vmatmul.bf16.gmra.mxu0 %v4499
        %v4561 = vpop.f32.mrf.mxu0
        %v4562 = vadd.f32 0.0, %v4561
        %v4563 = vpop.f32.mrf.mxu0
        %v4564 = vadd.f32 0.0, %v4563
        %4565 = vmatmul.bf16.gmra.mxu0 %v4502
        %v4566 = vpop.f32.mrf.mxu0
        %v4567 = vadd.f32 0.0, %v4566
        %v4568 = vpop.f32.mrf.mxu0
        %v4569 = vadd.f32 0.0, %v4568
        %4570 = vmatmul.bf16.gmra.mxu0 %v4505
        %v4571 = vpop.f32.mrf.mxu0
        %v4572 = vadd.f32 0.0, %v4571
        %v4573 = vpop.f32.mrf.mxu0
        %v4574 = vadd.f32 0.0, %v4573
        %4575 = vmatmul.bf16.gmra.mxu0 %v4508
        %v4576 = vpop.f32.mrf.mxu0
        %v4577 = vadd.f32 0.0, %v4576
        %v4578 = vpop.f32.mrf.mxu0
        %v4579 = vadd.f32 0.0, %v4578
        %4580 = vmatmul.bf16.gmra.mxu0 %v4511
        %v4581 = vpop.f32.mrf.mxu0
        %v4582 = vadd.f32 0.0, %v4581
        %v4583 = vpop.f32.mrf.mxu0
        %v4584 = vadd.f32 0.0, %v4583
        %4585 = vmatmul.bf16.gmra.mxu0 %v4514
        %v4586 = vpop.f32.mrf.mxu0
        %v4587 = vadd.f32 0.0, %v4586
        %v4588 = vpop.f32.mrf.mxu0
        %v4589 = vadd.f32 0.0, %v4588
        %4590 = vmatmul.bf16.gmra.mxu0 %v4517
        %v4591 = vpop.f32.mrf.mxu0
        %v4592 = vadd.f32 0.0, %v4591
        %v4593 = vpop.f32.mrf.mxu0
        %v4594 = vadd.f32 0.0, %v4593
        %4595 = vmatmul.bf16.gmra.mxu0 %v4520
        %v4596 = vpop.f32.mrf.mxu0
        %v4597 = vadd.f32 0.0, %v4596
        %v4598 = vpop.f32.mrf.mxu0
        %v4599 = vadd.f32 0.0, %v4598
        %4600 = vmatmul.bf16.gmra.mxu0 %v4523
        %v4601 = vpop.f32.mrf.mxu0
        %v4602 = vadd.f32 0.0, %v4601
        %v4603 = vpop.f32.mrf.mxu0
        %v4604 = vadd.f32 0.0, %v4603
        %4605 = vmatmul.bf16.gmra.mxu0 %v4526
        %v4606 = vpop.f32.mrf.mxu0
        %v4607 = vadd.f32 0.0, %v4606
        %v4608 = vpop.f32.mrf.mxu0
        %v4609 = vadd.f32 0.0, %v4608
        %4610 = vmatmul.bf16.gmra.mxu0 %v4529
        %v4611 = vpop.f32.mrf.mxu0
        %v4612 = vadd.f32 0.0, %v4611
        %v4613 = vpop.f32.mrf.mxu0
        %v4614 = vadd.f32 0.0, %v4613
        %4615 = vmatmul.bf16.gmra.mxu0 %v4532
        %v4616 = vpop.f32.mrf.mxu0
        %v4617 = vadd.f32 0.0, %v4616
        %v4618 = vpop.f32.mrf.mxu0
        %v4619 = vadd.f32 0.0, %v4618
        %4620 = vmatmul.bf16.gmra.mxu0 %v4535
        %v4621 = vpop.f32.mrf.mxu0
        %v4622 = vadd.f32 0.0, %v4621
        %v4623 = vpop.f32.mrf.mxu0
        %v4624 = vadd.f32 0.0, %v4623
        %4625 = vdwg.mxu0
        %v4626 = vld [vmem:[%s4 + $0x3] sm:$0x1]
        %v4627 = vperm.slane %v4626, 0
        %v4628 = vadd.f32 %v4547, %v4627
        %v4629 = vadd.f32 %v4549, %v4627
        %v4630 = vadd.f32 %v4552, %v4627
        %v4631 = vadd.f32 %v4554, %v4627
        %v4632 = vadd.f32 %v4557, %v4627
        %v4633 = vadd.f32 %v4559, %v4627
        %v4634 = vadd.f32 %v4562, %v4627
        %v4635 = vadd.f32 %v4564, %v4627
        %v4636 = vadd.f32 %v4567, %v4627
        %v4637 = vadd.f32 %v4569, %v4627
        %v4638 = vadd.f32 %v4572, %v4627
        %v4639 = vadd.f32 %v4574, %v4627
        %v4640 = vadd.f32 %v4577, %v4627
        %v4641 = vadd.f32 %v4579, %v4627
        %v4642 = vadd.f32 %v4582, %v4627
        %v4643 = vadd.f32 %v4584, %v4627
        %v4644 = vadd.f32 %v4587, %v4627
        %v4645 = vadd.f32 %v4589, %v4627
        %v4646 = vadd.f32 %v4592, %v4627
        %v4647 = vadd.f32 %v4594, %v4627
        %v4648 = vadd.f32 %v4597, %v4627
        %v4649 = vadd.f32 %v4599, %v4627
        %v4650 = vadd.f32 %v4602, %v4627
        %v4651 = vadd.f32 %v4604, %v4627
        %v4652 = vadd.f32 %v4607, %v4627
        %v4653 = vadd.f32 %v4609, %v4627
        %v4654 = vadd.f32 %v4612, %v4627
        %v4655 = vadd.f32 %v4614, %v4627
        %v4656 = vadd.f32 %v4617, %v4627
        %v4657 = vadd.f32 %v4619, %v4627
        %v4658 = vadd.f32 %v4622, %v4627
        %v4659 = vadd.f32 %v4624, %v4627
        %v4660 = vmax.f32 %v4628, 0.0
        %v4661 = vmax.f32 %v4629, 0.0
        %v4662 = vmax.f32 %v4630, 0.0
        %v4663 = vmax.f32 %v4631, 0.0
        %v4664 = vmax.f32 %v4632, 0.0
        %v4665 = vmax.f32 %v4633, 0.0
        %v4666 = vmax.f32 %v4634, 0.0
        %v4667 = vmax.f32 %v4635, 0.0
        %v4668 = vmax.f32 %v4636, 0.0
        %v4669 = vmax.f32 %v4637, 0.0
        %v4670 = vmax.f32 %v4638, 0.0
        %v4671 = vmax.f32 %v4639, 0.0
        %v4672 = vmax.f32 %v4640, 0.0
        %v4673 = vmax.f32 %v4641, 0.0
        %v4674 = vmax.f32 %v4642, 0.0
        %v4675 = vmax.f32 %v4643, 0.0
        %v4676 = vmax.f32 %v4644, 0.0
        %v4677 = vmax.f32 %v4645, 0.0
        %v4678 = vmax.f32 %v4646, 0.0
        %v4679 = vmax.f32 %v4647, 0.0
        %v4680 = vmax.f32 %v4648, 0.0
        %v4681 = vmax.f32 %v4649, 0.0
        %v4682 = vmax.f32 %v4650, 0.0
        %v4683 = vmax.f32 %v4651, 0.0
        %v4684 = vmax.f32 %v4652, 0.0
        %v4685 = vmax.f32 %v4653, 0.0
        %v4686 = vmax.f32 %v4654, 0.0
        %v4687 = vmax.f32 %v4655, 0.0
        %v4688 = vmax.f32 %v4656, 0.0
        %v4689 = vmax.f32 %v4657, 0.0
        %v4690 = vmax.f32 %v4658, 0.0
        %v4691 = vmax.f32 %v4659, 0.0
        %v4692 = vpack.c.bf16 %v4661, %v4660
        %v4693 = vpack.c.bf16 %v4663, %v4662
        %v4694 = vpack.c.bf16 %v4665, %v4664
        %v4695 = vpack.c.bf16 %v4667, %v4666
        %v4696 = vpack.c.bf16 %v4669, %v4668
        %v4697 = vpack.c.bf16 %v4671, %v4670
        %v4698 = vpack.c.bf16 %v4673, %v4672
        %v4699 = vpack.c.bf16 %v4675, %v4674
        %v4700 = vpack.c.bf16 %v4677, %v4676
        %v4701 = vpack.c.bf16 %v4679, %v4678
        %v4702 = vpack.c.bf16 %v4681, %v4680
        %v4703 = vpack.c.bf16 %v4683, %v4682
        %v4704 = vpack.c.bf16 %v4685, %v4684
        %v4705 = vpack.c.bf16 %v4687, %v4686
        %v4706 = vpack.c.bf16 %v4689, %v4688
        %v4707 = vpack.c.bf16 %v4691, %v4690
        %v4708 = vld [vmem:[%s3 + $0x48] sm:$0xf]
        %v4709 = vld [vmem:[%s3 + $0x4c] sm:$0xf]
        %v4712 = vunpack.c.l.b16 %v4708
        %v4713 = vunpack.c.l.b16 %v4709
        %v4714 = vpack.c.b16 %v4713, %v4712
        %v4717 = vsel %vm4488, %v4692, 0
        %v4720 = vsel %vm4488, %v4693, 0
        %v4723 = vsel %vm4488, %v4694, 0
        %v4726 = vsel %vm4488, %v4695, 0
        %v4729 = vsel %vm4488, %v4696, 0
        %v4732 = vsel %vm4488, %v4697, 0
        %v4735 = vsel %vm4488, %v4698, 0
        %v4738 = vsel %vm4488, %v4699, 0
        %v4741 = vsel %vm4488, %v4700, 0
        %v4744 = vsel %vm4488, %v4701, 0
        %v4747 = vsel %vm4488, %v4702, 0
        %v4750 = vsel %vm4488, %v4703, 0
        %v4753 = vsel %vm4488, %v4704, 0
        %v4756 = vsel %vm4488, %v4705, 0
        %v4759 = vsel %vm4488, %v4706, 0
        %v4762 = vsel %vm4488, %v4707, 0
        %4764 = vmatpush.bf16.msra.mxu0 0
        %4765 = vmatpush.bf16.msra.mxu0 0
        %4766 = vmatpush.bf16.msra.mxu0 0
        %4767 = vmatpush.bf16.msra.mxu0 0
        %4768 = vmatpush.bf16.msra.mxu0 0
        %4769 = vmatpush.bf16.msra.mxu0 0
        %4770 = vmatpush.bf16.msra.mxu0 0
        %4771 = vmatpush.bf16.msra.mxu0 %v4714
        %4772 = vmatmul.bf16.gmra.mxu0 %v4717
        %v4773 = vpop.f32.mrf.mxu0
        %v4774 = vadd.f32 0.0, %v4773
        %v4775 = vpop.f32.mrf.mxu0
        %v4776 = vadd.f32 0.0, %v4775
        %4777 = vmatmul.bf16.gmra.mxu0 %v4720
        %v4778 = vpop.f32.mrf.mxu0
        %v4779 = vadd.f32 0.0, %v4778
        %v4780 = vpop.f32.mrf.mxu0
        %v4781 = vadd.f32 0.0, %v4780
        %4782 = vmatmul.bf16.gmra.mxu0 %v4723
        %v4783 = vpop.f32.mrf.mxu0
        %v4784 = vadd.f32 0.0, %v4783
        %v4785 = vpop.f32.mrf.mxu0
        %v4786 = vadd.f32 0.0, %v4785
        %4787 = vmatmul.bf16.gmra.mxu0 %v4726
        %v4788 = vpop.f32.mrf.mxu0
        %v4789 = vadd.f32 0.0, %v4788
        %v4790 = vpop.f32.mrf.mxu0
        %v4791 = vadd.f32 0.0, %v4790
        %4792 = vmatmul.bf16.gmra.mxu0 %v4729
        %v4793 = vpop.f32.mrf.mxu0
        %v4794 = vadd.f32 0.0, %v4793
        %v4795 = vpop.f32.mrf.mxu0
        %v4796 = vadd.f32 0.0, %v4795
        %4797 = vmatmul.bf16.gmra.mxu0 %v4732
        %v4798 = vpop.f32.mrf.mxu0
        %v4799 = vadd.f32 0.0, %v4798
        %v4800 = vpop.f32.mrf.mxu0
        %v4801 = vadd.f32 0.0, %v4800
        %4802 = vmatmul.bf16.gmra.mxu0 %v4735
        %v4803 = vpop.f32.mrf.mxu0
        %v4804 = vadd.f32 0.0, %v4803
        %v4805 = vpop.f32.mrf.mxu0
        %v4806 = vadd.f32 0.0, %v4805
        %4807 = vmatmul.bf16.gmra.mxu0 %v4738
        %v4808 = vpop.f32.mrf.mxu0
        %v4809 = vadd.f32 0.0, %v4808
        %v4810 = vpop.f32.mrf.mxu0
        %v4811 = vadd.f32 0.0, %v4810
        %4812 = vmatmul.bf16.gmra.mxu0 %v4741
        %v4813 = vpop.f32.mrf.mxu0
        %v4814 = vadd.f32 0.0, %v4813
        %v4815 = vpop.f32.mrf.mxu0
        %v4816 = vadd.f32 0.0, %v4815
        %4817 = vmatmul.bf16.gmra.mxu0 %v4744
        %v4818 = vpop.f32.mrf.mxu0
        %v4819 = vadd.f32 0.0, %v4818
        %v4820 = vpop.f32.mrf.mxu0
        %v4821 = vadd.f32 0.0, %v4820
        %4822 = vmatmul.bf16.gmra.mxu0 %v4747
        %v4823 = vpop.f32.mrf.mxu0
        %v4824 = vadd.f32 0.0, %v4823
        %v4825 = vpop.f32.mrf.mxu0
        %v4826 = vadd.f32 0.0, %v4825
        %4827 = vmatmul.bf16.gmra.mxu0 %v4750
        %v4828 = vpop.f32.mrf.mxu0
        %v4829 = vadd.f32 0.0, %v4828
        %v4830 = vpop.f32.mrf.mxu0
        %v4831 = vadd.f32 0.0, %v4830
        %4832 = vmatmul.bf16.gmra.mxu0 %v4753
        %v4833 = vpop.f32.mrf.mxu0
        %v4834 = vadd.f32 0.0, %v4833
        %v4835 = vpop.f32.mrf.mxu0
        %v4836 = vadd.f32 0.0, %v4835
        %4837 = vmatmul.bf16.gmra.mxu0 %v4756
        %v4838 = vpop.f32.mrf.mxu0
        %v4839 = vadd.f32 0.0, %v4838
        %v4840 = vpop.f32.mrf.mxu0
        %v4841 = vadd.f32 0.0, %v4840
        %4842 = vmatmul.bf16.gmra.mxu0 %v4759
        %v4843 = vpop.f32.mrf.mxu0
        %v4844 = vadd.f32 0.0, %v4843
        %v4845 = vpop.f32.mrf.mxu0
        %v4846 = vadd.f32 0.0, %v4845
        %4847 = vmatmul.bf16.gmra.mxu0 %v4762
        %v4848 = vpop.f32.mrf.mxu0
        %v4849 = vadd.f32 0.0, %v4848
        %v4850 = vpop.f32.mrf.mxu0
        %v4851 = vadd.f32 0.0, %v4850
        %4852 = vdwg.mxu0
        %4854 = vset.pattern.permute.xlu0 0
        %4855 = vperm.xlu0 %4854, %v4774
        %v4856 = vpop.permute.xlu0 %4855
        %4859 = vset.pattern.permute.xlu0 0
        %4860 = vperm.xlu0 %4859, %v4776
        %v4861 = vpop.permute.xlu0 %4860
        %4864 = vset.pattern.permute.xlu0 0
        %4865 = vperm.xlu0 %4864, %v4779
        %v4866 = vpop.permute.xlu0 %4865
        %4869 = vset.pattern.permute.xlu0 0
        %4870 = vperm.xlu0 %4869, %v4781
        %v4871 = vpop.permute.xlu0 %4870
        %4874 = vset.pattern.permute.xlu0 0
        %4875 = vperm.xlu0 %4874, %v4784
        %v4876 = vpop.permute.xlu0 %4875
        %4879 = vset.pattern.permute.xlu0 0
        %4880 = vperm.xlu0 %4879, %v4786
        %v4881 = vpop.permute.xlu0 %4880
        %4884 = vset.pattern.permute.xlu0 0
        %4885 = vperm.xlu0 %4884, %v4789
        %v4886 = vpop.permute.xlu0 %4885
        %4889 = vset.pattern.permute.xlu0 0
        %4890 = vperm.xlu0 %4889, %v4791
        %v4891 = vpop.permute.xlu0 %4890
        %4894 = vset.pattern.permute.xlu0 0
        %4895 = vperm.xlu0 %4894, %v4794
        %v4896 = vpop.permute.xlu0 %4895
        %4899 = vset.pattern.permute.xlu0 0
        %4900 = vperm.xlu0 %4899, %v4796
        %v4901 = vpop.permute.xlu0 %4900
        %4904 = vset.pattern.permute.xlu0 0
        %4905 = vperm.xlu0 %4904, %v4799
        %v4906 = vpop.permute.xlu0 %4905
        %4909 = vset.pattern.permute.xlu0 0
        %4910 = vperm.xlu0 %4909, %v4801
        %v4911 = vpop.permute.xlu0 %4910
        %4914 = vset.pattern.permute.xlu0 0
        %4915 = vperm.xlu0 %4914, %v4804
        %v4916 = vpop.permute.xlu0 %4915
        %4919 = vset.pattern.permute.xlu0 0
        %4920 = vperm.xlu0 %4919, %v4806
        %v4921 = vpop.permute.xlu0 %4920
        %4924 = vset.pattern.permute.xlu0 0
        %4925 = vperm.xlu0 %4924, %v4809
        %v4926 = vpop.permute.xlu0 %4925
        %4929 = vset.pattern.permute.xlu0 0
        %4930 = vperm.xlu0 %4929, %v4811
        %v4931 = vpop.permute.xlu0 %4930
        %4934 = vset.pattern.permute.xlu0 0
        %4935 = vperm.xlu0 %4934, %v4814
        %v4936 = vpop.permute.xlu0 %4935
        %4939 = vset.pattern.permute.xlu0 0
        %4940 = vperm.xlu0 %4939, %v4816
        %v4941 = vpop.permute.xlu0 %4940
        %4944 = vset.pattern.permute.xlu0 0
        %4945 = vperm.xlu0 %4944, %v4819
        %v4946 = vpop.permute.xlu0 %4945
        %4949 = vset.pattern.permute.xlu0 0
        %4950 = vperm.xlu0 %4949, %v4821
        %v4951 = vpop.permute.xlu0 %4950
        %4954 = vset.pattern.permute.xlu0 0
        %4955 = vperm.xlu0 %4954, %v4824
        %v4956 = vpop.permute.xlu0 %4955
        %4959 = vset.pattern.permute.xlu0 0
        %4960 = vperm.xlu0 %4959, %v4826
        %v4961 = vpop.permute.xlu0 %4960
        %4964 = vset.pattern.permute.xlu0 0
        %4965 = vperm.xlu0 %4964, %v4829
        %v4966 = vpop.permute.xlu0 %4965
        %4969 = vset.pattern.permute.xlu0 0
        %4970 = vperm.xlu0 %4969, %v4831
        %v4971 = vpop.permute.xlu0 %4970
        %4974 = vset.pattern.permute.xlu0 0
        %4975 = vperm.xlu0 %4974, %v4834
        %v4976 = vpop.permute.xlu0 %4975
        %4979 = vset.pattern.permute.xlu0 0
        %4980 = vperm.xlu0 %4979, %v4836
        %v4981 = vpop.permute.xlu0 %4980
        %4984 = vset.pattern.permute.xlu0 0
        %4985 = vperm.xlu0 %4984, %v4839
        %v4986 = vpop.permute.xlu0 %4985
        %4989 = vset.pattern.permute.xlu0 0
        %4990 = vperm.xlu0 %4989, %v4841
        %v4991 = vpop.permute.xlu0 %4990
        %4994 = vset.pattern.permute.xlu0 0
        %4995 = vperm.xlu0 %4994, %v4844
        %v4996 = vpop.permute.xlu0 %4995
        %4999 = vset.pattern.permute.xlu0 0
        %5000 = vperm.xlu0 %4999, %v4846
        %v5001 = vpop.permute.xlu0 %5000
        %5004 = vset.pattern.permute.xlu0 0
        %5005 = vperm.xlu0 %5004, %v4849
        %v5006 = vpop.permute.xlu0 %5005
        %5009 = vset.pattern.permute.xlu0 0
        %5010 = vperm.xlu0 %5009, %v4851
        %v5011 = vpop.permute.xlu0 %5010
        %v5013 = vsel %vm298, %v4856, 0.0
        %v5014 = vsel %vm299, %v4856, 0.0
        %v5015 = vsel %vm300, %v4856, 0.0
        %v5016 = vsel %vm301, %v4856, 0.0
        %v5017 = vsel %vm302, %v4861, 0.0
        %v5018 = vsel %vm303, %v4861, 0.0
        %v5019 = vsel %vm304, %v4861, 0.0
        %v5020 = vsel %vm305, %v4861, 0.0
        %v5021 = vsel %vm306, %v4866, 0.0
        %v5022 = vsel %vm307, %v4866, 0.0
        %v5023 = vsel %vm308, %v4866, 0.0
        %v5024 = vsel %vm309, %v4866, 0.0
        %v5025 = vsel %vm310, %v4871, 0.0
        %v5026 = vsel %vm311, %v4871, 0.0
        %v5027 = vsel %vm312, %v4871, 0.0
        %v5028 = vsel %vm313, %v4871, 0.0
        %v5029 = vsel %vm314, %v4876, 0.0
        %v5030 = vsel %vm315, %v4876, 0.0
        %v5031 = vsel %vm316, %v4876, 0.0
        %v5032 = vsel %vm317, %v4876, 0.0
        %v5033 = vsel %vm318, %v4881, 0.0
        %v5034 = vsel %vm319, %v4881, 0.0
        %v5035 = vsel %vm320, %v4881, 0.0
        %v5036 = vsel %vm321, %v4881, 0.0
        %v5037 = vsel %vm322, %v4886, 0.0
        %v5038 = vsel %vm323, %v4886, 0.0
        %v5039 = vsel %vm324, %v4886, 0.0
        %v5040 = vsel %vm325, %v4886, 0.0
        %v5041 = vsel %vm326, %v4891, 0.0
        %v5042 = vsel %vm327, %v4891, 0.0
        %v5043 = vsel %vm328, %v4891, 0.0
        %v5044 = vsel %vm329, %v4891, 0.0
        %v5045 = vsel %vm330, %v4896, 0.0
        %v5046 = vsel %vm331, %v4896, 0.0
        %v5047 = vsel %vm332, %v4896, 0.0
        %v5048 = vsel %vm333, %v4896, 0.0
        %v5049 = vsel %vm334, %v4901, 0.0
        %v5050 = vsel %vm335, %v4901, 0.0
        %v5051 = vsel %vm336, %v4901, 0.0
        %v5052 = vsel %vm337, %v4901, 0.0
        %v5053 = vsel %vm338, %v4906, 0.0
        %v5054 = vsel %vm339, %v4906, 0.0
        %v5055 = vsel %vm340, %v4906, 0.0
        %v5056 = vsel %vm341, %v4906, 0.0
        %v5057 = vsel %vm342, %v4911, 0.0
        %v5058 = vsel %vm343, %v4911, 0.0
        %v5059 = vsel %vm344, %v4911, 0.0
        %v5060 = vsel %vm345, %v4911, 0.0
        %v5061 = vsel %vm346, %v4916, 0.0
        %v5062 = vsel %vm347, %v4916, 0.0
        %v5063 = vsel %vm348, %v4916, 0.0
        %v5064 = vsel %vm349, %v4916, 0.0
        %v5065 = vsel %vm350, %v4921, 0.0
        %v5066 = vsel %vm351, %v4921, 0.0
        %v5067 = vsel %vm352, %v4921, 0.0
        %v5068 = vsel %vm353, %v4921, 0.0
        %v5069 = vsel %vm354, %v4926, 0.0
        %v5070 = vsel %vm355, %v4926, 0.0
        %v5071 = vsel %vm356, %v4926, 0.0
        %v5072 = vsel %vm357, %v4926, 0.0
        %v5073 = vsel %vm358, %v4931, 0.0
        %v5074 = vsel %vm359, %v4931, 0.0
        %v5075 = vsel %vm360, %v4931, 0.0
        %v5076 = vsel %vm361, %v4931, 0.0
        %v5077 = vsel %vm362, %v4936, 0.0
        %v5078 = vsel %vm363, %v4936, 0.0
        %v5079 = vsel %vm364, %v4936, 0.0
        %v5080 = vsel %vm365, %v4936, 0.0
        %v5081 = vsel %vm366, %v4941, 0.0
        %v5082 = vsel %vm367, %v4941, 0.0
        %v5083 = vsel %vm368, %v4941, 0.0
        %v5084 = vsel %vm369, %v4941, 0.0
        %v5085 = vsel %vm370, %v4946, 0.0
        %v5086 = vsel %vm371, %v4946, 0.0
        %v5087 = vsel %vm372, %v4946, 0.0
        %v5088 = vsel %vm373, %v4946, 0.0
        %v5089 = vsel %vm374, %v4951, 0.0
        %v5090 = vsel %vm375, %v4951, 0.0
        %v5091 = vsel %vm376, %v4951, 0.0
        %v5092 = vsel %vm377, %v4951, 0.0
        %v5093 = vsel %vm378, %v4956, 0.0
        %v5094 = vsel %vm379, %v4956, 0.0
        %v5095 = vsel %vm380, %v4956, 0.0
        %v5096 = vsel %vm381, %v4956, 0.0
        %v5097 = vsel %vm382, %v4961, 0.0
        %v5098 = vsel %vm383, %v4961, 0.0
        %v5099 = vsel %vm384, %v4961, 0.0
        %v5100 = vsel %vm385, %v4961, 0.0
        %v5101 = vsel %vm386, %v4966, 0.0
        %v5102 = vsel %vm387, %v4966, 0.0
        %v5103 = vsel %vm388, %v4966, 0.0
        %v5104 = vsel %vm389, %v4966, 0.0
        %v5105 = vsel %vm390, %v4971, 0.0
        %v5106 = vsel %vm391, %v4971, 0.0
        %v5107 = vsel %vm392, %v4971, 0.0
        %v5108 = vsel %vm393, %v4971, 0.0
        %v5109 = vsel %vm394, %v4976, 0.0
        %v5110 = vsel %vm395, %v4976, 0.0
        %v5111 = vsel %vm396, %v4976, 0.0
        %v5112 = vsel %vm397, %v4976, 0.0
        %v5113 = vsel %vm398, %v4981, 0.0
        %v5114 = vsel %vm399, %v4981, 0.0
        %v5115 = vsel %vm400, %v4981, 0.0
        %v5116 = vsel %vm401, %v4981, 0.0
        %v5117 = vsel %vm402, %v4986, 0.0
        %v5118 = vsel %vm403, %v4986, 0.0
        %v5119 = vsel %vm404, %v4986, 0.0
        %v5120 = vsel %vm405, %v4986, 0.0
        %v5121 = vsel %vm406, %v4991, 0.0
        %v5122 = vsel %vm407, %v4991, 0.0
        %v5123 = vsel %vm408, %v4991, 0.0
        %v5124 = vsel %vm409, %v4991, 0.0
        %v5125 = vsel %vm410, %v4996, 0.0
        %v5126 = vsel %vm411, %v4996, 0.0
        %v5127 = vsel %vm412, %v4996, 0.0
        %v5128 = vsel %vm413, %v4996, 0.0
        %v5129 = vsel %vm414, %v5001, 0.0
        %v5130 = vsel %vm415, %v5001, 0.0
        %v5131 = vsel %vm416, %v5001, 0.0
        %v5132 = vsel %vm417, %v5001, 0.0
        %v5133 = vsel %vm418, %v5006, 0.0
        %v5134 = vsel %vm419, %v5006, 0.0
        %v5135 = vsel %vm420, %v5006, 0.0
        %v5136 = vsel %vm421, %v5006, 0.0
        %v5137 = vsel %vm422, %v5011, 0.0
        %v5138 = vsel %vm423, %v5011, 0.0
        %v5139 = vsel %vm424, %v5011, 0.0
        %v5140 = vsel %vm425, %v5011, 0.0
        %5141 = vset.pattern.permute.xlu0 1
        %5142 = vperm.xlu0 %5141, %v4774
        %v5143 = vpop.permute.xlu0 %5142
        %5145 = vset.pattern.permute.xlu0 1
        %5146 = vperm.xlu0 %5145, %v4776
        %v5147 = vpop.permute.xlu0 %5146
        %5149 = vset.pattern.permute.xlu0 1
        %5150 = vperm.xlu0 %5149, %v4779
        %v5151 = vpop.permute.xlu0 %5150
        %5153 = vset.pattern.permute.xlu0 1
        %5154 = vperm.xlu0 %5153, %v4781
        %v5155 = vpop.permute.xlu0 %5154
        %5157 = vset.pattern.permute.xlu0 1
        %5158 = vperm.xlu0 %5157, %v4784
        %v5159 = vpop.permute.xlu0 %5158
        %5161 = vset.pattern.permute.xlu0 1
        %5162 = vperm.xlu0 %5161, %v4786
        %v5163 = vpop.permute.xlu0 %5162
        %5165 = vset.pattern.permute.xlu0 1
        %5166 = vperm.xlu0 %5165, %v4789
        %v5167 = vpop.permute.xlu0 %5166
        %5169 = vset.pattern.permute.xlu0 1
        %5170 = vperm.xlu0 %5169, %v4791
        %v5171 = vpop.permute.xlu0 %5170
        %5173 = vset.pattern.permute.xlu0 1
        %5174 = vperm.xlu0 %5173, %v4794
        %v5175 = vpop.permute.xlu0 %5174
        %5177 = vset.pattern.permute.xlu0 1
        %5178 = vperm.xlu0 %5177, %v4796
        %v5179 = vpop.permute.xlu0 %5178
        %5181 = vset.pattern.permute.xlu0 1
        %5182 = vperm.xlu0 %5181, %v4799
        %v5183 = vpop.permute.xlu0 %5182
        %5185 = vset.pattern.permute.xlu0 1
        %5186 = vperm.xlu0 %5185, %v4801
        %v5187 = vpop.permute.xlu0 %5186
        %5189 = vset.pattern.permute.xlu0 1
        %5190 = vperm.xlu0 %5189, %v4804
        %v5191 = vpop.permute.xlu0 %5190
        %5193 = vset.pattern.permute.xlu0 1
        %5194 = vperm.xlu0 %5193, %v4806
        %v5195 = vpop.permute.xlu0 %5194
        %5197 = vset.pattern.permute.xlu0 1
        %5198 = vperm.xlu0 %5197, %v4809
        %v5199 = vpop.permute.xlu0 %5198
        %5201 = vset.pattern.permute.xlu0 1
        %5202 = vperm.xlu0 %5201, %v4811
        %v5203 = vpop.permute.xlu0 %5202
        %5205 = vset.pattern.permute.xlu0 1
        %5206 = vperm.xlu0 %5205, %v4814
        %v5207 = vpop.permute.xlu0 %5206
        %5209 = vset.pattern.permute.xlu0 1
        %5210 = vperm.xlu0 %5209, %v4816
        %v5211 = vpop.permute.xlu0 %5210
        %5213 = vset.pattern.permute.xlu0 1
        %5214 = vperm.xlu0 %5213, %v4819
        %v5215 = vpop.permute.xlu0 %5214
        %5217 = vset.pattern.permute.xlu0 1
        %5218 = vperm.xlu0 %5217, %v4821
        %v5219 = vpop.permute.xlu0 %5218
        %5221 = vset.pattern.permute.xlu0 1
        %5222 = vperm.xlu0 %5221, %v4824
        %v5223 = vpop.permute.xlu0 %5222
        %5225 = vset.pattern.permute.xlu0 1
        %5226 = vperm.xlu0 %5225, %v4826
        %v5227 = vpop.permute.xlu0 %5226
        %5229 = vset.pattern.permute.xlu0 1
        %5230 = vperm.xlu0 %5229, %v4829
        %v5231 = vpop.permute.xlu0 %5230
        %5233 = vset.pattern.permute.xlu0 1
        %5234 = vperm.xlu0 %5233, %v4831
        %v5235 = vpop.permute.xlu0 %5234
        %5237 = vset.pattern.permute.xlu0 1
        %5238 = vperm.xlu0 %5237, %v4834
        %v5239 = vpop.permute.xlu0 %5238
        %5241 = vset.pattern.permute.xlu0 1
        %5242 = vperm.xlu0 %5241, %v4836
        %v5243 = vpop.permute.xlu0 %5242
        %5245 = vset.pattern.permute.xlu0 1
        %5246 = vperm.xlu0 %5245, %v4839
        %v5247 = vpop.permute.xlu0 %5246
        %5249 = vset.pattern.permute.xlu0 1
        %5250 = vperm.xlu0 %5249, %v4841
        %v5251 = vpop.permute.xlu0 %5250
        %5253 = vset.pattern.permute.xlu0 1
        %5254 = vperm.xlu0 %5253, %v4844
        %v5255 = vpop.permute.xlu0 %5254
        %5257 = vset.pattern.permute.xlu0 1
        %5258 = vperm.xlu0 %5257, %v4846
        %v5259 = vpop.permute.xlu0 %5258
        %5261 = vset.pattern.permute.xlu0 1
        %5262 = vperm.xlu0 %5261, %v4849
        %v5263 = vpop.permute.xlu0 %5262
        %5265 = vset.pattern.permute.xlu0 1
        %5266 = vperm.xlu0 %5265, %v4851
        %v5267 = vpop.permute.xlu0 %5266
        %v5269 = vsel %vm431, %v5143, 0.0
        %v5270 = vsel %vm432, %v5143, 0.0
        %v5271 = vsel %vm433, %v5143, 0.0
        %v5272 = vsel %vm434, %v5143, 0.0
        %v5273 = vsel %vm435, %v5147, 0.0
        %v5274 = vsel %vm436, %v5147, 0.0
        %v5275 = vsel %vm437, %v5147, 0.0
        %v5276 = vsel %vm438, %v5147, 0.0
        %v5277 = vsel %vm439, %v5151, 0.0
        %v5278 = vsel %vm440, %v5151, 0.0
        %v5279 = vsel %vm441, %v5151, 0.0
        %v5280 = vsel %vm442, %v5151, 0.0
        %v5281 = vsel %vm443, %v5155, 0.0
        %v5282 = vsel %vm444, %v5155, 0.0
        %v5283 = vsel %vm445, %v5155, 0.0
        %v5284 = vsel %vm446, %v5155, 0.0
        %v5285 = vsel %vm447, %v5159, 0.0
        %v5286 = vsel %vm448, %v5159, 0.0
        %v5287 = vsel %vm449, %v5159, 0.0
        %v5288 = vsel %vm450, %v5159, 0.0
        %v5289 = vsel %vm451, %v5163, 0.0
        %v5290 = vsel %vm452, %v5163, 0.0
        %v5291 = vsel %vm453, %v5163, 0.0
        %v5292 = vsel %vm454, %v5163, 0.0
        %v5293 = vsel %vm455, %v5167, 0.0
        %v5294 = vsel %vm456, %v5167, 0.0
        %v5295 = vsel %vm457, %v5167, 0.0
        %v5296 = vsel %vm458, %v5167, 0.0
        %v5297 = vsel %vm459, %v5171, 0.0
        %v5298 = vsel %vm460, %v5171, 0.0
        %v5299 = vsel %vm461, %v5171, 0.0
        %v5300 = vsel %vm462, %v5171, 0.0
        %v5301 = vsel %vm463, %v5175, 0.0
        %v5302 = vsel %vm464, %v5175, 0.0
        %v5303 = vsel %vm465, %v5175, 0.0
        %v5304 = vsel %vm466, %v5175, 0.0
        %v5305 = vsel %vm467, %v5179, 0.0
        %v5306 = vsel %vm468, %v5179, 0.0
        %v5307 = vsel %vm469, %v5179, 0.0
        %v5308 = vsel %vm470, %v5179, 0.0
        %v5309 = vsel %vm471, %v5183, 0.0
        %v5310 = vsel %vm472, %v5183, 0.0
        %v5311 = vsel %vm473, %v5183, 0.0
        %v5312 = vsel %vm474, %v5183, 0.0
        %v5313 = vsel %vm475, %v5187, 0.0
        %v5314 = vsel %vm476, %v5187, 0.0
        %v5315 = vsel %vm477, %v5187, 0.0
        %v5316 = vsel %vm478, %v5187, 0.0
        %v5317 = vsel %vm479, %v5191, 0.0
        %v5318 = vsel %vm480, %v5191, 0.0
        %v5319 = vsel %vm481, %v5191, 0.0
        %v5320 = vsel %vm482, %v5191, 0.0
        %v5321 = vsel %vm483, %v5195, 0.0
        %v5322 = vsel %vm484, %v5195, 0.0
        %v5323 = vsel %vm485, %v5195, 0.0
        %v5324 = vsel %vm486, %v5195, 0.0
        %v5325 = vsel %vm487, %v5199, 0.0
        %v5326 = vsel %vm488, %v5199, 0.0
        %v5327 = vsel %vm489, %v5199, 0.0
        %v5328 = vsel %vm490, %v5199, 0.0
        %v5329 = vsel %vm491, %v5203, 0.0
        %v5330 = vsel %vm492, %v5203, 0.0
        %v5331 = vsel %vm493, %v5203, 0.0
        %v5332 = vsel %vm494, %v5203, 0.0
        %v5333 = vsel %vm495, %v5207, 0.0
        %v5334 = vsel %vm496, %v5207, 0.0
        %v5335 = vsel %vm497, %v5207, 0.0
        %v5336 = vsel %vm498, %v5207, 0.0
        %v5337 = vsel %vm499, %v5211, 0.0
        %v5338 = vsel %vm500, %v5211, 0.0
        %v5339 = vsel %vm501, %v5211, 0.0
        %v5340 = vsel %vm502, %v5211, 0.0
        %v5341 = vsel %vm503, %v5215, 0.0
        %v5342 = vsel %vm504, %v5215, 0.0
        %v5343 = vsel %vm505, %v5215, 0.0
        %v5344 = vsel %vm506, %v5215, 0.0
        %v5345 = vsel %vm507, %v5219, 0.0
        %v5346 = vsel %vm508, %v5219, 0.0
        %v5347 = vsel %vm509, %v5219, 0.0
        %v5348 = vsel %vm510, %v5219, 0.0
        %v5349 = vsel %vm511, %v5223, 0.0
        %v5350 = vsel %vm512, %v5223, 0.0
        %v5351 = vsel %vm513, %v5223, 0.0
        %v5352 = vsel %vm514, %v5223, 0.0
        %v5353 = vsel %vm515, %v5227, 0.0
        %v5354 = vsel %vm516, %v5227, 0.0
        %v5355 = vsel %vm517, %v5227, 0.0
        %v5356 = vsel %vm518, %v5227, 0.0
        %v5357 = vsel %vm519, %v5231, 0.0
        %v5358 = vsel %vm520, %v5231, 0.0
        %v5359 = vsel %vm521, %v5231, 0.0
        %v5360 = vsel %vm522, %v5231, 0.0
        %v5361 = vsel %vm523, %v5235, 0.0
        %v5362 = vsel %vm524, %v5235, 0.0
        %v5363 = vsel %vm525, %v5235, 0.0
        %v5364 = vsel %vm526, %v5235, 0.0
        %v5365 = vsel %vm527, %v5239, 0.0
        %v5366 = vsel %vm528, %v5239, 0.0
        %v5367 = vsel %vm529, %v5239, 0.0
        %v5368 = vsel %vm530, %v5239, 0.0
        %v5369 = vsel %vm531, %v5243, 0.0
        %v5370 = vsel %vm532, %v5243, 0.0
        %v5371 = vsel %vm533, %v5243, 0.0
        %v5372 = vsel %vm534, %v5243, 0.0
        %v5373 = vsel %vm535, %v5247, 0.0
        %v5374 = vsel %vm536, %v5247, 0.0
        %v5375 = vsel %vm537, %v5247, 0.0
        %v5376 = vsel %vm538, %v5247, 0.0
        %v5377 = vsel %vm539, %v5251, 0.0
        %v5378 = vsel %vm540, %v5251, 0.0
        %v5379 = vsel %vm541, %v5251, 0.0
        %v5380 = vsel %vm542, %v5251, 0.0
        %v5381 = vsel %vm543, %v5255, 0.0
        %v5382 = vsel %vm544, %v5255, 0.0
        %v5383 = vsel %vm545, %v5255, 0.0
        %v5384 = vsel %vm546, %v5255, 0.0
        %v5385 = vsel %vm547, %v5259, 0.0
        %v5386 = vsel %vm548, %v5259, 0.0
        %v5387 = vsel %vm549, %v5259, 0.0
        %v5388 = vsel %vm550, %v5259, 0.0
        %v5389 = vsel %vm551, %v5263, 0.0
        %v5390 = vsel %vm552, %v5263, 0.0
        %v5391 = vsel %vm553, %v5263, 0.0
        %v5392 = vsel %vm554, %v5263, 0.0
        %v5393 = vsel %vm555, %v5267, 0.0
        %v5394 = vsel %vm556, %v5267, 0.0
        %v5395 = vsel %vm557, %v5267, 0.0
        %v5396 = vsel %vm558, %v5267, 0.0
        %v5397 = vadd.f32 %v5013, %v5269
        %v5398 = vadd.f32 %v5014, %v5270
        %v5399 = vadd.f32 %v5015, %v5271
        %v5400 = vadd.f32 %v5016, %v5272
        %v5401 = vadd.f32 %v5017, %v5273
        %v5402 = vadd.f32 %v5018, %v5274
        %v5403 = vadd.f32 %v5019, %v5275
        %v5404 = vadd.f32 %v5020, %v5276
        %v5405 = vadd.f32 %v5021, %v5277
        %v5406 = vadd.f32 %v5022, %v5278
        %v5407 = vadd.f32 %v5023, %v5279
        %v5408 = vadd.f32 %v5024, %v5280
        %v5409 = vadd.f32 %v5025, %v5281
        %v5410 = vadd.f32 %v5026, %v5282
        %v5411 = vadd.f32 %v5027, %v5283
        %v5412 = vadd.f32 %v5028, %v5284
        %v5413 = vadd.f32 %v5029, %v5285
        %v5414 = vadd.f32 %v5030, %v5286
        %v5415 = vadd.f32 %v5031, %v5287
        %v5416 = vadd.f32 %v5032, %v5288
        %v5417 = vadd.f32 %v5033, %v5289
        %v5418 = vadd.f32 %v5034, %v5290
        %v5419 = vadd.f32 %v5035, %v5291
        %v5420 = vadd.f32 %v5036, %v5292
        %v5421 = vadd.f32 %v5037, %v5293
        %v5422 = vadd.f32 %v5038, %v5294
        %v5423 = vadd.f32 %v5039, %v5295
        %v5424 = vadd.f32 %v5040, %v5296
        %v5425 = vadd.f32 %v5041, %v5297
        %v5426 = vadd.f32 %v5042, %v5298
        %v5427 = vadd.f32 %v5043, %v5299
        %v5428 = vadd.f32 %v5044, %v5300
        %v5429 = vadd.f32 %v5045, %v5301
        %v5430 = vadd.f32 %v5046, %v5302
        %v5431 = vadd.f32 %v5047, %v5303
        %v5432 = vadd.f32 %v5048, %v5304
        %v5433 = vadd.f32 %v5049, %v5305
        %v5434 = vadd.f32 %v5050, %v5306
        %v5435 = vadd.f32 %v5051, %v5307
        %v5436 = vadd.f32 %v5052, %v5308
        %v5437 = vadd.f32 %v5053, %v5309
        %v5438 = vadd.f32 %v5054, %v5310
        %v5439 = vadd.f32 %v5055, %v5311
        %v5440 = vadd.f32 %v5056, %v5312
        %v5441 = vadd.f32 %v5057, %v5313
        %v5442 = vadd.f32 %v5058, %v5314
        %v5443 = vadd.f32 %v5059, %v5315
        %v5444 = vadd.f32 %v5060, %v5316
        %v5445 = vadd.f32 %v5061, %v5317
        %v5446 = vadd.f32 %v5062, %v5318
        %v5447 = vadd.f32 %v5063, %v5319
        %v5448 = vadd.f32 %v5064, %v5320
        %v5449 = vadd.f32 %v5065, %v5321
        %v5450 = vadd.f32 %v5066, %v5322
        %v5451 = vadd.f32 %v5067, %v5323
        %v5452 = vadd.f32 %v5068, %v5324
        %v5453 = vadd.f32 %v5069, %v5325
        %v5454 = vadd.f32 %v5070, %v5326
        %v5455 = vadd.f32 %v5071, %v5327
        %v5456 = vadd.f32 %v5072, %v5328
        %v5457 = vadd.f32 %v5073, %v5329
        %v5458 = vadd.f32 %v5074, %v5330
        %v5459 = vadd.f32 %v5075, %v5331
        %v5460 = vadd.f32 %v5076, %v5332
        %v5461 = vadd.f32 %v5077, %v5333
        %v5462 = vadd.f32 %v5078, %v5334
        %v5463 = vadd.f32 %v5079, %v5335
        %v5464 = vadd.f32 %v5080, %v5336
        %v5465 = vadd.f32 %v5081, %v5337
        %v5466 = vadd.f32 %v5082, %v5338
        %v5467 = vadd.f32 %v5083, %v5339
        %v5468 = vadd.f32 %v5084, %v5340
        %v5469 = vadd.f32 %v5085, %v5341
        %v5470 = vadd.f32 %v5086, %v5342
        %v5471 = vadd.f32 %v5087, %v5343
        %v5472 = vadd.f32 %v5088, %v5344
        %v5473 = vadd.f32 %v5089, %v5345
        %v5474 = vadd.f32 %v5090, %v5346
        %v5475 = vadd.f32 %v5091, %v5347
        %v5476 = vadd.f32 %v5092, %v5348
        %v5477 = vadd.f32 %v5093, %v5349
        %v5478 = vadd.f32 %v5094, %v5350
        %v5479 = vadd.f32 %v5095, %v5351
        %v5480 = vadd.f32 %v5096, %v5352
        %v5481 = vadd.f32 %v5097, %v5353
        %v5482 = vadd.f32 %v5098, %v5354
        %v5483 = vadd.f32 %v5099, %v5355
        %v5484 = vadd.f32 %v5100, %v5356
        %v5485 = vadd.f32 %v5101, %v5357
        %v5486 = vadd.f32 %v5102, %v5358
        %v5487 = vadd.f32 %v5103, %v5359
        %v5488 = vadd.f32 %v5104, %v5360
        %v5489 = vadd.f32 %v5105, %v5361
        %v5490 = vadd.f32 %v5106, %v5362
        %v5491 = vadd.f32 %v5107, %v5363
        %v5492 = vadd.f32 %v5108, %v5364
        %v5493 = vadd.f32 %v5109, %v5365
        %v5494 = vadd.f32 %v5110, %v5366
        %v5495 = vadd.f32 %v5111, %v5367
        %v5496 = vadd.f32 %v5112, %v5368
        %v5497 = vadd.f32 %v5113, %v5369
        %v5498 = vadd.f32 %v5114, %v5370
        %v5499 = vadd.f32 %v5115, %v5371
        %v5500 = vadd.f32 %v5116, %v5372
        %v5501 = vadd.f32 %v5117, %v5373
        %v5502 = vadd.f32 %v5118, %v5374
        %v5503 = vadd.f32 %v5119, %v5375
        %v5504 = vadd.f32 %v5120, %v5376
        %v5505 = vadd.f32 %v5121, %v5377
        %v5506 = vadd.f32 %v5122, %v5378
        %v5507 = vadd.f32 %v5123, %v5379
        %v5508 = vadd.f32 %v5124, %v5380
        %v5509 = vadd.f32 %v5125, %v5381
        %v5510 = vadd.f32 %v5126, %v5382
        %v5511 = vadd.f32 %v5127, %v5383
        %v5512 = vadd.f32 %v5128, %v5384
        %v5513 = vadd.f32 %v5129, %v5385
        %v5514 = vadd.f32 %v5130, %v5386
        %v5515 = vadd.f32 %v5131, %v5387
        %v5516 = vadd.f32 %v5132, %v5388
        %v5517 = vadd.f32 %v5133, %v5389
        %v5518 = vadd.f32 %v5134, %v5390
        %v5519 = vadd.f32 %v5135, %v5391
        %v5520 = vadd.f32 %v5136, %v5392
        %v5521 = vadd.f32 %v5137, %v5393
        %v5522 = vadd.f32 %v5138, %v5394
        %v5523 = vadd.f32 %v5139, %v5395
        %v5524 = vadd.f32 %v5140, %v5396
        %v5525 = vadd.f32 %v5397, %v5401
        %v5526 = vadd.f32 %v5525, %v5405
        %v5527 = vadd.f32 %v5526, %v5409
        %v5528 = vadd.f32 %v5527, %v5413
        %v5529 = vadd.f32 %v5528, %v5417
        %v5530 = vadd.f32 %v5529, %v5421
        %v5531 = vadd.f32 %v5530, %v5425
        %v5532 = vadd.f32 %v5531, %v5429
        %v5533 = vadd.f32 %v5532, %v5433
        %v5534 = vadd.f32 %v5533, %v5437
        %v5535 = vadd.f32 %v5534, %v5441
        %v5536 = vadd.f32 %v5535, %v5445
        %v5537 = vadd.f32 %v5536, %v5449
        %v5538 = vadd.f32 %v5537, %v5453
        %v5539 = vadd.f32 %v5538, %v5457
        %v5540 = vadd.f32 %v5539, %v5461
        %v5541 = vadd.f32 %v5540, %v5465
        %v5542 = vadd.f32 %v5541, %v5469
        %v5543 = vadd.f32 %v5542, %v5473
        %v5544 = vadd.f32 %v5543, %v5477
        %v5545 = vadd.f32 %v5544, %v5481
        %v5546 = vadd.f32 %v5545, %v5485
        %v5547 = vadd.f32 %v5546, %v5489
        %v5548 = vadd.f32 %v5547, %v5493
        %v5549 = vadd.f32 %v5548, %v5497
        %v5550 = vadd.f32 %v5549, %v5501
        %v5551 = vadd.f32 %v5550, %v5505
        %v5552 = vadd.f32 %v5551, %v5509
        %v5553 = vadd.f32 %v5552, %v5513
        %v5554 = vadd.f32 %v5553, %v5517
        %v5555 = vadd.f32 %v5554, %v5521
        %v5556 = vrot.slane %v5555, 4
        %v5557 = vadd.f32 %v5555, %v5556
        %v5558 = vrot.slane %v5557, 2
        %v5559 = vadd.f32 %v5557, %v5558
        %v5560 = vrot.slane %v5559, 1
        %v5561 = vadd.f32 %v5559, %v5560
        %v5562 = vadd.f32 %v5398, %v5402
        %v5563 = vadd.f32 %v5562, %v5406
        %v5564 = vadd.f32 %v5563, %v5410
        %v5565 = vadd.f32 %v5564, %v5414
        %v5566 = vadd.f32 %v5565, %v5418
        %v5567 = vadd.f32 %v5566, %v5422
        %v5568 = vadd.f32 %v5567, %v5426
        %v5569 = vadd.f32 %v5568, %v5430
        %v5570 = vadd.f32 %v5569, %v5434
        %v5571 = vadd.f32 %v5570, %v5438
        %v5572 = vadd.f32 %v5571, %v5442
        %v5573 = vadd.f32 %v5572, %v5446
        %v5574 = vadd.f32 %v5573, %v5450
        %v5575 = vadd.f32 %v5574, %v5454
        %v5576 = vadd.f32 %v5575, %v5458
        %v5577 = vadd.f32 %v5576, %v5462
        %v5578 = vadd.f32 %v5577, %v5466
        %v5579 = vadd.f32 %v5578, %v5470
        %v5580 = vadd.f32 %v5579, %v5474
        %v5581 = vadd.f32 %v5580, %v5478
        %v5582 = vadd.f32 %v5581, %v5482
        %v5583 = vadd.f32 %v5582, %v5486
        %v5584 = vadd.f32 %v5583, %v5490
        %v5585 = vadd.f32 %v5584, %v5494
        %v5586 = vadd.f32 %v5585, %v5498
        %v5587 = vadd.f32 %v5586, %v5502
        %v5588 = vadd.f32 %v5587, %v5506
        %v5589 = vadd.f32 %v5588, %v5510
        %v5590 = vadd.f32 %v5589, %v5514
        %v5591 = vadd.f32 %v5590, %v5518
        %v5592 = vadd.f32 %v5591, %v5522
        %v5593 = vrot.slane %v5592, 4
        %v5594 = vadd.f32 %v5592, %v5593
        %v5595 = vrot.slane %v5594, 2
        %v5596 = vadd.f32 %v5594, %v5595
        %v5597 = vrot.slane %v5596, 1
        %v5598 = vadd.f32 %v5596, %v5597
        %v5599 = vadd.f32 %v5399, %v5403
        %v5600 = vadd.f32 %v5599, %v5407
        %v5601 = vadd.f32 %v5600, %v5411
        %v5602 = vadd.f32 %v5601, %v5415
        %v5603 = vadd.f32 %v5602, %v5419
        %v5604 = vadd.f32 %v5603, %v5423
        %v5605 = vadd.f32 %v5604, %v5427
        %v5606 = vadd.f32 %v5605, %v5431
        %v5607 = vadd.f32 %v5606, %v5435
        %v5608 = vadd.f32 %v5607, %v5439
        %v5609 = vadd.f32 %v5608, %v5443
        %v5610 = vadd.f32 %v5609, %v5447
        %v5611 = vadd.f32 %v5610, %v5451
        %v5612 = vadd.f32 %v5611, %v5455
        %v5613 = vadd.f32 %v5612, %v5459
        %v5614 = vadd.f32 %v5613, %v5463
        %v5615 = vadd.f32 %v5614, %v5467
        %v5616 = vadd.f32 %v5615, %v5471
        %v5617 = vadd.f32 %v5616, %v5475
        %v5618 = vadd.f32 %v5617, %v5479
        %v5619 = vadd.f32 %v5618, %v5483
        %v5620 = vadd.f32 %v5619, %v5487
        %v5621 = vadd.f32 %v5620, %v5491
        %v5622 = vadd.f32 %v5621, %v5495
        %v5623 = vadd.f32 %v5622, %v5499
        %v5624 = vadd.f32 %v5623, %v5503
        %v5625 = vadd.f32 %v5624, %v5507
        %v5626 = vadd.f32 %v5625, %v5511
        %v5627 = vadd.f32 %v5626, %v5515
        %v5628 = vadd.f32 %v5627, %v5519
        %v5629 = vadd.f32 %v5628, %v5523
        %v5630 = vrot.slane %v5629, 4
        %v5631 = vadd.f32 %v5629, %v5630
        %v5632 = vrot.slane %v5631, 2
        %v5633 = vadd.f32 %v5631, %v5632
        %v5634 = vrot.slane %v5633, 1
        %v5635 = vadd.f32 %v5633, %v5634
        %v5636 = vadd.f32 %v5400, %v5404
        %v5637 = vadd.f32 %v5636, %v5408
        %v5638 = vadd.f32 %v5637, %v5412
        %v5639 = vadd.f32 %v5638, %v5416
        %v5640 = vadd.f32 %v5639, %v5420
        %v5641 = vadd.f32 %v5640, %v5424
        %v5642 = vadd.f32 %v5641, %v5428
        %v5643 = vadd.f32 %v5642, %v5432
        %v5644 = vadd.f32 %v5643, %v5436
        %v5645 = vadd.f32 %v5644, %v5440
        %v5646 = vadd.f32 %v5645, %v5444
        %v5647 = vadd.f32 %v5646, %v5448
        %v5648 = vadd.f32 %v5647, %v5452
        %v5649 = vadd.f32 %v5648, %v5456
        %v5650 = vadd.f32 %v5649, %v5460
        %v5651 = vadd.f32 %v5650, %v5464
        %v5652 = vadd.f32 %v5651, %v5468
        %v5653 = vadd.f32 %v5652, %v5472
        %v5654 = vadd.f32 %v5653, %v5476
        %v5655 = vadd.f32 %v5654, %v5480
        %v5656 = vadd.f32 %v5655, %v5484
        %v5657 = vadd.f32 %v5656, %v5488
        %v5658 = vadd.f32 %v5657, %v5492
        %v5659 = vadd.f32 %v5658, %v5496
        %v5660 = vadd.f32 %v5659, %v5500
        %v5661 = vadd.f32 %v5660, %v5504
        %v5662 = vadd.f32 %v5661, %v5508
        %v5663 = vadd.f32 %v5662, %v5512
        %v5664 = vadd.f32 %v5663, %v5516
        %v5665 = vadd.f32 %v5664, %v5520
        %v5666 = vadd.f32 %v5665, %v5524
        %v5667 = vrot.slane %v5666, 4
        %v5668 = vadd.f32 %v5666, %v5667
        %v5669 = vrot.slane %v5668, 2
        %v5670 = vadd.f32 %v5668, %v5669
        %v5671 = vrot.slane %v5670, 1
        %v5672 = vadd.f32 %v5670, %v5671
        %v5673 = vld [vmem:[%s4 + $0x4] sm:$0x1]
        %5675 = vset.pattern.permute.xlu0 0
        %5676 = vperm.xlu0 %5675, %v5673
        %v5677 = vpop.permute.xlu0 %5676
        %v5679 = vadd.f32 %v5561, %v5677
        %v5680 = vadd.f32 %v5598, %v5677
        %v5681 = vadd.f32 %v5635, %v5677
        %v5682 = vadd.f32 %v5672, %v5677
        %v5683 = vperm.slane %v5679, 0
        %v5684 = vperm.slane %v5680, 0
        %v5685 = vperm.slane %v5681, 0
        %v5686 = vperm.slane %v5682, 0
        %v5687 = vsel %vm431, %v5683, -1e+30
        %v5688 = vsel %vm432, %v5684, -1e+30
        %v5689 = vsel %vm433, %v5685, -1e+30
        %v5690 = vsel %vm434, %v5686, -1e+30
        %v5691 = vsel %vm435, %v5683, -1e+30
        %v5692 = vsel %vm436, %v5684, -1e+30
        %v5693 = vsel %vm437, %v5685, -1e+30
        %v5694 = vsel %vm438, %v5686, -1e+30
        %v5695 = vsel %vm439, %v5683, -1e+30
        %v5696 = vsel %vm440, %v5684, -1e+30
        %v5697 = vsel %vm441, %v5685, -1e+30
        %v5698 = vsel %vm442, %v5686, -1e+30
        %v5699 = vsel %vm443, %v5683, -1e+30
        %v5700 = vsel %vm444, %v5684, -1e+30
        %v5701 = vsel %vm445, %v5685, -1e+30
        %v5702 = vsel %vm446, %v5686, -1e+30
        %v5703 = vsel %vm447, %v5683, -1e+30
        %v5704 = vsel %vm448, %v5684, -1e+30
        %v5705 = vsel %vm449, %v5685, -1e+30
        %v5706 = vsel %vm450, %v5686, -1e+30
        %v5707 = vsel %vm451, %v5683, -1e+30
        %v5708 = vsel %vm452, %v5684, -1e+30
        %v5709 = vsel %vm453, %v5685, -1e+30
        %v5710 = vsel %vm454, %v5686, -1e+30
        %v5711 = vsel %vm455, %v5683, -1e+30
        %v5712 = vsel %vm456, %v5684, -1e+30
        %v5713 = vsel %vm457, %v5685, -1e+30
        %v5714 = vsel %vm458, %v5686, -1e+30
        %v5715 = vsel %vm459, %v5683, -1e+30
        %v5716 = vsel %vm460, %v5684, -1e+30
        %v5717 = vsel %vm461, %v5685, -1e+30
        %v5718 = vsel %vm462, %v5686, -1e+30
        %v5719 = vsel %vm463, %v5683, -1e+30
        %v5720 = vsel %vm464, %v5684, -1e+30
        %v5721 = vsel %vm465, %v5685, -1e+30
        %v5722 = vsel %vm466, %v5686, -1e+30
        %v5723 = vsel %vm467, %v5683, -1e+30
        %v5724 = vsel %vm468, %v5684, -1e+30
        %v5725 = vsel %vm469, %v5685, -1e+30
        %v5726 = vsel %vm470, %v5686, -1e+30
        %v5727 = vsel %vm471, %v5683, -1e+30
        %v5728 = vsel %vm472, %v5684, -1e+30
        %v5729 = vsel %vm473, %v5685, -1e+30
        %v5730 = vsel %vm474, %v5686, -1e+30
        %v5731 = vsel %vm475, %v5683, -1e+30
        %v5732 = vsel %vm476, %v5684, -1e+30
        %v5733 = vsel %vm477, %v5685, -1e+30
        %v5734 = vsel %vm478, %v5686, -1e+30
        %v5735 = vsel %vm479, %v5683, -1e+30
        %v5736 = vsel %vm480, %v5684, -1e+30
        %v5737 = vsel %vm481, %v5685, -1e+30
        %v5738 = vsel %vm482, %v5686, -1e+30
        %v5739 = vsel %vm483, %v5683, -1e+30
        %v5740 = vsel %vm484, %v5684, -1e+30
        %v5741 = vsel %vm485, %v5685, -1e+30
        %v5742 = vsel %vm486, %v5686, -1e+30
        %v5743 = vsel %vm487, %v5683, -1e+30
        %v5744 = vsel %vm488, %v5684, -1e+30
        %v5745 = vsel %vm489, %v5685, -1e+30
        %v5746 = vsel %vm490, %v5686, -1e+30
        %v5747 = vsel %vm491, %v5683, -1e+30
        %v5748 = vsel %vm492, %v5684, -1e+30
        %v5749 = vsel %vm493, %v5685, -1e+30
        %v5750 = vsel %vm494, %v5686, -1e+30
        %v5751 = vsel %vm495, %v5683, -1e+30
        %v5752 = vsel %vm496, %v5684, -1e+30
        %v5753 = vsel %vm497, %v5685, -1e+30
        %v5754 = vsel %vm498, %v5686, -1e+30
        %v5755 = vsel %vm499, %v5683, -1e+30
        %v5756 = vsel %vm500, %v5684, -1e+30
        %v5757 = vsel %vm501, %v5685, -1e+30
        %v5758 = vsel %vm502, %v5686, -1e+30
        %v5759 = vsel %vm503, %v5683, -1e+30
        %v5760 = vsel %vm504, %v5684, -1e+30
        %v5761 = vsel %vm505, %v5685, -1e+30
        %v5762 = vsel %vm506, %v5686, -1e+30
        %v5763 = vsel %vm507, %v5683, -1e+30
        %v5764 = vsel %vm508, %v5684, -1e+30
        %v5765 = vsel %vm509, %v5685, -1e+30
        %v5766 = vsel %vm510, %v5686, -1e+30
        %v5767 = vsel %vm511, %v5683, -1e+30
        %v5768 = vsel %vm512, %v5684, -1e+30
        %v5769 = vsel %vm513, %v5685, -1e+30
        %v5770 = vsel %vm514, %v5686, -1e+30
        %v5771 = vsel %vm515, %v5683, -1e+30
        %v5772 = vsel %vm516, %v5684, -1e+30
        %v5773 = vsel %vm517, %v5685, -1e+30
        %v5774 = vsel %vm518, %v5686, -1e+30
        %v5775 = vsel %vm519, %v5683, -1e+30
        %v5776 = vsel %vm520, %v5684, -1e+30
        %v5777 = vsel %vm521, %v5685, -1e+30
        %v5778 = vsel %vm522, %v5686, -1e+30
        %v5779 = vsel %vm523, %v5683, -1e+30
        %v5780 = vsel %vm524, %v5684, -1e+30
        %v5781 = vsel %vm525, %v5685, -1e+30
        %v5782 = vsel %vm526, %v5686, -1e+30
        %v5783 = vsel %vm527, %v5683, -1e+30
        %v5784 = vsel %vm528, %v5684, -1e+30
        %v5785 = vsel %vm529, %v5685, -1e+30
        %v5786 = vsel %vm530, %v5686, -1e+30
        %v5787 = vsel %vm531, %v5683, -1e+30
        %v5788 = vsel %vm532, %v5684, -1e+30
        %v5789 = vsel %vm533, %v5685, -1e+30
        %v5790 = vsel %vm534, %v5686, -1e+30
        %v5791 = vsel %vm535, %v5683, -1e+30
        %v5792 = vsel %vm536, %v5684, -1e+30
        %v5793 = vsel %vm537, %v5685, -1e+30
        %v5794 = vsel %vm538, %v5686, -1e+30
        %v5795 = vsel %vm539, %v5683, -1e+30
        %v5796 = vsel %vm540, %v5684, -1e+30
        %v5797 = vsel %vm541, %v5685, -1e+30
        %v5798 = vsel %vm542, %v5686, -1e+30
        %v5799 = vsel %vm543, %v5683, -1e+30
        %v5800 = vsel %vm544, %v5684, -1e+30
        %v5801 = vsel %vm545, %v5685, -1e+30
        %v5802 = vsel %vm546, %v5686, -1e+30
        %v5803 = vsel %vm547, %v5683, -1e+30
        %v5804 = vsel %vm548, %v5684, -1e+30
        %v5805 = vsel %vm549, %v5685, -1e+30
        %v5806 = vsel %vm550, %v5686, -1e+30
        %v5807 = vsel %vm551, %v5683, -1e+30
        %v5808 = vsel %vm552, %v5684, -1e+30
        %v5809 = vsel %vm553, %v5685, -1e+30
        %v5810 = vsel %vm554, %v5686, -1e+30
        %v5811 = vsel %vm555, %v5683, -1e+30
        %v5812 = vsel %vm556, %v5684, -1e+30
        %v5813 = vsel %vm557, %v5685, -1e+30
        %v5814 = vsel %vm558, %v5686, -1e+30
        %v5815 = vmax.f32 %v5687, %v5688
        %v5816 = vmax.f32 %v5815, %v5689
        %v5817 = vmax.f32 %v5816, %v5690
        %5818 = vmax.xlane.f32.xlu0 %v5817
        %v5819 = vpop.xlane.xlu0 %5818
        %v5820 = vmax.f32 %v5691, %v5692
        %v5821 = vmax.f32 %v5820, %v5693
        %v5822 = vmax.f32 %v5821, %v5694
        %5823 = vmax.xlane.f32.xlu0 %v5822
        %v5824 = vpop.xlane.xlu0 %5823
        %v5825 = vmax.f32 %v5695, %v5696
        %v5826 = vmax.f32 %v5825, %v5697
        %v5827 = vmax.f32 %v5826, %v5698
        %5828 = vmax.xlane.f32.xlu0 %v5827
        %v5829 = vpop.xlane.xlu0 %5828
        %v5830 = vmax.f32 %v5699, %v5700
        %v5831 = vmax.f32 %v5830, %v5701
        %v5832 = vmax.f32 %v5831, %v5702
        %5833 = vmax.xlane.f32.xlu0 %v5832
        %v5834 = vpop.xlane.xlu0 %5833
        %v5835 = vmax.f32 %v5703, %v5704
        %v5836 = vmax.f32 %v5835, %v5705
        %v5837 = vmax.f32 %v5836, %v5706
        %5838 = vmax.xlane.f32.xlu0 %v5837
        %v5839 = vpop.xlane.xlu0 %5838
        %v5840 = vmax.f32 %v5707, %v5708
        %v5841 = vmax.f32 %v5840, %v5709
        %v5842 = vmax.f32 %v5841, %v5710
        %5843 = vmax.xlane.f32.xlu0 %v5842
        %v5844 = vpop.xlane.xlu0 %5843
        %v5845 = vmax.f32 %v5711, %v5712
        %v5846 = vmax.f32 %v5845, %v5713
        %v5847 = vmax.f32 %v5846, %v5714
        %5848 = vmax.xlane.f32.xlu0 %v5847
        %v5849 = vpop.xlane.xlu0 %5848
        %v5850 = vmax.f32 %v5715, %v5716
        %v5851 = vmax.f32 %v5850, %v5717
        %v5852 = vmax.f32 %v5851, %v5718
        %5853 = vmax.xlane.f32.xlu0 %v5852
        %v5854 = vpop.xlane.xlu0 %5853
        %v5855 = vmax.f32 %v5719, %v5720
        %v5856 = vmax.f32 %v5855, %v5721
        %v5857 = vmax.f32 %v5856, %v5722
        %5858 = vmax.xlane.f32.xlu0 %v5857
        %v5859 = vpop.xlane.xlu0 %5858
        %v5860 = vmax.f32 %v5723, %v5724
        %v5861 = vmax.f32 %v5860, %v5725
        %v5862 = vmax.f32 %v5861, %v5726
        %5863 = vmax.xlane.f32.xlu0 %v5862
        %v5864 = vpop.xlane.xlu0 %5863
        %v5865 = vmax.f32 %v5727, %v5728
        %v5866 = vmax.f32 %v5865, %v5729
        %v5867 = vmax.f32 %v5866, %v5730
        %5868 = vmax.xlane.f32.xlu0 %v5867
        %v5869 = vpop.xlane.xlu0 %5868
        %v5870 = vmax.f32 %v5731, %v5732
        %v5871 = vmax.f32 %v5870, %v5733
        %v5872 = vmax.f32 %v5871, %v5734
        %5873 = vmax.xlane.f32.xlu0 %v5872
        %v5874 = vpop.xlane.xlu0 %5873
        %v5875 = vmax.f32 %v5735, %v5736
        %v5876 = vmax.f32 %v5875, %v5737
        %v5877 = vmax.f32 %v5876, %v5738
        %5878 = vmax.xlane.f32.xlu0 %v5877
        %v5879 = vpop.xlane.xlu0 %5878
        %v5880 = vmax.f32 %v5739, %v5740
        %v5881 = vmax.f32 %v5880, %v5741
        %v5882 = vmax.f32 %v5881, %v5742
        %5883 = vmax.xlane.f32.xlu0 %v5882
        %v5884 = vpop.xlane.xlu0 %5883
        %v5885 = vmax.f32 %v5743, %v5744
        %v5886 = vmax.f32 %v5885, %v5745
        %v5887 = vmax.f32 %v5886, %v5746
        %5888 = vmax.xlane.f32.xlu0 %v5887
        %v5889 = vpop.xlane.xlu0 %5888
        %v5890 = vmax.f32 %v5747, %v5748
        %v5891 = vmax.f32 %v5890, %v5749
        %v5892 = vmax.f32 %v5891, %v5750
        %5893 = vmax.xlane.f32.xlu0 %v5892
        %v5894 = vpop.xlane.xlu0 %5893
        %v5895 = vmax.f32 %v5751, %v5752
        %v5896 = vmax.f32 %v5895, %v5753
        %v5897 = vmax.f32 %v5896, %v5754
        %5898 = vmax.xlane.f32.xlu0 %v5897
        %v5899 = vpop.xlane.xlu0 %5898
        %v5900 = vmax.f32 %v5755, %v5756
        %v5901 = vmax.f32 %v5900, %v5757
        %v5902 = vmax.f32 %v5901, %v5758
        %5903 = vmax.xlane.f32.xlu0 %v5902
        %v5904 = vpop.xlane.xlu0 %5903
        %v5905 = vmax.f32 %v5759, %v5760
        %v5906 = vmax.f32 %v5905, %v5761
        %v5907 = vmax.f32 %v5906, %v5762
        %5908 = vmax.xlane.f32.xlu0 %v5907
        %v5909 = vpop.xlane.xlu0 %5908
        %v5910 = vmax.f32 %v5763, %v5764
        %v5911 = vmax.f32 %v5910, %v5765
        %v5912 = vmax.f32 %v5911, %v5766
        %5913 = vmax.xlane.f32.xlu0 %v5912
        %v5914 = vpop.xlane.xlu0 %5913
        %v5915 = vmax.f32 %v5767, %v5768
        %v5916 = vmax.f32 %v5915, %v5769
        %v5917 = vmax.f32 %v5916, %v5770
        %5918 = vmax.xlane.f32.xlu0 %v5917
        %v5919 = vpop.xlane.xlu0 %5918
        %v5920 = vmax.f32 %v5771, %v5772
        %v5921 = vmax.f32 %v5920, %v5773
        %v5922 = vmax.f32 %v5921, %v5774
        %5923 = vmax.xlane.f32.xlu0 %v5922
        %v5924 = vpop.xlane.xlu0 %5923
        %v5925 = vmax.f32 %v5775, %v5776
        %v5926 = vmax.f32 %v5925, %v5777
        %v5927 = vmax.f32 %v5926, %v5778
        %5928 = vmax.xlane.f32.xlu0 %v5927
        %v5929 = vpop.xlane.xlu0 %5928
        %v5930 = vmax.f32 %v5779, %v5780
        %v5931 = vmax.f32 %v5930, %v5781
        %v5932 = vmax.f32 %v5931, %v5782
        %5933 = vmax.xlane.f32.xlu0 %v5932
        %v5934 = vpop.xlane.xlu0 %5933
        %v5935 = vmax.f32 %v5783, %v5784
        %v5936 = vmax.f32 %v5935, %v5785
        %v5937 = vmax.f32 %v5936, %v5786
        %5938 = vmax.xlane.f32.xlu0 %v5937
        %v5939 = vpop.xlane.xlu0 %5938
        %v5940 = vmax.f32 %v5787, %v5788
        %v5941 = vmax.f32 %v5940, %v5789
        %v5942 = vmax.f32 %v5941, %v5790
        %5943 = vmax.xlane.f32.xlu0 %v5942
        %v5944 = vpop.xlane.xlu0 %5943
        %v5945 = vmax.f32 %v5791, %v5792
        %v5946 = vmax.f32 %v5945, %v5793
        %v5947 = vmax.f32 %v5946, %v5794
        %5948 = vmax.xlane.f32.xlu0 %v5947
        %v5949 = vpop.xlane.xlu0 %5948
        %v5950 = vmax.f32 %v5795, %v5796
        %v5951 = vmax.f32 %v5950, %v5797
        %v5952 = vmax.f32 %v5951, %v5798
        %5953 = vmax.xlane.f32.xlu0 %v5952
        %v5954 = vpop.xlane.xlu0 %5953
        %v5955 = vmax.f32 %v5799, %v5800
        %v5956 = vmax.f32 %v5955, %v5801
        %v5957 = vmax.f32 %v5956, %v5802
        %5958 = vmax.xlane.f32.xlu0 %v5957
        %v5959 = vpop.xlane.xlu0 %5958
        %v5960 = vmax.f32 %v5803, %v5804
        %v5961 = vmax.f32 %v5960, %v5805
        %v5962 = vmax.f32 %v5961, %v5806
        %5963 = vmax.xlane.f32.xlu0 %v5962
        %v5964 = vpop.xlane.xlu0 %5963
        %v5965 = vmax.f32 %v5807, %v5808
        %v5966 = vmax.f32 %v5965, %v5809
        %v5967 = vmax.f32 %v5966, %v5810
        %5968 = vmax.xlane.f32.xlu0 %v5967
        %v5969 = vpop.xlane.xlu0 %5968
        %v5970 = vmax.f32 %v5811, %v5812
        %v5971 = vmax.f32 %v5970, %v5813
        %v5972 = vmax.f32 %v5971, %v5814
        %5973 = vmax.xlane.f32.xlu0 %v5972
        %v5974 = vpop.xlane.xlu0 %5973
        %v5975 = vsub.f32 %v5687, %v5819
        %v5976 = vsub.f32 %v5688, %v5819
        %v5977 = vsub.f32 %v5689, %v5819
        %v5978 = vsub.f32 %v5690, %v5819
        %v5979 = vsub.f32 %v5691, %v5824
        %v5980 = vsub.f32 %v5692, %v5824
        %v5981 = vsub.f32 %v5693, %v5824
        %v5982 = vsub.f32 %v5694, %v5824
        %v5983 = vsub.f32 %v5695, %v5829
        %v5984 = vsub.f32 %v5696, %v5829
        %v5985 = vsub.f32 %v5697, %v5829
        %v5986 = vsub.f32 %v5698, %v5829
        %v5987 = vsub.f32 %v5699, %v5834
        %v5988 = vsub.f32 %v5700, %v5834
        %v5989 = vsub.f32 %v5701, %v5834
        %v5990 = vsub.f32 %v5702, %v5834
        %v5991 = vsub.f32 %v5703, %v5839
        %v5992 = vsub.f32 %v5704, %v5839
        %v5993 = vsub.f32 %v5705, %v5839
        %v5994 = vsub.f32 %v5706, %v5839
        %v5995 = vsub.f32 %v5707, %v5844
        %v5996 = vsub.f32 %v5708, %v5844
        %v5997 = vsub.f32 %v5709, %v5844
        %v5998 = vsub.f32 %v5710, %v5844
        %v5999 = vsub.f32 %v5711, %v5849
        %v6000 = vsub.f32 %v5712, %v5849
        %v6001 = vsub.f32 %v5713, %v5849
        %v6002 = vsub.f32 %v5714, %v5849
        %v6003 = vsub.f32 %v5715, %v5854
        %v6004 = vsub.f32 %v5716, %v5854
        %v6005 = vsub.f32 %v5717, %v5854
        %v6006 = vsub.f32 %v5718, %v5854
        %v6007 = vsub.f32 %v5719, %v5859
        %v6008 = vsub.f32 %v5720, %v5859
        %v6009 = vsub.f32 %v5721, %v5859
        %v6010 = vsub.f32 %v5722, %v5859
        %v6011 = vsub.f32 %v5723, %v5864
        %v6012 = vsub.f32 %v5724, %v5864
        %v6013 = vsub.f32 %v5725, %v5864
        %v6014 = vsub.f32 %v5726, %v5864
        %v6015 = vsub.f32 %v5727, %v5869
        %v6016 = vsub.f32 %v5728, %v5869
        %v6017 = vsub.f32 %v5729, %v5869
        %v6018 = vsub.f32 %v5730, %v5869
        %v6019 = vsub.f32 %v5731, %v5874
        %v6020 = vsub.f32 %v5732, %v5874
        %v6021 = vsub.f32 %v5733, %v5874
        %v6022 = vsub.f32 %v5734, %v5874
        %v6023 = vsub.f32 %v5735, %v5879
        %v6024 = vsub.f32 %v5736, %v5879
        %v6025 = vsub.f32 %v5737, %v5879
        %v6026 = vsub.f32 %v5738, %v5879
        %v6027 = vsub.f32 %v5739, %v5884
        %v6028 = vsub.f32 %v5740, %v5884
        %v6029 = vsub.f32 %v5741, %v5884
        %v6030 = vsub.f32 %v5742, %v5884
        %v6031 = vsub.f32 %v5743, %v5889
        %v6032 = vsub.f32 %v5744, %v5889
        %v6033 = vsub.f32 %v5745, %v5889
        %v6034 = vsub.f32 %v5746, %v5889
        %v6035 = vsub.f32 %v5747, %v5894
        %v6036 = vsub.f32 %v5748, %v5894
        %v6037 = vsub.f32 %v5749, %v5894
        %v6038 = vsub.f32 %v5750, %v5894
        %v6039 = vsub.f32 %v5751, %v5899
        %v6040 = vsub.f32 %v5752, %v5899
        %v6041 = vsub.f32 %v5753, %v5899
        %v6042 = vsub.f32 %v5754, %v5899
        %v6043 = vsub.f32 %v5755, %v5904
        %v6044 = vsub.f32 %v5756, %v5904
        %v6045 = vsub.f32 %v5757, %v5904
        %v6046 = vsub.f32 %v5758, %v5904
        %v6047 = vsub.f32 %v5759, %v5909
        %v6048 = vsub.f32 %v5760, %v5909
        %v6049 = vsub.f32 %v5761, %v5909
        %v6050 = vsub.f32 %v5762, %v5909
        %v6051 = vsub.f32 %v5763, %v5914
        %v6052 = vsub.f32 %v5764, %v5914
        %v6053 = vsub.f32 %v5765, %v5914
        %v6054 = vsub.f32 %v5766, %v5914
        %v6055 = vsub.f32 %v5767, %v5919
        %v6056 = vsub.f32 %v5768, %v5919
        %v6057 = vsub.f32 %v5769, %v5919
        %v6058 = vsub.f32 %v5770, %v5919
        %v6059 = vsub.f32 %v5771, %v5924
        %v6060 = vsub.f32 %v5772, %v5924
        %v6061 = vsub.f32 %v5773, %v5924
        %v6062 = vsub.f32 %v5774, %v5924
        %v6063 = vsub.f32 %v5775, %v5929
        %v6064 = vsub.f32 %v5776, %v5929
        %v6065 = vsub.f32 %v5777, %v5929
        %v6066 = vsub.f32 %v5778, %v5929
        %v6067 = vsub.f32 %v5779, %v5934
        %v6068 = vsub.f32 %v5780, %v5934
        %v6069 = vsub.f32 %v5781, %v5934
        %v6070 = vsub.f32 %v5782, %v5934
        %v6071 = vsub.f32 %v5783, %v5939
        %v6072 = vsub.f32 %v5784, %v5939
        %v6073 = vsub.f32 %v5785, %v5939
        %v6074 = vsub.f32 %v5786, %v5939
        %v6075 = vsub.f32 %v5787, %v5944
        %v6076 = vsub.f32 %v5788, %v5944
        %v6077 = vsub.f32 %v5789, %v5944
        %v6078 = vsub.f32 %v5790, %v5944
        %v6079 = vsub.f32 %v5791, %v5949
        %v6080 = vsub.f32 %v5792, %v5949
        %v6081 = vsub.f32 %v5793, %v5949
        %v6082 = vsub.f32 %v5794, %v5949
        %v6083 = vsub.f32 %v5795, %v5954
        %v6084 = vsub.f32 %v5796, %v5954
        %v6085 = vsub.f32 %v5797, %v5954
        %v6086 = vsub.f32 %v5798, %v5954
        %v6087 = vsub.f32 %v5799, %v5959
        %v6088 = vsub.f32 %v5800, %v5959
        %v6089 = vsub.f32 %v5801, %v5959
        %v6090 = vsub.f32 %v5802, %v5959
        %v6091 = vsub.f32 %v5803, %v5964
        %v6092 = vsub.f32 %v5804, %v5964
        %v6093 = vsub.f32 %v5805, %v5964
        %v6094 = vsub.f32 %v5806, %v5964
        %v6095 = vsub.f32 %v5807, %v5969
        %v6096 = vsub.f32 %v5808, %v5969
        %v6097 = vsub.f32 %v5809, %v5969
        %v6098 = vsub.f32 %v5810, %v5969
        %v6099 = vsub.f32 %v5811, %v5974
        %v6100 = vsub.f32 %v5812, %v5974
        %v6101 = vsub.f32 %v5813, %v5974
        %v6102 = vsub.f32 %v5814, %v5974
        %v6103 = vmul.f32 %v5975, 1.442695
        %v6104 = vpow.pop %v6103
        %v6105 = vmul.f32 %v5976, 1.442695
        %v6106 = vpow.pop %v6105
        %v6107 = vmul.f32 %v5977, 1.442695
        %v6108 = vpow.pop %v6107
        %v6109 = vmul.f32 %v5978, 1.442695
        %v6110 = vpow.pop %v6109
        %v6111 = vmul.f32 %v5979, 1.442695
        %v6112 = vpow.pop %v6111
        %v6113 = vmul.f32 %v5980, 1.442695
        %v6114 = vpow.pop %v6113
        %v6115 = vmul.f32 %v5981, 1.442695
        %v6116 = vpow.pop %v6115
        %v6117 = vmul.f32 %v5982, 1.442695
        %v6118 = vpow.pop %v6117
        %v6119 = vmul.f32 %v5983, 1.442695
        %v6120 = vpow.pop %v6119
        %v6121 = vmul.f32 %v5984, 1.442695
        %v6122 = vpow.pop %v6121
        %v6123 = vmul.f32 %v5985, 1.442695
        %v6124 = vpow.pop %v6123
        %v6125 = vmul.f32 %v5986, 1.442695
        %v6126 = vpow.pop %v6125
        %v6127 = vmul.f32 %v5987, 1.442695
        %v6128 = vpow.pop %v6127
        %v6129 = vmul.f32 %v5988, 1.442695
        %v6130 = vpow.pop %v6129
        %v6131 = vmul.f32 %v5989, 1.442695
        %v6132 = vpow.pop %v6131
        %v6133 = vmul.f32 %v5990, 1.442695
        %v6134 = vpow.pop %v6133
        %v6135 = vmul.f32 %v5991, 1.442695
        %v6136 = vpow.pop %v6135
        %v6137 = vmul.f32 %v5992, 1.442695
        %v6138 = vpow.pop %v6137
        %v6139 = vmul.f32 %v5993, 1.442695
        %v6140 = vpow.pop %v6139
        %v6141 = vmul.f32 %v5994, 1.442695
        %v6142 = vpow.pop %v6141
        %v6143 = vmul.f32 %v5995, 1.442695
        %v6144 = vpow.pop %v6143
        %v6145 = vmul.f32 %v5996, 1.442695
        %v6146 = vpow.pop %v6145
        %v6147 = vmul.f32 %v5997, 1.442695
        %v6148 = vpow.pop %v6147
        %v6149 = vmul.f32 %v5998, 1.442695
        %v6150 = vpow.pop %v6149
        %v6151 = vmul.f32 %v5999, 1.442695
        %v6152 = vpow.pop %v6151
        %v6153 = vmul.f32 %v6000, 1.442695
        %v6154 = vpow.pop %v6153
        %v6155 = vmul.f32 %v6001, 1.442695
        %v6156 = vpow.pop %v6155
        %v6157 = vmul.f32 %v6002, 1.442695
        %v6158 = vpow.pop %v6157
        %v6159 = vmul.f32 %v6003, 1.442695
        %v6160 = vpow.pop %v6159
        %v6161 = vmul.f32 %v6004, 1.442695
        %v6162 = vpow.pop %v6161
        %v6163 = vmul.f32 %v6005, 1.442695
        %v6164 = vpow.pop %v6163
        %v6165 = vmul.f32 %v6006, 1.442695
        %v6166 = vpow.pop %v6165
        %v6167 = vmul.f32 %v6007, 1.442695
        %v6168 = vpow.pop %v6167
        %v6169 = vmul.f32 %v6008, 1.442695
        %v6170 = vpow.pop %v6169
        %v6171 = vmul.f32 %v6009, 1.442695
        %v6172 = vpow.pop %v6171
        %v6173 = vmul.f32 %v6010, 1.442695
        %v6174 = vpow.pop %v6173
        %v6175 = vmul.f32 %v6011, 1.442695
        %v6176 = vpow.pop %v6175
        %v6177 = vmul.f32 %v6012, 1.442695
        %v6178 = vpow.pop %v6177
        %v6179 = vmul.f32 %v6013, 1.442695
        %v6180 = vpow.pop %v6179
        %v6181 = vmul.f32 %v6014, 1.442695
        %v6182 = vpow.pop %v6181
        %v6183 = vmul.f32 %v6015, 1.442695
        %v6184 = vpow.pop %v6183
        %v6185 = vmul.f32 %v6016, 1.442695
        %v6186 = vpow.pop %v6185
        %v6187 = vmul.f32 %v6017, 1.442695
        %v6188 = vpow.pop %v6187
        %v6189 = vmul.f32 %v6018, 1.442695
        %v6190 = vpow.pop %v6189
        %v6191 = vmul.f32 %v6019, 1.442695
        %v6192 = vpow.pop %v6191
        %v6193 = vmul.f32 %v6020, 1.442695
        %v6194 = vpow.pop %v6193
        %v6195 = vmul.f32 %v6021, 1.442695
        %v6196 = vpow.pop %v6195
        %v6197 = vmul.f32 %v6022, 1.442695
        %v6198 = vpow.pop %v6197
        %v6199 = vmul.f32 %v6023, 1.442695
        %v6200 = vpow.pop %v6199
        %v6201 = vmul.f32 %v6024, 1.442695
        %v6202 = vpow.pop %v6201
        %v6203 = vmul.f32 %v6025, 1.442695
        %v6204 = vpow.pop %v6203
        %v6205 = vmul.f32 %v6026, 1.442695
        %v6206 = vpow.pop %v6205
        %v6207 = vmul.f32 %v6027, 1.442695
        %v6208 = vpow.pop %v6207
        %v6209 = vmul.f32 %v6028, 1.442695
        %v6210 = vpow.pop %v6209
        %v6211 = vmul.f32 %v6029, 1.442695
        %v6212 = vpow.pop %v6211
        %v6213 = vmul.f32 %v6030, 1.442695
        %v6214 = vpow.pop %v6213
        %v6215 = vmul.f32 %v6031, 1.442695
        %v6216 = vpow.pop %v6215
        %v6217 = vmul.f32 %v6032, 1.442695
        %v6218 = vpow.pop %v6217
        %v6219 = vmul.f32 %v6033, 1.442695
        %v6220 = vpow.pop %v6219
        %v6221 = vmul.f32 %v6034, 1.442695
        %v6222 = vpow.pop %v6221
        %v6223 = vmul.f32 %v6035, 1.442695
        %v6224 = vpow.pop %v6223
        %v6225 = vmul.f32 %v6036, 1.442695
        %v6226 = vpow.pop %v6225
        %v6227 = vmul.f32 %v6037, 1.442695
        %v6228 = vpow.pop %v6227
        %v6229 = vmul.f32 %v6038, 1.442695
        %v6230 = vpow.pop %v6229
        %v6231 = vmul.f32 %v6039, 1.442695
        %v6232 = vpow.pop %v6231
        %v6233 = vmul.f32 %v6040, 1.442695
        %v6234 = vpow.pop %v6233
        %v6235 = vmul.f32 %v6041, 1.442695
        %v6236 = vpow.pop %v6235
        %v6237 = vmul.f32 %v6042, 1.442695
        %v6238 = vpow.pop %v6237
        %v6239 = vmul.f32 %v6043, 1.442695
        %v6240 = vpow.pop %v6239
        %v6241 = vmul.f32 %v6044, 1.442695
        %v6242 = vpow.pop %v6241
        %v6243 = vmul.f32 %v6045, 1.442695
        %v6244 = vpow.pop %v6243
        %v6245 = vmul.f32 %v6046, 1.442695
        %v6246 = vpow.pop %v6245
        %v6247 = vmul.f32 %v6047, 1.442695
        %v6248 = vpow.pop %v6247
        %v6249 = vmul.f32 %v6048, 1.442695
        %v6250 = vpow.pop %v6249
        %v6251 = vmul.f32 %v6049, 1.442695
        %v6252 = vpow.pop %v6251
        %v6253 = vmul.f32 %v6050, 1.442695
        %v6254 = vpow.pop %v6253
        %v6255 = vmul.f32 %v6051, 1.442695
        %v6256 = vpow.pop %v6255
        %v6257 = vmul.f32 %v6052, 1.442695
        %v6258 = vpow.pop %v6257
        %v6259 = vmul.f32 %v6053, 1.442695
        %v6260 = vpow.pop %v6259
        %v6261 = vmul.f32 %v6054, 1.442695
        %v6262 = vpow.pop %v6261
        %v6263 = vmul.f32 %v6055, 1.442695
        %v6264 = vpow.pop %v6263
        %v6265 = vmul.f32 %v6056, 1.442695
        %v6266 = vpow.pop %v6265
        %v6267 = vmul.f32 %v6057, 1.442695
        %v6268 = vpow.pop %v6267
        %v6269 = vmul.f32 %v6058, 1.442695
        %v6270 = vpow.pop %v6269
        %v6271 = vmul.f32 %v6059, 1.442695
        %v6272 = vpow.pop %v6271
        %v6273 = vmul.f32 %v6060, 1.442695
        %v6274 = vpow.pop %v6273
        %v6275 = vmul.f32 %v6061, 1.442695
        %v6276 = vpow.pop %v6275
        %v6277 = vmul.f32 %v6062, 1.442695
        %v6278 = vpow.pop %v6277
        %v6279 = vmul.f32 %v6063, 1.442695
        %v6280 = vpow.pop %v6279
        %v6281 = vmul.f32 %v6064, 1.442695
        %v6282 = vpow.pop %v6281
        %v6283 = vmul.f32 %v6065, 1.442695
        %v6284 = vpow.pop %v6283
        %v6285 = vmul.f32 %v6066, 1.442695
        %v6286 = vpow.pop %v6285
        %v6287 = vmul.f32 %v6067, 1.442695
        %v6288 = vpow.pop %v6287
        %v6289 = vmul.f32 %v6068, 1.442695
        %v6290 = vpow.pop %v6289
        %v6291 = vmul.f32 %v6069, 1.442695
        %v6292 = vpow.pop %v6291
        %v6293 = vmul.f32 %v6070, 1.442695
        %v6294 = vpow.pop %v6293
        %v6295 = vmul.f32 %v6071, 1.442695
        %v6296 = vpow.pop %v6295
        %v6297 = vmul.f32 %v6072, 1.442695
        %v6298 = vpow.pop %v6297
        %v6299 = vmul.f32 %v6073, 1.442695
        %v6300 = vpow.pop %v6299
        %v6301 = vmul.f32 %v6074, 1.442695
        %v6302 = vpow.pop %v6301
        %v6303 = vmul.f32 %v6075, 1.442695
        %v6304 = vpow.pop %v6303
        %v6305 = vmul.f32 %v6076, 1.442695
        %v6306 = vpow.pop %v6305
        %v6307 = vmul.f32 %v6077, 1.442695
        %v6308 = vpow.pop %v6307
        %v6309 = vmul.f32 %v6078, 1.442695
        %v6310 = vpow.pop %v6309
        %v6311 = vmul.f32 %v6079, 1.442695
        %v6312 = vpow.pop %v6311
        %v6313 = vmul.f32 %v6080, 1.442695
        %v6314 = vpow.pop %v6313
        %v6315 = vmul.f32 %v6081, 1.442695
        %v6316 = vpow.pop %v6315
        %v6317 = vmul.f32 %v6082, 1.442695
        %v6318 = vpow.pop %v6317
        %v6319 = vmul.f32 %v6083, 1.442695
        %v6320 = vpow.pop %v6319
        %v6321 = vmul.f32 %v6084, 1.442695
        %v6322 = vpow.pop %v6321
        %v6323 = vmul.f32 %v6085, 1.442695
        %v6324 = vpow.pop %v6323
        %v6325 = vmul.f32 %v6086, 1.442695
        %v6326 = vpow.pop %v6325
        %v6327 = vmul.f32 %v6087, 1.442695
        %v6328 = vpow.pop %v6327
        %v6329 = vmul.f32 %v6088, 1.442695
        %v6330 = vpow.pop %v6329
        %v6331 = vmul.f32 %v6089, 1.442695
        %v6332 = vpow.pop %v6331
        %v6333 = vmul.f32 %v6090, 1.442695
        %v6334 = vpow.pop %v6333
        %v6335 = vmul.f32 %v6091, 1.442695
        %v6336 = vpow.pop %v6335
        %v6337 = vmul.f32 %v6092, 1.442695
        %v6338 = vpow.pop %v6337
        %v6339 = vmul.f32 %v6093, 1.442695
        %v6340 = vpow.pop %v6339
        %v6341 = vmul.f32 %v6094, 1.442695
        %v6342 = vpow.pop %v6341
        %v6343 = vmul.f32 %v6095, 1.442695
        %v6344 = vpow.pop %v6343
        %v6345 = vmul.f32 %v6096, 1.442695
        %v6346 = vpow.pop %v6345
        %v6347 = vmul.f32 %v6097, 1.442695
        %v6348 = vpow.pop %v6347
        %v6349 = vmul.f32 %v6098, 1.442695
        %v6350 = vpow.pop %v6349
        %v6351 = vmul.f32 %v6099, 1.442695
        %v6352 = vpow.pop %v6351
        %v6353 = vmul.f32 %v6100, 1.442695
        %v6354 = vpow.pop %v6353
        %v6355 = vmul.f32 %v6101, 1.442695
        %v6356 = vpow.pop %v6355
        %v6357 = vmul.f32 %v6102, 1.442695
        %v6358 = vpow.pop %v6357
        %v6359 = vsel %vm431, %v6104, 0.0
        %v6360 = vsel %vm432, %v6106, 0.0
        %v6361 = vsel %vm433, %v6108, 0.0
        %v6362 = vsel %vm434, %v6110, 0.0
        %v6363 = vsel %vm435, %v6112, 0.0
        %v6364 = vsel %vm436, %v6114, 0.0
        %v6365 = vsel %vm437, %v6116, 0.0
        %v6366 = vsel %vm438, %v6118, 0.0
        %v6367 = vsel %vm439, %v6120, 0.0
        %v6368 = vsel %vm440, %v6122, 0.0
        %v6369 = vsel %vm441, %v6124, 0.0
        %v6370 = vsel %vm442, %v6126, 0.0
        %v6371 = vsel %vm443, %v6128, 0.0
        %v6372 = vsel %vm444, %v6130, 0.0
        %v6373 = vsel %vm445, %v6132, 0.0
        %v6374 = vsel %vm446, %v6134, 0.0
        %v6375 = vsel %vm447, %v6136, 0.0
        %v6376 = vsel %vm448, %v6138, 0.0
        %v6377 = vsel %vm449, %v6140, 0.0
        %v6378 = vsel %vm450, %v6142, 0.0
        %v6379 = vsel %vm451, %v6144, 0.0
        %v6380 = vsel %vm452, %v6146, 0.0
        %v6381 = vsel %vm453, %v6148, 0.0
        %v6382 = vsel %vm454, %v6150, 0.0
        %v6383 = vsel %vm455, %v6152, 0.0
        %v6384 = vsel %vm456, %v6154, 0.0
        %v6385 = vsel %vm457, %v6156, 0.0
        %v6386 = vsel %vm458, %v6158, 0.0
        %v6387 = vsel %vm459, %v6160, 0.0
        %v6388 = vsel %vm460, %v6162, 0.0
        %v6389 = vsel %vm461, %v6164, 0.0
        %v6390 = vsel %vm462, %v6166, 0.0
        %v6391 = vsel %vm463, %v6168, 0.0
        %v6392 = vsel %vm464, %v6170, 0.0
        %v6393 = vsel %vm465, %v6172, 0.0
        %v6394 = vsel %vm466, %v6174, 0.0
        %v6395 = vsel %vm467, %v6176, 0.0
        %v6396 = vsel %vm468, %v6178, 0.0
        %v6397 = vsel %vm469, %v6180, 0.0
        %v6398 = vsel %vm470, %v6182, 0.0
        %v6399 = vsel %vm471, %v6184, 0.0
        %v6400 = vsel %vm472, %v6186, 0.0
        %v6401 = vsel %vm473, %v6188, 0.0
        %v6402 = vsel %vm474, %v6190, 0.0
        %v6403 = vsel %vm475, %v6192, 0.0
        %v6404 = vsel %vm476, %v6194, 0.0
        %v6405 = vsel %vm477, %v6196, 0.0
        %v6406 = vsel %vm478, %v6198, 0.0
        %v6407 = vsel %vm479, %v6200, 0.0
        %v6408 = vsel %vm480, %v6202, 0.0
        %v6409 = vsel %vm481, %v6204, 0.0
        %v6410 = vsel %vm482, %v6206, 0.0
        %v6411 = vsel %vm483, %v6208, 0.0
        %v6412 = vsel %vm484, %v6210, 0.0
        %v6413 = vsel %vm485, %v6212, 0.0
        %v6414 = vsel %vm486, %v6214, 0.0
        %v6415 = vsel %vm487, %v6216, 0.0
        %v6416 = vsel %vm488, %v6218, 0.0
        %v6417 = vsel %vm489, %v6220, 0.0
        %v6418 = vsel %vm490, %v6222, 0.0
        %v6419 = vsel %vm491, %v6224, 0.0
        %v6420 = vsel %vm492, %v6226, 0.0
        %v6421 = vsel %vm493, %v6228, 0.0
        %v6422 = vsel %vm494, %v6230, 0.0
        %v6423 = vsel %vm495, %v6232, 0.0
        %v6424 = vsel %vm496, %v6234, 0.0
        %v6425 = vsel %vm497, %v6236, 0.0
        %v6426 = vsel %vm498, %v6238, 0.0
        %v6427 = vsel %vm499, %v6240, 0.0
        %v6428 = vsel %vm500, %v6242, 0.0
        %v6429 = vsel %vm501, %v6244, 0.0
        %v6430 = vsel %vm502, %v6246, 0.0
        %v6431 = vsel %vm503, %v6248, 0.0
        %v6432 = vsel %vm504, %v6250, 0.0
        %v6433 = vsel %vm505, %v6252, 0.0
        %v6434 = vsel %vm506, %v6254, 0.0
        %v6435 = vsel %vm507, %v6256, 0.0
        %v6436 = vsel %vm508, %v6258, 0.0
        %v6437 = vsel %vm509, %v6260, 0.0
        %v6438 = vsel %vm510, %v6262, 0.0
        %v6439 = vsel %vm511, %v6264, 0.0
        %v6440 = vsel %vm512, %v6266, 0.0
        %v6441 = vsel %vm513, %v6268, 0.0
        %v6442 = vsel %vm514, %v6270, 0.0
        %v6443 = vsel %vm515, %v6272, 0.0
        %v6444 = vsel %vm516, %v6274, 0.0
        %v6445 = vsel %vm517, %v6276, 0.0
        %v6446 = vsel %vm518, %v6278, 0.0
        %v6447 = vsel %vm519, %v6280, 0.0
        %v6448 = vsel %vm520, %v6282, 0.0
        %v6449 = vsel %vm521, %v6284, 0.0
        %v6450 = vsel %vm522, %v6286, 0.0
        %v6451 = vsel %vm523, %v6288, 0.0
        %v6452 = vsel %vm524, %v6290, 0.0
        %v6453 = vsel %vm525, %v6292, 0.0
        %v6454 = vsel %vm526, %v6294, 0.0
        %v6455 = vsel %vm527, %v6296, 0.0
        %v6456 = vsel %vm528, %v6298, 0.0
        %v6457 = vsel %vm529, %v6300, 0.0
        %v6458 = vsel %vm530, %v6302, 0.0
        %v6459 = vsel %vm531, %v6304, 0.0
        %v6460 = vsel %vm532, %v6306, 0.0
        %v6461 = vsel %vm533, %v6308, 0.0
        %v6462 = vsel %vm534, %v6310, 0.0
        %v6463 = vsel %vm535, %v6312, 0.0
        %v6464 = vsel %vm536, %v6314, 0.0
        %v6465 = vsel %vm537, %v6316, 0.0
        %v6466 = vsel %vm538, %v6318, 0.0
        %v6467 = vsel %vm539, %v6320, 0.0
        %v6468 = vsel %vm540, %v6322, 0.0
        %v6469 = vsel %vm541, %v6324, 0.0
        %v6470 = vsel %vm542, %v6326, 0.0
        %v6471 = vsel %vm543, %v6328, 0.0
        %v6472 = vsel %vm544, %v6330, 0.0
        %v6473 = vsel %vm545, %v6332, 0.0
        %v6474 = vsel %vm546, %v6334, 0.0
        %v6475 = vsel %vm547, %v6336, 0.0
        %v6476 = vsel %vm548, %v6338, 0.0
        %v6477 = vsel %vm549, %v6340, 0.0
        %v6478 = vsel %vm550, %v6342, 0.0
        %v6479 = vsel %vm551, %v6344, 0.0
        %v6480 = vsel %vm552, %v6346, 0.0
        %v6481 = vsel %vm553, %v6348, 0.0
        %v6482 = vsel %vm554, %v6350, 0.0
        %v6483 = vsel %vm555, %v6352, 0.0
        %v6484 = vsel %vm556, %v6354, 0.0
        %v6485 = vsel %vm557, %v6356, 0.0
        %v6486 = vsel %vm558, %v6358, 0.0
        %v6487 = vadd.f32 %v6359, %v6360
        %v6488 = vadd.f32 %v6487, %v6361
        %v6489 = vadd.f32 %v6488, %v6362
        %6490 = vadd.xlane.f32.xlu0 %v6489
        %v6491 = vpop.xlane.xlu0 %6490
        %v6492 = vadd.f32 %v6363, %v6364
        %v6493 = vadd.f32 %v6492, %v6365
        %v6494 = vadd.f32 %v6493, %v6366
        %6495 = vadd.xlane.f32.xlu0 %v6494
        %v6496 = vpop.xlane.xlu0 %6495
        %v6497 = vadd.f32 %v6367, %v6368
        %v6498 = vadd.f32 %v6497, %v6369
        %v6499 = vadd.f32 %v6498, %v6370
        %6500 = vadd.xlane.f32.xlu0 %v6499
        %v6501 = vpop.xlane.xlu0 %6500
        %v6502 = vadd.f32 %v6371, %v6372
        %v6503 = vadd.f32 %v6502, %v6373
        %v6504 = vadd.f32 %v6503, %v6374
        %6505 = vadd.xlane.f32.xlu0 %v6504
        %v6506 = vpop.xlane.xlu0 %6505
        %v6507 = vadd.f32 %v6375, %v6376
        %v6508 = vadd.f32 %v6507, %v6377
        %v6509 = vadd.f32 %v6508, %v6378
        %6510 = vadd.xlane.f32.xlu0 %v6509
        %v6511 = vpop.xlane.xlu0 %6510
        %v6512 = vadd.f32 %v6379, %v6380
        %v6513 = vadd.f32 %v6512, %v6381
        %v6514 = vadd.f32 %v6513, %v6382
        %6515 = vadd.xlane.f32.xlu0 %v6514
        %v6516 = vpop.xlane.xlu0 %6515
        %v6517 = vadd.f32 %v6383, %v6384
        %v6518 = vadd.f32 %v6517, %v6385
        %v6519 = vadd.f32 %v6518, %v6386
        %6520 = vadd.xlane.f32.xlu0 %v6519
        %v6521 = vpop.xlane.xlu0 %6520
        %v6522 = vadd.f32 %v6387, %v6388
        %v6523 = vadd.f32 %v6522, %v6389
        %v6524 = vadd.f32 %v6523, %v6390
        %6525 = vadd.xlane.f32.xlu0 %v6524
        %v6526 = vpop.xlane.xlu0 %6525
        %v6527 = vadd.f32 %v6391, %v6392
        %v6528 = vadd.f32 %v6527, %v6393
        %v6529 = vadd.f32 %v6528, %v6394
        %6530 = vadd.xlane.f32.xlu0 %v6529
        %v6531 = vpop.xlane.xlu0 %6530
        %v6532 = vadd.f32 %v6395, %v6396
        %v6533 = vadd.f32 %v6532, %v6397
        %v6534 = vadd.f32 %v6533, %v6398
        %6535 = vadd.xlane.f32.xlu0 %v6534
        %v6536 = vpop.xlane.xlu0 %6535
        %v6537 = vadd.f32 %v6399, %v6400
        %v6538 = vadd.f32 %v6537, %v6401
        %v6539 = vadd.f32 %v6538, %v6402
        %6540 = vadd.xlane.f32.xlu0 %v6539
        %v6541 = vpop.xlane.xlu0 %6540
        %v6542 = vadd.f32 %v6403, %v6404
        %v6543 = vadd.f32 %v6542, %v6405
        %v6544 = vadd.f32 %v6543, %v6406
        %6545 = vadd.xlane.f32.xlu0 %v6544
        %v6546 = vpop.xlane.xlu0 %6545
        %v6547 = vadd.f32 %v6407, %v6408
        %v6548 = vadd.f32 %v6547, %v6409
        %v6549 = vadd.f32 %v6548, %v6410
        %6550 = vadd.xlane.f32.xlu0 %v6549
        %v6551 = vpop.xlane.xlu0 %6550
        %v6552 = vadd.f32 %v6411, %v6412
        %v6553 = vadd.f32 %v6552, %v6413
        %v6554 = vadd.f32 %v6553, %v6414
        %6555 = vadd.xlane.f32.xlu0 %v6554
        %v6556 = vpop.xlane.xlu0 %6555
        %v6557 = vadd.f32 %v6415, %v6416
        %v6558 = vadd.f32 %v6557, %v6417
        %v6559 = vadd.f32 %v6558, %v6418
        %6560 = vadd.xlane.f32.xlu0 %v6559
        %v6561 = vpop.xlane.xlu0 %6560
        %v6562 = vadd.f32 %v6419, %v6420
        %v6563 = vadd.f32 %v6562, %v6421
        %v6564 = vadd.f32 %v6563, %v6422
        %6565 = vadd.xlane.f32.xlu0 %v6564
        %v6566 = vpop.xlane.xlu0 %6565
        %v6567 = vadd.f32 %v6423, %v6424
        %v6568 = vadd.f32 %v6567, %v6425
        %v6569 = vadd.f32 %v6568, %v6426
        %6570 = vadd.xlane.f32.xlu0 %v6569
        %v6571 = vpop.xlane.xlu0 %6570
        %v6572 = vadd.f32 %v6427, %v6428
        %v6573 = vadd.f32 %v6572, %v6429
        %v6574 = vadd.f32 %v6573, %v6430
        %6575 = vadd.xlane.f32.xlu0 %v6574
        %v6576 = vpop.xlane.xlu0 %6575
        %v6577 = vadd.f32 %v6431, %v6432
        %v6578 = vadd.f32 %v6577, %v6433
        %v6579 = vadd.f32 %v6578, %v6434
        %6580 = vadd.xlane.f32.xlu0 %v6579
        %v6581 = vpop.xlane.xlu0 %6580
        %v6582 = vadd.f32 %v6435, %v6436
        %v6583 = vadd.f32 %v6582, %v6437
        %v6584 = vadd.f32 %v6583, %v6438
        %6585 = vadd.xlane.f32.xlu0 %v6584
        %v6586 = vpop.xlane.xlu0 %6585
        %v6587 = vadd.f32 %v6439, %v6440
        %v6588 = vadd.f32 %v6587, %v6441
        %v6589 = vadd.f32 %v6588, %v6442
        %6590 = vadd.xlane.f32.xlu0 %v6589
        %v6591 = vpop.xlane.xlu0 %6590
        %v6592 = vadd.f32 %v6443, %v6444
        %v6593 = vadd.f32 %v6592, %v6445
        %v6594 = vadd.f32 %v6593, %v6446
        %6595 = vadd.xlane.f32.xlu0 %v6594
        %v6596 = vpop.xlane.xlu0 %6595
        %v6597 = vadd.f32 %v6447, %v6448
        %v6598 = vadd.f32 %v6597, %v6449
        %v6599 = vadd.f32 %v6598, %v6450
        %6600 = vadd.xlane.f32.xlu0 %v6599
        %v6601 = vpop.xlane.xlu0 %6600
        %v6602 = vadd.f32 %v6451, %v6452
        %v6603 = vadd.f32 %v6602, %v6453
        %v6604 = vadd.f32 %v6603, %v6454
        %6605 = vadd.xlane.f32.xlu0 %v6604
        %v6606 = vpop.xlane.xlu0 %6605
        %v6607 = vadd.f32 %v6455, %v6456
        %v6608 = vadd.f32 %v6607, %v6457
        %v6609 = vadd.f32 %v6608, %v6458
        %6610 = vadd.xlane.f32.xlu0 %v6609
        %v6611 = vpop.xlane.xlu0 %6610
        %v6612 = vadd.f32 %v6459, %v6460
        %v6613 = vadd.f32 %v6612, %v6461
        %v6614 = vadd.f32 %v6613, %v6462
        %6615 = vadd.xlane.f32.xlu0 %v6614
        %v6616 = vpop.xlane.xlu0 %6615
        %v6617 = vadd.f32 %v6463, %v6464
        %v6618 = vadd.f32 %v6617, %v6465
        %v6619 = vadd.f32 %v6618, %v6466
        %6620 = vadd.xlane.f32.xlu0 %v6619
        %v6621 = vpop.xlane.xlu0 %6620
        %v6622 = vadd.f32 %v6467, %v6468
        %v6623 = vadd.f32 %v6622, %v6469
        %v6624 = vadd.f32 %v6623, %v6470
        %6625 = vadd.xlane.f32.xlu0 %v6624
        %v6626 = vpop.xlane.xlu0 %6625
        %v6627 = vadd.f32 %v6471, %v6472
        %v6628 = vadd.f32 %v6627, %v6473
        %v6629 = vadd.f32 %v6628, %v6474
        %6630 = vadd.xlane.f32.xlu0 %v6629
        %v6631 = vpop.xlane.xlu0 %6630
        %v6632 = vadd.f32 %v6475, %v6476
        %v6633 = vadd.f32 %v6632, %v6477
        %v6634 = vadd.f32 %v6633, %v6478
        %6635 = vadd.xlane.f32.xlu0 %v6634
        %v6636 = vpop.xlane.xlu0 %6635
        %v6637 = vadd.f32 %v6479, %v6480
        %v6638 = vadd.f32 %v6637, %v6481
        %v6639 = vadd.f32 %v6638, %v6482
        %6640 = vadd.xlane.f32.xlu0 %v6639
        %v6641 = vpop.xlane.xlu0 %6640
        %v6642 = vadd.f32 %v6483, %v6484
        %v6643 = vadd.f32 %v6642, %v6485
        %v6644 = vadd.f32 %v6643, %v6486
        %6645 = vadd.xlane.f32.xlu0 %v6644
        %v6646 = vpop.xlane.xlu0 %6645
        %v6647 = vadd.f32 %v6359, %v6363
        %v6648 = vadd.f32 %v6647, %v6367
        %v6649 = vadd.f32 %v6648, %v6371
        %v6650 = vadd.f32 %v6649, %v6375
        %v6651 = vadd.f32 %v6650, %v6379
        %v6652 = vadd.f32 %v6651, %v6383
        %v6653 = vadd.f32 %v6652, %v6387
        %v6654 = vadd.f32 %v6653, %v6391
        %v6655 = vadd.f32 %v6654, %v6395
        %v6656 = vadd.f32 %v6655, %v6399
        %v6657 = vadd.f32 %v6656, %v6403
        %v6658 = vadd.f32 %v6657, %v6407
        %v6659 = vadd.f32 %v6658, %v6411
        %v6660 = vadd.f32 %v6659, %v6415
        %v6661 = vadd.f32 %v6660, %v6419
        %v6662 = vadd.f32 %v6661, %v6423
        %v6663 = vadd.f32 %v6662, %v6427
        %v6664 = vadd.f32 %v6663, %v6431
        %v6665 = vadd.f32 %v6664, %v6435
        %v6666 = vadd.f32 %v6665, %v6439
        %v6667 = vadd.f32 %v6666, %v6443
        %v6668 = vadd.f32 %v6667, %v6447
        %v6669 = vadd.f32 %v6668, %v6451
        %v6670 = vadd.f32 %v6669, %v6455
        %v6671 = vadd.f32 %v6670, %v6459
        %v6672 = vadd.f32 %v6671, %v6463
        %v6673 = vadd.f32 %v6672, %v6467
        %v6674 = vadd.f32 %v6673, %v6471
        %v6675 = vadd.f32 %v6674, %v6475
        %v6676 = vadd.f32 %v6675, %v6479
        %v6677 = vadd.f32 %v6676, %v6483
        %v6678 = vrot.slane %v6677, 4
        %v6679 = vadd.f32 %v6677, %v6678
        %v6680 = vrot.slane %v6679, 2
        %v6681 = vadd.f32 %v6679, %v6680
        %v6682 = vrot.slane %v6681, 1
        %v6683 = vadd.f32 %v6681, %v6682
        %v6684 = vadd.f32 %v6360, %v6364
        %v6685 = vadd.f32 %v6684, %v6368
        %v6686 = vadd.f32 %v6685, %v6372
        %v6687 = vadd.f32 %v6686, %v6376
        %v6688 = vadd.f32 %v6687, %v6380
        %v6689 = vadd.f32 %v6688, %v6384
        %v6690 = vadd.f32 %v6689, %v6388
        %v6691 = vadd.f32 %v6690, %v6392
        %v6692 = vadd.f32 %v6691, %v6396
        %v6693 = vadd.f32 %v6692, %v6400
        %v6694 = vadd.f32 %v6693, %v6404
        %v6695 = vadd.f32 %v6694, %v6408
        %v6696 = vadd.f32 %v6695, %v6412
        %v6697 = vadd.f32 %v6696, %v6416
        %v6698 = vadd.f32 %v6697, %v6420
        %v6699 = vadd.f32 %v6698, %v6424
        %v6700 = vadd.f32 %v6699, %v6428
        %v6701 = vadd.f32 %v6700, %v6432
        %v6702 = vadd.f32 %v6701, %v6436
        %v6703 = vadd.f32 %v6702, %v6440
        %v6704 = vadd.f32 %v6703, %v6444
        %v6705 = vadd.f32 %v6704, %v6448
        %v6706 = vadd.f32 %v6705, %v6452
        %v6707 = vadd.f32 %v6706, %v6456
        %v6708 = vadd.f32 %v6707, %v6460
        %v6709 = vadd.f32 %v6708, %v6464
        %v6710 = vadd.f32 %v6709, %v6468
        %v6711 = vadd.f32 %v6710, %v6472
        %v6712 = vadd.f32 %v6711, %v6476
        %v6713 = vadd.f32 %v6712, %v6480
        %v6714 = vadd.f32 %v6713, %v6484
        %v6715 = vrot.slane %v6714, 4
        %v6716 = vadd.f32 %v6714, %v6715
        %v6717 = vrot.slane %v6716, 2
        %v6718 = vadd.f32 %v6716, %v6717
        %v6719 = vrot.slane %v6718, 1
        %v6720 = vadd.f32 %v6718, %v6719
        %v6721 = vadd.f32 %v6361, %v6365
        %v6722 = vadd.f32 %v6721, %v6369
        %v6723 = vadd.f32 %v6722, %v6373
        %v6724 = vadd.f32 %v6723, %v6377
        %v6725 = vadd.f32 %v6724, %v6381
        %v6726 = vadd.f32 %v6725, %v6385
        %v6727 = vadd.f32 %v6726, %v6389
        %v6728 = vadd.f32 %v6727, %v6393
        %v6729 = vadd.f32 %v6728, %v6397
        %v6730 = vadd.f32 %v6729, %v6401
        %v6731 = vadd.f32 %v6730, %v6405
        %v6732 = vadd.f32 %v6731, %v6409
        %v6733 = vadd.f32 %v6732, %v6413
        %v6734 = vadd.f32 %v6733, %v6417
        %v6735 = vadd.f32 %v6734, %v6421
        %v6736 = vadd.f32 %v6735, %v6425
        %v6737 = vadd.f32 %v6736, %v6429
        %v6738 = vadd.f32 %v6737, %v6433
        %v6739 = vadd.f32 %v6738, %v6437
        %v6740 = vadd.f32 %v6739, %v6441
        %v6741 = vadd.f32 %v6740, %v6445
        %v6742 = vadd.f32 %v6741, %v6449
        %v6743 = vadd.f32 %v6742, %v6453
        %v6744 = vadd.f32 %v6743, %v6457
        %v6745 = vadd.f32 %v6744, %v6461
        %v6746 = vadd.f32 %v6745, %v6465
        %v6747 = vadd.f32 %v6746, %v6469
        %v6748 = vadd.f32 %v6747, %v6473
        %v6749 = vadd.f32 %v6748, %v6477
        %v6750 = vadd.f32 %v6749, %v6481
        %v6751 = vadd.f32 %v6750, %v6485
        %v6752 = vrot.slane %v6751, 4
        %v6753 = vadd.f32 %v6751, %v6752
        %v6754 = vrot.slane %v6753, 2
        %v6755 = vadd.f32 %v6753, %v6754
        %v6756 = vrot.slane %v6755, 1
        %v6757 = vadd.f32 %v6755, %v6756
        %v6758 = vadd.f32 %v6362, %v6366
        %v6759 = vadd.f32 %v6758, %v6370
        %v6760 = vadd.f32 %v6759, %v6374
        %v6761 = vadd.f32 %v6760, %v6378
        %v6762 = vadd.f32 %v6761, %v6382
        %v6763 = vadd.f32 %v6762, %v6386
        %v6764 = vadd.f32 %v6763, %v6390
        %v6765 = vadd.f32 %v6764, %v6394
        %v6766 = vadd.f32 %v6765, %v6398
        %v6767 = vadd.f32 %v6766, %v6402
        %v6768 = vadd.f32 %v6767, %v6406
        %v6769 = vadd.f32 %v6768, %v6410
        %v6770 = vadd.f32 %v6769, %v6414
        %v6771 = vadd.f32 %v6770, %v6418
        %v6772 = vadd.f32 %v6771, %v6422
        %v6773 = vadd.f32 %v6772, %v6426
        %v6774 = vadd.f32 %v6773, %v6430
        %v6775 = vadd.f32 %v6774, %v6434
        %v6776 = vadd.f32 %v6775, %v6438
        %v6777 = vadd.f32 %v6776, %v6442
        %v6778 = vadd.f32 %v6777, %v6446
        %v6779 = vadd.f32 %v6778, %v6450
        %v6780 = vadd.f32 %v6779, %v6454
        %v6781 = vadd.f32 %v6780, %v6458
        %v6782 = vadd.f32 %v6781, %v6462
        %v6783 = vadd.f32 %v6782, %v6466
        %v6784 = vadd.f32 %v6783, %v6470
        %v6785 = vadd.f32 %v6784, %v6474
        %v6786 = vadd.f32 %v6785, %v6478
        %v6787 = vadd.f32 %v6786, %v6482
        %v6788 = vadd.f32 %v6787, %v6486
        %v6789 = vrot.slane %v6788, 4
        %v6790 = vadd.f32 %v6788, %v6789
        %v6791 = vrot.slane %v6790, 2
        %v6792 = vadd.f32 %v6790, %v6791
        %v6793 = vrot.slane %v6792, 1
        %v6794 = vadd.f32 %v6792, %v6793
        %v6795 = vsel %vm431, %v6491, 0.0
        %v6796 = vsel %vm432, %v6491, 0.0
        %v6797 = vsel %vm433, %v6491, 0.0
        %v6798 = vsel %vm434, %v6491, 0.0
        %v6799 = vsel %vm435, %v6496, 0.0
        %v6800 = vsel %vm436, %v6496, 0.0
        %v6801 = vsel %vm437, %v6496, 0.0
        %v6802 = vsel %vm438, %v6496, 0.0
        %v6803 = vsel %vm439, %v6501, 0.0
        %v6804 = vsel %vm440, %v6501, 0.0
        %v6805 = vsel %vm441, %v6501, 0.0
        %v6806 = vsel %vm442, %v6501, 0.0
        %v6807 = vsel %vm443, %v6506, 0.0
        %v6808 = vsel %vm444, %v6506, 0.0
        %v6809 = vsel %vm445, %v6506, 0.0
        %v6810 = vsel %vm446, %v6506, 0.0
        %v6811 = vsel %vm447, %v6511, 0.0
        %v6812 = vsel %vm448, %v6511, 0.0
        %v6813 = vsel %vm449, %v6511, 0.0
        %v6814 = vsel %vm450, %v6511, 0.0
        %v6815 = vsel %vm451, %v6516, 0.0
        %v6816 = vsel %vm452, %v6516, 0.0
        %v6817 = vsel %vm453, %v6516, 0.0
        %v6818 = vsel %vm454, %v6516, 0.0
        %v6819 = vsel %vm455, %v6521, 0.0
        %v6820 = vsel %vm456, %v6521, 0.0
        %v6821 = vsel %vm457, %v6521, 0.0
        %v6822 = vsel %vm458, %v6521, 0.0
        %v6823 = vsel %vm459, %v6526, 0.0
        %v6824 = vsel %vm460, %v6526, 0.0
        %v6825 = vsel %vm461, %v6526, 0.0
        %v6826 = vsel %vm462, %v6526, 0.0
        %v6827 = vsel %vm463, %v6531, 0.0
        %v6828 = vsel %vm464, %v6531, 0.0
        %v6829 = vsel %vm465, %v6531, 0.0
        %v6830 = vsel %vm466, %v6531, 0.0
        %v6831 = vsel %vm467, %v6536, 0.0
        %v6832 = vsel %vm468, %v6536, 0.0
        %v6833 = vsel %vm469, %v6536, 0.0
        %v6834 = vsel %vm470, %v6536, 0.0
        %v6835 = vsel %vm471, %v6541, 0.0
        %v6836 = vsel %vm472, %v6541, 0.0
        %v6837 = vsel %vm473, %v6541, 0.0
        %v6838 = vsel %vm474, %v6541, 0.0
        %v6839 = vsel %vm475, %v6546, 0.0
        %v6840 = vsel %vm476, %v6546, 0.0
        %v6841 = vsel %vm477, %v6546, 0.0
        %v6842 = vsel %vm478, %v6546, 0.0
        %v6843 = vsel %vm479, %v6551, 0.0
        %v6844 = vsel %vm480, %v6551, 0.0
        %v6845 = vsel %vm481, %v6551, 0.0
        %v6846 = vsel %vm482, %v6551, 0.0
        %v6847 = vsel %vm483, %v6556, 0.0
        %v6848 = vsel %vm484, %v6556, 0.0
        %v6849 = vsel %vm485, %v6556, 0.0
        %v6850 = vsel %vm486, %v6556, 0.0
        %v6851 = vsel %vm487, %v6561, 0.0
        %v6852 = vsel %vm488, %v6561, 0.0
        %v6853 = vsel %vm489, %v6561, 0.0
        %v6854 = vsel %vm490, %v6561, 0.0
        %v6855 = vsel %vm491, %v6566, 0.0
        %v6856 = vsel %vm492, %v6566, 0.0
        %v6857 = vsel %vm493, %v6566, 0.0
        %v6858 = vsel %vm494, %v6566, 0.0
        %v6859 = vsel %vm495, %v6571, 0.0
        %v6860 = vsel %vm496, %v6571, 0.0
        %v6861 = vsel %vm497, %v6571, 0.0
        %v6862 = vsel %vm498, %v6571, 0.0
        %v6863 = vsel %vm499, %v6576, 0.0
        %v6864 = vsel %vm500, %v6576, 0.0
        %v6865 = vsel %vm501, %v6576, 0.0
        %v6866 = vsel %vm502, %v6576, 0.0
        %v6867 = vsel %vm503, %v6581, 0.0
        %v6868 = vsel %vm504, %v6581, 0.0
        %v6869 = vsel %vm505, %v6581, 0.0
        %v6870 = vsel %vm506, %v6581, 0.0
        %v6871 = vsel %vm507, %v6586, 0.0
        %v6872 = vsel %vm508, %v6586, 0.0
        %v6873 = vsel %vm509, %v6586, 0.0
        %v6874 = vsel %vm510, %v6586, 0.0
        %v6875 = vsel %vm511, %v6591, 0.0
        %v6876 = vsel %vm512, %v6591, 0.0
        %v6877 = vsel %vm513, %v6591, 0.0
        %v6878 = vsel %vm514, %v6591, 0.0
        %v6879 = vsel %vm515, %v6596, 0.0
        %v6880 = vsel %vm516, %v6596, 0.0
        %v6881 = vsel %vm517, %v6596, 0.0
        %v6882 = vsel %vm518, %v6596, 0.0
        %v6883 = vsel %vm519, %v6601, 0.0
        %v6884 = vsel %vm520, %v6601, 0.0
        %v6885 = vsel %vm521, %v6601, 0.0
        %v6886 = vsel %vm522, %v6601, 0.0
        %v6887 = vsel %vm523, %v6606, 0.0
        %v6888 = vsel %vm524, %v6606, 0.0
        %v6889 = vsel %vm525, %v6606, 0.0
        %v6890 = vsel %vm526, %v6606, 0.0
        %v6891 = vsel %vm527, %v6611, 0.0
        %v6892 = vsel %vm528, %v6611, 0.0
        %v6893 = vsel %vm529, %v6611, 0.0
        %v6894 = vsel %vm530, %v6611, 0.0
        %v6895 = vsel %vm531, %v6616, 0.0
        %v6896 = vsel %vm532, %v6616, 0.0
        %v6897 = vsel %vm533, %v6616, 0.0
        %v6898 = vsel %vm534, %v6616, 0.0
        %v6899 = vsel %vm535, %v6621, 0.0
        %v6900 = vsel %vm536, %v6621, 0.0
        %v6901 = vsel %vm537, %v6621, 0.0
        %v6902 = vsel %vm538, %v6621, 0.0
        %v6903 = vsel %vm539, %v6626, 0.0
        %v6904 = vsel %vm540, %v6626, 0.0
        %v6905 = vsel %vm541, %v6626, 0.0
        %v6906 = vsel %vm542, %v6626, 0.0
        %v6907 = vsel %vm543, %v6631, 0.0
        %v6908 = vsel %vm544, %v6631, 0.0
        %v6909 = vsel %vm545, %v6631, 0.0
        %v6910 = vsel %vm546, %v6631, 0.0
        %v6911 = vsel %vm547, %v6636, 0.0
        %v6912 = vsel %vm548, %v6636, 0.0
        %v6913 = vsel %vm549, %v6636, 0.0
        %v6914 = vsel %vm550, %v6636, 0.0
        %v6915 = vsel %vm551, %v6641, 0.0
        %v6916 = vsel %vm552, %v6641, 0.0
        %v6917 = vsel %vm553, %v6641, 0.0
        %v6918 = vsel %vm554, %v6641, 0.0
        %v6919 = vsel %vm555, %v6646, 0.0
        %v6920 = vsel %vm556, %v6646, 0.0
        %v6921 = vsel %vm557, %v6646, 0.0
        %v6922 = vsel %vm558, %v6646, 0.0
        %v6923 = vadd.f32 %v6795, %v6799
        %v6924 = vadd.f32 %v6923, %v6803
        %v6925 = vadd.f32 %v6924, %v6807
        %v6926 = vadd.f32 %v6925, %v6811
        %v6927 = vadd.f32 %v6926, %v6815
        %v6928 = vadd.f32 %v6927, %v6819
        %v6929 = vadd.f32 %v6928, %v6823
        %v6930 = vadd.f32 %v6929, %v6827
        %v6931 = vadd.f32 %v6930, %v6831
        %v6932 = vadd.f32 %v6931, %v6835
        %v6933 = vadd.f32 %v6932, %v6839
        %v6934 = vadd.f32 %v6933, %v6843
        %v6935 = vadd.f32 %v6934, %v6847
        %v6936 = vadd.f32 %v6935, %v6851
        %v6937 = vadd.f32 %v6936, %v6855
        %v6938 = vadd.f32 %v6937, %v6859
        %v6939 = vadd.f32 %v6938, %v6863
        %v6940 = vadd.f32 %v6939, %v6867
        %v6941 = vadd.f32 %v6940, %v6871
        %v6942 = vadd.f32 %v6941, %v6875
        %v6943 = vadd.f32 %v6942, %v6879
        %v6944 = vadd.f32 %v6943, %v6883
        %v6945 = vadd.f32 %v6944, %v6887
        %v6946 = vadd.f32 %v6945, %v6891
        %v6947 = vadd.f32 %v6946, %v6895
        %v6948 = vadd.f32 %v6947, %v6899
        %v6949 = vadd.f32 %v6948, %v6903
        %v6950 = vadd.f32 %v6949, %v6907
        %v6951 = vadd.f32 %v6950, %v6911
        %v6952 = vadd.f32 %v6951, %v6915
        %v6953 = vadd.f32 %v6952, %v6919
        %v6954 = vrot.slane %v6953, 4
        %v6955 = vadd.f32 %v6953, %v6954
        %v6956 = vrot.slane %v6955, 2
        %v6957 = vadd.f32 %v6955, %v6956
        %v6958 = vrot.slane %v6957, 1
        %v6959 = vadd.f32 %v6957, %v6958
        %v6960 = vadd.f32 %v6796, %v6800
        %v6961 = vadd.f32 %v6960, %v6804
        %v6962 = vadd.f32 %v6961, %v6808
        %v6963 = vadd.f32 %v6962, %v6812
        %v6964 = vadd.f32 %v6963, %v6816
        %v6965 = vadd.f32 %v6964, %v6820
        %v6966 = vadd.f32 %v6965, %v6824
        %v6967 = vadd.f32 %v6966, %v6828
        %v6968 = vadd.f32 %v6967, %v6832
        %v6969 = vadd.f32 %v6968, %v6836
        %v6970 = vadd.f32 %v6969, %v6840
        %v6971 = vadd.f32 %v6970, %v6844
        %v6972 = vadd.f32 %v6971, %v6848
        %v6973 = vadd.f32 %v6972, %v6852
        %v6974 = vadd.f32 %v6973, %v6856
        %v6975 = vadd.f32 %v6974, %v6860
        %v6976 = vadd.f32 %v6975, %v6864
        %v6977 = vadd.f32 %v6976, %v6868
        %v6978 = vadd.f32 %v6977, %v6872
        %v6979 = vadd.f32 %v6978, %v6876
        %v6980 = vadd.f32 %v6979, %v6880
        %v6981 = vadd.f32 %v6980, %v6884
        %v6982 = vadd.f32 %v6981, %v6888
        %v6983 = vadd.f32 %v6982, %v6892
        %v6984 = vadd.f32 %v6983, %v6896
        %v6985 = vadd.f32 %v6984, %v6900
        %v6986 = vadd.f32 %v6985, %v6904
        %v6987 = vadd.f32 %v6986, %v6908
        %v6988 = vadd.f32 %v6987, %v6912
        %v6989 = vadd.f32 %v6988, %v6916
        %v6990 = vadd.f32 %v6989, %v6920
        %v6991 = vrot.slane %v6990, 4
        %v6992 = vadd.f32 %v6990, %v6991
        %v6993 = vrot.slane %v6992, 2
        %v6994 = vadd.f32 %v6992, %v6993
        %v6995 = vrot.slane %v6994, 1
        %v6996 = vadd.f32 %v6994, %v6995
        %v6997 = vadd.f32 %v6797, %v6801
        %v6998 = vadd.f32 %v6997, %v6805
        %v6999 = vadd.f32 %v6998, %v6809
        %v7000 = vadd.f32 %v6999, %v6813
        %v7001 = vadd.f32 %v7000, %v6817
        %v7002 = vadd.f32 %v7001, %v6821
        %v7003 = vadd.f32 %v7002, %v6825
        %v7004 = vadd.f32 %v7003, %v6829
        %v7005 = vadd.f32 %v7004, %v6833
        %v7006 = vadd.f32 %v7005, %v6837
        %v7007 = vadd.f32 %v7006, %v6841
        %v7008 = vadd.f32 %v7007, %v6845
        %v7009 = vadd.f32 %v7008, %v6849
        %v7010 = vadd.f32 %v7009, %v6853
        %v7011 = vadd.f32 %v7010, %v6857
        %v7012 = vadd.f32 %v7011, %v6861
        %v7013 = vadd.f32 %v7012, %v6865
        %v7014 = vadd.f32 %v7013, %v6869
        %v7015 = vadd.f32 %v7014, %v6873
        %v7016 = vadd.f32 %v7015, %v6877
        %v7017 = vadd.f32 %v7016, %v6881
        %v7018 = vadd.f32 %v7017, %v6885
        %v7019 = vadd.f32 %v7018, %v6889
        %v7020 = vadd.f32 %v7019, %v6893
        %v7021 = vadd.f32 %v7020, %v6897
        %v7022 = vadd.f32 %v7021, %v6901
        %v7023 = vadd.f32 %v7022, %v6905
        %v7024 = vadd.f32 %v7023, %v6909
        %v7025 = vadd.f32 %v7024, %v6913
        %v7026 = vadd.f32 %v7025, %v6917
        %v7027 = vadd.f32 %v7026, %v6921
        %v7028 = vrot.slane %v7027, 4
        %v7029 = vadd.f32 %v7027, %v7028
        %v7030 = vrot.slane %v7029, 2
        %v7031 = vadd.f32 %v7029, %v7030
        %v7032 = vrot.slane %v7031, 1
        %v7033 = vadd.f32 %v7031, %v7032
        %v7034 = vadd.f32 %v6798, %v6802
        %v7035 = vadd.f32 %v7034, %v6806
        %v7036 = vadd.f32 %v7035, %v6810
        %v7037 = vadd.f32 %v7036, %v6814
        %v7038 = vadd.f32 %v7037, %v6818
        %v7039 = vadd.f32 %v7038, %v6822
        %v7040 = vadd.f32 %v7039, %v6826
        %v7041 = vadd.f32 %v7040, %v6830
        %v7042 = vadd.f32 %v7041, %v6834
        %v7043 = vadd.f32 %v7042, %v6838
        %v7044 = vadd.f32 %v7043, %v6842
        %v7045 = vadd.f32 %v7044, %v6846
        %v7046 = vadd.f32 %v7045, %v6850
        %v7047 = vadd.f32 %v7046, %v6854
        %v7048 = vadd.f32 %v7047, %v6858
        %v7049 = vadd.f32 %v7048, %v6862
        %v7050 = vadd.f32 %v7049, %v6866
        %v7051 = vadd.f32 %v7050, %v6870
        %v7052 = vadd.f32 %v7051, %v6874
        %v7053 = vadd.f32 %v7052, %v6878
        %v7054 = vadd.f32 %v7053, %v6882
        %v7055 = vadd.f32 %v7054, %v6886
        %v7056 = vadd.f32 %v7055, %v6890
        %v7057 = vadd.f32 %v7056, %v6894
        %v7058 = vadd.f32 %v7057, %v6898
        %v7059 = vadd.f32 %v7058, %v6902
        %v7060 = vadd.f32 %v7059, %v6906
        %v7061 = vadd.f32 %v7060, %v6910
        %v7062 = vadd.f32 %v7061, %v6914
        %v7063 = vadd.f32 %v7062, %v6918
        %v7064 = vadd.f32 %v7063, %v6922
        %v7065 = vrot.slane %v7064, 4
        %v7066 = vadd.f32 %v7064, %v7065
        %v7067 = vrot.slane %v7066, 2
        %v7068 = vadd.f32 %v7066, %v7067
        %v7069 = vrot.slane %v7068, 1
        %v7070 = vadd.f32 %v7068, %v7069
        %v7071 = vrcp.pop %v6959
        %v7072 = vmul.f32 %v6959, %v7071
        %v7073 = vsub.f32 1.0, %v7072
        %v7074 = vmul.f32 %v7071, %v7073
        %v7075 = vadd.f32 %v7071, %v7074
        %vm7076 = vweird.f32 %v6959
        %vm7077 = vweird.f32 %v7071
        %vm7078 = vmor %vm7076, %vm7077
        %v7079 = vsel %vm7078, %v7071, %v7075
        %v7080 = vand.u32 2147483647, %v6959
        %vm7081 = vcmp.eq.f32.partialorder %v7080, 8.507059e+37
        %v7082 = vand.u32 %v6959, 2147483648
        %v7083 = vor.u32 1.1754944e-38, %v7082
        %v7084 = vsel %vm7081, %v7083, %v7079
        %v7085 = vmul.f32 %v6683, %v7084
        %v7086 = vrcp.pop %v6996
        %v7087 = vmul.f32 %v6996, %v7086
        %v7088 = vsub.f32 1.0, %v7087
        %v7089 = vmul.f32 %v7086, %v7088
        %v7090 = vadd.f32 %v7086, %v7089
        %vm7091 = vweird.f32 %v6996
        %vm7092 = vweird.f32 %v7086
        %vm7093 = vmor %vm7091, %vm7092
        %v7094 = vsel %vm7093, %v7086, %v7090
        %v7095 = vand.u32 2147483647, %v6996
        %vm7096 = vcmp.eq.f32.partialorder %v7095, 8.507059e+37
        %v7097 = vand.u32 %v6996, 2147483648
        %v7098 = vor.u32 1.1754944e-38, %v7097
        %v7099 = vsel %vm7096, %v7098, %v7094
        %v7100 = vmul.f32 %v6720, %v7099
        %v7101 = vrcp.pop %v7033
        %v7102 = vmul.f32 %v7033, %v7101
        %v7103 = vsub.f32 1.0, %v7102
        %v7104 = vmul.f32 %v7101, %v7103
        %v7105 = vadd.f32 %v7101, %v7104
        %vm7106 = vweird.f32 %v7033
        %vm7107 = vweird.f32 %v7101
        %vm7108 = vmor %vm7106, %vm7107
        %v7109 = vsel %vm7108, %v7101, %v7105
        %v7110 = vand.u32 2147483647, %v7033
        %vm7111 = vcmp.eq.f32.partialorder %v7110, 8.507059e+37
        %v7112 = vand.u32 %v7033, 2147483648
        %v7113 = vor.u32 1.1754944e-38, %v7112
        %v7114 = vsel %vm7111, %v7113, %v7109
        %v7115 = vmul.f32 %v6757, %v7114
        %v7116 = vrcp.pop %v7070
        %v7117 = vmul.f32 %v7070, %v7116
        %v7118 = vsub.f32 1.0, %v7117
        %v7119 = vmul.f32 %v7116, %v7118
        %v7120 = vadd.f32 %v7116, %v7119
        %vm7121 = vweird.f32 %v7070
        %vm7122 = vweird.f32 %v7116
        %vm7123 = vmor %vm7121, %vm7122
        %v7124 = vsel %vm7123, %v7116, %v7120
        %v7125 = vand.u32 2147483647, %v7070
        %vm7126 = vcmp.eq.f32.partialorder %v7125, 8.507059e+37
        %v7127 = vand.u32 %v7070, 2147483648
        %v7128 = vor.u32 1.1754944e-38, %v7127
        %v7129 = vsel %vm7126, %v7128, %v7124
        %v7130 = vmul.f32 %v6794, %v7129
        %v7131 = vadd.f32 %v7085, 0.5
        %v7132 = vadd.f32 %v7100, 0.5
        %v7133 = vadd.f32 %v7115, 0.5
        %v7134 = vadd.f32 %v7130, 0.5
        %v7139 = vrot.slane %v7132, 7
        %v7140 = vrot.slane %v7133, 6
        %v7141 = vrot.slane %v7134, 5
        %vm7142 = vcmask 1040384
        %v7143 = vsel %vm7142, %v7131, %v7139
        %vm7144 = vcmask 1042434
        %v7145 = vsel %vm7144, %v7140, %v7141
        %vm7146 = vcmask 1041408
        %v7147 = vsel %vm7146, %v7143, %v7145
        %v7149 = vlaneseq
        %vm7150 = vcmp.ge.s32.totalorder %v7149, 0
        %vm7151 = vcmp.lt.s32.totalorder %v7149, 512
        %vm7152 = vmand %vm7150, %vm7151
        %7153 = vst.msk [vmem:[%s244] sm:$0xf] %vm7152, %v7147
        %s7154 = sand.u32 %s147, 1
        %s7155 = scalar_lea.sflag [#allocation3], %s7154
        %s7156 = sand.u32 %s147, 1
        %s7157 = smul.addr %s7156, 4
        %s7158 = scalar_lea.vmem [#allocation2], %s7157
        // Predicated region
        $region41: #{tpu_custom_call.1} parent=39 // pred_check
          %p7159 = pneg %p157
        $region42: #{tpu_custom_call.1} parent=39 // pred_check_branch
          %7161 = sbr.rel (%p7159) target = $region44
        $region43: #{tpu_custom_call.1} parent=39 // pred_region
          %7163 = vsyncadd %s7155, 0
          %s7164 = smul.addr %s19, 4
          %s7165 = scalar_lea.hbm %s5, %s7164
          %s7167 = sshll.u32 %s7158, 4
          %s7168 = int_to_ptr.vmem [resolvable:$true] %s7167
          %s7169 = sshll.u32 %s7165, 4
          %s7170 = int_to_ptr.hbm [resolvable:$true] %s7169
          %7172 = dma.vmem_to_hbm [thread:$0]  %s7168, 64, %s7170, %s7155
        $region44: #{tpu_custom_call.1} parent=39 // pred_fallthru
          _
      $region40: #{tpu_custom_call.1} parent=5 // pred_fallthru
        _
      %p7173 = scmp.le.s32.totalorder 2, %s14
      // Predicated region
      $region45: #{tpu_custom_call.1} parent=5 // pred_check
        %p7174 = pneg %p7173
      $region46: #{tpu_custom_call.1} parent=5 // pred_check_branch
        %7176 = sbr.rel (%p7174) target = $region48
      $region47: #{tpu_custom_call.1} parent=5 // pred_region
        %s7177 = ssub.s32 %s14, 2
        // Predicated region
        $region49: #{tpu_custom_call.1} parent=47 // pred_check
          %p7178 = pneg %p163
        $region50: #{tpu_custom_call.1} parent=47 // pred_check_branch
          %7180 = sbr.rel (%p7178) target = $region52
        $region51: #{tpu_custom_call.1} parent=47 // pred_region
          %s7181 = sand.u32 %s148, 1
          %s7182 = scalar_lea.sflag [#allocation3], %s7181
          %s7183 = sand.u32 %s148, 1
          %s7184 = smul.addr %s7183, 4
          %s7185 = scalar_lea.vmem [#allocation2], %s7184
          %7187 = dma.done %s7182, 64
        $region52: #{tpu_custom_call.1} parent=47 // pred_fallthru
          _
      $region48: #{tpu_custom_call.1} parent=5 // pred_fallthru
        _
    $region6: #{tpu_custom_call.1} parent=1 // loop_footer
      %s18 = sadd.s32 1, %s14
    $region7: #{tpu_custom_call.1} parent=1 // loop_footer_branch
      %13 = sbr.rel target = $region3
    $region8: #{tpu_custom_call.1} parent=1 // loop_exit
      _
    %7188 = vsyncpa [#allocation3], 1
    %s7189 = scalar_lea.sflag [#allocation3], 1
    %7190 = vsyncpa %s7189, 1

</llo_original>
